<compile_context>
chip_gen: v7x
topology: tpu7x:2x2x1
jax: 0.10.0
libtpu: 0.0.40
codegen_flags: <defaults>
</compile_context>

<pallas_src>
import jax
import jax.numpy as jnp
from jax import lax
from jax.experimental import pallas as pl
from jax.experimental.pallas import tpu as pltpu

LRELU_SLOPE = 0.01   # nn.LeakyReLU() default; Conv_3's alpha arg is never used
BN_EPS = 1e-5


def _dconv2_kernel(x_ref, w1_ref, g1_ref, be1_ref, w2_ref, g2_ref, be2_ref,
                   out_ref, xpad_ref):
    """Fused: [conv3x3(s=1,p=1) -> BN(train-mode stats) -> LeakyReLU] x 2, + x."""
    N, H, W, C = x_ref.shape
    NHW = N * H * W

    def conv_bn_lrelu(w9, gamma, beta):
        # xpad_ref holds the zero-padded (N, H+2, W+2, C) input of this layer.
        xpad = xpad_ref[...]
        # im2col: 9 shifted windows concatenated once -> ONE MXU matmul, K = 9*C.
        cols = [xpad[:, dy:dy + H, dx:dx + W, :].reshape(NHW, C)
                for dy in range(3) for dx in range(3)]          # (dy, dx, ci) order
        patches = jnp.concatenate(cols, axis=1)                 # (NHW, 9C)
        acc = jnp.dot(patches, w9, preferred_element_type=jnp.float32)  # (NHW, C)

        # BatchNorm2d (training-mode batch stats over N,H,W), folded into a
        # per-channel scale/shift; single pass: sum and sum-of-squares.
        inv_n = jnp.float32(1.0 / NHW)
        mean = jnp.sum(acc, axis=0, keepdims=True) * inv_n            # (1, C)
        ex2 = jnp.sum(acc * acc, axis=0, keepdims=True) * inv_n       # (1, C)
        var = jnp.maximum(ex2 - mean * mean, 0.0)
        scale = gamma * lax.rsqrt(var + BN_EPS)                       # (1, C)
        shift = beta - mean * scale                                   # (1, C)
        y = acc * scale + shift
        # LeakyReLU: max(y, a*y)
        return jnp.maximum(y, LRELU_SLOPE * y)                        # (NHW, C)

    # ---- layer 1: zero the padded scratch once (border reused by layer 2) ----
    xpad_ref[...] = jnp.zeros(xpad_ref.shape, xpad_ref.dtype)
    x = x_ref[...]
    xpad_ref[:, 1:H + 1, 1:W + 1, :] = x
    e1 = conv_bn_lrelu(w1_ref[...], g1_ref[...], be1_ref[...])

    # ---- layer 2: e1 stays resident in VMEM (no HBM round trip) ----
    xpad_ref[:, 1:H + 1, 1:W + 1, :] = e1.reshape(N, H, W, C)
    e2 = conv_bn_lrelu(w2_ref[...], g2_ref[...], be2_ref[...])

    # residual: e2 + x (module adds the input only after layer 2)
    out_ref[...] = (e2 + x.reshape(NHW, C)).astype(out_ref.dtype)


def dconv2_forward(x_nchw, params):
    N, C, H, W = x_nchw.shape
    x = jnp.transpose(x_nchw, (0, 2, 3, 1)).astype(jnp.float32)   # NCHW -> NHWC
    # HWIO (3,3,Cin,Cout) -> (9*Cin, Cout), flattened as (dy, dx, ci): free XLA reshape
    w1 = params["w1"].reshape(9 * C, C)
    w2 = params["w2"].reshape(9 * C, C)
    vmem = pl.BlockSpec(memory_space=pltpu.MemorySpace.VMEM)
    out2d = pl.pallas_call(
        _dconv2_kernel,
        out_shape=jax.ShapeDtypeStruct((N * H * W, C), jnp.float32),
        in_specs=[vmem] * 7,
        out_specs=vmem,
        scratch_shapes=[pltpu.VMEM((N, H + 2, W + 2, C), jnp.float32)],  # padded layer input
    )(x, w1, params["g1"].reshape(1, C), params["be1"].reshape(1, C),
      w2, params["g2"].reshape(1, C), params["be2"].reshape(1, C))
    # back to NCHW (layout plumbing left to XLA outside the kernel)
    return jnp.transpose(out2d.reshape(N, H, W, C), (0, 3, 1, 2))


def init_params(key, channels):
    # Deterministic synthetic parameters (shapes match nn.Conv2d(C,C,3) + BatchNorm2d(C)).
    # Conv biases b1/b2 exist in the module but are exactly cancelled by the
    # training-mode BN mean subtraction, so the kernel never reads them (the
    # pure-JAX reference below uses them to verify that claim).
    ks = jax.random.split(key, 8)

    def conv_w(k):
        return 0.1 * jax.random.normal(k, (3, 3, channels, channels), jnp.float32)  # HWIO

    return dict(
        w1=conv_w(ks[0]),
        b1=0.05 * jax.random.normal(ks[1], (channels,), jnp.float32),
        g1=1.0 + 0.1 * jax.random.normal(ks[2], (channels,), jnp.float32),
        be1=0.05 * jax.random.normal(ks[3], (channels,), jnp.float32),
        w2=conv_w(ks[4]),
        b2=0.05 * jax.random.normal(ks[5], (channels,), jnp.float32),
        g2=1.0 + 0.1 * jax.random.normal(ks[6], (channels,), jnp.float32),
        be2=0.05 * jax.random.normal(ks[7], (channels,), jnp.float32),
    )


def _reference_forward(x_nchw, params):
    """Pure-JAX/XLA reference of the PyTorch module (includes the conv biases)."""
    x = jnp.transpose(x_nchw, (0, 2, 3, 1)).astype(jnp.float32)

    def layer(h, w, b, g, be):
        y = lax.conv_general_dilated(h, w, (1, 1), "SAME",
                                     dimension_numbers=("NHWC", "HWIO", "NHWC"))
        y = y + b
        m = jnp.mean(y, axis=(0, 1, 2), keepdims=True)
        v = jnp.mean((y - m) ** 2, axis=(0, 1, 2), keepdims=True)
        y = (y - m) / jnp.sqrt(v + BN_EPS) * g + be
        return jnp.where(y >= 0, y, LRELU_SLOPE * y)

    e1 = layer(x, params["w1"], params["b1"], params["g1"], params["be1"])
    e2 = layer(e1, params["w2"], params["b2"], params["g2"], params["be2"])
    return jnp.transpose(e2 + x, (0, 3, 1, 2))


if __name__ == "__main__":
    key = jax.random.PRNGKey(0)
    kx, kp = jax.random.split(key)
    N, C, H, W = 2, 4, 16, 16
    x = jax.random.normal(kx, (N, C, H, W), jnp.float32)
    params = init_params(kp, C)

    out = jax.jit(dconv2_forward)(x, params)
    jax.block_until_ready(out)
    assert out.shape == (N, C, H, W) and out.dtype == jnp.float32

    ref = _reference_forward(x, params)
    err = float(jnp.max(jnp.abs(out - ref)))
    assert jnp.allclose(out, ref, rtol=2e-3, atol=2e-3), f"max abs err {err}"
    print("KERNEL_OK")
</pallas_src>

<mosaic_0001>
module attributes {stable_mosaic.version = 11 : i64} {
  func.func @_dconv2_kernel(%arg0: memref<2x16x16x4xf32, #tpu.memory_space<vmem>>, %arg1: memref<36x4xf32, #tpu.memory_space<vmem>>, %arg2: memref<1x4xf32, #tpu.memory_space<vmem>>, %arg3: memref<1x4xf32, #tpu.memory_space<vmem>>, %arg4: memref<36x4xf32, #tpu.memory_space<vmem>>, %arg5: memref<1x4xf32, #tpu.memory_space<vmem>>, %arg6: memref<1x4xf32, #tpu.memory_space<vmem>>, %arg7: memref<512x4xf32, #tpu.memory_space<vmem>>, %arg8: memref<2x18x18x4xf32, #tpu.memory_space<vmem>>) attributes {dimension_semantics = [], scalar_prefetch = 0 : i64, scratch_operands = 1 : i64, tpu.core_type = #tpu.core_type<tc>} {
    %cst = arith.constant 0.000000e+00 : f32
    %0 = vector.broadcast %cst : f32 to vector<2x18x18x4xf32>
    %c0 = arith.constant 0 : index
    %c0_0 = arith.constant 0 : index
    %c0_1 = arith.constant 0 : index
    %c0_2 = arith.constant 0 : index
    %1 = vector.load %arg8[%c0, %c0_0, %c0_1, %c0_2] : memref<2x18x18x4xf32, #tpu.memory_space<vmem>>, vector<2x18x18x4xf32>
    tpu.vector_store %arg8[%c0, %c0_0, %c0_1, %c0_2], %0 {strides = array<i32>} : memref<2x18x18x4xf32, #tpu.memory_space<vmem>>, vector<2x18x18x4xf32>,
    %c0_3 = arith.constant 0 : index
    %c0_4 = arith.constant 0 : index
    %c0_5 = arith.constant 0 : index
    %c0_6 = arith.constant 0 : index
    %2 = vector.load %arg0[%c0_3, %c0_4, %c0_5, %c0_6] : memref<2x16x16x4xf32, #tpu.memory_space<vmem>>, vector<2x16x16x4xf32>
    %c0_7 = arith.constant 0 : index
    %c1 = arith.constant 1 : index
    %c1_8 = arith.constant 1 : index
    %c0_9 = arith.constant 0 : index
    %3 = vector.load %arg8[%c0_7, %c1, %c1_8, %c0_9] : memref<2x18x18x4xf32, #tpu.memory_space<vmem>>, vector<2x16x16x4xf32>
    tpu.vector_store %arg8[%c0_7, %c1, %c1_8, %c0_9], %2 {strides = array<i32>} : memref<2x18x18x4xf32, #tpu.memory_space<vmem>>, vector<2x16x16x4xf32>,
    %c0_10 = arith.constant 0 : index
    %c0_11 = arith.constant 0 : index
    %4 = vector.load %arg1[%c0_10, %c0_11] : memref<36x4xf32, #tpu.memory_space<vmem>>, vector<36x4xf32>
    %c0_12 = arith.constant 0 : index
    %c0_13 = arith.constant 0 : index
    %5 = vector.load %arg2[%c0_12, %c0_13] : memref<1x4xf32, #tpu.memory_space<vmem>>, vector<1x4xf32>
    %c0_14 = arith.constant 0 : index
    %c0_15 = arith.constant 0 : index
    %6 = vector.load %arg3[%c0_14, %c0_15] : memref<1x4xf32, #tpu.memory_space<vmem>>, vector<1x4xf32>
    %c0_16 = arith.constant 0 : index
    %c0_17 = arith.constant 0 : index
    %c0_18 = arith.constant 0 : index
    %c0_19 = arith.constant 0 : index
    %7 = vector.load %arg8[%c0_16, %c0_17, %c0_18, %c0_19] : memref<2x18x18x4xf32, #tpu.memory_space<vmem>>, vector<2x18x18x4xf32>
    %8 = vector.extract_strided_slice %7 {offsets = [0, 0, 0, 0], sizes = [2, 16, 16, 4], strides = [1, 1, 1, 1]} : vector<2x18x18x4xf32> to vector<2x16x16x4xf32>
    %9 = vector.shape_cast %8 : vector<2x16x16x4xf32> to vector<512x4xf32>
    %10 = vector.extract_strided_slice %7 {offsets = [0, 0, 1, 0], sizes = [2, 16, 16, 4], strides = [1, 1, 1, 1]} : vector<2x18x18x4xf32> to vector<2x16x16x4xf32>
    %11 = vector.shape_cast %10 : vector<2x16x16x4xf32> to vector<512x4xf32>
    %12 = vector.extract_strided_slice %7 {offsets = [0, 0, 2, 0], sizes = [2, 16, 16, 4], strides = [1, 1, 1, 1]} : vector<2x18x18x4xf32> to vector<2x16x16x4xf32>
    %13 = vector.shape_cast %12 : vector<2x16x16x4xf32> to vector<512x4xf32>
    %14 = vector.extract_strided_slice %7 {offsets = [0, 1, 0, 0], sizes = [2, 16, 16, 4], strides = [1, 1, 1, 1]} : vector<2x18x18x4xf32> to vector<2x16x16x4xf32>
    %15 = vector.shape_cast %14 : vector<2x16x16x4xf32> to vector<512x4xf32>
    %16 = vector.extract_strided_slice %7 {offsets = [0, 1, 1, 0], sizes = [2, 16, 16, 4], strides = [1, 1, 1, 1]} : vector<2x18x18x4xf32> to vector<2x16x16x4xf32>
    %17 = vector.shape_cast %16 : vector<2x16x16x4xf32> to vector<512x4xf32>
    %18 = vector.extract_strided_slice %7 {offsets = [0, 1, 2, 0], sizes = [2, 16, 16, 4], strides = [1, 1, 1, 1]} : vector<2x18x18x4xf32> to vector<2x16x16x4xf32>
    %19 = vector.shape_cast %18 : vector<2x16x16x4xf32> to vector<512x4xf32>
    %20 = vector.extract_strided_slice %7 {offsets = [0, 2, 0, 0], sizes = [2, 16, 16, 4], strides = [1, 1, 1, 1]} : vector<2x18x18x4xf32> to vector<2x16x16x4xf32>
    %21 = vector.shape_cast %20 : vector<2x16x16x4xf32> to vector<512x4xf32>
    %22 = vector.extract_strided_slice %7 {offsets = [0, 2, 1, 0], sizes = [2, 16, 16, 4], strides = [1, 1, 1, 1]} : vector<2x18x18x4xf32> to vector<2x16x16x4xf32>
    %23 = vector.shape_cast %22 : vector<2x16x16x4xf32> to vector<512x4xf32>
    %24 = vector.extract_strided_slice %7 {offsets = [0, 2, 2, 0], sizes = [2, 16, 16, 4], strides = [1, 1, 1, 1]} : vector<2x18x18x4xf32> to vector<2x16x16x4xf32>
    %25 = vector.shape_cast %24 : vector<2x16x16x4xf32> to vector<512x4xf32>
    %26 = tpu.concatenate %9, %11, %13, %15, %17, %19, %21, %23, %25 in 1 : vector<512x4xf32>, vector<512x4xf32>, vector<512x4xf32>, vector<512x4xf32>, vector<512x4xf32>, vector<512x4xf32>, vector<512x4xf32>, vector<512x4xf32>, vector<512x4xf32> -> vector<512x36xf32>
    %cst_20 = arith.constant dense<0.000000e+00> : vector<512x4xf32>
    %27 = tpu.matmul %26, %4, %cst_20 {dimension_numbers = #tpu.dot_dimension_numbers<[1], [0], [0], [1], [0, 0, 1, 1], [], []>} : vector<512x36xf32>, vector<36x4xf32>, vector<512x4xf32> -> vector<512x4xf32>
    %cst_21 = arith.constant dense<0.000000e+00> : vector<4xf32>
    %28 = vector.multi_reduction <add>, %27, %cst_21 [0] : vector<512x4xf32> to vector<4xf32>
    %29 = vector.shape_cast %28 : vector<4xf32> to vector<1x4xf32>
    %cst_22 = arith.constant 0.001953125 : f32
    %30 = vector.broadcast %cst_22 : f32 to vector<1x4xf32>
    %31 = arith.mulf %29, %30 : vector<1x4xf32>
    %32 = arith.mulf %27, %27 : vector<512x4xf32>
    %cst_23 = arith.constant dense<0.000000e+00> : vector<4xf32>
    %33 = vector.multi_reduction <add>, %32, %cst_23 [0] : vector<512x4xf32> to vector<4xf32>
    %34 = vector.shape_cast %33 : vector<4xf32> to vector<1x4xf32>
    %cst_24 = arith.constant 0.001953125 : f32
    %35 = vector.broadcast %cst_24 : f32 to vector<1x4xf32>
    %36 = arith.mulf %34, %35 : vector<1x4xf32>
    %37 = arith.mulf %31, %31 : vector<1x4xf32>
    %38 = arith.subf %36, %37 : vector<1x4xf32>
    %cst_25 = arith.constant 0.000000e+00 : f32
    %39 = vector.broadcast %cst_25 : f32 to vector<1x4xf32>
    %40 = arith.maximumf %38, %39 : vector<1x4xf32>
    %cst_26 = arith.constant 9.99999974E-6 : f32
    %41 = vector.broadcast %cst_26 : f32 to vector<1x4xf32>
    %42 = arith.addf %40, %41 : vector<1x4xf32>
    %43 = math.rsqrt %42 : vector<1x4xf32>
    %44 = arith.mulf %5, %43 : vector<1x4xf32>
    %45 = arith.mulf %31, %44 : vector<1x4xf32>
    %46 = arith.subf %6, %45 : vector<1x4xf32>
    %47 = vector.broadcast %44 : vector<1x4xf32> to vector<512x4xf32>
    %48 = arith.mulf %27, %47 : vector<512x4xf32>
    %49 = vector.broadcast %46 : vector<1x4xf32> to vector<512x4xf32>
    %50 = arith.addf %48, %49 : vector<512x4xf32>
    %cst_27 = arith.constant 0.00999999977 : f32
    %51 = vector.broadcast %cst_27 : f32 to vector<512x4xf32>
    %52 = arith.mulf %51, %50 : vector<512x4xf32>
    %53 = arith.maximumf %50, %52 : vector<512x4xf32>
    %54 = vector.shape_cast %53 : vector<512x4xf32> to vector<2x16x16x4xf32>
    %c0_28 = arith.constant 0 : index
    %c1_29 = arith.constant 1 : index
    %c1_30 = arith.constant 1 : index
    %c0_31 = arith.constant 0 : index
    %55 = vector.load %arg8[%c0_28, %c1_29, %c1_30, %c0_31] : memref<2x18x18x4xf32, #tpu.memory_space<vmem>>, vector<2x16x16x4xf32>
    tpu.vector_store %arg8[%c0_28, %c1_29, %c1_30, %c0_31], %54 {strides = array<i32>} : memref<2x18x18x4xf32, #tpu.memory_space<vmem>>, vector<2x16x16x4xf32>,
    %c0_32 = arith.constant 0 : index
    %c0_33 = arith.constant 0 : index
    %56 = vector.load %arg4[%c0_32, %c0_33] : memref<36x4xf32, #tpu.memory_space<vmem>>, vector<36x4xf32>
    %c0_34 = arith.constant 0 : index
    %c0_35 = arith.constant 0 : index
    %57 = vector.load %arg5[%c0_34, %c0_35] : memref<1x4xf32, #tpu.memory_space<vmem>>, vector<1x4xf32>
    %c0_36 = arith.constant 0 : index
    %c0_37 = arith.constant 0 : index
    %58 = vector.load %arg6[%c0_36, %c0_37] : memref<1x4xf32, #tpu.memory_space<vmem>>, vector<1x4xf32>
    %c0_38 = arith.constant 0 : index
    %c0_39 = arith.constant 0 : index
    %c0_40 = arith.constant 0 : index
    %c0_41 = arith.constant 0 : index
    %59 = vector.load %arg8[%c0_38, %c0_39, %c0_40, %c0_41] : memref<2x18x18x4xf32, #tpu.memory_space<vmem>>, vector<2x18x18x4xf32>
    %60 = vector.extract_strided_slice %59 {offsets = [0, 0, 0, 0], sizes = [2, 16, 16, 4], strides = [1, 1, 1, 1]} : vector<2x18x18x4xf32> to vector<2x16x16x4xf32>
    %61 = vector.shape_cast %60 : vector<2x16x16x4xf32> to vector<512x4xf32>
    %62 = vector.extract_strided_slice %59 {offsets = [0, 0, 1, 0], sizes = [2, 16, 16, 4], strides = [1, 1, 1, 1]} : vector<2x18x18x4xf32> to vector<2x16x16x4xf32>
    %63 = vector.shape_cast %62 : vector<2x16x16x4xf32> to vector<512x4xf32>
    %64 = vector.extract_strided_slice %59 {offsets = [0, 0, 2, 0], sizes = [2, 16, 16, 4], strides = [1, 1, 1, 1]} : vector<2x18x18x4xf32> to vector<2x16x16x4xf32>
    %65 = vector.shape_cast %64 : vector<2x16x16x4xf32> to vector<512x4xf32>
    %66 = vector.extract_strided_slice %59 {offsets = [0, 1, 0, 0], sizes = [2, 16, 16, 4], strides = [1, 1, 1, 1]} : vector<2x18x18x4xf32> to vector<2x16x16x4xf32>
    %67 = vector.shape_cast %66 : vector<2x16x16x4xf32> to vector<512x4xf32>
    %68 = vector.extract_strided_slice %59 {offsets = [0, 1, 1, 0], sizes = [2, 16, 16, 4], strides = [1, 1, 1, 1]} : vector<2x18x18x4xf32> to vector<2x16x16x4xf32>
    %69 = vector.shape_cast %68 : vector<2x16x16x4xf32> to vector<512x4xf32>
    %70 = vector.extract_strided_slice %59 {offsets = [0, 1, 2, 0], sizes = [2, 16, 16, 4], strides = [1, 1, 1, 1]} : vector<2x18x18x4xf32> to vector<2x16x16x4xf32>
    %71 = vector.shape_cast %70 : vector<2x16x16x4xf32> to vector<512x4xf32>
    %72 = vector.extract_strided_slice %59 {offsets = [0, 2, 0, 0], sizes = [2, 16, 16, 4], strides = [1, 1, 1, 1]} : vector<2x18x18x4xf32> to vector<2x16x16x4xf32>
    %73 = vector.shape_cast %72 : vector<2x16x16x4xf32> to vector<512x4xf32>
    %74 = vector.extract_strided_slice %59 {offsets = [0, 2, 1, 0], sizes = [2, 16, 16, 4], strides = [1, 1, 1, 1]} : vector<2x18x18x4xf32> to vector<2x16x16x4xf32>
    %75 = vector.shape_cast %74 : vector<2x16x16x4xf32> to vector<512x4xf32>
    %76 = vector.extract_strided_slice %59 {offsets = [0, 2, 2, 0], sizes = [2, 16, 16, 4], strides = [1, 1, 1, 1]} : vector<2x18x18x4xf32> to vector<2x16x16x4xf32>
    %77 = vector.shape_cast %76 : vector<2x16x16x4xf32> to vector<512x4xf32>
    %78 = tpu.concatenate %61, %63, %65, %67, %69, %71, %73, %75, %77 in 1 : vector<512x4xf32>, vector<512x4xf32>, vector<512x4xf32>, vector<512x4xf32>, vector<512x4xf32>, vector<512x4xf32>, vector<512x4xf32>, vector<512x4xf32>, vector<512x4xf32> -> vector<512x36xf32>
    %cst_42 = arith.constant dense<0.000000e+00> : vector<512x4xf32>
    %79 = tpu.matmul %78, %56, %cst_42 {dimension_numbers = #tpu.dot_dimension_numbers<[1], [0], [0], [1], [0, 0, 1, 1], [], []>} : vector<512x36xf32>, vector<36x4xf32>, vector<512x4xf32> -> vector<512x4xf32>
    %cst_43 = arith.constant dense<0.000000e+00> : vector<4xf32>
    %80 = vector.multi_reduction <add>, %79, %cst_43 [0] : vector<512x4xf32> to vector<4xf32>
    %81 = vector.shape_cast %80 : vector<4xf32> to vector<1x4xf32>
    %cst_44 = arith.constant 0.001953125 : f32
    %82 = vector.broadcast %cst_44 : f32 to vector<1x4xf32>
    %83 = arith.mulf %81, %82 : vector<1x4xf32>
    %84 = arith.mulf %79, %79 : vector<512x4xf32>
    %cst_45 = arith.constant dense<0.000000e+00> : vector<4xf32>
    %85 = vector.multi_reduction <add>, %84, %cst_45 [0] : vector<512x4xf32> to vector<4xf32>
    %86 = vector.shape_cast %85 : vector<4xf32> to vector<1x4xf32>
    %cst_46 = arith.constant 0.001953125 : f32
    %87 = vector.broadcast %cst_46 : f32 to vector<1x4xf32>
    %88 = arith.mulf %86, %87 : vector<1x4xf32>
    %89 = arith.mulf %83, %83 : vector<1x4xf32>
    %90 = arith.subf %88, %89 : vector<1x4xf32>
    %cst_47 = arith.constant 0.000000e+00 : f32
    %91 = vector.broadcast %cst_47 : f32 to vector<1x4xf32>
    %92 = arith.maximumf %90, %91 : vector<1x4xf32>
    %cst_48 = arith.constant 9.99999974E-6 : f32
    %93 = vector.broadcast %cst_48 : f32 to vector<1x4xf32>
    %94 = arith.addf %92, %93 : vector<1x4xf32>
    %95 = math.rsqrt %94 : vector<1x4xf32>
    %96 = arith.mulf %57, %95 : vector<1x4xf32>
    %97 = arith.mulf %83, %96 : vector<1x4xf32>
    %98 = arith.subf %58, %97 : vector<1x4xf32>
    %99 = vector.broadcast %96 : vector<1x4xf32> to vector<512x4xf32>
    %100 = arith.mulf %79, %99 : vector<512x4xf32>
    %101 = vector.broadcast %98 : vector<1x4xf32> to vector<512x4xf32>
    %102 = arith.addf %100, %101 : vector<512x4xf32>
    %cst_49 = arith.constant 0.00999999977 : f32
    %103 = vector.broadcast %cst_49 : f32 to vector<512x4xf32>
    %104 = arith.mulf %103, %102 : vector<512x4xf32>
    %105 = arith.maximumf %102, %104 : vector<512x4xf32>
    %106 = vector.shape_cast %2 : vector<2x16x16x4xf32> to vector<512x4xf32>
    %107 = arith.addf %105, %106 : vector<512x4xf32>
    %c0_50 = arith.constant 0 : index
    %c0_51 = arith.constant 0 : index
    %108 = vector.load %arg7[%c0_50, %c0_51] : memref<512x4xf32, #tpu.memory_space<vmem>>, vector<512x4xf32>
    tpu.vector_store %arg7[%c0_50, %c0_51], %107 {strides = array<i32>} : memref<512x4xf32, #tpu.memory_space<vmem>>, vector<512x4xf32>,
    return
  }
}

</mosaic_0001>

<llo_original>
// kernel: dconv2_forward.1
$region0: #{dconv2_forward.1}
  #allocation0 [shape = 'u32[]', space=smem, size = 0x4, offset = 0x4, fixed_abs, tag = 'smem constant byte address 0x4 - core index']
  #allocation1 [shape = 'u32[144,128]{1,0:T(1,128)}', space=vmem, size = 0x12000, scoped, tag = 'internal scratch']
  #allocation2 [shape = 'f32[2,18,18,4]{3,2,1,0:T(8,128)}', space=vmem, size = 0x6c000, scoped, tag = 'scratch operand']
  %s0 = inlined_call_operand.vmem [shape: f32[2,16,16,4], index: 0, kind: input, shape index: {}]
  %s1 = inlined_call_operand.vmem [shape: f32[36,4], index: 1, kind: input, shape index: {}]
  %s2 = inlined_call_operand.vmem [shape: f32[1,4], index: 2, kind: input, shape index: {}]
  %s3 = inlined_call_operand.vmem [shape: f32[1,4], index: 3, kind: input, shape index: {}]
  %s4 = inlined_call_operand.vmem [shape: f32[36,4], index: 4, kind: input, shape index: {}]
  %s5 = inlined_call_operand.vmem [shape: f32[1,4], index: 5, kind: input, shape index: {}]
  %s6 = inlined_call_operand.vmem [shape: f32[1,4], index: 6, kind: input, shape index: {}]
  %s7 = inlined_call_operand.vmem [shape: f32[512,4], index: 7, kind: output, shape index: {}]
  %s8 = sld [smem:[#allocation0]]
  $region38: #{dconv2_forward.1} parent=0
    _
  %s10 = ssub.s32 1, %s8
  %s11 = scalar_select 0, %s10, %s8
  // Predicated region
  $region2: #{dconv2_forward.1} parent=0 // pred_check
    _
  $region3: #{dconv2_forward.1} parent=0 // pred_check_branch
    %13 = sbr.rel (0) target = $region5
  $region4: #{dconv2_forward.1} parent=0 // pred_region
    _
  $region5: #{dconv2_forward.1} parent=0 // pred_fallthru
    _
  // Predicated region
  $region6: #{dconv2_forward.1} parent=0 // pred_check
    _
  $region7: #{dconv2_forward.1} parent=0 // pred_check_branch
    %15 = sbr.rel (0) target = $region9
  $region8: #{dconv2_forward.1} parent=0 // pred_region
    _
  $region9: #{dconv2_forward.1} parent=0 // pred_fallthru
    _
  // Predicated region
  $region10: #{dconv2_forward.1} parent=0 // pred_check
    _
  $region11: #{dconv2_forward.1} parent=0 // pred_check_branch
    %17 = sbr.rel (0) target = $region13
  $region12: #{dconv2_forward.1} parent=0 // pred_region
    _
  $region13: #{dconv2_forward.1} parent=0 // pred_fallthru
    _
  // Predicated region
  $region14: #{dconv2_forward.1} parent=0 // pred_check
    _
  $region15: #{dconv2_forward.1} parent=0 // pred_check_branch
    %19 = sbr.rel (0) target = $region17
  $region16: #{dconv2_forward.1} parent=0 // pred_region
    _
  $region17: #{dconv2_forward.1} parent=0 // pred_fallthru
    _
  // Predicated region
  $region18: #{dconv2_forward.1} parent=0 // pred_check
    _
  $region19: #{dconv2_forward.1} parent=0 // pred_check_branch
    %21 = sbr.rel (0) target = $region21
  $region20: #{dconv2_forward.1} parent=0 // pred_region
    _
  $region21: #{dconv2_forward.1} parent=0 // pred_fallthru
    _
  // Predicated region
  $region22: #{dconv2_forward.1} parent=0 // pred_check
    _
  $region23: #{dconv2_forward.1} parent=0 // pred_check_branch
    %23 = sbr.rel (0) target = $region25
  $region24: #{dconv2_forward.1} parent=0 // pred_region
    _
  $region25: #{dconv2_forward.1} parent=0 // pred_fallthru
    _
  // Predicated region
  $region26: #{dconv2_forward.1} parent=0 // pred_check
    _
  $region27: #{dconv2_forward.1} parent=0 // pred_check_branch
    %25 = sbr.rel (0) target = $region29
  $region28: #{dconv2_forward.1} parent=0 // pred_region
    _
  $region29: #{dconv2_forward.1} parent=0 // pred_fallthru
    _
  %vm26 = vcmask 31744
  %27 = vst.msk [vmem:[#allocation2] sm:$0xff] %vm26, 0.0
  %28 = vst.msk [vmem:[#allocation2 + $0x8] sm:$0xff] %vm26, 0.0
  %vm29 = vcmask 25600
  %30 = vst.msk [vmem:[#allocation2 + $0x10] sm:$0x3] %vm29, 0.0
  %31 = vst.msk [vmem:[#allocation2 + $0x18] sm:$0xff] %vm26, 0.0
  %32 = vst.msk [vmem:[#allocation2 + $0x20] sm:$0xff] %vm26, 0.0
  %33 = vst.msk [vmem:[#allocation2 + $0x28] sm:$0x3] %vm29, 0.0
  %34 = vst.msk [vmem:[#allocation2 + $0x30] sm:$0xff] %vm26, 0.0
  %35 = vst.msk [vmem:[#allocation2 + $0x38] sm:$0xff] %vm26, 0.0
  %36 = vst.msk [vmem:[#allocation2 + $0x40] sm:$0x3] %vm29, 0.0
  %37 = vst.msk [vmem:[#allocation2 + $0x48] sm:$0xff] %vm26, 0.0
  %38 = vst.msk [vmem:[#allocation2 + $0x50] sm:$0xff] %vm26, 0.0
  %39 = vst.msk [vmem:[#allocation2 + $0x58] sm:$0x3] %vm29, 0.0
  %40 = vst.msk [vmem:[#allocation2 + $0x60] sm:$0xff] %vm26, 0.0
  %41 = vst.msk [vmem:[#allocation2 + $0x68] sm:$0xff] %vm26, 0.0
  %42 = vst.msk [vmem:[#allocation2 + $0x70] sm:$0x3] %vm29, 0.0
  %43 = vst.msk [vmem:[#allocation2 + $0x78] sm:$0xff] %vm26, 0.0
  %44 = vst.msk [vmem:[#allocation2 + $0x80] sm:$0xff] %vm26, 0.0
  %45 = vst.msk [vmem:[#allocation2 + $0x88] sm:$0x3] %vm29, 0.0
  %46 = vst.msk [vmem:[#allocation2 + $0x90] sm:$0xff] %vm26, 0.0
  %47 = vst.msk [vmem:[#allocation2 + $0x98] sm:$0xff] %vm26, 0.0
  %48 = vst.msk [vmem:[#allocation2 + $0xa0] sm:$0x3] %vm29, 0.0
  %49 = vst.msk [vmem:[#allocation2 + $0xa8] sm:$0xff] %vm26, 0.0
  %50 = vst.msk [vmem:[#allocation2 + $0xb0] sm:$0xff] %vm26, 0.0
  %51 = vst.msk [vmem:[#allocation2 + $0xb8] sm:$0x3] %vm29, 0.0
  %52 = vst.msk [vmem:[#allocation2 + $0xc0] sm:$0xff] %vm26, 0.0
  %53 = vst.msk [vmem:[#allocation2 + $0xc8] sm:$0xff] %vm26, 0.0
  %54 = vst.msk [vmem:[#allocation2 + $0xd0] sm:$0x3] %vm29, 0.0
  %55 = vst.msk [vmem:[#allocation2 + $0xd8] sm:$0xff] %vm26, 0.0
  %56 = vst.msk [vmem:[#allocation2 + $0xe0] sm:$0xff] %vm26, 0.0
  %57 = vst.msk [vmem:[#allocation2 + $0xe8] sm:$0x3] %vm29, 0.0
  %58 = vst.msk [vmem:[#allocation2 + $0xf0] sm:$0xff] %vm26, 0.0
  %59 = vst.msk [vmem:[#allocation2 + $0xf8] sm:$0xff] %vm26, 0.0
  %60 = vst.msk [vmem:[#allocation2 + $0x100] sm:$0x3] %vm29, 0.0
  %61 = vst.msk [vmem:[#allocation2 + $0x108] sm:$0xff] %vm26, 0.0
  %62 = vst.msk [vmem:[#allocation2 + $0x110] sm:$0xff] %vm26, 0.0
  %63 = vst.msk [vmem:[#allocation2 + $0x118] sm:$0x3] %vm29, 0.0
  %64 = vst.msk [vmem:[#allocation2 + $0x120] sm:$0xff] %vm26, 0.0
  %65 = vst.msk [vmem:[#allocation2 + $0x128] sm:$0xff] %vm26, 0.0
  %66 = vst.msk [vmem:[#allocation2 + $0x130] sm:$0x3] %vm29, 0.0
  %67 = vst.msk [vmem:[#allocation2 + $0x138] sm:$0xff] %vm26, 0.0
  %68 = vst.msk [vmem:[#allocation2 + $0x140] sm:$0xff] %vm26, 0.0
  %69 = vst.msk [vmem:[#allocation2 + $0x148] sm:$0x3] %vm29, 0.0
  %70 = vst.msk [vmem:[#allocation2 + $0x150] sm:$0xff] %vm26, 0.0
  %71 = vst.msk [vmem:[#allocation2 + $0x158] sm:$0xff] %vm26, 0.0
  %72 = vst.msk [vmem:[#allocation2 + $0x160] sm:$0x3] %vm29, 0.0
  %73 = vst.msk [vmem:[#allocation2 + $0x168] sm:$0xff] %vm26, 0.0
  %74 = vst.msk [vmem:[#allocation2 + $0x170] sm:$0xff] %vm26, 0.0
  %75 = vst.msk [vmem:[#allocation2 + $0x178] sm:$0x3] %vm29, 0.0
  %76 = vst.msk [vmem:[#allocation2 + $0x180] sm:$0xff] %vm26, 0.0
  %77 = vst.msk [vmem:[#allocation2 + $0x188] sm:$0xff] %vm26, 0.0
  %78 = vst.msk [vmem:[#allocation2 + $0x190] sm:$0x3] %vm29, 0.0
  %79 = vst.msk [vmem:[#allocation2 + $0x198] sm:$0xff] %vm26, 0.0
  %80 = vst.msk [vmem:[#allocation2 + $0x1a0] sm:$0xff] %vm26, 0.0
  %81 = vst.msk [vmem:[#allocation2 + $0x1a8] sm:$0x3] %vm29, 0.0
  %82 = vst.msk [vmem:[#allocation2 + $0x1b0] sm:$0xff] %vm26, 0.0
  %83 = vst.msk [vmem:[#allocation2 + $0x1b8] sm:$0xff] %vm26, 0.0
  %84 = vst.msk [vmem:[#allocation2 + $0x1c0] sm:$0x3] %vm29, 0.0
  %85 = vst.msk [vmem:[#allocation2 + $0x1c8] sm:$0xff] %vm26, 0.0
  %86 = vst.msk [vmem:[#allocation2 + $0x1d0] sm:$0xff] %vm26, 0.0
  %87 = vst.msk [vmem:[#allocation2 + $0x1d8] sm:$0x3] %vm29, 0.0
  %88 = vst.msk [vmem:[#allocation2 + $0x1e0] sm:$0xff] %vm26, 0.0
  %89 = vst.msk [vmem:[#allocation2 + $0x1e8] sm:$0xff] %vm26, 0.0
  %90 = vst.msk [vmem:[#allocation2 + $0x1f0] sm:$0x3] %vm29, 0.0
  %91 = vst.msk [vmem:[#allocation2 + $0x1f8] sm:$0xff] %vm26, 0.0
  %92 = vst.msk [vmem:[#allocation2 + $0x200] sm:$0xff] %vm26, 0.0
  %93 = vst.msk [vmem:[#allocation2 + $0x208] sm:$0x3] %vm29, 0.0
  %94 = vst.msk [vmem:[#allocation2 + $0x210] sm:$0xff] %vm26, 0.0
  %95 = vst.msk [vmem:[#allocation2 + $0x218] sm:$0xff] %vm26, 0.0
  %96 = vst.msk [vmem:[#allocation2 + $0x220] sm:$0x3] %vm29, 0.0
  %97 = vst.msk [vmem:[#allocation2 + $0x228] sm:$0xff] %vm26, 0.0
  %98 = vst.msk [vmem:[#allocation2 + $0x230] sm:$0xff] %vm26, 0.0
  %99 = vst.msk [vmem:[#allocation2 + $0x238] sm:$0x3] %vm29, 0.0
  %100 = vst.msk [vmem:[#allocation2 + $0x240] sm:$0xff] %vm26, 0.0
  %101 = vst.msk [vmem:[#allocation2 + $0x248] sm:$0xff] %vm26, 0.0
  %102 = vst.msk [vmem:[#allocation2 + $0x250] sm:$0x3] %vm29, 0.0
  %103 = vst.msk [vmem:[#allocation2 + $0x258] sm:$0xff] %vm26, 0.0
  %104 = vst.msk [vmem:[#allocation2 + $0x260] sm:$0xff] %vm26, 0.0
  %105 = vst.msk [vmem:[#allocation2 + $0x268] sm:$0x3] %vm29, 0.0
  %106 = vst.msk [vmem:[#allocation2 + $0x270] sm:$0xff] %vm26, 0.0
  %107 = vst.msk [vmem:[#allocation2 + $0x278] sm:$0xff] %vm26, 0.0
  %108 = vst.msk [vmem:[#allocation2 + $0x280] sm:$0x3] %vm29, 0.0
  %109 = vst.msk [vmem:[#allocation2 + $0x288] sm:$0xff] %vm26, 0.0
  %110 = vst.msk [vmem:[#allocation2 + $0x290] sm:$0xff] %vm26, 0.0
  %111 = vst.msk [vmem:[#allocation2 + $0x298] sm:$0x3] %vm29, 0.0
  %112 = vst.msk [vmem:[#allocation2 + $0x2a0] sm:$0xff] %vm26, 0.0
  %113 = vst.msk [vmem:[#allocation2 + $0x2a8] sm:$0xff] %vm26, 0.0
  %114 = vst.msk [vmem:[#allocation2 + $0x2b0] sm:$0x3] %vm29, 0.0
  %115 = vst.msk [vmem:[#allocation2 + $0x2b8] sm:$0xff] %vm26, 0.0
  %116 = vst.msk [vmem:[#allocation2 + $0x2c0] sm:$0xff] %vm26, 0.0
  %117 = vst.msk [vmem:[#allocation2 + $0x2c8] sm:$0x3] %vm29, 0.0
  %118 = vst.msk [vmem:[#allocation2 + $0x2d0] sm:$0xff] %vm26, 0.0
  %119 = vst.msk [vmem:[#allocation2 + $0x2d8] sm:$0xff] %vm26, 0.0
  %120 = vst.msk [vmem:[#allocation2 + $0x2e0] sm:$0x3] %vm29, 0.0
  %121 = vst.msk [vmem:[#allocation2 + $0x2e8] sm:$0xff] %vm26, 0.0
  %122 = vst.msk [vmem:[#allocation2 + $0x2f0] sm:$0xff] %vm26, 0.0
  %123 = vst.msk [vmem:[#allocation2 + $0x2f8] sm:$0x3] %vm29, 0.0
  %124 = vst.msk [vmem:[#allocation2 + $0x300] sm:$0xff] %vm26, 0.0
  %125 = vst.msk [vmem:[#allocation2 + $0x308] sm:$0xff] %vm26, 0.0
  %126 = vst.msk [vmem:[#allocation2 + $0x310] sm:$0x3] %vm29, 0.0
  %127 = vst.msk [vmem:[#allocation2 + $0x318] sm:$0xff] %vm26, 0.0
  %128 = vst.msk [vmem:[#allocation2 + $0x320] sm:$0xff] %vm26, 0.0
  %129 = vst.msk [vmem:[#allocation2 + $0x328] sm:$0x3] %vm29, 0.0
  %130 = vst.msk [vmem:[#allocation2 + $0x330] sm:$0xff] %vm26, 0.0
  %131 = vst.msk [vmem:[#allocation2 + $0x338] sm:$0xff] %vm26, 0.0
  %132 = vst.msk [vmem:[#allocation2 + $0x340] sm:$0x3] %vm29, 0.0
  %133 = vst.msk [vmem:[#allocation2 + $0x348] sm:$0xff] %vm26, 0.0
  %134 = vst.msk [vmem:[#allocation2 + $0x350] sm:$0xff] %vm26, 0.0
  %135 = vst.msk [vmem:[#allocation2 + $0x358] sm:$0x3] %vm29, 0.0
  %v136 = vld [vmem:[%s0] sm:$0xff]
  %v137 = vld [vmem:[%s0 + $0x8] sm:$0xff]
  %v138 = vld [vmem:[%s0 + $0x10] sm:$0xff]
  %v139 = vld [vmem:[%s0 + $0x18] sm:$0xff]
  %v140 = vld [vmem:[%s0 + $0x20] sm:$0xff]
  %v141 = vld [vmem:[%s0 + $0x28] sm:$0xff]
  %v142 = vld [vmem:[%s0 + $0x30] sm:$0xff]
  %v143 = vld [vmem:[%s0 + $0x38] sm:$0xff]
  %v144 = vld [vmem:[%s0 + $0x40] sm:$0xff]
  %v145 = vld [vmem:[%s0 + $0x48] sm:$0xff]
  %v146 = vld [vmem:[%s0 + $0x50] sm:$0xff]
  %v147 = vld [vmem:[%s0 + $0x58] sm:$0xff]
  %v148 = vld [vmem:[%s0 + $0x60] sm:$0xff]
  %v149 = vld [vmem:[%s0 + $0x68] sm:$0xff]
  %v150 = vld [vmem:[%s0 + $0x70] sm:$0xff]
  %v151 = vld [vmem:[%s0 + $0x78] sm:$0xff]
  %v152 = vld [vmem:[%s0 + $0x80] sm:$0xff]
  %v153 = vld [vmem:[%s0 + $0x88] sm:$0xff]
  %v154 = vld [vmem:[%s0 + $0x90] sm:$0xff]
  %v155 = vld [vmem:[%s0 + $0x98] sm:$0xff]
  %v156 = vld [vmem:[%s0 + $0xa0] sm:$0xff]
  %v157 = vld [vmem:[%s0 + $0xa8] sm:$0xff]
  %v158 = vld [vmem:[%s0 + $0xb0] sm:$0xff]
  %v159 = vld [vmem:[%s0 + $0xb8] sm:$0xff]
  %v160 = vld [vmem:[%s0 + $0xc0] sm:$0xff]
  %v161 = vld [vmem:[%s0 + $0xc8] sm:$0xff]
  %v162 = vld [vmem:[%s0 + $0xd0] sm:$0xff]
  %v163 = vld [vmem:[%s0 + $0xd8] sm:$0xff]
  %v164 = vld [vmem:[%s0 + $0xe0] sm:$0xff]
  %v165 = vld [vmem:[%s0 + $0xe8] sm:$0xff]
  %v166 = vld [vmem:[%s0 + $0xf0] sm:$0xff]
  %v167 = vld [vmem:[%s0 + $0xf8] sm:$0xff]
  %v168 = vld [vmem:[%s0 + $0x100] sm:$0xff]
  %v169 = vld [vmem:[%s0 + $0x108] sm:$0xff]
  %v170 = vld [vmem:[%s0 + $0x110] sm:$0xff]
  %v171 = vld [vmem:[%s0 + $0x118] sm:$0xff]
  %v172 = vld [vmem:[%s0 + $0x120] sm:$0xff]
  %v173 = vld [vmem:[%s0 + $0x128] sm:$0xff]
  %v174 = vld [vmem:[%s0 + $0x130] sm:$0xff]
  %v175 = vld [vmem:[%s0 + $0x138] sm:$0xff]
  %v176 = vld [vmem:[%s0 + $0x140] sm:$0xff]
  %v177 = vld [vmem:[%s0 + $0x148] sm:$0xff]
  %v178 = vld [vmem:[%s0 + $0x150] sm:$0xff]
  %v179 = vld [vmem:[%s0 + $0x158] sm:$0xff]
  %v180 = vld [vmem:[%s0 + $0x160] sm:$0xff]
  %v181 = vld [vmem:[%s0 + $0x168] sm:$0xff]
  %v182 = vld [vmem:[%s0 + $0x170] sm:$0xff]
  %v183 = vld [vmem:[%s0 + $0x178] sm:$0xff]
  %v184 = vld [vmem:[%s0 + $0x180] sm:$0xff]
  %v185 = vld [vmem:[%s0 + $0x188] sm:$0xff]
  %v186 = vld [vmem:[%s0 + $0x190] sm:$0xff]
  %v187 = vld [vmem:[%s0 + $0x198] sm:$0xff]
  %v188 = vld [vmem:[%s0 + $0x1a0] sm:$0xff]
  %v189 = vld [vmem:[%s0 + $0x1a8] sm:$0xff]
  %v190 = vld [vmem:[%s0 + $0x1b0] sm:$0xff]
  %v191 = vld [vmem:[%s0 + $0x1b8] sm:$0xff]
  %v192 = vld [vmem:[%s0 + $0x1c0] sm:$0xff]
  %v193 = vld [vmem:[%s0 + $0x1c8] sm:$0xff]
  %v194 = vld [vmem:[%s0 + $0x1d0] sm:$0xff]
  %v195 = vld [vmem:[%s0 + $0x1d8] sm:$0xff]
  %v196 = vld [vmem:[%s0 + $0x1e0] sm:$0xff]
  %v197 = vld [vmem:[%s0 + $0x1e8] sm:$0xff]
  %v198 = vld [vmem:[%s0 + $0x1f0] sm:$0xff]
  %v199 = vld [vmem:[%s0 + $0x1f8] sm:$0xff]
  %s200 = scalar_lea.vmem [#allocation2], 24
  %201 = vst.msk [vmem:[%s200 + $0x1] sm:$0xff] %vm26, %v136
  %202 = vst.msk [vmem:[%s200 + $0x9] sm:$0xff] %vm26, %v137
  %203 = vst.msk [vmem:[%s200 + $0x19] sm:$0xff] %vm26, %v138
  %204 = vst.msk [vmem:[%s200 + $0x21] sm:$0xff] %vm26, %v139
  %205 = vst.msk [vmem:[%s200 + $0x31] sm:$0xff] %vm26, %v140
  %206 = vst.msk [vmem:[%s200 + $0x39] sm:$0xff] %vm26, %v141
  %207 = vst.msk [vmem:[%s200 + $0x49] sm:$0xff] %vm26, %v142
  %208 = vst.msk [vmem:[%s200 + $0x51] sm:$0xff] %vm26, %v143
  %209 = vst.msk [vmem:[%s200 + $0x61] sm:$0xff] %vm26, %v144
  %210 = vst.msk [vmem:[%s200 + $0x69] sm:$0xff] %vm26, %v145
  %211 = vst.msk [vmem:[%s200 + $0x79] sm:$0xff] %vm26, %v146
  %212 = vst.msk [vmem:[%s200 + $0x81] sm:$0xff] %vm26, %v147
  %213 = vst.msk [vmem:[%s200 + $0x91] sm:$0xff] %vm26, %v148
  %214 = vst.msk [vmem:[%s200 + $0x99] sm:$0xff] %vm26, %v149
  %215 = vst.msk [vmem:[%s200 + $0xa9] sm:$0xff] %vm26, %v150
  %216 = vst.msk [vmem:[%s200 + $0xb1] sm:$0xff] %vm26, %v151
  %217 = vst.msk [vmem:[%s200 + $0xc1] sm:$0xff] %vm26, %v152
  %218 = vst.msk [vmem:[%s200 + $0xc9] sm:$0xff] %vm26, %v153
  %219 = vst.msk [vmem:[%s200 + $0xd9] sm:$0xff] %vm26, %v154
  %220 = vst.msk [vmem:[%s200 + $0xe1] sm:$0xff] %vm26, %v155
  %221 = vst.msk [vmem:[%s200 + $0xf1] sm:$0xff] %vm26, %v156
  %222 = vst.msk [vmem:[%s200 + $0xf9] sm:$0xff] %vm26, %v157
  %223 = vst.msk [vmem:[%s200 + $0x109] sm:$0xff] %vm26, %v158
  %224 = vst.msk [vmem:[%s200 + $0x111] sm:$0xff] %vm26, %v159
  %225 = vst.msk [vmem:[%s200 + $0x121] sm:$0xff] %vm26, %v160
  %226 = vst.msk [vmem:[%s200 + $0x129] sm:$0xff] %vm26, %v161
  %227 = vst.msk [vmem:[%s200 + $0x139] sm:$0xff] %vm26, %v162
  %228 = vst.msk [vmem:[%s200 + $0x141] sm:$0xff] %vm26, %v163
  %229 = vst.msk [vmem:[%s200 + $0x151] sm:$0xff] %vm26, %v164
  %230 = vst.msk [vmem:[%s200 + $0x159] sm:$0xff] %vm26, %v165
  %231 = vst.msk [vmem:[%s200 + $0x169] sm:$0xff] %vm26, %v166
  %232 = vst.msk [vmem:[%s200 + $0x171] sm:$0xff] %vm26, %v167
  %233 = vst.msk [vmem:[%s200 + $0x1b1] sm:$0xff] %vm26, %v168
  %234 = vst.msk [vmem:[%s200 + $0x1b9] sm:$0xff] %vm26, %v169
  %235 = vst.msk [vmem:[%s200 + $0x1c9] sm:$0xff] %vm26, %v170
  %236 = vst.msk [vmem:[%s200 + $0x1d1] sm:$0xff] %vm26, %v171
  %237 = vst.msk [vmem:[%s200 + $0x1e1] sm:$0xff] %vm26, %v172
  %238 = vst.msk [vmem:[%s200 + $0x1e9] sm:$0xff] %vm26, %v173
  %239 = vst.msk [vmem:[%s200 + $0x1f9] sm:$0xff] %vm26, %v174
  %240 = vst.msk [vmem:[%s200 + $0x201] sm:$0xff] %vm26, %v175
  %241 = vst.msk [vmem:[%s200 + $0x211] sm:$0xff] %vm26, %v176
  %242 = vst.msk [vmem:[%s200 + $0x219] sm:$0xff] %vm26, %v177
  %243 = vst.msk [vmem:[%s200 + $0x229] sm:$0xff] %vm26, %v178
  %244 = vst.msk [vmem:[%s200 + $0x231] sm:$0xff] %vm26, %v179
  %245 = vst.msk [vmem:[%s200 + $0x241] sm:$0xff] %vm26, %v180
  %246 = vst.msk [vmem:[%s200 + $0x249] sm:$0xff] %vm26, %v181
  %247 = vst.msk [vmem:[%s200 + $0x259] sm:$0xff] %vm26, %v182
  %248 = vst.msk [vmem:[%s200 + $0x261] sm:$0xff] %vm26, %v183
  %249 = vst.msk [vmem:[%s200 + $0x271] sm:$0xff] %vm26, %v184
  %250 = vst.msk [vmem:[%s200 + $0x279] sm:$0xff] %vm26, %v185
  %251 = vst.msk [vmem:[%s200 + $0x289] sm:$0xff] %vm26, %v186
  %252 = vst.msk [vmem:[%s200 + $0x291] sm:$0xff] %vm26, %v187
  %253 = vst.msk [vmem:[%s200 + $0x2a1] sm:$0xff] %vm26, %v188
  %254 = vst.msk [vmem:[%s200 + $0x2a9] sm:$0xff] %vm26, %v189
  %255 = vst.msk [vmem:[%s200 + $0x2b9] sm:$0xff] %vm26, %v190
  %256 = vst.msk [vmem:[%s200 + $0x2c1] sm:$0xff] %vm26, %v191
  %257 = vst.msk [vmem:[%s200 + $0x2d1] sm:$0xff] %vm26, %v192
  %258 = vst.msk [vmem:[%s200 + $0x2d9] sm:$0xff] %vm26, %v193
  %259 = vst.msk [vmem:[%s200 + $0x2e9] sm:$0xff] %vm26, %v194
  %260 = vst.msk [vmem:[%s200 + $0x2f1] sm:$0xff] %vm26, %v195
  %261 = vst.msk [vmem:[%s200 + $0x301] sm:$0xff] %vm26, %v196
  %262 = vst.msk [vmem:[%s200 + $0x309] sm:$0xff] %vm26, %v197
  %263 = vst.msk [vmem:[%s200 + $0x319] sm:$0xff] %vm26, %v198
  %264 = vst.msk [vmem:[%s200 + $0x321] sm:$0xff] %vm26, %v199
  %v265 = vld [vmem:[%s1] sm:$0xff]
  %v266 = vld [vmem:[%s1 + $0x8] sm:$0xff]
  %v267 = vld [vmem:[%s1 + $0x10] sm:$0xff]
  %v268 = vld [vmem:[%s1 + $0x18] sm:$0xff]
  %v269 = vld [vmem:[%s1 + $0x20] sm:$0xf]
  %v270 = vld [vmem:[%s2] sm:$0x1]
  %v271 = vld [vmem:[%s3] sm:$0x1]
  %v272 = vld [vmem:[#allocation2] sm:$0xff]
  %v273 = vld [vmem:[#allocation2 + $0x8] sm:$0xff]
  %v274 = vld [vmem:[#allocation2 + $0x10] sm:$0x3]
  %v275 = vld [vmem:[#allocation2 + $0x18] sm:$0xff]
  %v276 = vld [vmem:[#allocation2 + $0x20] sm:$0xff]
  %v277 = vld [vmem:[#allocation2 + $0x28] sm:$0x3]
  %v278 = vld [vmem:[#allocation2 + $0x30] sm:$0xff]
  %v279 = vld [vmem:[#allocation2 + $0x38] sm:$0xff]
  %v280 = vld [vmem:[#allocation2 + $0x40] sm:$0x3]
  %v281 = vld [vmem:[#allocation2 + $0x48] sm:$0xff]
  %v282 = vld [vmem:[#allocation2 + $0x50] sm:$0xff]
  %v283 = vld [vmem:[#allocation2 + $0x58] sm:$0x3]
  %v284 = vld [vmem:[#allocation2 + $0x60] sm:$0xff]
  %v285 = vld [vmem:[#allocation2 + $0x68] sm:$0xff]
  %v286 = vld [vmem:[#allocation2 + $0x70] sm:$0x3]
  %v287 = vld [vmem:[#allocation2 + $0x78] sm:$0xff]
  %v288 = vld [vmem:[#allocation2 + $0x80] sm:$0xff]
  %v289 = vld [vmem:[#allocation2 + $0x88] sm:$0x3]
  %v290 = vld [vmem:[#allocation2 + $0x90] sm:$0xff]
  %v291 = vld [vmem:[#allocation2 + $0x98] sm:$0xff]
  %v292 = vld [vmem:[#allocation2 + $0xa0] sm:$0x3]
  %v293 = vld [vmem:[#allocation2 + $0xa8] sm:$0xff]
  %v294 = vld [vmem:[#allocation2 + $0xb0] sm:$0xff]
  %v295 = vld [vmem:[#allocation2 + $0xb8] sm:$0x3]
  %v296 = vld [vmem:[#allocation2 + $0xc0] sm:$0xff]
  %v297 = vld [vmem:[#allocation2 + $0xc8] sm:$0xff]
  %v298 = vld [vmem:[#allocation2 + $0xd0] sm:$0x3]
  %v299 = vld [vmem:[#allocation2 + $0xd8] sm:$0xff]
  %v300 = vld [vmem:[#allocation2 + $0xe0] sm:$0xff]
  %v301 = vld [vmem:[#allocation2 + $0xe8] sm:$0x3]
  %v302 = vld [vmem:[#allocation2 + $0xf0] sm:$0xff]
  %v303 = vld [vmem:[#allocation2 + $0xf8] sm:$0xff]
  %v304 = vld [vmem:[#allocation2 + $0x100] sm:$0x3]
  %v305 = vld [vmem:[#allocation2 + $0x108] sm:$0xff]
  %v306 = vld [vmem:[#allocation2 + $0x110] sm:$0xff]
  %v307 = vld [vmem:[#allocation2 + $0x118] sm:$0x3]
  %v308 = vld [vmem:[#allocation2 + $0x120] sm:$0xff]
  %v309 = vld [vmem:[#allocation2 + $0x128] sm:$0xff]
  %v310 = vld [vmem:[#allocation2 + $0x130] sm:$0x3]
  %v311 = vld [vmem:[#allocation2 + $0x138] sm:$0xff]
  %v312 = vld [vmem:[#allocation2 + $0x140] sm:$0xff]
  %v313 = vld [vmem:[#allocation2 + $0x148] sm:$0x3]
  %v314 = vld [vmem:[#allocation2 + $0x150] sm:$0xff]
  %v315 = vld [vmem:[#allocation2 + $0x158] sm:$0xff]
  %v316 = vld [vmem:[#allocation2 + $0x160] sm:$0x3]
  %v317 = vld [vmem:[#allocation2 + $0x168] sm:$0xff]
  %v318 = vld [vmem:[#allocation2 + $0x170] sm:$0xff]
  %v319 = vld [vmem:[#allocation2 + $0x178] sm:$0x3]
  %v320 = vld [vmem:[#allocation2 + $0x180] sm:$0xff]
  %v321 = vld [vmem:[#allocation2 + $0x188] sm:$0xff]
  %v322 = vld [vmem:[#allocation2 + $0x190] sm:$0x3]
  %v323 = vld [vmem:[#allocation2 + $0x198] sm:$0xff]
  %v324 = vld [vmem:[#allocation2 + $0x1a0] sm:$0xff]
  %v325 = vld [vmem:[#allocation2 + $0x1a8] sm:$0x3]
  %v326 = vld [vmem:[#allocation2 + $0x1b0] sm:$0xff]
  %v327 = vld [vmem:[#allocation2 + $0x1b8] sm:$0xff]
  %v328 = vld [vmem:[#allocation2 + $0x1c0] sm:$0x3]
  %v329 = vld [vmem:[#allocation2 + $0x1c8] sm:$0xff]
  %v330 = vld [vmem:[#allocation2 + $0x1d0] sm:$0xff]
  %v331 = vld [vmem:[#allocation2 + $0x1d8] sm:$0x3]
  %v332 = vld [vmem:[#allocation2 + $0x1e0] sm:$0xff]
  %v333 = vld [vmem:[#allocation2 + $0x1e8] sm:$0xff]
  %v334 = vld [vmem:[#allocation2 + $0x1f0] sm:$0x3]
  %v335 = vld [vmem:[#allocation2 + $0x1f8] sm:$0xff]
  %v336 = vld [vmem:[#allocation2 + $0x200] sm:$0xff]
  %v337 = vld [vmem:[#allocation2 + $0x208] sm:$0x3]
  %v338 = vld [vmem:[#allocation2 + $0x210] sm:$0xff]
  %v339 = vld [vmem:[#allocation2 + $0x218] sm:$0xff]
  %v340 = vld [vmem:[#allocation2 + $0x220] sm:$0x3]
  %v341 = vld [vmem:[#allocation2 + $0x228] sm:$0xff]
  %v342 = vld [vmem:[#allocation2 + $0x230] sm:$0xff]
  %v343 = vld [vmem:[#allocation2 + $0x238] sm:$0x3]
  %v344 = vld [vmem:[#allocation2 + $0x240] sm:$0xff]
  %v345 = vld [vmem:[#allocation2 + $0x248] sm:$0xff]
  %v346 = vld [vmem:[#allocation2 + $0x250] sm:$0x3]
  %v347 = vld [vmem:[#allocation2 + $0x258] sm:$0xff]
  %v348 = vld [vmem:[#allocation2 + $0x260] sm:$0xff]
  %v349 = vld [vmem:[#allocation2 + $0x268] sm:$0x3]
  %v350 = vld [vmem:[#allocation2 + $0x270] sm:$0xff]
  %v351 = vld [vmem:[#allocation2 + $0x278] sm:$0xff]
  %v352 = vld [vmem:[#allocation2 + $0x280] sm:$0x3]
  %v353 = vld [vmem:[#allocation2 + $0x288] sm:$0xff]
  %v354 = vld [vmem:[#allocation2 + $0x290] sm:$0xff]
  %v355 = vld [vmem:[#allocation2 + $0x298] sm:$0x3]
  %v356 = vld [vmem:[#allocation2 + $0x2a0] sm:$0xff]
  %v357 = vld [vmem:[#allocation2 + $0x2a8] sm:$0xff]
  %v358 = vld [vmem:[#allocation2 + $0x2b0] sm:$0x3]
  %v359 = vld [vmem:[#allocation2 + $0x2b8] sm:$0xff]
  %v360 = vld [vmem:[#allocation2 + $0x2c0] sm:$0xff]
  %v361 = vld [vmem:[#allocation2 + $0x2c8] sm:$0x3]
  %v362 = vld [vmem:[#allocation2 + $0x2d0] sm:$0xff]
  %v363 = vld [vmem:[#allocation2 + $0x2d8] sm:$0xff]
  %v364 = vld [vmem:[#allocation2 + $0x2e0] sm:$0x3]
  %v365 = vld [vmem:[#allocation2 + $0x2e8] sm:$0xff]
  %v366 = vld [vmem:[#allocation2 + $0x2f0] sm:$0xff]
  %v367 = vld [vmem:[#allocation2 + $0x2f8] sm:$0x3]
  %v368 = vld [vmem:[#allocation2 + $0x300] sm:$0xff]
  %v369 = vld [vmem:[#allocation2 + $0x308] sm:$0xff]
  %v370 = vld [vmem:[#allocation2 + $0x310] sm:$0x3]
  %v371 = vld [vmem:[#allocation2 + $0x318] sm:$0xff]
  %v372 = vld [vmem:[#allocation2 + $0x320] sm:$0xff]
  %v373 = vld [vmem:[#allocation2 + $0x328] sm:$0x3]
  %v374 = vld [vmem:[#allocation2 + $0x330] sm:$0xff]
  %v375 = vld [vmem:[#allocation2 + $0x338] sm:$0xff]
  %v376 = vld [vmem:[#allocation2 + $0x340] sm:$0x3]
  %v377 = vld [vmem:[#allocation2 + $0x348] sm:$0xff]
  %v378 = vld [vmem:[#allocation2 + $0x350] sm:$0xff]
  %v379 = vld [vmem:[#allocation2 + $0x358] sm:$0x3]
  %vm476 = vcmask 1046528
  %v477 = vrot.slane %v272, 1
  %v478 = vrot.slane %v273, 1
  %v479 = vsel %vm476, %v477, %v478
  %v480 = vrot.slane %v274, 1
  %v481 = vsel %vm476, %v478, %v480
  %v482 = vrot.slane %v275, 1
  %v483 = vrot.slane %v276, 1
  %v484 = vsel %vm476, %v482, %v483
  %v485 = vrot.slane %v277, 1
  %v486 = vsel %vm476, %v483, %v485
  %v487 = vrot.slane %v278, 1
  %v488 = vrot.slane %v279, 1
  %v489 = vsel %vm476, %v487, %v488
  %v490 = vrot.slane %v280, 1
  %v491 = vsel %vm476, %v488, %v490
  %v492 = vrot.slane %v281, 1
  %v493 = vrot.slane %v282, 1
  %v494 = vsel %vm476, %v492, %v493
  %v495 = vrot.slane %v283, 1
  %v496 = vsel %vm476, %v493, %v495
  %v497 = vrot.slane %v284, 1
  %v498 = vrot.slane %v285, 1
  %v499 = vsel %vm476, %v497, %v498
  %v500 = vrot.slane %v286, 1
  %v501 = vsel %vm476, %v498, %v500
  %v502 = vrot.slane %v287, 1
  %v503 = vrot.slane %v288, 1
  %v504 = vsel %vm476, %v502, %v503
  %v505 = vrot.slane %v289, 1
  %v506 = vsel %vm476, %v503, %v505
  %v507 = vrot.slane %v290, 1
  %v508 = vrot.slane %v291, 1
  %v509 = vsel %vm476, %v507, %v508
  %v510 = vrot.slane %v292, 1
  %v511 = vsel %vm476, %v508, %v510
  %v512 = vrot.slane %v293, 1
  %v513 = vrot.slane %v294, 1
  %v514 = vsel %vm476, %v512, %v513
  %v515 = vrot.slane %v295, 1
  %v516 = vsel %vm476, %v513, %v515
  %v517 = vrot.slane %v296, 1
  %v518 = vrot.slane %v297, 1
  %v519 = vsel %vm476, %v517, %v518
  %v520 = vrot.slane %v298, 1
  %v521 = vsel %vm476, %v518, %v520
  %v522 = vrot.slane %v299, 1
  %v523 = vrot.slane %v300, 1
  %v524 = vsel %vm476, %v522, %v523
  %v525 = vrot.slane %v301, 1
  %v526 = vsel %vm476, %v523, %v525
  %v527 = vrot.slane %v302, 1
  %v528 = vrot.slane %v303, 1
  %v529 = vsel %vm476, %v527, %v528
  %v530 = vrot.slane %v304, 1
  %v531 = vsel %vm476, %v528, %v530
  %v532 = vrot.slane %v305, 1
  %v533 = vrot.slane %v306, 1
  %v534 = vsel %vm476, %v532, %v533
  %v535 = vrot.slane %v307, 1
  %v536 = vsel %vm476, %v533, %v535
  %v537 = vrot.slane %v308, 1
  %v538 = vrot.slane %v309, 1
  %v539 = vsel %vm476, %v537, %v538
  %v540 = vrot.slane %v310, 1
  %v541 = vsel %vm476, %v538, %v540
  %v542 = vrot.slane %v311, 1
  %v543 = vrot.slane %v312, 1
  %v544 = vsel %vm476, %v542, %v543
  %v545 = vrot.slane %v313, 1
  %v546 = vsel %vm476, %v543, %v545
  %v547 = vrot.slane %v314, 1
  %v548 = vrot.slane %v315, 1
  %v549 = vsel %vm476, %v547, %v548
  %v550 = vrot.slane %v316, 1
  %v551 = vsel %vm476, %v548, %v550
  %v552 = vrot.slane %v317, 1
  %v553 = vrot.slane %v318, 1
  %v554 = vsel %vm476, %v552, %v553
  %v555 = vrot.slane %v319, 1
  %v556 = vsel %vm476, %v553, %v555
  %v557 = vrot.slane %v326, 1
  %v558 = vrot.slane %v327, 1
  %v559 = vsel %vm476, %v557, %v558
  %v560 = vrot.slane %v328, 1
  %v561 = vsel %vm476, %v558, %v560
  %v562 = vrot.slane %v329, 1
  %v563 = vrot.slane %v330, 1
  %v564 = vsel %vm476, %v562, %v563
  %v565 = vrot.slane %v331, 1
  %v566 = vsel %vm476, %v563, %v565
  %v567 = vrot.slane %v332, 1
  %v568 = vrot.slane %v333, 1
  %v569 = vsel %vm476, %v567, %v568
  %v570 = vrot.slane %v334, 1
  %v571 = vsel %vm476, %v568, %v570
  %v572 = vrot.slane %v335, 1
  %v573 = vrot.slane %v336, 1
  %v574 = vsel %vm476, %v572, %v573
  %v575 = vrot.slane %v337, 1
  %v576 = vsel %vm476, %v573, %v575
  %v577 = vrot.slane %v338, 1
  %v578 = vrot.slane %v339, 1
  %v579 = vsel %vm476, %v577, %v578
  %v580 = vrot.slane %v340, 1
  %v581 = vsel %vm476, %v578, %v580
  %v582 = vrot.slane %v341, 1
  %v583 = vrot.slane %v342, 1
  %v584 = vsel %vm476, %v582, %v583
  %v585 = vrot.slane %v343, 1
  %v586 = vsel %vm476, %v583, %v585
  %v587 = vrot.slane %v344, 1
  %v588 = vrot.slane %v345, 1
  %v589 = vsel %vm476, %v587, %v588
  %v590 = vrot.slane %v346, 1
  %v591 = vsel %vm476, %v588, %v590
  %v592 = vrot.slane %v347, 1
  %v593 = vrot.slane %v348, 1
  %v594 = vsel %vm476, %v592, %v593
  %v595 = vrot.slane %v349, 1
  %v596 = vsel %vm476, %v593, %v595
  %v597 = vrot.slane %v350, 1
  %v598 = vrot.slane %v351, 1
  %v599 = vsel %vm476, %v597, %v598
  %v600 = vrot.slane %v352, 1
  %v601 = vsel %vm476, %v598, %v600
  %v602 = vrot.slane %v353, 1
  %v603 = vrot.slane %v354, 1
  %v604 = vsel %vm476, %v602, %v603
  %v605 = vrot.slane %v355, 1
  %v606 = vsel %vm476, %v603, %v605
  %v607 = vrot.slane %v356, 1
  %v608 = vrot.slane %v357, 1
  %v609 = vsel %vm476, %v607, %v608
  %v610 = vrot.slane %v358, 1
  %v611 = vsel %vm476, %v608, %v610
  %v612 = vrot.slane %v359, 1
  %v613 = vrot.slane %v360, 1
  %v614 = vsel %vm476, %v612, %v613
  %v615 = vrot.slane %v361, 1
  %v616 = vsel %vm476, %v613, %v615
  %v617 = vrot.slane %v362, 1
  %v618 = vrot.slane %v363, 1
  %v619 = vsel %vm476, %v617, %v618
  %v620 = vrot.slane %v364, 1
  %v621 = vsel %vm476, %v618, %v620
  %v622 = vrot.slane %v365, 1
  %v623 = vrot.slane %v366, 1
  %v624 = vsel %vm476, %v622, %v623
  %v625 = vrot.slane %v367, 1
  %v626 = vsel %vm476, %v623, %v625
  %v627 = vrot.slane %v368, 1
  %v628 = vrot.slane %v369, 1
  %v629 = vsel %vm476, %v627, %v628
  %v630 = vrot.slane %v370, 1
  %v631 = vsel %vm476, %v628, %v630
  %v632 = vrot.slane %v371, 1
  %v633 = vrot.slane %v372, 1
  %v634 = vsel %vm476, %v632, %v633
  %v635 = vrot.slane %v373, 1
  %v636 = vsel %vm476, %v633, %v635
  %vm637 = vcmask 1045504
  %v638 = vrot.slane %v272, 2
  %v639 = vrot.slane %v273, 2
  %v640 = vsel %vm637, %v638, %v639
  %v641 = vrot.slane %v274, 2
  %v642 = vsel %vm637, %v639, %v641
  %v643 = vrot.slane %v275, 2
  %v644 = vrot.slane %v276, 2
  %v645 = vsel %vm637, %v643, %v644
  %v646 = vrot.slane %v277, 2
  %v647 = vsel %vm637, %v644, %v646
  %v648 = vrot.slane %v278, 2
  %v649 = vrot.slane %v279, 2
  %v650 = vsel %vm637, %v648, %v649
  %v651 = vrot.slane %v280, 2
  %v652 = vsel %vm637, %v649, %v651
  %v653 = vrot.slane %v281, 2
  %v654 = vrot.slane %v282, 2
  %v655 = vsel %vm637, %v653, %v654
  %v656 = vrot.slane %v283, 2
  %v657 = vsel %vm637, %v654, %v656
  %v658 = vrot.slane %v284, 2
  %v659 = vrot.slane %v285, 2
  %v660 = vsel %vm637, %v658, %v659
  %v661 = vrot.slane %v286, 2
  %v662 = vsel %vm637, %v659, %v661
  %v663 = vrot.slane %v287, 2
  %v664 = vrot.slane %v288, 2
  %v665 = vsel %vm637, %v663, %v664
  %v666 = vrot.slane %v289, 2
  %v667 = vsel %vm637, %v664, %v666
  %v668 = vrot.slane %v290, 2
  %v669 = vrot.slane %v291, 2
  %v670 = vsel %vm637, %v668, %v669
  %v671 = vrot.slane %v292, 2
  %v672 = vsel %vm637, %v669, %v671
  %v673 = vrot.slane %v293, 2
  %v674 = vrot.slane %v294, 2
  %v675 = vsel %vm637, %v673, %v674
  %v676 = vrot.slane %v295, 2
  %v677 = vsel %vm637, %v674, %v676
  %v678 = vrot.slane %v296, 2
  %v679 = vrot.slane %v297, 2
  %v680 = vsel %vm637, %v678, %v679
  %v681 = vrot.slane %v298, 2
  %v682 = vsel %vm637, %v679, %v681
  %v683 = vrot.slane %v299, 2
  %v684 = vrot.slane %v300, 2
  %v685 = vsel %vm637, %v683, %v684
  %v686 = vrot.slane %v301, 2
  %v687 = vsel %vm637, %v684, %v686
  %v688 = vrot.slane %v302, 2
  %v689 = vrot.slane %v303, 2
  %v690 = vsel %vm637, %v688, %v689
  %v691 = vrot.slane %v304, 2
  %v692 = vsel %vm637, %v689, %v691
  %v693 = vrot.slane %v305, 2
  %v694 = vrot.slane %v306, 2
  %v695 = vsel %vm637, %v693, %v694
  %v696 = vrot.slane %v307, 2
  %v697 = vsel %vm637, %v694, %v696
  %v698 = vrot.slane %v308, 2
  %v699 = vrot.slane %v309, 2
  %v700 = vsel %vm637, %v698, %v699
  %v701 = vrot.slane %v310, 2
  %v702 = vsel %vm637, %v699, %v701
  %v703 = vrot.slane %v311, 2
  %v704 = vrot.slane %v312, 2
  %v705 = vsel %vm637, %v703, %v704
  %v706 = vrot.slane %v313, 2
  %v707 = vsel %vm637, %v704, %v706
  %v708 = vrot.slane %v314, 2
  %v709 = vrot.slane %v315, 2
  %v710 = vsel %vm637, %v708, %v709
  %v711 = vrot.slane %v316, 2
  %v712 = vsel %vm637, %v709, %v711
  %v713 = vrot.slane %v317, 2
  %v714 = vrot.slane %v318, 2
  %v715 = vsel %vm637, %v713, %v714
  %v716 = vrot.slane %v319, 2
  %v717 = vsel %vm637, %v714, %v716
  %v718 = vrot.slane %v326, 2
  %v719 = vrot.slane %v327, 2
  %v720 = vsel %vm637, %v718, %v719
  %v721 = vrot.slane %v328, 2
  %v722 = vsel %vm637, %v719, %v721
  %v723 = vrot.slane %v329, 2
  %v724 = vrot.slane %v330, 2
  %v725 = vsel %vm637, %v723, %v724
  %v726 = vrot.slane %v331, 2
  %v727 = vsel %vm637, %v724, %v726
  %v728 = vrot.slane %v332, 2
  %v729 = vrot.slane %v333, 2
  %v730 = vsel %vm637, %v728, %v729
  %v731 = vrot.slane %v334, 2
  %v732 = vsel %vm637, %v729, %v731
  %v733 = vrot.slane %v335, 2
  %v734 = vrot.slane %v336, 2
  %v735 = vsel %vm637, %v733, %v734
  %v736 = vrot.slane %v337, 2
  %v737 = vsel %vm637, %v734, %v736
  %v738 = vrot.slane %v338, 2
  %v739 = vrot.slane %v339, 2
  %v740 = vsel %vm637, %v738, %v739
  %v741 = vrot.slane %v340, 2
  %v742 = vsel %vm637, %v739, %v741
  %v743 = vrot.slane %v341, 2
  %v744 = vrot.slane %v342, 2
  %v745 = vsel %vm637, %v743, %v744
  %v746 = vrot.slane %v343, 2
  %v747 = vsel %vm637, %v744, %v746
  %v748 = vrot.slane %v344, 2
  %v749 = vrot.slane %v345, 2
  %v750 = vsel %vm637, %v748, %v749
  %v751 = vrot.slane %v346, 2
  %v752 = vsel %vm637, %v749, %v751
  %v753 = vrot.slane %v347, 2
  %v754 = vrot.slane %v348, 2
  %v755 = vsel %vm637, %v753, %v754
  %v756 = vrot.slane %v349, 2
  %v757 = vsel %vm637, %v754, %v756
  %v758 = vrot.slane %v350, 2
  %v759 = vrot.slane %v351, 2
  %v760 = vsel %vm637, %v758, %v759
  %v761 = vrot.slane %v352, 2
  %v762 = vsel %vm637, %v759, %v761
  %v763 = vrot.slane %v353, 2
  %v764 = vrot.slane %v354, 2
  %v765 = vsel %vm637, %v763, %v764
  %v766 = vrot.slane %v355, 2
  %v767 = vsel %vm637, %v764, %v766
  %v768 = vrot.slane %v356, 2
  %v769 = vrot.slane %v357, 2
  %v770 = vsel %vm637, %v768, %v769
  %v771 = vrot.slane %v358, 2
  %v772 = vsel %vm637, %v769, %v771
  %v773 = vrot.slane %v359, 2
  %v774 = vrot.slane %v360, 2
  %v775 = vsel %vm637, %v773, %v774
  %v776 = vrot.slane %v361, 2
  %v777 = vsel %vm637, %v774, %v776
  %v778 = vrot.slane %v362, 2
  %v779 = vrot.slane %v363, 2
  %v780 = vsel %vm637, %v778, %v779
  %v781 = vrot.slane %v364, 2
  %v782 = vsel %vm637, %v779, %v781
  %v783 = vrot.slane %v365, 2
  %v784 = vrot.slane %v366, 2
  %v785 = vsel %vm637, %v783, %v784
  %v786 = vrot.slane %v367, 2
  %v787 = vsel %vm637, %v784, %v786
  %v788 = vrot.slane %v368, 2
  %v789 = vrot.slane %v369, 2
  %v790 = vsel %vm637, %v788, %v789
  %v791 = vrot.slane %v370, 2
  %v792 = vsel %vm637, %v789, %v791
  %v793 = vrot.slane %v371, 2
  %v794 = vrot.slane %v372, 2
  %v795 = vsel %vm637, %v793, %v794
  %v796 = vrot.slane %v373, 2
  %v797 = vsel %vm637, %v794, %v796
  %v804 = vrot.slane %v320, 1
  %v805 = vrot.slane %v321, 1
  %v806 = vsel %vm476, %v804, %v805
  %v807 = vrot.slane %v322, 1
  %v808 = vsel %vm476, %v805, %v807
  %v809 = vrot.slane %v374, 1
  %v810 = vrot.slane %v375, 1
  %v811 = vsel %vm476, %v809, %v810
  %v812 = vrot.slane %v376, 1
  %v813 = vsel %vm476, %v810, %v812
  %v814 = vrot.slane %v320, 2
  %v815 = vrot.slane %v321, 2
  %v816 = vsel %vm637, %v814, %v815
  %v817 = vrot.slane %v322, 2
  %v818 = vsel %vm637, %v815, %v817
  %v819 = vrot.slane %v374, 2
  %v820 = vrot.slane %v375, 2
  %v821 = vsel %vm637, %v819, %v820
  %v822 = vrot.slane %v376, 2
  %v823 = vsel %vm637, %v820, %v822
  %v830 = vrot.slane %v323, 1
  %v831 = vrot.slane %v324, 1
  %v832 = vsel %vm476, %v830, %v831
  %v833 = vrot.slane %v325, 1
  %v834 = vsel %vm476, %v831, %v833
  %v835 = vrot.slane %v377, 1
  %v836 = vrot.slane %v378, 1
  %v837 = vsel %vm476, %v835, %v836
  %v838 = vrot.slane %v379, 1
  %v839 = vsel %vm476, %v836, %v838
  %v840 = vrot.slane %v323, 2
  %v841 = vrot.slane %v324, 2
  %v842 = vsel %vm637, %v840, %v841
  %v843 = vrot.slane %v325, 2
  %v844 = vsel %vm637, %v841, %v843
  %v845 = vrot.slane %v377, 2
  %v846 = vrot.slane %v378, 2
  %v847 = vsel %vm637, %v845, %v846
  %v848 = vrot.slane %v379, 2
  %v849 = vsel %vm637, %v846, %v848
  %850 = vrot.lane.b32.xlu0 %v479, 4
  %v851 = vpop.permute.xlu0 %850
  %852 = vrot.lane.b32.xlu0 %v481, 4
  %v853 = vpop.permute.xlu0 %852
  %854 = vrot.lane.b32.xlu0 %v484, 4
  %v855 = vpop.permute.xlu0 %854
  %856 = vrot.lane.b32.xlu0 %v486, 4
  %v857 = vpop.permute.xlu0 %856
  %858 = vrot.lane.b32.xlu0 %v489, 4
  %v859 = vpop.permute.xlu0 %858
  %860 = vrot.lane.b32.xlu0 %v491, 4
  %v861 = vpop.permute.xlu0 %860
  %862 = vrot.lane.b32.xlu0 %v494, 4
  %v863 = vpop.permute.xlu0 %862
  %864 = vrot.lane.b32.xlu0 %v496, 4
  %v865 = vpop.permute.xlu0 %864
  %866 = vrot.lane.b32.xlu0 %v499, 4
  %v867 = vpop.permute.xlu0 %866
  %868 = vrot.lane.b32.xlu0 %v501, 4
  %v869 = vpop.permute.xlu0 %868
  %870 = vrot.lane.b32.xlu0 %v504, 4
  %v871 = vpop.permute.xlu0 %870
  %872 = vrot.lane.b32.xlu0 %v506, 4
  %v873 = vpop.permute.xlu0 %872
  %874 = vrot.lane.b32.xlu0 %v509, 4
  %v875 = vpop.permute.xlu0 %874
  %876 = vrot.lane.b32.xlu0 %v511, 4
  %v877 = vpop.permute.xlu0 %876
  %878 = vrot.lane.b32.xlu0 %v514, 4
  %v879 = vpop.permute.xlu0 %878
  %880 = vrot.lane.b32.xlu0 %v516, 4
  %v881 = vpop.permute.xlu0 %880
  %882 = vrot.lane.b32.xlu0 %v519, 4
  %v883 = vpop.permute.xlu0 %882
  %884 = vrot.lane.b32.xlu0 %v521, 4
  %v885 = vpop.permute.xlu0 %884
  %886 = vrot.lane.b32.xlu0 %v524, 4
  %v887 = vpop.permute.xlu0 %886
  %888 = vrot.lane.b32.xlu0 %v526, 4
  %v889 = vpop.permute.xlu0 %888
  %890 = vrot.lane.b32.xlu0 %v529, 4
  %v891 = vpop.permute.xlu0 %890
  %892 = vrot.lane.b32.xlu0 %v531, 4
  %v893 = vpop.permute.xlu0 %892
  %894 = vrot.lane.b32.xlu0 %v534, 4
  %v895 = vpop.permute.xlu0 %894
  %896 = vrot.lane.b32.xlu0 %v536, 4
  %v897 = vpop.permute.xlu0 %896
  %898 = vrot.lane.b32.xlu0 %v539, 4
  %v899 = vpop.permute.xlu0 %898
  %900 = vrot.lane.b32.xlu0 %v541, 4
  %v901 = vpop.permute.xlu0 %900
  %902 = vrot.lane.b32.xlu0 %v544, 4
  %v903 = vpop.permute.xlu0 %902
  %904 = vrot.lane.b32.xlu0 %v546, 4
  %v905 = vpop.permute.xlu0 %904
  %906 = vrot.lane.b32.xlu0 %v549, 4
  %v907 = vpop.permute.xlu0 %906
  %908 = vrot.lane.b32.xlu0 %v551, 4
  %v909 = vpop.permute.xlu0 %908
  %910 = vrot.lane.b32.xlu0 %v554, 4
  %v911 = vpop.permute.xlu0 %910
  %912 = vrot.lane.b32.xlu0 %v556, 4
  %v913 = vpop.permute.xlu0 %912
  %914 = vrot.lane.b32.xlu0 %v559, 4
  %v915 = vpop.permute.xlu0 %914
  %916 = vrot.lane.b32.xlu0 %v561, 4
  %v917 = vpop.permute.xlu0 %916
  %918 = vrot.lane.b32.xlu0 %v564, 4
  %v919 = vpop.permute.xlu0 %918
  %920 = vrot.lane.b32.xlu0 %v566, 4
  %v921 = vpop.permute.xlu0 %920
  %922 = vrot.lane.b32.xlu0 %v569, 4
  %v923 = vpop.permute.xlu0 %922
  %924 = vrot.lane.b32.xlu0 %v571, 4
  %v925 = vpop.permute.xlu0 %924
  %926 = vrot.lane.b32.xlu0 %v574, 4
  %v927 = vpop.permute.xlu0 %926
  %928 = vrot.lane.b32.xlu0 %v576, 4
  %v929 = vpop.permute.xlu0 %928
  %930 = vrot.lane.b32.xlu0 %v579, 4
  %v931 = vpop.permute.xlu0 %930
  %932 = vrot.lane.b32.xlu0 %v581, 4
  %v933 = vpop.permute.xlu0 %932
  %934 = vrot.lane.b32.xlu0 %v584, 4
  %v935 = vpop.permute.xlu0 %934
  %936 = vrot.lane.b32.xlu0 %v586, 4
  %v937 = vpop.permute.xlu0 %936
  %938 = vrot.lane.b32.xlu0 %v589, 4
  %v939 = vpop.permute.xlu0 %938
  %940 = vrot.lane.b32.xlu0 %v591, 4
  %v941 = vpop.permute.xlu0 %940
  %942 = vrot.lane.b32.xlu0 %v594, 4
  %v943 = vpop.permute.xlu0 %942
  %944 = vrot.lane.b32.xlu0 %v596, 4
  %v945 = vpop.permute.xlu0 %944
  %946 = vrot.lane.b32.xlu0 %v599, 4
  %v947 = vpop.permute.xlu0 %946
  %948 = vrot.lane.b32.xlu0 %v601, 4
  %v949 = vpop.permute.xlu0 %948
  %950 = vrot.lane.b32.xlu0 %v604, 4
  %v951 = vpop.permute.xlu0 %950
  %952 = vrot.lane.b32.xlu0 %v606, 4
  %v953 = vpop.permute.xlu0 %952
  %954 = vrot.lane.b32.xlu0 %v609, 4
  %v955 = vpop.permute.xlu0 %954
  %956 = vrot.lane.b32.xlu0 %v611, 4
  %v957 = vpop.permute.xlu0 %956
  %958 = vrot.lane.b32.xlu0 %v614, 4
  %v959 = vpop.permute.xlu0 %958
  %960 = vrot.lane.b32.xlu0 %v616, 4
  %v961 = vpop.permute.xlu0 %960
  %962 = vrot.lane.b32.xlu0 %v619, 4
  %v963 = vpop.permute.xlu0 %962
  %964 = vrot.lane.b32.xlu0 %v621, 4
  %v965 = vpop.permute.xlu0 %964
  %966 = vrot.lane.b32.xlu0 %v624, 4
  %v967 = vpop.permute.xlu0 %966
  %968 = vrot.lane.b32.xlu0 %v626, 4
  %v969 = vpop.permute.xlu0 %968
  %970 = vrot.lane.b32.xlu0 %v629, 4
  %v971 = vpop.permute.xlu0 %970
  %972 = vrot.lane.b32.xlu0 %v631, 4
  %v973 = vpop.permute.xlu0 %972
  %974 = vrot.lane.b32.xlu0 %v634, 4
  %v975 = vpop.permute.xlu0 %974
  %976 = vrot.lane.b32.xlu0 %v636, 4
  %v977 = vpop.permute.xlu0 %976
  %1042 = vrot.lane.b32.xlu0 %v640, 8
  %v1043 = vpop.permute.xlu0 %1042
  %1044 = vrot.lane.b32.xlu0 %v642, 8
  %v1045 = vpop.permute.xlu0 %1044
  %1046 = vrot.lane.b32.xlu0 %v645, 8
  %v1047 = vpop.permute.xlu0 %1046
  %1048 = vrot.lane.b32.xlu0 %v647, 8
  %v1049 = vpop.permute.xlu0 %1048
  %1050 = vrot.lane.b32.xlu0 %v650, 8
  %v1051 = vpop.permute.xlu0 %1050
  %1052 = vrot.lane.b32.xlu0 %v652, 8
  %v1053 = vpop.permute.xlu0 %1052
  %1054 = vrot.lane.b32.xlu0 %v655, 8
  %v1055 = vpop.permute.xlu0 %1054
  %1056 = vrot.lane.b32.xlu0 %v657, 8
  %v1057 = vpop.permute.xlu0 %1056
  %1058 = vrot.lane.b32.xlu0 %v660, 8
  %v1059 = vpop.permute.xlu0 %1058
  %1060 = vrot.lane.b32.xlu0 %v662, 8
  %v1061 = vpop.permute.xlu0 %1060
  %1062 = vrot.lane.b32.xlu0 %v665, 8
  %v1063 = vpop.permute.xlu0 %1062
  %1064 = vrot.lane.b32.xlu0 %v667, 8
  %v1065 = vpop.permute.xlu0 %1064
  %1066 = vrot.lane.b32.xlu0 %v670, 8
  %v1067 = vpop.permute.xlu0 %1066
  %1068 = vrot.lane.b32.xlu0 %v672, 8
  %v1069 = vpop.permute.xlu0 %1068
  %1070 = vrot.lane.b32.xlu0 %v675, 8
  %v1071 = vpop.permute.xlu0 %1070
  %1072 = vrot.lane.b32.xlu0 %v677, 8
  %v1073 = vpop.permute.xlu0 %1072
  %1074 = vrot.lane.b32.xlu0 %v680, 8
  %v1075 = vpop.permute.xlu0 %1074
  %1076 = vrot.lane.b32.xlu0 %v682, 8
  %v1077 = vpop.permute.xlu0 %1076
  %1078 = vrot.lane.b32.xlu0 %v685, 8
  %v1079 = vpop.permute.xlu0 %1078
  %1080 = vrot.lane.b32.xlu0 %v687, 8
  %v1081 = vpop.permute.xlu0 %1080
  %1082 = vrot.lane.b32.xlu0 %v690, 8
  %v1083 = vpop.permute.xlu0 %1082
  %1084 = vrot.lane.b32.xlu0 %v692, 8
  %v1085 = vpop.permute.xlu0 %1084
  %1086 = vrot.lane.b32.xlu0 %v695, 8
  %v1087 = vpop.permute.xlu0 %1086
  %1088 = vrot.lane.b32.xlu0 %v697, 8
  %v1089 = vpop.permute.xlu0 %1088
  %1090 = vrot.lane.b32.xlu0 %v700, 8
  %v1091 = vpop.permute.xlu0 %1090
  %1092 = vrot.lane.b32.xlu0 %v702, 8
  %v1093 = vpop.permute.xlu0 %1092
  %1094 = vrot.lane.b32.xlu0 %v705, 8
  %v1095 = vpop.permute.xlu0 %1094
  %1096 = vrot.lane.b32.xlu0 %v707, 8
  %v1097 = vpop.permute.xlu0 %1096
  %1098 = vrot.lane.b32.xlu0 %v710, 8
  %v1099 = vpop.permute.xlu0 %1098
  %1100 = vrot.lane.b32.xlu0 %v712, 8
  %v1101 = vpop.permute.xlu0 %1100
  %1102 = vrot.lane.b32.xlu0 %v715, 8
  %v1103 = vpop.permute.xlu0 %1102
  %1104 = vrot.lane.b32.xlu0 %v717, 8
  %v1105 = vpop.permute.xlu0 %1104
  %1106 = vrot.lane.b32.xlu0 %v720, 8
  %v1107 = vpop.permute.xlu0 %1106
  %1108 = vrot.lane.b32.xlu0 %v722, 8
  %v1109 = vpop.permute.xlu0 %1108
  %1110 = vrot.lane.b32.xlu0 %v725, 8
  %v1111 = vpop.permute.xlu0 %1110
  %1112 = vrot.lane.b32.xlu0 %v727, 8
  %v1113 = vpop.permute.xlu0 %1112
  %1114 = vrot.lane.b32.xlu0 %v730, 8
  %v1115 = vpop.permute.xlu0 %1114
  %1116 = vrot.lane.b32.xlu0 %v732, 8
  %v1117 = vpop.permute.xlu0 %1116
  %1118 = vrot.lane.b32.xlu0 %v735, 8
  %v1119 = vpop.permute.xlu0 %1118
  %1120 = vrot.lane.b32.xlu0 %v737, 8
  %v1121 = vpop.permute.xlu0 %1120
  %1122 = vrot.lane.b32.xlu0 %v740, 8
  %v1123 = vpop.permute.xlu0 %1122
  %1124 = vrot.lane.b32.xlu0 %v742, 8
  %v1125 = vpop.permute.xlu0 %1124
  %1126 = vrot.lane.b32.xlu0 %v745, 8
  %v1127 = vpop.permute.xlu0 %1126
  %1128 = vrot.lane.b32.xlu0 %v747, 8
  %v1129 = vpop.permute.xlu0 %1128
  %1130 = vrot.lane.b32.xlu0 %v750, 8
  %v1131 = vpop.permute.xlu0 %1130
  %1132 = vrot.lane.b32.xlu0 %v752, 8
  %v1133 = vpop.permute.xlu0 %1132
  %1134 = vrot.lane.b32.xlu0 %v755, 8
  %v1135 = vpop.permute.xlu0 %1134
  %1136 = vrot.lane.b32.xlu0 %v757, 8
  %v1137 = vpop.permute.xlu0 %1136
  %1138 = vrot.lane.b32.xlu0 %v760, 8
  %v1139 = vpop.permute.xlu0 %1138
  %1140 = vrot.lane.b32.xlu0 %v762, 8
  %v1141 = vpop.permute.xlu0 %1140
  %1142 = vrot.lane.b32.xlu0 %v765, 8
  %v1143 = vpop.permute.xlu0 %1142
  %1144 = vrot.lane.b32.xlu0 %v767, 8
  %v1145 = vpop.permute.xlu0 %1144
  %1146 = vrot.lane.b32.xlu0 %v770, 8
  %v1147 = vpop.permute.xlu0 %1146
  %1148 = vrot.lane.b32.xlu0 %v772, 8
  %v1149 = vpop.permute.xlu0 %1148
  %1150 = vrot.lane.b32.xlu0 %v775, 8
  %v1151 = vpop.permute.xlu0 %1150
  %1152 = vrot.lane.b32.xlu0 %v777, 8
  %v1153 = vpop.permute.xlu0 %1152
  %1154 = vrot.lane.b32.xlu0 %v780, 8
  %v1155 = vpop.permute.xlu0 %1154
  %1156 = vrot.lane.b32.xlu0 %v782, 8
  %v1157 = vpop.permute.xlu0 %1156
  %1158 = vrot.lane.b32.xlu0 %v785, 8
  %v1159 = vpop.permute.xlu0 %1158
  %1160 = vrot.lane.b32.xlu0 %v787, 8
  %v1161 = vpop.permute.xlu0 %1160
  %1162 = vrot.lane.b32.xlu0 %v790, 8
  %v1163 = vpop.permute.xlu0 %1162
  %1164 = vrot.lane.b32.xlu0 %v792, 8
  %v1165 = vpop.permute.xlu0 %1164
  %1166 = vrot.lane.b32.xlu0 %v795, 8
  %v1167 = vpop.permute.xlu0 %1166
  %1168 = vrot.lane.b32.xlu0 %v797, 8
  %v1169 = vpop.permute.xlu0 %1168
  %1234 = vrot.lane.b32.xlu0 %v275, 12
  %v1235 = vpop.permute.xlu0 %1234
  %1236 = vrot.lane.b32.xlu0 %v276, 12
  %v1237 = vpop.permute.xlu0 %1236
  %1238 = vrot.lane.b32.xlu0 %v278, 12
  %v1239 = vpop.permute.xlu0 %1238
  %1240 = vrot.lane.b32.xlu0 %v279, 12
  %v1241 = vpop.permute.xlu0 %1240
  %1242 = vrot.lane.b32.xlu0 %v281, 12
  %v1243 = vpop.permute.xlu0 %1242
  %1244 = vrot.lane.b32.xlu0 %v282, 12
  %v1245 = vpop.permute.xlu0 %1244
  %1246 = vrot.lane.b32.xlu0 %v284, 12
  %v1247 = vpop.permute.xlu0 %1246
  %1248 = vrot.lane.b32.xlu0 %v285, 12
  %v1249 = vpop.permute.xlu0 %1248
  %1250 = vrot.lane.b32.xlu0 %v287, 12
  %v1251 = vpop.permute.xlu0 %1250
  %1252 = vrot.lane.b32.xlu0 %v288, 12
  %v1253 = vpop.permute.xlu0 %1252
  %1254 = vrot.lane.b32.xlu0 %v290, 12
  %v1255 = vpop.permute.xlu0 %1254
  %1256 = vrot.lane.b32.xlu0 %v291, 12
  %v1257 = vpop.permute.xlu0 %1256
  %1258 = vrot.lane.b32.xlu0 %v293, 12
  %v1259 = vpop.permute.xlu0 %1258
  %1260 = vrot.lane.b32.xlu0 %v294, 12
  %v1261 = vpop.permute.xlu0 %1260
  %1262 = vrot.lane.b32.xlu0 %v296, 12
  %v1263 = vpop.permute.xlu0 %1262
  %1264 = vrot.lane.b32.xlu0 %v297, 12
  %v1265 = vpop.permute.xlu0 %1264
  %1266 = vrot.lane.b32.xlu0 %v299, 12
  %v1267 = vpop.permute.xlu0 %1266
  %1268 = vrot.lane.b32.xlu0 %v300, 12
  %v1269 = vpop.permute.xlu0 %1268
  %1270 = vrot.lane.b32.xlu0 %v302, 12
  %v1271 = vpop.permute.xlu0 %1270
  %1272 = vrot.lane.b32.xlu0 %v303, 12
  %v1273 = vpop.permute.xlu0 %1272
  %1274 = vrot.lane.b32.xlu0 %v305, 12
  %v1275 = vpop.permute.xlu0 %1274
  %1276 = vrot.lane.b32.xlu0 %v306, 12
  %v1277 = vpop.permute.xlu0 %1276
  %1278 = vrot.lane.b32.xlu0 %v308, 12
  %v1279 = vpop.permute.xlu0 %1278
  %1280 = vrot.lane.b32.xlu0 %v309, 12
  %v1281 = vpop.permute.xlu0 %1280
  %1282 = vrot.lane.b32.xlu0 %v311, 12
  %v1283 = vpop.permute.xlu0 %1282
  %1284 = vrot.lane.b32.xlu0 %v312, 12
  %v1285 = vpop.permute.xlu0 %1284
  %1286 = vrot.lane.b32.xlu0 %v314, 12
  %v1287 = vpop.permute.xlu0 %1286
  %1288 = vrot.lane.b32.xlu0 %v315, 12
  %v1289 = vpop.permute.xlu0 %1288
  %1290 = vrot.lane.b32.xlu0 %v317, 12
  %v1291 = vpop.permute.xlu0 %1290
  %1292 = vrot.lane.b32.xlu0 %v318, 12
  %v1293 = vpop.permute.xlu0 %1292
  %1294 = vrot.lane.b32.xlu0 %v320, 12
  %v1295 = vpop.permute.xlu0 %1294
  %1296 = vrot.lane.b32.xlu0 %v321, 12
  %v1297 = vpop.permute.xlu0 %1296
  %1298 = vrot.lane.b32.xlu0 %v329, 12
  %v1299 = vpop.permute.xlu0 %1298
  %1300 = vrot.lane.b32.xlu0 %v330, 12
  %v1301 = vpop.permute.xlu0 %1300
  %1302 = vrot.lane.b32.xlu0 %v332, 12
  %v1303 = vpop.permute.xlu0 %1302
  %1304 = vrot.lane.b32.xlu0 %v333, 12
  %v1305 = vpop.permute.xlu0 %1304
  %1306 = vrot.lane.b32.xlu0 %v335, 12
  %v1307 = vpop.permute.xlu0 %1306
  %1308 = vrot.lane.b32.xlu0 %v336, 12
  %v1309 = vpop.permute.xlu0 %1308
  %1310 = vrot.lane.b32.xlu0 %v338, 12
  %v1311 = vpop.permute.xlu0 %1310
  %1312 = vrot.lane.b32.xlu0 %v339, 12
  %v1313 = vpop.permute.xlu0 %1312
  %1314 = vrot.lane.b32.xlu0 %v341, 12
  %v1315 = vpop.permute.xlu0 %1314
  %1316 = vrot.lane.b32.xlu0 %v342, 12
  %v1317 = vpop.permute.xlu0 %1316
  %1318 = vrot.lane.b32.xlu0 %v344, 12
  %v1319 = vpop.permute.xlu0 %1318
  %1320 = vrot.lane.b32.xlu0 %v345, 12
  %v1321 = vpop.permute.xlu0 %1320
  %1322 = vrot.lane.b32.xlu0 %v347, 12
  %v1323 = vpop.permute.xlu0 %1322
  %1324 = vrot.lane.b32.xlu0 %v348, 12
  %v1325 = vpop.permute.xlu0 %1324
  %1326 = vrot.lane.b32.xlu0 %v350, 12
  %v1327 = vpop.permute.xlu0 %1326
  %1328 = vrot.lane.b32.xlu0 %v351, 12
  %v1329 = vpop.permute.xlu0 %1328
  %1330 = vrot.lane.b32.xlu0 %v353, 12
  %v1331 = vpop.permute.xlu0 %1330
  %1332 = vrot.lane.b32.xlu0 %v354, 12
  %v1333 = vpop.permute.xlu0 %1332
  %1334 = vrot.lane.b32.xlu0 %v356, 12
  %v1335 = vpop.permute.xlu0 %1334
  %1336 = vrot.lane.b32.xlu0 %v357, 12
  %v1337 = vpop.permute.xlu0 %1336
  %1338 = vrot.lane.b32.xlu0 %v359, 12
  %v1339 = vpop.permute.xlu0 %1338
  %1340 = vrot.lane.b32.xlu0 %v360, 12
  %v1341 = vpop.permute.xlu0 %1340
  %1342 = vrot.lane.b32.xlu0 %v362, 12
  %v1343 = vpop.permute.xlu0 %1342
  %1344 = vrot.lane.b32.xlu0 %v363, 12
  %v1345 = vpop.permute.xlu0 %1344
  %1346 = vrot.lane.b32.xlu0 %v365, 12
  %v1347 = vpop.permute.xlu0 %1346
  %1348 = vrot.lane.b32.xlu0 %v366, 12
  %v1349 = vpop.permute.xlu0 %1348
  %1350 = vrot.lane.b32.xlu0 %v368, 12
  %v1351 = vpop.permute.xlu0 %1350
  %1352 = vrot.lane.b32.xlu0 %v369, 12
  %v1353 = vpop.permute.xlu0 %1352
  %1354 = vrot.lane.b32.xlu0 %v371, 12
  %v1355 = vpop.permute.xlu0 %1354
  %1356 = vrot.lane.b32.xlu0 %v372, 12
  %v1357 = vpop.permute.xlu0 %1356
  %1358 = vrot.lane.b32.xlu0 %v374, 12
  %v1359 = vpop.permute.xlu0 %1358
  %1360 = vrot.lane.b32.xlu0 %v375, 12
  %v1361 = vpop.permute.xlu0 %1360
  %1426 = vrot.lane.b32.xlu0 %v484, 16
  %v1427 = vpop.permute.xlu0 %1426
  %1428 = vrot.lane.b32.xlu0 %v486, 16
  %v1429 = vpop.permute.xlu0 %1428
  %1430 = vrot.lane.b32.xlu0 %v489, 16
  %v1431 = vpop.permute.xlu0 %1430
  %1432 = vrot.lane.b32.xlu0 %v491, 16
  %v1433 = vpop.permute.xlu0 %1432
  %1434 = vrot.lane.b32.xlu0 %v494, 16
  %v1435 = vpop.permute.xlu0 %1434
  %1436 = vrot.lane.b32.xlu0 %v496, 16
  %v1437 = vpop.permute.xlu0 %1436
  %1438 = vrot.lane.b32.xlu0 %v499, 16
  %v1439 = vpop.permute.xlu0 %1438
  %1440 = vrot.lane.b32.xlu0 %v501, 16
  %v1441 = vpop.permute.xlu0 %1440
  %1442 = vrot.lane.b32.xlu0 %v504, 16
  %v1443 = vpop.permute.xlu0 %1442
  %1444 = vrot.lane.b32.xlu0 %v506, 16
  %v1445 = vpop.permute.xlu0 %1444
  %1446 = vrot.lane.b32.xlu0 %v509, 16
  %v1447 = vpop.permute.xlu0 %1446
  %1448 = vrot.lane.b32.xlu0 %v511, 16
  %v1449 = vpop.permute.xlu0 %1448
  %1450 = vrot.lane.b32.xlu0 %v514, 16
  %v1451 = vpop.permute.xlu0 %1450
  %1452 = vrot.lane.b32.xlu0 %v516, 16
  %v1453 = vpop.permute.xlu0 %1452
  %1454 = vrot.lane.b32.xlu0 %v519, 16
  %v1455 = vpop.permute.xlu0 %1454
  %1456 = vrot.lane.b32.xlu0 %v521, 16
  %v1457 = vpop.permute.xlu0 %1456
  %1458 = vrot.lane.b32.xlu0 %v524, 16
  %v1459 = vpop.permute.xlu0 %1458
  %1460 = vrot.lane.b32.xlu0 %v526, 16
  %v1461 = vpop.permute.xlu0 %1460
  %1462 = vrot.lane.b32.xlu0 %v529, 16
  %v1463 = vpop.permute.xlu0 %1462
  %1464 = vrot.lane.b32.xlu0 %v531, 16
  %v1465 = vpop.permute.xlu0 %1464
  %1466 = vrot.lane.b32.xlu0 %v534, 16
  %v1467 = vpop.permute.xlu0 %1466
  %1468 = vrot.lane.b32.xlu0 %v536, 16
  %v1469 = vpop.permute.xlu0 %1468
  %1470 = vrot.lane.b32.xlu0 %v539, 16
  %v1471 = vpop.permute.xlu0 %1470
  %1472 = vrot.lane.b32.xlu0 %v541, 16
  %v1473 = vpop.permute.xlu0 %1472
  %1474 = vrot.lane.b32.xlu0 %v544, 16
  %v1475 = vpop.permute.xlu0 %1474
  %1476 = vrot.lane.b32.xlu0 %v546, 16
  %v1477 = vpop.permute.xlu0 %1476
  %1478 = vrot.lane.b32.xlu0 %v549, 16
  %v1479 = vpop.permute.xlu0 %1478
  %1480 = vrot.lane.b32.xlu0 %v551, 16
  %v1481 = vpop.permute.xlu0 %1480
  %1482 = vrot.lane.b32.xlu0 %v554, 16
  %v1483 = vpop.permute.xlu0 %1482
  %1484 = vrot.lane.b32.xlu0 %v556, 16
  %v1485 = vpop.permute.xlu0 %1484
  %1486 = vrot.lane.b32.xlu0 %v806, 16
  %v1487 = vpop.permute.xlu0 %1486
  %1488 = vrot.lane.b32.xlu0 %v808, 16
  %v1489 = vpop.permute.xlu0 %1488
  %1490 = vrot.lane.b32.xlu0 %v564, 16
  %v1491 = vpop.permute.xlu0 %1490
  %1492 = vrot.lane.b32.xlu0 %v566, 16
  %v1493 = vpop.permute.xlu0 %1492
  %1494 = vrot.lane.b32.xlu0 %v569, 16
  %v1495 = vpop.permute.xlu0 %1494
  %1496 = vrot.lane.b32.xlu0 %v571, 16
  %v1497 = vpop.permute.xlu0 %1496
  %1498 = vrot.lane.b32.xlu0 %v574, 16
  %v1499 = vpop.permute.xlu0 %1498
  %1500 = vrot.lane.b32.xlu0 %v576, 16
  %v1501 = vpop.permute.xlu0 %1500
  %1502 = vrot.lane.b32.xlu0 %v579, 16
  %v1503 = vpop.permute.xlu0 %1502
  %1504 = vrot.lane.b32.xlu0 %v581, 16
  %v1505 = vpop.permute.xlu0 %1504
  %1506 = vrot.lane.b32.xlu0 %v584, 16
  %v1507 = vpop.permute.xlu0 %1506
  %1508 = vrot.lane.b32.xlu0 %v586, 16
  %v1509 = vpop.permute.xlu0 %1508
  %1510 = vrot.lane.b32.xlu0 %v589, 16
  %v1511 = vpop.permute.xlu0 %1510
  %1512 = vrot.lane.b32.xlu0 %v591, 16
  %v1513 = vpop.permute.xlu0 %1512
  %1514 = vrot.lane.b32.xlu0 %v594, 16
  %v1515 = vpop.permute.xlu0 %1514
  %1516 = vrot.lane.b32.xlu0 %v596, 16
  %v1517 = vpop.permute.xlu0 %1516
  %1518 = vrot.lane.b32.xlu0 %v599, 16
  %v1519 = vpop.permute.xlu0 %1518
  %1520 = vrot.lane.b32.xlu0 %v601, 16
  %v1521 = vpop.permute.xlu0 %1520
  %1522 = vrot.lane.b32.xlu0 %v604, 16
  %v1523 = vpop.permute.xlu0 %1522
  %1524 = vrot.lane.b32.xlu0 %v606, 16
  %v1525 = vpop.permute.xlu0 %1524
  %1526 = vrot.lane.b32.xlu0 %v609, 16
  %v1527 = vpop.permute.xlu0 %1526
  %1528 = vrot.lane.b32.xlu0 %v611, 16
  %v1529 = vpop.permute.xlu0 %1528
  %1530 = vrot.lane.b32.xlu0 %v614, 16
  %v1531 = vpop.permute.xlu0 %1530
  %1532 = vrot.lane.b32.xlu0 %v616, 16
  %v1533 = vpop.permute.xlu0 %1532
  %1534 = vrot.lane.b32.xlu0 %v619, 16
  %v1535 = vpop.permute.xlu0 %1534
  %1536 = vrot.lane.b32.xlu0 %v621, 16
  %v1537 = vpop.permute.xlu0 %1536
  %1538 = vrot.lane.b32.xlu0 %v624, 16
  %v1539 = vpop.permute.xlu0 %1538
  %1540 = vrot.lane.b32.xlu0 %v626, 16
  %v1541 = vpop.permute.xlu0 %1540
  %1542 = vrot.lane.b32.xlu0 %v629, 16
  %v1543 = vpop.permute.xlu0 %1542
  %1544 = vrot.lane.b32.xlu0 %v631, 16
  %v1545 = vpop.permute.xlu0 %1544
  %1546 = vrot.lane.b32.xlu0 %v634, 16
  %v1547 = vpop.permute.xlu0 %1546
  %1548 = vrot.lane.b32.xlu0 %v636, 16
  %v1549 = vpop.permute.xlu0 %1548
  %1550 = vrot.lane.b32.xlu0 %v811, 16
  %v1551 = vpop.permute.xlu0 %1550
  %1552 = vrot.lane.b32.xlu0 %v813, 16
  %v1553 = vpop.permute.xlu0 %1552
  %1618 = vrot.lane.b32.xlu0 %v645, 20
  %v1619 = vpop.permute.xlu0 %1618
  %1620 = vrot.lane.b32.xlu0 %v647, 20
  %v1621 = vpop.permute.xlu0 %1620
  %1622 = vrot.lane.b32.xlu0 %v650, 20
  %v1623 = vpop.permute.xlu0 %1622
  %1624 = vrot.lane.b32.xlu0 %v652, 20
  %v1625 = vpop.permute.xlu0 %1624
  %1626 = vrot.lane.b32.xlu0 %v655, 20
  %v1627 = vpop.permute.xlu0 %1626
  %1628 = vrot.lane.b32.xlu0 %v657, 20
  %v1629 = vpop.permute.xlu0 %1628
  %1630 = vrot.lane.b32.xlu0 %v660, 20
  %v1631 = vpop.permute.xlu0 %1630
  %1632 = vrot.lane.b32.xlu0 %v662, 20
  %v1633 = vpop.permute.xlu0 %1632
  %1634 = vrot.lane.b32.xlu0 %v665, 20
  %v1635 = vpop.permute.xlu0 %1634
  %1636 = vrot.lane.b32.xlu0 %v667, 20
  %v1637 = vpop.permute.xlu0 %1636
  %1638 = vrot.lane.b32.xlu0 %v670, 20
  %v1639 = vpop.permute.xlu0 %1638
  %1640 = vrot.lane.b32.xlu0 %v672, 20
  %v1641 = vpop.permute.xlu0 %1640
  %1642 = vrot.lane.b32.xlu0 %v675, 20
  %v1643 = vpop.permute.xlu0 %1642
  %1644 = vrot.lane.b32.xlu0 %v677, 20
  %v1645 = vpop.permute.xlu0 %1644
  %1646 = vrot.lane.b32.xlu0 %v680, 20
  %v1647 = vpop.permute.xlu0 %1646
  %1648 = vrot.lane.b32.xlu0 %v682, 20
  %v1649 = vpop.permute.xlu0 %1648
  %1650 = vrot.lane.b32.xlu0 %v685, 20
  %v1651 = vpop.permute.xlu0 %1650
  %1652 = vrot.lane.b32.xlu0 %v687, 20
  %v1653 = vpop.permute.xlu0 %1652
  %1654 = vrot.lane.b32.xlu0 %v690, 20
  %v1655 = vpop.permute.xlu0 %1654
  %1656 = vrot.lane.b32.xlu0 %v692, 20
  %v1657 = vpop.permute.xlu0 %1656
  %1658 = vrot.lane.b32.xlu0 %v695, 20
  %v1659 = vpop.permute.xlu0 %1658
  %1660 = vrot.lane.b32.xlu0 %v697, 20
  %v1661 = vpop.permute.xlu0 %1660
  %1662 = vrot.lane.b32.xlu0 %v700, 20
  %v1663 = vpop.permute.xlu0 %1662
  %1664 = vrot.lane.b32.xlu0 %v702, 20
  %v1665 = vpop.permute.xlu0 %1664
  %1666 = vrot.lane.b32.xlu0 %v705, 20
  %v1667 = vpop.permute.xlu0 %1666
  %1668 = vrot.lane.b32.xlu0 %v707, 20
  %v1669 = vpop.permute.xlu0 %1668
  %1670 = vrot.lane.b32.xlu0 %v710, 20
  %v1671 = vpop.permute.xlu0 %1670
  %1672 = vrot.lane.b32.xlu0 %v712, 20
  %v1673 = vpop.permute.xlu0 %1672
  %1674 = vrot.lane.b32.xlu0 %v715, 20
  %v1675 = vpop.permute.xlu0 %1674
  %1676 = vrot.lane.b32.xlu0 %v717, 20
  %v1677 = vpop.permute.xlu0 %1676
  %1678 = vrot.lane.b32.xlu0 %v816, 20
  %v1679 = vpop.permute.xlu0 %1678
  %1680 = vrot.lane.b32.xlu0 %v818, 20
  %v1681 = vpop.permute.xlu0 %1680
  %1682 = vrot.lane.b32.xlu0 %v725, 20
  %v1683 = vpop.permute.xlu0 %1682
  %1684 = vrot.lane.b32.xlu0 %v727, 20
  %v1685 = vpop.permute.xlu0 %1684
  %1686 = vrot.lane.b32.xlu0 %v730, 20
  %v1687 = vpop.permute.xlu0 %1686
  %1688 = vrot.lane.b32.xlu0 %v732, 20
  %v1689 = vpop.permute.xlu0 %1688
  %1690 = vrot.lane.b32.xlu0 %v735, 20
  %v1691 = vpop.permute.xlu0 %1690
  %1692 = vrot.lane.b32.xlu0 %v737, 20
  %v1693 = vpop.permute.xlu0 %1692
  %1694 = vrot.lane.b32.xlu0 %v740, 20
  %v1695 = vpop.permute.xlu0 %1694
  %1696 = vrot.lane.b32.xlu0 %v742, 20
  %v1697 = vpop.permute.xlu0 %1696
  %1698 = vrot.lane.b32.xlu0 %v745, 20
  %v1699 = vpop.permute.xlu0 %1698
  %1700 = vrot.lane.b32.xlu0 %v747, 20
  %v1701 = vpop.permute.xlu0 %1700
  %1702 = vrot.lane.b32.xlu0 %v750, 20
  %v1703 = vpop.permute.xlu0 %1702
  %1704 = vrot.lane.b32.xlu0 %v752, 20
  %v1705 = vpop.permute.xlu0 %1704
  %1706 = vrot.lane.b32.xlu0 %v755, 20
  %v1707 = vpop.permute.xlu0 %1706
  %1708 = vrot.lane.b32.xlu0 %v757, 20
  %v1709 = vpop.permute.xlu0 %1708
  %1710 = vrot.lane.b32.xlu0 %v760, 20
  %v1711 = vpop.permute.xlu0 %1710
  %1712 = vrot.lane.b32.xlu0 %v762, 20
  %v1713 = vpop.permute.xlu0 %1712
  %1714 = vrot.lane.b32.xlu0 %v765, 20
  %v1715 = vpop.permute.xlu0 %1714
  %1716 = vrot.lane.b32.xlu0 %v767, 20
  %v1717 = vpop.permute.xlu0 %1716
  %1718 = vrot.lane.b32.xlu0 %v770, 20
  %v1719 = vpop.permute.xlu0 %1718
  %1720 = vrot.lane.b32.xlu0 %v772, 20
  %v1721 = vpop.permute.xlu0 %1720
  %1722 = vrot.lane.b32.xlu0 %v775, 20
  %v1723 = vpop.permute.xlu0 %1722
  %1724 = vrot.lane.b32.xlu0 %v777, 20
  %v1725 = vpop.permute.xlu0 %1724
  %1726 = vrot.lane.b32.xlu0 %v780, 20
  %v1727 = vpop.permute.xlu0 %1726
  %1728 = vrot.lane.b32.xlu0 %v782, 20
  %v1729 = vpop.permute.xlu0 %1728
  %1730 = vrot.lane.b32.xlu0 %v785, 20
  %v1731 = vpop.permute.xlu0 %1730
  %1732 = vrot.lane.b32.xlu0 %v787, 20
  %v1733 = vpop.permute.xlu0 %1732
  %1734 = vrot.lane.b32.xlu0 %v790, 20
  %v1735 = vpop.permute.xlu0 %1734
  %1736 = vrot.lane.b32.xlu0 %v792, 20
  %v1737 = vpop.permute.xlu0 %1736
  %1738 = vrot.lane.b32.xlu0 %v795, 20
  %v1739 = vpop.permute.xlu0 %1738
  %1740 = vrot.lane.b32.xlu0 %v797, 20
  %v1741 = vpop.permute.xlu0 %1740
  %1742 = vrot.lane.b32.xlu0 %v821, 20
  %v1743 = vpop.permute.xlu0 %1742
  %1744 = vrot.lane.b32.xlu0 %v823, 20
  %v1745 = vpop.permute.xlu0 %1744
  %1810 = vrot.lane.b32.xlu0 %v278, 24
  %v1811 = vpop.permute.xlu0 %1810
  %1812 = vrot.lane.b32.xlu0 %v279, 24
  %v1813 = vpop.permute.xlu0 %1812
  %1814 = vrot.lane.b32.xlu0 %v281, 24
  %v1815 = vpop.permute.xlu0 %1814
  %1816 = vrot.lane.b32.xlu0 %v282, 24
  %v1817 = vpop.permute.xlu0 %1816
  %1818 = vrot.lane.b32.xlu0 %v284, 24
  %v1819 = vpop.permute.xlu0 %1818
  %1820 = vrot.lane.b32.xlu0 %v285, 24
  %v1821 = vpop.permute.xlu0 %1820
  %1822 = vrot.lane.b32.xlu0 %v287, 24
  %v1823 = vpop.permute.xlu0 %1822
  %1824 = vrot.lane.b32.xlu0 %v288, 24
  %v1825 = vpop.permute.xlu0 %1824
  %1826 = vrot.lane.b32.xlu0 %v290, 24
  %v1827 = vpop.permute.xlu0 %1826
  %1828 = vrot.lane.b32.xlu0 %v291, 24
  %v1829 = vpop.permute.xlu0 %1828
  %1830 = vrot.lane.b32.xlu0 %v293, 24
  %v1831 = vpop.permute.xlu0 %1830
  %1832 = vrot.lane.b32.xlu0 %v294, 24
  %v1833 = vpop.permute.xlu0 %1832
  %1834 = vrot.lane.b32.xlu0 %v296, 24
  %v1835 = vpop.permute.xlu0 %1834
  %1836 = vrot.lane.b32.xlu0 %v297, 24
  %v1837 = vpop.permute.xlu0 %1836
  %1838 = vrot.lane.b32.xlu0 %v299, 24
  %v1839 = vpop.permute.xlu0 %1838
  %1840 = vrot.lane.b32.xlu0 %v300, 24
  %v1841 = vpop.permute.xlu0 %1840
  %1842 = vrot.lane.b32.xlu0 %v302, 24
  %v1843 = vpop.permute.xlu0 %1842
  %1844 = vrot.lane.b32.xlu0 %v303, 24
  %v1845 = vpop.permute.xlu0 %1844
  %1846 = vrot.lane.b32.xlu0 %v305, 24
  %v1847 = vpop.permute.xlu0 %1846
  %1848 = vrot.lane.b32.xlu0 %v306, 24
  %v1849 = vpop.permute.xlu0 %1848
  %1850 = vrot.lane.b32.xlu0 %v308, 24
  %v1851 = vpop.permute.xlu0 %1850
  %1852 = vrot.lane.b32.xlu0 %v309, 24
  %v1853 = vpop.permute.xlu0 %1852
  %1854 = vrot.lane.b32.xlu0 %v311, 24
  %v1855 = vpop.permute.xlu0 %1854
  %1856 = vrot.lane.b32.xlu0 %v312, 24
  %v1857 = vpop.permute.xlu0 %1856
  %1858 = vrot.lane.b32.xlu0 %v314, 24
  %v1859 = vpop.permute.xlu0 %1858
  %1860 = vrot.lane.b32.xlu0 %v315, 24
  %v1861 = vpop.permute.xlu0 %1860
  %1862 = vrot.lane.b32.xlu0 %v317, 24
  %v1863 = vpop.permute.xlu0 %1862
  %1864 = vrot.lane.b32.xlu0 %v318, 24
  %v1865 = vpop.permute.xlu0 %1864
  %1866 = vrot.lane.b32.xlu0 %v320, 24
  %v1867 = vpop.permute.xlu0 %1866
  %1868 = vrot.lane.b32.xlu0 %v321, 24
  %v1869 = vpop.permute.xlu0 %1868
  %1870 = vrot.lane.b32.xlu0 %v323, 24
  %v1871 = vpop.permute.xlu0 %1870
  %1872 = vrot.lane.b32.xlu0 %v324, 24
  %v1873 = vpop.permute.xlu0 %1872
  %1874 = vrot.lane.b32.xlu0 %v332, 24
  %v1875 = vpop.permute.xlu0 %1874
  %1876 = vrot.lane.b32.xlu0 %v333, 24
  %v1877 = vpop.permute.xlu0 %1876
  %1878 = vrot.lane.b32.xlu0 %v335, 24
  %v1879 = vpop.permute.xlu0 %1878
  %1880 = vrot.lane.b32.xlu0 %v336, 24
  %v1881 = vpop.permute.xlu0 %1880
  %1882 = vrot.lane.b32.xlu0 %v338, 24
  %v1883 = vpop.permute.xlu0 %1882
  %1884 = vrot.lane.b32.xlu0 %v339, 24
  %v1885 = vpop.permute.xlu0 %1884
  %1886 = vrot.lane.b32.xlu0 %v341, 24
  %v1887 = vpop.permute.xlu0 %1886
  %1888 = vrot.lane.b32.xlu0 %v342, 24
  %v1889 = vpop.permute.xlu0 %1888
  %1890 = vrot.lane.b32.xlu0 %v344, 24
  %v1891 = vpop.permute.xlu0 %1890
  %1892 = vrot.lane.b32.xlu0 %v345, 24
  %v1893 = vpop.permute.xlu0 %1892
  %1894 = vrot.lane.b32.xlu0 %v347, 24
  %v1895 = vpop.permute.xlu0 %1894
  %1896 = vrot.lane.b32.xlu0 %v348, 24
  %v1897 = vpop.permute.xlu0 %1896
  %1898 = vrot.lane.b32.xlu0 %v350, 24
  %v1899 = vpop.permute.xlu0 %1898
  %1900 = vrot.lane.b32.xlu0 %v351, 24
  %v1901 = vpop.permute.xlu0 %1900
  %1902 = vrot.lane.b32.xlu0 %v353, 24
  %v1903 = vpop.permute.xlu0 %1902
  %1904 = vrot.lane.b32.xlu0 %v354, 24
  %v1905 = vpop.permute.xlu0 %1904
  %1906 = vrot.lane.b32.xlu0 %v356, 24
  %v1907 = vpop.permute.xlu0 %1906
  %1908 = vrot.lane.b32.xlu0 %v357, 24
  %v1909 = vpop.permute.xlu0 %1908
  %1910 = vrot.lane.b32.xlu0 %v359, 24
  %v1911 = vpop.permute.xlu0 %1910
  %1912 = vrot.lane.b32.xlu0 %v360, 24
  %v1913 = vpop.permute.xlu0 %1912
  %1914 = vrot.lane.b32.xlu0 %v362, 24
  %v1915 = vpop.permute.xlu0 %1914
  %1916 = vrot.lane.b32.xlu0 %v363, 24
  %v1917 = vpop.permute.xlu0 %1916
  %1918 = vrot.lane.b32.xlu0 %v365, 24
  %v1919 = vpop.permute.xlu0 %1918
  %1920 = vrot.lane.b32.xlu0 %v366, 24
  %v1921 = vpop.permute.xlu0 %1920
  %1922 = vrot.lane.b32.xlu0 %v368, 24
  %v1923 = vpop.permute.xlu0 %1922
  %1924 = vrot.lane.b32.xlu0 %v369, 24
  %v1925 = vpop.permute.xlu0 %1924
  %1926 = vrot.lane.b32.xlu0 %v371, 24
  %v1927 = vpop.permute.xlu0 %1926
  %1928 = vrot.lane.b32.xlu0 %v372, 24
  %v1929 = vpop.permute.xlu0 %1928
  %1930 = vrot.lane.b32.xlu0 %v374, 24
  %v1931 = vpop.permute.xlu0 %1930
  %1932 = vrot.lane.b32.xlu0 %v375, 24
  %v1933 = vpop.permute.xlu0 %1932
  %1934 = vrot.lane.b32.xlu0 %v377, 24
  %v1935 = vpop.permute.xlu0 %1934
  %1936 = vrot.lane.b32.xlu0 %v378, 24
  %v1937 = vpop.permute.xlu0 %1936
  %2002 = vrot.lane.b32.xlu0 %v489, 28
  %v2003 = vpop.permute.xlu0 %2002
  %2004 = vrot.lane.b32.xlu0 %v491, 28
  %v2005 = vpop.permute.xlu0 %2004
  %2006 = vrot.lane.b32.xlu0 %v494, 28
  %v2007 = vpop.permute.xlu0 %2006
  %2008 = vrot.lane.b32.xlu0 %v496, 28
  %v2009 = vpop.permute.xlu0 %2008
  %2010 = vrot.lane.b32.xlu0 %v499, 28
  %v2011 = vpop.permute.xlu0 %2010
  %2012 = vrot.lane.b32.xlu0 %v501, 28
  %v2013 = vpop.permute.xlu0 %2012
  %2014 = vrot.lane.b32.xlu0 %v504, 28
  %v2015 = vpop.permute.xlu0 %2014
  %2016 = vrot.lane.b32.xlu0 %v506, 28
  %v2017 = vpop.permute.xlu0 %2016
  %2018 = vrot.lane.b32.xlu0 %v509, 28
  %v2019 = vpop.permute.xlu0 %2018
  %2020 = vrot.lane.b32.xlu0 %v511, 28
  %v2021 = vpop.permute.xlu0 %2020
  %2022 = vrot.lane.b32.xlu0 %v514, 28
  %v2023 = vpop.permute.xlu0 %2022
  %2024 = vrot.lane.b32.xlu0 %v516, 28
  %v2025 = vpop.permute.xlu0 %2024
  %2026 = vrot.lane.b32.xlu0 %v519, 28
  %v2027 = vpop.permute.xlu0 %2026
  %2028 = vrot.lane.b32.xlu0 %v521, 28
  %v2029 = vpop.permute.xlu0 %2028
  %2030 = vrot.lane.b32.xlu0 %v524, 28
  %v2031 = vpop.permute.xlu0 %2030
  %2032 = vrot.lane.b32.xlu0 %v526, 28
  %v2033 = vpop.permute.xlu0 %2032
  %2034 = vrot.lane.b32.xlu0 %v529, 28
  %v2035 = vpop.permute.xlu0 %2034
  %2036 = vrot.lane.b32.xlu0 %v531, 28
  %v2037 = vpop.permute.xlu0 %2036
  %2038 = vrot.lane.b32.xlu0 %v534, 28
  %v2039 = vpop.permute.xlu0 %2038
  %2040 = vrot.lane.b32.xlu0 %v536, 28
  %v2041 = vpop.permute.xlu0 %2040
  %2042 = vrot.lane.b32.xlu0 %v539, 28
  %v2043 = vpop.permute.xlu0 %2042
  %2044 = vrot.lane.b32.xlu0 %v541, 28
  %v2045 = vpop.permute.xlu0 %2044
  %2046 = vrot.lane.b32.xlu0 %v544, 28
  %v2047 = vpop.permute.xlu0 %2046
  %2048 = vrot.lane.b32.xlu0 %v546, 28
  %v2049 = vpop.permute.xlu0 %2048
  %2050 = vrot.lane.b32.xlu0 %v549, 28
  %v2051 = vpop.permute.xlu0 %2050
  %2052 = vrot.lane.b32.xlu0 %v551, 28
  %v2053 = vpop.permute.xlu0 %2052
  %2054 = vrot.lane.b32.xlu0 %v554, 28
  %v2055 = vpop.permute.xlu0 %2054
  %2056 = vrot.lane.b32.xlu0 %v556, 28
  %v2057 = vpop.permute.xlu0 %2056
  %2058 = vrot.lane.b32.xlu0 %v806, 28
  %v2059 = vpop.permute.xlu0 %2058
  %2060 = vrot.lane.b32.xlu0 %v808, 28
  %v2061 = vpop.permute.xlu0 %2060
  %2062 = vrot.lane.b32.xlu0 %v832, 28
  %v2063 = vpop.permute.xlu0 %2062
  %2064 = vrot.lane.b32.xlu0 %v834, 28
  %v2065 = vpop.permute.xlu0 %2064
  %2066 = vrot.lane.b32.xlu0 %v569, 28
  %v2067 = vpop.permute.xlu0 %2066
  %2068 = vrot.lane.b32.xlu0 %v571, 28
  %v2069 = vpop.permute.xlu0 %2068
  %2070 = vrot.lane.b32.xlu0 %v574, 28
  %v2071 = vpop.permute.xlu0 %2070
  %2072 = vrot.lane.b32.xlu0 %v576, 28
  %v2073 = vpop.permute.xlu0 %2072
  %2074 = vrot.lane.b32.xlu0 %v579, 28
  %v2075 = vpop.permute.xlu0 %2074
  %2076 = vrot.lane.b32.xlu0 %v581, 28
  %v2077 = vpop.permute.xlu0 %2076
  %2078 = vrot.lane.b32.xlu0 %v584, 28
  %v2079 = vpop.permute.xlu0 %2078
  %2080 = vrot.lane.b32.xlu0 %v586, 28
  %v2081 = vpop.permute.xlu0 %2080
  %2082 = vrot.lane.b32.xlu0 %v589, 28
  %v2083 = vpop.permute.xlu0 %2082
  %2084 = vrot.lane.b32.xlu0 %v591, 28
  %v2085 = vpop.permute.xlu0 %2084
  %2086 = vrot.lane.b32.xlu0 %v594, 28
  %v2087 = vpop.permute.xlu0 %2086
  %2088 = vrot.lane.b32.xlu0 %v596, 28
  %v2089 = vpop.permute.xlu0 %2088
  %2090 = vrot.lane.b32.xlu0 %v599, 28
  %v2091 = vpop.permute.xlu0 %2090
  %2092 = vrot.lane.b32.xlu0 %v601, 28
  %v2093 = vpop.permute.xlu0 %2092
  %2094 = vrot.lane.b32.xlu0 %v604, 28
  %v2095 = vpop.permute.xlu0 %2094
  %2096 = vrot.lane.b32.xlu0 %v606, 28
  %v2097 = vpop.permute.xlu0 %2096
  %2098 = vrot.lane.b32.xlu0 %v609, 28
  %v2099 = vpop.permute.xlu0 %2098
  %2100 = vrot.lane.b32.xlu0 %v611, 28
  %v2101 = vpop.permute.xlu0 %2100
  %2102 = vrot.lane.b32.xlu0 %v614, 28
  %v2103 = vpop.permute.xlu0 %2102
  %2104 = vrot.lane.b32.xlu0 %v616, 28
  %v2105 = vpop.permute.xlu0 %2104
  %2106 = vrot.lane.b32.xlu0 %v619, 28
  %v2107 = vpop.permute.xlu0 %2106
  %2108 = vrot.lane.b32.xlu0 %v621, 28
  %v2109 = vpop.permute.xlu0 %2108
  %2110 = vrot.lane.b32.xlu0 %v624, 28
  %v2111 = vpop.permute.xlu0 %2110
  %2112 = vrot.lane.b32.xlu0 %v626, 28
  %v2113 = vpop.permute.xlu0 %2112
  %2114 = vrot.lane.b32.xlu0 %v629, 28
  %v2115 = vpop.permute.xlu0 %2114
  %2116 = vrot.lane.b32.xlu0 %v631, 28
  %v2117 = vpop.permute.xlu0 %2116
  %2118 = vrot.lane.b32.xlu0 %v634, 28
  %v2119 = vpop.permute.xlu0 %2118
  %2120 = vrot.lane.b32.xlu0 %v636, 28
  %v2121 = vpop.permute.xlu0 %2120
  %2122 = vrot.lane.b32.xlu0 %v811, 28
  %v2123 = vpop.permute.xlu0 %2122
  %2124 = vrot.lane.b32.xlu0 %v813, 28
  %v2125 = vpop.permute.xlu0 %2124
  %2126 = vrot.lane.b32.xlu0 %v837, 28
  %v2127 = vpop.permute.xlu0 %2126
  %2128 = vrot.lane.b32.xlu0 %v839, 28
  %v2129 = vpop.permute.xlu0 %2128
  %2194 = vrot.lane.b32.xlu0 %v650, 32
  %v2195 = vpop.permute.xlu0 %2194
  %2196 = vrot.lane.b32.xlu0 %v652, 32
  %v2197 = vpop.permute.xlu0 %2196
  %2198 = vrot.lane.b32.xlu0 %v655, 32
  %v2199 = vpop.permute.xlu0 %2198
  %2200 = vrot.lane.b32.xlu0 %v657, 32
  %v2201 = vpop.permute.xlu0 %2200
  %2202 = vrot.lane.b32.xlu0 %v660, 32
  %v2203 = vpop.permute.xlu0 %2202
  %2204 = vrot.lane.b32.xlu0 %v662, 32
  %v2205 = vpop.permute.xlu0 %2204
  %2206 = vrot.lane.b32.xlu0 %v665, 32
  %v2207 = vpop.permute.xlu0 %2206
  %2208 = vrot.lane.b32.xlu0 %v667, 32
  %v2209 = vpop.permute.xlu0 %2208
  %2210 = vrot.lane.b32.xlu0 %v670, 32
  %v2211 = vpop.permute.xlu0 %2210
  %2212 = vrot.lane.b32.xlu0 %v672, 32
  %v2213 = vpop.permute.xlu0 %2212
  %2214 = vrot.lane.b32.xlu0 %v675, 32
  %v2215 = vpop.permute.xlu0 %2214
  %2216 = vrot.lane.b32.xlu0 %v677, 32
  %v2217 = vpop.permute.xlu0 %2216
  %2218 = vrot.lane.b32.xlu0 %v680, 32
  %v2219 = vpop.permute.xlu0 %2218
  %2220 = vrot.lane.b32.xlu0 %v682, 32
  %v2221 = vpop.permute.xlu0 %2220
  %2222 = vrot.lane.b32.xlu0 %v685, 32
  %v2223 = vpop.permute.xlu0 %2222
  %2224 = vrot.lane.b32.xlu0 %v687, 32
  %v2225 = vpop.permute.xlu0 %2224
  %2226 = vrot.lane.b32.xlu0 %v690, 32
  %v2227 = vpop.permute.xlu0 %2226
  %2228 = vrot.lane.b32.xlu0 %v692, 32
  %v2229 = vpop.permute.xlu0 %2228
  %2230 = vrot.lane.b32.xlu0 %v695, 32
  %v2231 = vpop.permute.xlu0 %2230
  %2232 = vrot.lane.b32.xlu0 %v697, 32
  %v2233 = vpop.permute.xlu0 %2232
  %2234 = vrot.lane.b32.xlu0 %v700, 32
  %v2235 = vpop.permute.xlu0 %2234
  %2236 = vrot.lane.b32.xlu0 %v702, 32
  %v2237 = vpop.permute.xlu0 %2236
  %2238 = vrot.lane.b32.xlu0 %v705, 32
  %v2239 = vpop.permute.xlu0 %2238
  %2240 = vrot.lane.b32.xlu0 %v707, 32
  %v2241 = vpop.permute.xlu0 %2240
  %2242 = vrot.lane.b32.xlu0 %v710, 32
  %v2243 = vpop.permute.xlu0 %2242
  %2244 = vrot.lane.b32.xlu0 %v712, 32
  %v2245 = vpop.permute.xlu0 %2244
  %2246 = vrot.lane.b32.xlu0 %v715, 32
  %v2247 = vpop.permute.xlu0 %2246
  %2248 = vrot.lane.b32.xlu0 %v717, 32
  %v2249 = vpop.permute.xlu0 %2248
  %2250 = vrot.lane.b32.xlu0 %v816, 32
  %v2251 = vpop.permute.xlu0 %2250
  %2252 = vrot.lane.b32.xlu0 %v818, 32
  %v2253 = vpop.permute.xlu0 %2252
  %2254 = vrot.lane.b32.xlu0 %v842, 32
  %v2255 = vpop.permute.xlu0 %2254
  %2256 = vrot.lane.b32.xlu0 %v844, 32
  %v2257 = vpop.permute.xlu0 %2256
  %2258 = vrot.lane.b32.xlu0 %v730, 32
  %v2259 = vpop.permute.xlu0 %2258
  %2260 = vrot.lane.b32.xlu0 %v732, 32
  %v2261 = vpop.permute.xlu0 %2260
  %2262 = vrot.lane.b32.xlu0 %v735, 32
  %v2263 = vpop.permute.xlu0 %2262
  %2264 = vrot.lane.b32.xlu0 %v737, 32
  %v2265 = vpop.permute.xlu0 %2264
  %2266 = vrot.lane.b32.xlu0 %v740, 32
  %v2267 = vpop.permute.xlu0 %2266
  %2268 = vrot.lane.b32.xlu0 %v742, 32
  %v2269 = vpop.permute.xlu0 %2268
  %2270 = vrot.lane.b32.xlu0 %v745, 32
  %v2271 = vpop.permute.xlu0 %2270
  %2272 = vrot.lane.b32.xlu0 %v747, 32
  %v2273 = vpop.permute.xlu0 %2272
  %2274 = vrot.lane.b32.xlu0 %v750, 32
  %v2275 = vpop.permute.xlu0 %2274
  %2276 = vrot.lane.b32.xlu0 %v752, 32
  %v2277 = vpop.permute.xlu0 %2276
  %2278 = vrot.lane.b32.xlu0 %v755, 32
  %v2279 = vpop.permute.xlu0 %2278
  %2280 = vrot.lane.b32.xlu0 %v757, 32
  %v2281 = vpop.permute.xlu0 %2280
  %2282 = vrot.lane.b32.xlu0 %v760, 32
  %v2283 = vpop.permute.xlu0 %2282
  %2284 = vrot.lane.b32.xlu0 %v762, 32
  %v2285 = vpop.permute.xlu0 %2284
  %2286 = vrot.lane.b32.xlu0 %v765, 32
  %v2287 = vpop.permute.xlu0 %2286
  %2288 = vrot.lane.b32.xlu0 %v767, 32
  %v2289 = vpop.permute.xlu0 %2288
  %2290 = vrot.lane.b32.xlu0 %v770, 32
  %v2291 = vpop.permute.xlu0 %2290
  %2292 = vrot.lane.b32.xlu0 %v772, 32
  %v2293 = vpop.permute.xlu0 %2292
  %2294 = vrot.lane.b32.xlu0 %v775, 32
  %v2295 = vpop.permute.xlu0 %2294
  %2296 = vrot.lane.b32.xlu0 %v777, 32
  %v2297 = vpop.permute.xlu0 %2296
  %2298 = vrot.lane.b32.xlu0 %v780, 32
  %v2299 = vpop.permute.xlu0 %2298
  %2300 = vrot.lane.b32.xlu0 %v782, 32
  %v2301 = vpop.permute.xlu0 %2300
  %2302 = vrot.lane.b32.xlu0 %v785, 32
  %v2303 = vpop.permute.xlu0 %2302
  %2304 = vrot.lane.b32.xlu0 %v787, 32
  %v2305 = vpop.permute.xlu0 %2304
  %2306 = vrot.lane.b32.xlu0 %v790, 32
  %v2307 = vpop.permute.xlu0 %2306
  %2308 = vrot.lane.b32.xlu0 %v792, 32
  %v2309 = vpop.permute.xlu0 %2308
  %2310 = vrot.lane.b32.xlu0 %v795, 32
  %v2311 = vpop.permute.xlu0 %2310
  %2312 = vrot.lane.b32.xlu0 %v797, 32
  %v2313 = vpop.permute.xlu0 %2312
  %2314 = vrot.lane.b32.xlu0 %v821, 32
  %v2315 = vpop.permute.xlu0 %2314
  %2316 = vrot.lane.b32.xlu0 %v823, 32
  %v2317 = vpop.permute.xlu0 %2316
  %2318 = vrot.lane.b32.xlu0 %v847, 32
  %v2319 = vpop.permute.xlu0 %2318
  %2320 = vrot.lane.b32.xlu0 %v849, 32
  %v2321 = vpop.permute.xlu0 %2320
  %v2386 = vsel %vm26, %v272, %v851
  %v2387 = vsel %vm26, %v273, %v853
  %v2388 = vsel %vm26, %v275, %v855
  %v2389 = vsel %vm26, %v276, %v857
  %v2390 = vsel %vm26, %v278, %v859
  %v2391 = vsel %vm26, %v279, %v861
  %v2392 = vsel %vm26, %v281, %v863
  %v2393 = vsel %vm26, %v282, %v865
  %v2394 = vsel %vm26, %v284, %v867
  %v2395 = vsel %vm26, %v285, %v869
  %v2396 = vsel %vm26, %v287, %v871
  %v2397 = vsel %vm26, %v288, %v873
  %v2398 = vsel %vm26, %v290, %v875
  %v2399 = vsel %vm26, %v291, %v877
  %v2400 = vsel %vm26, %v293, %v879
  %v2401 = vsel %vm26, %v294, %v881
  %v2402 = vsel %vm26, %v296, %v883
  %v2403 = vsel %vm26, %v297, %v885
  %v2404 = vsel %vm26, %v299, %v887
  %v2405 = vsel %vm26, %v300, %v889
  %v2406 = vsel %vm26, %v302, %v891
  %v2407 = vsel %vm26, %v303, %v893
  %v2408 = vsel %vm26, %v305, %v895
  %v2409 = vsel %vm26, %v306, %v897
  %v2410 = vsel %vm26, %v308, %v899
  %v2411 = vsel %vm26, %v309, %v901
  %v2412 = vsel %vm26, %v311, %v903
  %v2413 = vsel %vm26, %v312, %v905
  %v2414 = vsel %vm26, %v314, %v907
  %v2415 = vsel %vm26, %v315, %v909
  %v2416 = vsel %vm26, %v317, %v911
  %v2417 = vsel %vm26, %v318, %v913
  %v2418 = vsel %vm26, %v326, %v915
  %v2419 = vsel %vm26, %v327, %v917
  %v2420 = vsel %vm26, %v329, %v919
  %v2421 = vsel %vm26, %v330, %v921
  %v2422 = vsel %vm26, %v332, %v923
  %v2423 = vsel %vm26, %v333, %v925
  %v2424 = vsel %vm26, %v335, %v927
  %v2425 = vsel %vm26, %v336, %v929
  %v2426 = vsel %vm26, %v338, %v931
  %v2427 = vsel %vm26, %v339, %v933
  %v2428 = vsel %vm26, %v341, %v935
  %v2429 = vsel %vm26, %v342, %v937
  %v2430 = vsel %vm26, %v344, %v939
  %v2431 = vsel %vm26, %v345, %v941
  %v2432 = vsel %vm26, %v347, %v943
  %v2433 = vsel %vm26, %v348, %v945
  %v2434 = vsel %vm26, %v350, %v947
  %v2435 = vsel %vm26, %v351, %v949
  %v2436 = vsel %vm26, %v353, %v951
  %v2437 = vsel %vm26, %v354, %v953
  %v2438 = vsel %vm26, %v356, %v955
  %v2439 = vsel %vm26, %v357, %v957
  %v2440 = vsel %vm26, %v359, %v959
  %v2441 = vsel %vm26, %v360, %v961
  %v2442 = vsel %vm26, %v362, %v963
  %v2443 = vsel %vm26, %v363, %v965
  %v2444 = vsel %vm26, %v365, %v967
  %v2445 = vsel %vm26, %v366, %v969
  %v2446 = vsel %vm26, %v368, %v971
  %v2447 = vsel %vm26, %v369, %v973
  %v2448 = vsel %vm26, %v371, %v975
  %v2449 = vsel %vm26, %v372, %v977
  %vm2450 = vcmask 64512
  %v2451 = vsel %vm2450, %v2386, %v1043
  %v2452 = vsel %vm2450, %v2387, %v1045
  %v2453 = vsel %vm2450, %v2388, %v1047
  %v2454 = vsel %vm2450, %v2389, %v1049
  %v2455 = vsel %vm2450, %v2390, %v1051
  %v2456 = vsel %vm2450, %v2391, %v1053
  %v2457 = vsel %vm2450, %v2392, %v1055
  %v2458 = vsel %vm2450, %v2393, %v1057
  %v2459 = vsel %vm2450, %v2394, %v1059
  %v2460 = vsel %vm2450, %v2395, %v1061
  %v2461 = vsel %vm2450, %v2396, %v1063
  %v2462 = vsel %vm2450, %v2397, %v1065
  %v2463 = vsel %vm2450, %v2398, %v1067
  %v2464 = vsel %vm2450, %v2399, %v1069
  %v2465 = vsel %vm2450, %v2400, %v1071
  %v2466 = vsel %vm2450, %v2401, %v1073
  %v2467 = vsel %vm2450, %v2402, %v1075
  %v2468 = vsel %vm2450, %v2403, %v1077
  %v2469 = vsel %vm2450, %v2404, %v1079
  %v2470 = vsel %vm2450, %v2405, %v1081
  %v2471 = vsel %vm2450, %v2406, %v1083
  %v2472 = vsel %vm2450, %v2407, %v1085
  %v2473 = vsel %vm2450, %v2408, %v1087
  %v2474 = vsel %vm2450, %v2409, %v1089
  %v2475 = vsel %vm2450, %v2410, %v1091
  %v2476 = vsel %vm2450, %v2411, %v1093
  %v2477 = vsel %vm2450, %v2412, %v1095
  %v2478 = vsel %vm2450, %v2413, %v1097
  %v2479 = vsel %vm2450, %v2414, %v1099
  %v2480 = vsel %vm2450, %v2415, %v1101
  %v2481 = vsel %vm2450, %v2416, %v1103
  %v2482 = vsel %vm2450, %v2417, %v1105
  %v2483 = vsel %vm2450, %v2418, %v1107
  %v2484 = vsel %vm2450, %v2419, %v1109
  %v2485 = vsel %vm2450, %v2420, %v1111
  %v2486 = vsel %vm2450, %v2421, %v1113
  %v2487 = vsel %vm2450, %v2422, %v1115
  %v2488 = vsel %vm2450, %v2423, %v1117
  %v2489 = vsel %vm2450, %v2424, %v1119
  %v2490 = vsel %vm2450, %v2425, %v1121
  %v2491 = vsel %vm2450, %v2426, %v1123
  %v2492 = vsel %vm2450, %v2427, %v1125
  %v2493 = vsel %vm2450, %v2428, %v1127
  %v2494 = vsel %vm2450, %v2429, %v1129
  %v2495 = vsel %vm2450, %v2430, %v1131
  %v2496 = vsel %vm2450, %v2431, %v1133
  %v2497 = vsel %vm2450, %v2432, %v1135
  %v2498 = vsel %vm2450, %v2433, %v1137
  %v2499 = vsel %vm2450, %v2434, %v1139
  %v2500 = vsel %vm2450, %v2435, %v1141
  %v2501 = vsel %vm2450, %v2436, %v1143
  %v2502 = vsel %vm2450, %v2437, %v1145
  %v2503 = vsel %vm2450, %v2438, %v1147
  %v2504 = vsel %vm2450, %v2439, %v1149
  %v2505 = vsel %vm2450, %v2440, %v1151
  %v2506 = vsel %vm2450, %v2441, %v1153
  %v2507 = vsel %vm2450, %v2442, %v1155
  %v2508 = vsel %vm2450, %v2443, %v1157
  %v2509 = vsel %vm2450, %v2444, %v1159
  %v2510 = vsel %vm2450, %v2445, %v1161
  %v2511 = vsel %vm2450, %v2446, %v1163
  %v2512 = vsel %vm2450, %v2447, %v1165
  %v2513 = vsel %vm2450, %v2448, %v1167
  %v2514 = vsel %vm2450, %v2449, %v1169
  %vm2515 = vcmask 97280
  %v2516 = vsel %vm2515, %v2451, %v1235
  %v2517 = vsel %vm2515, %v2452, %v1237
  %v2518 = vsel %vm2515, %v2453, %v1239
  %v2519 = vsel %vm2515, %v2454, %v1241
  %v2520 = vsel %vm2515, %v2455, %v1243
  %v2521 = vsel %vm2515, %v2456, %v1245
  %v2522 = vsel %vm2515, %v2457, %v1247
  %v2523 = vsel %vm2515, %v2458, %v1249
  %v2524 = vsel %vm2515, %v2459, %v1251
  %v2525 = vsel %vm2515, %v2460, %v1253
  %v2526 = vsel %vm2515, %v2461, %v1255
  %v2527 = vsel %vm2515, %v2462, %v1257
  %v2528 = vsel %vm2515, %v2463, %v1259
  %v2529 = vsel %vm2515, %v2464, %v1261
  %v2530 = vsel %vm2515, %v2465, %v1263
  %v2531 = vsel %vm2515, %v2466, %v1265
  %v2532 = vsel %vm2515, %v2467, %v1267
  %v2533 = vsel %vm2515, %v2468, %v1269
  %v2534 = vsel %vm2515, %v2469, %v1271
  %v2535 = vsel %vm2515, %v2470, %v1273
  %v2536 = vsel %vm2515, %v2471, %v1275
  %v2537 = vsel %vm2515, %v2472, %v1277
  %v2538 = vsel %vm2515, %v2473, %v1279
  %v2539 = vsel %vm2515, %v2474, %v1281
  %v2540 = vsel %vm2515, %v2475, %v1283
  %v2541 = vsel %vm2515, %v2476, %v1285
  %v2542 = vsel %vm2515, %v2477, %v1287
  %v2543 = vsel %vm2515, %v2478, %v1289
  %v2544 = vsel %vm2515, %v2479, %v1291
  %v2545 = vsel %vm2515, %v2480, %v1293
  %v2546 = vsel %vm2515, %v2481, %v1295
  %v2547 = vsel %vm2515, %v2482, %v1297
  %v2548 = vsel %vm2515, %v2483, %v1299
  %v2549 = vsel %vm2515, %v2484, %v1301
  %v2550 = vsel %vm2515, %v2485, %v1303
  %v2551 = vsel %vm2515, %v2486, %v1305
  %v2552 = vsel %vm2515, %v2487, %v1307
  %v2553 = vsel %vm2515, %v2488, %v1309
  %v2554 = vsel %vm2515, %v2489, %v1311
  %v2555 = vsel %vm2515, %v2490, %v1313
  %v2556 = vsel %vm2515, %v2491, %v1315
  %v2557 = vsel %vm2515, %v2492, %v1317
  %v2558 = vsel %vm2515, %v2493, %v1319
  %v2559 = vsel %vm2515, %v2494, %v1321
  %v2560 = vsel %vm2515, %v2495, %v1323
  %v2561 = vsel %vm2515, %v2496, %v1325
  %v2562 = vsel %vm2515, %v2497, %v1327
  %v2563 = vsel %vm2515, %v2498, %v1329
  %v2564 = vsel %vm2515, %v2499, %v1331
  %v2565 = vsel %vm2515, %v2500, %v1333
  %v2566 = vsel %vm2515, %v2501, %v1335
  %v2567 = vsel %vm2515, %v2502, %v1337
  %v2568 = vsel %vm2515, %v2503, %v1339
  %v2569 = vsel %vm2515, %v2504, %v1341
  %v2570 = vsel %vm2515, %v2505, %v1343
  %v2571 = vsel %vm2515, %v2506, %v1345
  %v2572 = vsel %vm2515, %v2507, %v1347
  %v2573 = vsel %vm2515, %v2508, %v1349
  %v2574 = vsel %vm2515, %v2509, %v1351
  %v2575 = vsel %vm2515, %v2510, %v1353
  %v2576 = vsel %vm2515, %v2511, %v1355
  %v2577 = vsel %vm2515, %v2512, %v1357
  %v2578 = vsel %vm2515, %v2513, %v1359
  %v2579 = vsel %vm2515, %v2514, %v1361
  %vm2580 = vcmask 130048
  %v2581 = vsel %vm2580, %v2516, %v1427
  %v2582 = vsel %vm2580, %v2517, %v1429
  %v2583 = vsel %vm2580, %v2518, %v1431
  %v2584 = vsel %vm2580, %v2519, %v1433
  %v2585 = vsel %vm2580, %v2520, %v1435
  %v2586 = vsel %vm2580, %v2521, %v1437
  %v2587 = vsel %vm2580, %v2522, %v1439
  %v2588 = vsel %vm2580, %v2523, %v1441
  %v2589 = vsel %vm2580, %v2524, %v1443
  %v2590 = vsel %vm2580, %v2525, %v1445
  %v2591 = vsel %vm2580, %v2526, %v1447
  %v2592 = vsel %vm2580, %v2527, %v1449
  %v2593 = vsel %vm2580, %v2528, %v1451
  %v2594 = vsel %vm2580, %v2529, %v1453
  %v2595 = vsel %vm2580, %v2530, %v1455
  %v2596 = vsel %vm2580, %v2531, %v1457
  %v2597 = vsel %vm2580, %v2532, %v1459
  %v2598 = vsel %vm2580, %v2533, %v1461
  %v2599 = vsel %vm2580, %v2534, %v1463
  %v2600 = vsel %vm2580, %v2535, %v1465
  %v2601 = vsel %vm2580, %v2536, %v1467
  %v2602 = vsel %vm2580, %v2537, %v1469
  %v2603 = vsel %vm2580, %v2538, %v1471
  %v2604 = vsel %vm2580, %v2539, %v1473
  %v2605 = vsel %vm2580, %v2540, %v1475
  %v2606 = vsel %vm2580, %v2541, %v1477
  %v2607 = vsel %vm2580, %v2542, %v1479
  %v2608 = vsel %vm2580, %v2543, %v1481
  %v2609 = vsel %vm2580, %v2544, %v1483
  %v2610 = vsel %vm2580, %v2545, %v1485
  %v2611 = vsel %vm2580, %v2546, %v1487
  %v2612 = vsel %vm2580, %v2547, %v1489
  %v2613 = vsel %vm2580, %v2548, %v1491
  %v2614 = vsel %vm2580, %v2549, %v1493
  %v2615 = vsel %vm2580, %v2550, %v1495
  %v2616 = vsel %vm2580, %v2551, %v1497
  %v2617 = vsel %vm2580, %v2552, %v1499
  %v2618 = vsel %vm2580, %v2553, %v1501
  %v2619 = vsel %vm2580, %v2554, %v1503
  %v2620 = vsel %vm2580, %v2555, %v1505
  %v2621 = vsel %vm2580, %v2556, %v1507
  %v2622 = vsel %vm2580, %v2557, %v1509
  %v2623 = vsel %vm2580, %v2558, %v1511
  %v2624 = vsel %vm2580, %v2559, %v1513
  %v2625 = vsel %vm2580, %v2560, %v1515
  %v2626 = vsel %vm2580, %v2561, %v1517
  %v2627 = vsel %vm2580, %v2562, %v1519
  %v2628 = vsel %vm2580, %v2563, %v1521
  %v2629 = vsel %vm2580, %v2564, %v1523
  %v2630 = vsel %vm2580, %v2565, %v1525
  %v2631 = vsel %vm2580, %v2566, %v1527
  %v2632 = vsel %vm2580, %v2567, %v1529
  %v2633 = vsel %vm2580, %v2568, %v1531
  %v2634 = vsel %vm2580, %v2569, %v1533
  %v2635 = vsel %vm2580, %v2570, %v1535
  %v2636 = vsel %vm2580, %v2571, %v1537
  %v2637 = vsel %vm2580, %v2572, %v1539
  %v2638 = vsel %vm2580, %v2573, %v1541
  %v2639 = vsel %vm2580, %v2574, %v1543
  %v2640 = vsel %vm2580, %v2575, %v1545
  %v2641 = vsel %vm2580, %v2576, %v1547
  %v2642 = vsel %vm2580, %v2577, %v1549
  %v2643 = vsel %vm2580, %v2578, %v1551
  %v2644 = vsel %vm2580, %v2579, %v1553
  %vm2645 = vcmask 162816
  %v2646 = vsel %vm2645, %v2581, %v1619
  %v2647 = vsel %vm2645, %v2582, %v1621
  %v2648 = vsel %vm2645, %v2583, %v1623
  %v2649 = vsel %vm2645, %v2584, %v1625
  %v2650 = vsel %vm2645, %v2585, %v1627
  %v2651 = vsel %vm2645, %v2586, %v1629
  %v2652 = vsel %vm2645, %v2587, %v1631
  %v2653 = vsel %vm2645, %v2588, %v1633
  %v2654 = vsel %vm2645, %v2589, %v1635
  %v2655 = vsel %vm2645, %v2590, %v1637
  %v2656 = vsel %vm2645, %v2591, %v1639
  %v2657 = vsel %vm2645, %v2592, %v1641
  %v2658 = vsel %vm2645, %v2593, %v1643
  %v2659 = vsel %vm2645, %v2594, %v1645
  %v2660 = vsel %vm2645, %v2595, %v1647
  %v2661 = vsel %vm2645, %v2596, %v1649
  %v2662 = vsel %vm2645, %v2597, %v1651
  %v2663 = vsel %vm2645, %v2598, %v1653
  %v2664 = vsel %vm2645, %v2599, %v1655
  %v2665 = vsel %vm2645, %v2600, %v1657
  %v2666 = vsel %vm2645, %v2601, %v1659
  %v2667 = vsel %vm2645, %v2602, %v1661
  %v2668 = vsel %vm2645, %v2603, %v1663
  %v2669 = vsel %vm2645, %v2604, %v1665
  %v2670 = vsel %vm2645, %v2605, %v1667
  %v2671 = vsel %vm2645, %v2606, %v1669
  %v2672 = vsel %vm2645, %v2607, %v1671
  %v2673 = vsel %vm2645, %v2608, %v1673
  %v2674 = vsel %vm2645, %v2609, %v1675
  %v2675 = vsel %vm2645, %v2610, %v1677
  %v2676 = vsel %vm2645, %v2611, %v1679
  %v2677 = vsel %vm2645, %v2612, %v1681
  %v2678 = vsel %vm2645, %v2613, %v1683
  %v2679 = vsel %vm2645, %v2614, %v1685
  %v2680 = vsel %vm2645, %v2615, %v1687
  %v2681 = vsel %vm2645, %v2616, %v1689
  %v2682 = vsel %vm2645, %v2617, %v1691
  %v2683 = vsel %vm2645, %v2618, %v1693
  %v2684 = vsel %vm2645, %v2619, %v1695
  %v2685 = vsel %vm2645, %v2620, %v1697
  %v2686 = vsel %vm2645, %v2621, %v1699
  %v2687 = vsel %vm2645, %v2622, %v1701
  %v2688 = vsel %vm2645, %v2623, %v1703
  %v2689 = vsel %vm2645, %v2624, %v1705
  %v2690 = vsel %vm2645, %v2625, %v1707
  %v2691 = vsel %vm2645, %v2626, %v1709
  %v2692 = vsel %vm2645, %v2627, %v1711
  %v2693 = vsel %vm2645, %v2628, %v1713
  %v2694 = vsel %vm2645, %v2629, %v1715
  %v2695 = vsel %vm2645, %v2630, %v1717
  %v2696 = vsel %vm2645, %v2631, %v1719
  %v2697 = vsel %vm2645, %v2632, %v1721
  %v2698 = vsel %vm2645, %v2633, %v1723
  %v2699 = vsel %vm2645, %v2634, %v1725
  %v2700 = vsel %vm2645, %v2635, %v1727
  %v2701 = vsel %vm2645, %v2636, %v1729
  %v2702 = vsel %vm2645, %v2637, %v1731
  %v2703 = vsel %vm2645, %v2638, %v1733
  %v2704 = vsel %vm2645, %v2639, %v1735
  %v2705 = vsel %vm2645, %v2640, %v1737
  %v2706 = vsel %vm2645, %v2641, %v1739
  %v2707 = vsel %vm2645, %v2642, %v1741
  %v2708 = vsel %vm2645, %v2643, %v1743
  %v2709 = vsel %vm2645, %v2644, %v1745
  %vm2710 = vcmask 195584
  %v2711 = vsel %vm2710, %v2646, %v1811
  %v2712 = vsel %vm2710, %v2647, %v1813
  %v2713 = vsel %vm2710, %v2648, %v1815
  %v2714 = vsel %vm2710, %v2649, %v1817
  %v2715 = vsel %vm2710, %v2650, %v1819
  %v2716 = vsel %vm2710, %v2651, %v1821
  %v2717 = vsel %vm2710, %v2652, %v1823
  %v2718 = vsel %vm2710, %v2653, %v1825
  %v2719 = vsel %vm2710, %v2654, %v1827
  %v2720 = vsel %vm2710, %v2655, %v1829
  %v2721 = vsel %vm2710, %v2656, %v1831
  %v2722 = vsel %vm2710, %v2657, %v1833
  %v2723 = vsel %vm2710, %v2658, %v1835
  %v2724 = vsel %vm2710, %v2659, %v1837
  %v2725 = vsel %vm2710, %v2660, %v1839
  %v2726 = vsel %vm2710, %v2661, %v1841
  %v2727 = vsel %vm2710, %v2662, %v1843
  %v2728 = vsel %vm2710, %v2663, %v1845
  %v2729 = vsel %vm2710, %v2664, %v1847
  %v2730 = vsel %vm2710, %v2665, %v1849
  %v2731 = vsel %vm2710, %v2666, %v1851
  %v2732 = vsel %vm2710, %v2667, %v1853
  %v2733 = vsel %vm2710, %v2668, %v1855
  %v2734 = vsel %vm2710, %v2669, %v1857
  %v2735 = vsel %vm2710, %v2670, %v1859
  %v2736 = vsel %vm2710, %v2671, %v1861
  %v2737 = vsel %vm2710, %v2672, %v1863
  %v2738 = vsel %vm2710, %v2673, %v1865
  %v2739 = vsel %vm2710, %v2674, %v1867
  %v2740 = vsel %vm2710, %v2675, %v1869
  %v2741 = vsel %vm2710, %v2676, %v1871
  %v2742 = vsel %vm2710, %v2677, %v1873
  %v2743 = vsel %vm2710, %v2678, %v1875
  %v2744 = vsel %vm2710, %v2679, %v1877
  %v2745 = vsel %vm2710, %v2680, %v1879
  %v2746 = vsel %vm2710, %v2681, %v1881
  %v2747 = vsel %vm2710, %v2682, %v1883
  %v2748 = vsel %vm2710, %v2683, %v1885
  %v2749 = vsel %vm2710, %v2684, %v1887
  %v2750 = vsel %vm2710, %v2685, %v1889
  %v2751 = vsel %vm2710, %v2686, %v1891
  %v2752 = vsel %vm2710, %v2687, %v1893
  %v2753 = vsel %vm2710, %v2688, %v1895
  %v2754 = vsel %vm2710, %v2689, %v1897
  %v2755 = vsel %vm2710, %v2690, %v1899
  %v2756 = vsel %vm2710, %v2691, %v1901
  %v2757 = vsel %vm2710, %v2692, %v1903
  %v2758 = vsel %vm2710, %v2693, %v1905
  %v2759 = vsel %vm2710, %v2694, %v1907
  %v2760 = vsel %vm2710, %v2695, %v1909
  %v2761 = vsel %vm2710, %v2696, %v1911
  %v2762 = vsel %vm2710, %v2697, %v1913
  %v2763 = vsel %vm2710, %v2698, %v1915
  %v2764 = vsel %vm2710, %v2699, %v1917
  %v2765 = vsel %vm2710, %v2700, %v1919
  %v2766 = vsel %vm2710, %v2701, %v1921
  %v2767 = vsel %vm2710, %v2702, %v1923
  %v2768 = vsel %vm2710, %v2703, %v1925
  %v2769 = vsel %vm2710, %v2704, %v1927
  %v2770 = vsel %vm2710, %v2705, %v1929
  %v2771 = vsel %vm2710, %v2706, %v1931
  %v2772 = vsel %vm2710, %v2707, %v1933
  %v2773 = vsel %vm2710, %v2708, %v1935
  %v2774 = vsel %vm2710, %v2709, %v1937
  %vm2775 = vcmask 228352
  %v2776 = vsel %vm2775, %v2711, %v2003
  %v2777 = vsel %vm2775, %v2712, %v2005
  %v2778 = vsel %vm2775, %v2713, %v2007
  %v2779 = vsel %vm2775, %v2714, %v2009
  %v2780 = vsel %vm2775, %v2715, %v2011
  %v2781 = vsel %vm2775, %v2716, %v2013
  %v2782 = vsel %vm2775, %v2717, %v2015
  %v2783 = vsel %vm2775, %v2718, %v2017
  %v2784 = vsel %vm2775, %v2719, %v2019
  %v2785 = vsel %vm2775, %v2720, %v2021
  %v2786 = vsel %vm2775, %v2721, %v2023
  %v2787 = vsel %vm2775, %v2722, %v2025
  %v2788 = vsel %vm2775, %v2723, %v2027
  %v2789 = vsel %vm2775, %v2724, %v2029
  %v2790 = vsel %vm2775, %v2725, %v2031
  %v2791 = vsel %vm2775, %v2726, %v2033
  %v2792 = vsel %vm2775, %v2727, %v2035
  %v2793 = vsel %vm2775, %v2728, %v2037
  %v2794 = vsel %vm2775, %v2729, %v2039
  %v2795 = vsel %vm2775, %v2730, %v2041
  %v2796 = vsel %vm2775, %v2731, %v2043
  %v2797 = vsel %vm2775, %v2732, %v2045
  %v2798 = vsel %vm2775, %v2733, %v2047
  %v2799 = vsel %vm2775, %v2734, %v2049
  %v2800 = vsel %vm2775, %v2735, %v2051
  %v2801 = vsel %vm2775, %v2736, %v2053
  %v2802 = vsel %vm2775, %v2737, %v2055
  %v2803 = vsel %vm2775, %v2738, %v2057
  %v2804 = vsel %vm2775, %v2739, %v2059
  %v2805 = vsel %vm2775, %v2740, %v2061
  %v2806 = vsel %vm2775, %v2741, %v2063
  %v2807 = vsel %vm2775, %v2742, %v2065
  %v2808 = vsel %vm2775, %v2743, %v2067
  %v2809 = vsel %vm2775, %v2744, %v2069
  %v2810 = vsel %vm2775, %v2745, %v2071
  %v2811 = vsel %vm2775, %v2746, %v2073
  %v2812 = vsel %vm2775, %v2747, %v2075
  %v2813 = vsel %vm2775, %v2748, %v2077
  %v2814 = vsel %vm2775, %v2749, %v2079
  %v2815 = vsel %vm2775, %v2750, %v2081
  %v2816 = vsel %vm2775, %v2751, %v2083
  %v2817 = vsel %vm2775, %v2752, %v2085
  %v2818 = vsel %vm2775, %v2753, %v2087
  %v2819 = vsel %vm2775, %v2754, %v2089
  %v2820 = vsel %vm2775, %v2755, %v2091
  %v2821 = vsel %vm2775, %v2756, %v2093
  %v2822 = vsel %vm2775, %v2757, %v2095
  %v2823 = vsel %vm2775, %v2758, %v2097
  %v2824 = vsel %vm2775, %v2759, %v2099
  %v2825 = vsel %vm2775, %v2760, %v2101
  %v2826 = vsel %vm2775, %v2761, %v2103
  %v2827 = vsel %vm2775, %v2762, %v2105
  %v2828 = vsel %vm2775, %v2763, %v2107
  %v2829 = vsel %vm2775, %v2764, %v2109
  %v2830 = vsel %vm2775, %v2765, %v2111
  %v2831 = vsel %vm2775, %v2766, %v2113
  %v2832 = vsel %vm2775, %v2767, %v2115
  %v2833 = vsel %vm2775, %v2768, %v2117
  %v2834 = vsel %vm2775, %v2769, %v2119
  %v2835 = vsel %vm2775, %v2770, %v2121
  %v2836 = vsel %vm2775, %v2771, %v2123
  %v2837 = vsel %vm2775, %v2772, %v2125
  %v2838 = vsel %vm2775, %v2773, %v2127
  %v2839 = vsel %vm2775, %v2774, %v2129
  %vm2840 = vcmask 261120
  %v2841 = vsel %vm2840, %v2776, %v2195
  %v2842 = vsel %vm2840, %v2777, %v2197
  %v2843 = vsel %vm2840, %v2778, %v2199
  %v2844 = vsel %vm2840, %v2779, %v2201
  %v2845 = vsel %vm2840, %v2780, %v2203
  %v2846 = vsel %vm2840, %v2781, %v2205
  %v2847 = vsel %vm2840, %v2782, %v2207
  %v2848 = vsel %vm2840, %v2783, %v2209
  %v2849 = vsel %vm2840, %v2784, %v2211
  %v2850 = vsel %vm2840, %v2785, %v2213
  %v2851 = vsel %vm2840, %v2786, %v2215
  %v2852 = vsel %vm2840, %v2787, %v2217
  %v2853 = vsel %vm2840, %v2788, %v2219
  %v2854 = vsel %vm2840, %v2789, %v2221
  %v2855 = vsel %vm2840, %v2790, %v2223
  %v2856 = vsel %vm2840, %v2791, %v2225
  %v2857 = vsel %vm2840, %v2792, %v2227
  %v2858 = vsel %vm2840, %v2793, %v2229
  %v2859 = vsel %vm2840, %v2794, %v2231
  %v2860 = vsel %vm2840, %v2795, %v2233
  %v2861 = vsel %vm2840, %v2796, %v2235
  %v2862 = vsel %vm2840, %v2797, %v2237
  %v2863 = vsel %vm2840, %v2798, %v2239
  %v2864 = vsel %vm2840, %v2799, %v2241
  %v2865 = vsel %vm2840, %v2800, %v2243
  %v2866 = vsel %vm2840, %v2801, %v2245
  %v2867 = vsel %vm2840, %v2802, %v2247
  %v2868 = vsel %vm2840, %v2803, %v2249
  %v2869 = vsel %vm2840, %v2804, %v2251
  %v2870 = vsel %vm2840, %v2805, %v2253
  %v2871 = vsel %vm2840, %v2806, %v2255
  %v2872 = vsel %vm2840, %v2807, %v2257
  %v2873 = vsel %vm2840, %v2808, %v2259
  %v2874 = vsel %vm2840, %v2809, %v2261
  %v2875 = vsel %vm2840, %v2810, %v2263
  %v2876 = vsel %vm2840, %v2811, %v2265
  %v2877 = vsel %vm2840, %v2812, %v2267
  %v2878 = vsel %vm2840, %v2813, %v2269
  %v2879 = vsel %vm2840, %v2814, %v2271
  %v2880 = vsel %vm2840, %v2815, %v2273
  %v2881 = vsel %vm2840, %v2816, %v2275
  %v2882 = vsel %vm2840, %v2817, %v2277
  %v2883 = vsel %vm2840, %v2818, %v2279
  %v2884 = vsel %vm2840, %v2819, %v2281
  %v2885 = vsel %vm2840, %v2820, %v2283
  %v2886 = vsel %vm2840, %v2821, %v2285
  %v2887 = vsel %vm2840, %v2822, %v2287
  %v2888 = vsel %vm2840, %v2823, %v2289
  %v2889 = vsel %vm2840, %v2824, %v2291
  %v2890 = vsel %vm2840, %v2825, %v2293
  %v2891 = vsel %vm2840, %v2826, %v2295
  %v2892 = vsel %vm2840, %v2827, %v2297
  %v2893 = vsel %vm2840, %v2828, %v2299
  %v2894 = vsel %vm2840, %v2829, %v2301
  %v2895 = vsel %vm2840, %v2830, %v2303
  %v2896 = vsel %vm2840, %v2831, %v2305
  %v2897 = vsel %vm2840, %v2832, %v2307
  %v2898 = vsel %vm2840, %v2833, %v2309
  %v2899 = vsel %vm2840, %v2834, %v2311
  %v2900 = vsel %vm2840, %v2835, %v2313
  %v2901 = vsel %vm2840, %v2836, %v2315
  %v2902 = vsel %vm2840, %v2837, %v2317
  %v2903 = vsel %vm2840, %v2838, %v2319
  %v2904 = vsel %vm2840, %v2839, %v2321
  %vm2905 = vcmask 293888
  %v2907 = vsel %vm2905, %v2841, 0
  %v2910 = vsel %vm2905, %v2842, 0
  %v2913 = vsel %vm2905, %v2843, 0
  %v2916 = vsel %vm2905, %v2844, 0
  %v2919 = vsel %vm2905, %v2845, 0
  %v2922 = vsel %vm2905, %v2846, 0
  %v2925 = vsel %vm2905, %v2847, 0
  %v2928 = vsel %vm2905, %v2848, 0
  %v2931 = vsel %vm2905, %v2849, 0
  %v2934 = vsel %vm2905, %v2850, 0
  %v2937 = vsel %vm2905, %v2851, 0
  %v2940 = vsel %vm2905, %v2852, 0
  %v2943 = vsel %vm2905, %v2853, 0
  %v2946 = vsel %vm2905, %v2854, 0
  %v2949 = vsel %vm2905, %v2855, 0
  %v2952 = vsel %vm2905, %v2856, 0
  %v2955 = vsel %vm2905, %v2857, 0
  %v2958 = vsel %vm2905, %v2858, 0
  %v2961 = vsel %vm2905, %v2859, 0
  %v2964 = vsel %vm2905, %v2860, 0
  %v2967 = vsel %vm2905, %v2861, 0
  %v2970 = vsel %vm2905, %v2862, 0
  %v2973 = vsel %vm2905, %v2863, 0
  %v2976 = vsel %vm2905, %v2864, 0
  %v2979 = vsel %vm2905, %v2865, 0
  %v2982 = vsel %vm2905, %v2866, 0
  %v2985 = vsel %vm2905, %v2867, 0
  %v2988 = vsel %vm2905, %v2868, 0
  %v2991 = vsel %vm2905, %v2869, 0
  %v2994 = vsel %vm2905, %v2870, 0
  %v2997 = vsel %vm2905, %v2871, 0
  %v3000 = vsel %vm2905, %v2872, 0
  %v3003 = vsel %vm2905, %v2873, 0
  %v3006 = vsel %vm2905, %v2874, 0
  %v3009 = vsel %vm2905, %v2875, 0
  %v3012 = vsel %vm2905, %v2876, 0
  %v3015 = vsel %vm2905, %v2877, 0
  %v3018 = vsel %vm2905, %v2878, 0
  %v3021 = vsel %vm2905, %v2879, 0
  %v3024 = vsel %vm2905, %v2880, 0
  %v3027 = vsel %vm2905, %v2881, 0
  %v3030 = vsel %vm2905, %v2882, 0
  %v3033 = vsel %vm2905, %v2883, 0
  %v3036 = vsel %vm2905, %v2884, 0
  %v3039 = vsel %vm2905, %v2885, 0
  %v3042 = vsel %vm2905, %v2886, 0
  %v3045 = vsel %vm2905, %v2887, 0
  %v3048 = vsel %vm2905, %v2888, 0
  %v3051 = vsel %vm2905, %v2889, 0
  %v3054 = vsel %vm2905, %v2890, 0
  %v3057 = vsel %vm2905, %v2891, 0
  %v3060 = vsel %vm2905, %v2892, 0
  %v3063 = vsel %vm2905, %v2893, 0
  %v3066 = vsel %vm2905, %v2894, 0
  %v3069 = vsel %vm2905, %v2895, 0
  %v3072 = vsel %vm2905, %v2896, 0
  %v3075 = vsel %vm2905, %v2897, 0
  %v3078 = vsel %vm2905, %v2898, 0
  %v3081 = vsel %vm2905, %v2899, 0
  %v3084 = vsel %vm2905, %v2900, 0
  %v3087 = vsel %vm2905, %v2901, 0
  %v3090 = vsel %vm2905, %v2902, 0
  %v3093 = vsel %vm2905, %v2903, 0
  %v3096 = vsel %vm2905, %v2904, 0
  %vm3098 = vcmask 1043456
  %v3100 = vsel %vm3098, %v269, 0
  %3102 = vmatprep.subr.mxu0 0.0
  %3103 = vmatpush1.msra.mxu0 %v265
  %3104 = vmatprep.subr.mxu0 0.0
  %3105 = vmatpush1.msra.mxu0 %v266
  %3106 = vmatprep.subr.mxu0 0.0
  %3107 = vmatpush1.msra.mxu0 %v267
  %3108 = vmatprep.subr.mxu0 0.0
  %3109 = vmatpush1.msra.mxu0 %v268
  %3110 = vmatprep.subr.mxu0 0.0
  %3111 = vmatpush1.msra.mxu0 %v3100
  %3112 = vmatprep.subr.mxu0 0.0
  %3113 = vmatpush1.msra.mxu0 0.0
  %3114 = vmatprep.subr.mxu0 0.0
  %3115 = vmatpush1.msra.mxu0 0.0
  %3116 = vmatprep.subr.mxu0 0.0
  %3117 = vmatpush1.msra.mxu0 0.0
  %3118 = vmatprep.subr.mxu0 0.0
  %3119 = vmatpush1.msra.mxu0 0.0
  %3120 = vmatprep.subr.mxu0 0.0
  %3121 = vmatpush1.msra.mxu0 0.0
  %3122 = vmatprep.subr.mxu0 0.0
  %3123 = vmatpush1.msra.mxu0 0.0
  %3124 = vmatprep.subr.mxu0 0.0
  %3125 = vmatpush1.msra.mxu0 0.0
  %3126 = vmatprep.subr.mxu0 0.0
  %3127 = vmatpush1.msra.mxu0 0.0
  %3128 = vmatprep.subr.mxu0 0.0
  %3129 = vmatpush1.msra.mxu0 0.0
  %3130 = vmatprep.subr.mxu0 0.0
  %3131 = vmatpush1.msra.mxu0 0.0
  %3132 = vmatprep.subr.mxu0 0.0
  %3133 = vmatpush1.msra.mxu0 0.0
  %3134 = vmatprep.subr.mxu0 0.0
  %3135 = vmatpush1.msra.mxu0 0.0
  %3136 = vmatprep.subr.mxu0 0.0
  %3137 = vmatpush1.msra.mxu0 0.0
  %3138 = vmatprep.subr.mxu0 0.0
  %3139 = vmatpush1.msra.mxu0 0.0
  %3140 = vmatprep.subr.mxu0 0.0
  %3141 = vmatpush1.msra.mxu0 0.0
  %3142 = vmatprep.subr.mxu0 0.0
  %3143 = vmatpush1.msra.mxu0 0.0
  %3144 = vmatprep.subr.mxu0 0.0
  %3145 = vmatpush1.msra.mxu0 0.0
  %3146 = vmatprep.subr.mxu0 0.0
  %3147 = vmatpush1.msra.mxu0 0.0
  %3148 = vmatprep.subr.mxu0 0.0
  %3149 = vmatpush1.msra.mxu0 0.0
  %3150 = vmatprep.subr.mxu0 0.0
  %3151 = vmatpush1.msra.mxu0 0.0
  %3152 = vmatprep.subr.mxu0 0.0
  %3153 = vmatpush1.msra.mxu0 0.0
  %3154 = vmatprep.subr.mxu0 0.0
  %3155 = vmatpush1.msra.mxu0 0.0
  %3156 = vmatprep.subr.mxu0 0.0
  %3157 = vmatpush1.msra.mxu0 0.0
  %3158 = vmatprep.subr.mxu0 0.0
  %3159 = vmatpush1.msra.mxu0 0.0
  %3160 = vmatprep.subr.mxu0 0.0
  %3161 = vmatpush1.msra.mxu0 0.0
  %3162 = vmatprep.subr.mxu0 0.0
  %3163 = vmatpush1.msra.mxu0 0.0
  %3164 = vmatprep.subr.mxu0 0.0
  %3165 = vmatpush1.msra.mxu0 0.0
  %3166 = vmatprep.mubr.f32.mxu0 0.0
  %3167 = vmatmul.mubr.f32.gmra.mrb[0].mxu0 %v2907
  %v3168 = vpop.f32.mrb[0].mxu0
  %v3169 = vadd.f32 0.0, %v3168
  %v3170 = vpop.f32.mrb[0].mxu0
  %3171 = vmatprep.mubr.f32.mxu0 0.0
  %3172 = vmatmul.mubr.f32.gmra.mrb[0].mxu0 %v2910
  %v3173 = vpop.f32.mrb[0].mxu0
  %v3174 = vadd.f32 0.0, %v3173
  %v3175 = vpop.f32.mrb[0].mxu0
  %3176 = vmatprep.mubr.f32.mxu0 0.0
  %3177 = vmatmul.mubr.f32.gmra.mrb[0].mxu0 %v2913
  %v3178 = vpop.f32.mrb[0].mxu0
  %v3179 = vadd.f32 0.0, %v3178
  %v3180 = vpop.f32.mrb[0].mxu0
  %3181 = vmatprep.mubr.f32.mxu0 0.0
  %3182 = vmatmul.mubr.f32.gmra.mrb[0].mxu0 %v2916
  %v3183 = vpop.f32.mrb[0].mxu0
  %v3184 = vadd.f32 0.0, %v3183
  %v3185 = vpop.f32.mrb[0].mxu0
  %3186 = vmatprep.mubr.f32.mxu0 0.0
  %3187 = vmatmul.mubr.f32.gmra.mrb[0].mxu0 %v2919
  %v3188 = vpop.f32.mrb[0].mxu0
  %v3189 = vadd.f32 0.0, %v3188
  %v3190 = vpop.f32.mrb[0].mxu0
  %3191 = vmatprep.mubr.f32.mxu0 0.0
  %3192 = vmatmul.mubr.f32.gmra.mrb[0].mxu0 %v2922
  %v3193 = vpop.f32.mrb[0].mxu0
  %v3194 = vadd.f32 0.0, %v3193
  %v3195 = vpop.f32.mrb[0].mxu0
  %3196 = vmatprep.mubr.f32.mxu0 0.0
  %3197 = vmatmul.mubr.f32.gmra.mrb[0].mxu0 %v2925
  %v3198 = vpop.f32.mrb[0].mxu0
  %v3199 = vadd.f32 0.0, %v3198
  %v3200 = vpop.f32.mrb[0].mxu0
  %3201 = vmatprep.mubr.f32.mxu0 0.0
  %3202 = vmatmul.mubr.f32.gmra.mrb[0].mxu0 %v2928
  %v3203 = vpop.f32.mrb[0].mxu0
  %v3204 = vadd.f32 0.0, %v3203
  %v3205 = vpop.f32.mrb[0].mxu0
  %3206 = vmatprep.mubr.f32.mxu0 0.0
  %3207 = vmatmul.mubr.f32.gmra.mrb[0].mxu0 %v2931
  %v3208 = vpop.f32.mrb[0].mxu0
  %v3209 = vadd.f32 0.0, %v3208
  %v3210 = vpop.f32.mrb[0].mxu0
  %3211 = vmatprep.mubr.f32.mxu0 0.0
  %3212 = vmatmul.mubr.f32.gmra.mrb[0].mxu0 %v2934
  %v3213 = vpop.f32.mrb[0].mxu0
  %v3214 = vadd.f32 0.0, %v3213
  %v3215 = vpop.f32.mrb[0].mxu0
  %3216 = vmatprep.mubr.f32.mxu0 0.0
  %3217 = vmatmul.mubr.f32.gmra.mrb[0].mxu0 %v2937
  %v3218 = vpop.f32.mrb[0].mxu0
  %v3219 = vadd.f32 0.0, %v3218
  %v3220 = vpop.f32.mrb[0].mxu0
  %3221 = vmatprep.mubr.f32.mxu0 0.0
  %3222 = vmatmul.mubr.f32.gmra.mrb[0].mxu0 %v2940
  %v3223 = vpop.f32.mrb[0].mxu0
  %v3224 = vadd.f32 0.0, %v3223
  %v3225 = vpop.f32.mrb[0].mxu0
  %3226 = vmatprep.mubr.f32.mxu0 0.0
  %3227 = vmatmul.mubr.f32.gmra.mrb[0].mxu0 %v2943
  %v3228 = vpop.f32.mrb[0].mxu0
  %v3229 = vadd.f32 0.0, %v3228
  %v3230 = vpop.f32.mrb[0].mxu0
  %3231 = vmatprep.mubr.f32.mxu0 0.0
  %3232 = vmatmul.mubr.f32.gmra.mrb[0].mxu0 %v2946
  %v3233 = vpop.f32.mrb[0].mxu0
  %v3234 = vadd.f32 0.0, %v3233
  %v3235 = vpop.f32.mrb[0].mxu0
  %3236 = vmatprep.mubr.f32.mxu0 0.0
  %3237 = vmatmul.mubr.f32.gmra.mrb[0].mxu0 %v2949
  %v3238 = vpop.f32.mrb[0].mxu0
  %v3239 = vadd.f32 0.0, %v3238
  %v3240 = vpop.f32.mrb[0].mxu0
  %3241 = vmatprep.mubr.f32.mxu0 0.0
  %3242 = vmatmul.mubr.f32.gmra.mrb[0].mxu0 %v2952
  %v3243 = vpop.f32.mrb[0].mxu0
  %v3244 = vadd.f32 0.0, %v3243
  %v3245 = vpop.f32.mrb[0].mxu0
  %3246 = vmatprep.mubr.f32.mxu0 0.0
  %3247 = vmatmul.mubr.f32.gmra.mrb[0].mxu0 %v2955
  %v3248 = vpop.f32.mrb[0].mxu0
  %v3249 = vadd.f32 0.0, %v3248
  %v3250 = vpop.f32.mrb[0].mxu0
  %3251 = vmatprep.mubr.f32.mxu0 0.0
  %3252 = vmatmul.mubr.f32.gmra.mrb[0].mxu0 %v2958
  %v3253 = vpop.f32.mrb[0].mxu0
  %v3254 = vadd.f32 0.0, %v3253
  %v3255 = vpop.f32.mrb[0].mxu0
  %3256 = vmatprep.mubr.f32.mxu0 0.0
  %3257 = vmatmul.mubr.f32.gmra.mrb[0].mxu0 %v2961
  %v3258 = vpop.f32.mrb[0].mxu0
  %v3259 = vadd.f32 0.0, %v3258
  %v3260 = vpop.f32.mrb[0].mxu0
  %3261 = vmatprep.mubr.f32.mxu0 0.0
  %3262 = vmatmul.mubr.f32.gmra.mrb[0].mxu0 %v2964
  %v3263 = vpop.f32.mrb[0].mxu0
  %v3264 = vadd.f32 0.0, %v3263
  %v3265 = vpop.f32.mrb[0].mxu0
  %3266 = vmatprep.mubr.f32.mxu0 0.0
  %3267 = vmatmul.mubr.f32.gmra.mrb[0].mxu0 %v2967
  %v3268 = vpop.f32.mrb[0].mxu0
  %v3269 = vadd.f32 0.0, %v3268
  %v3270 = vpop.f32.mrb[0].mxu0
  %3271 = vmatprep.mubr.f32.mxu0 0.0
  %3272 = vmatmul.mubr.f32.gmra.mrb[0].mxu0 %v2970
  %v3273 = vpop.f32.mrb[0].mxu0
  %v3274 = vadd.f32 0.0, %v3273
  %v3275 = vpop.f32.mrb[0].mxu0
  %3276 = vmatprep.mubr.f32.mxu0 0.0
  %3277 = vmatmul.mubr.f32.gmra.mrb[0].mxu0 %v2973
  %v3278 = vpop.f32.mrb[0].mxu0
  %v3279 = vadd.f32 0.0, %v3278
  %v3280 = vpop.f32.mrb[0].mxu0
  %3281 = vmatprep.mubr.f32.mxu0 0.0
  %3282 = vmatmul.mubr.f32.gmra.mrb[0].mxu0 %v2976
  %v3283 = vpop.f32.mrb[0].mxu0
  %v3284 = vadd.f32 0.0, %v3283
  %v3285 = vpop.f32.mrb[0].mxu0
  %3286 = vmatprep.mubr.f32.mxu0 0.0
  %3287 = vmatmul.mubr.f32.gmra.mrb[0].mxu0 %v2979
  %v3288 = vpop.f32.mrb[0].mxu0
  %v3289 = vadd.f32 0.0, %v3288
  %v3290 = vpop.f32.mrb[0].mxu0
  %3291 = vmatprep.mubr.f32.mxu0 0.0
  %3292 = vmatmul.mubr.f32.gmra.mrb[0].mxu0 %v2982
  %v3293 = vpop.f32.mrb[0].mxu0
  %v3294 = vadd.f32 0.0, %v3293
  %v3295 = vpop.f32.mrb[0].mxu0
  %3296 = vmatprep.mubr.f32.mxu0 0.0
  %3297 = vmatmul.mubr.f32.gmra.mrb[0].mxu0 %v2985
  %v3298 = vpop.f32.mrb[0].mxu0
  %v3299 = vadd.f32 0.0, %v3298
  %v3300 = vpop.f32.mrb[0].mxu0
  %3301 = vmatprep.mubr.f32.mxu0 0.0
  %3302 = vmatmul.mubr.f32.gmra.mrb[0].mxu0 %v2988
  %v3303 = vpop.f32.mrb[0].mxu0
  %v3304 = vadd.f32 0.0, %v3303
  %v3305 = vpop.f32.mrb[0].mxu0
  %3306 = vmatprep.mubr.f32.mxu0 0.0
  %3307 = vmatmul.mubr.f32.gmra.mrb[0].mxu0 %v2991
  %v3308 = vpop.f32.mrb[0].mxu0
  %v3309 = vadd.f32 0.0, %v3308
  %v3310 = vpop.f32.mrb[0].mxu0
  %3311 = vmatprep.mubr.f32.mxu0 0.0
  %3312 = vmatmul.mubr.f32.gmra.mrb[0].mxu0 %v2994
  %v3313 = vpop.f32.mrb[0].mxu0
  %v3314 = vadd.f32 0.0, %v3313
  %v3315 = vpop.f32.mrb[0].mxu0
  %3316 = vmatprep.mubr.f32.mxu0 0.0
  %3317 = vmatmul.mubr.f32.gmra.mrb[0].mxu0 %v2997
  %v3318 = vpop.f32.mrb[0].mxu0
  %v3319 = vadd.f32 0.0, %v3318
  %v3320 = vpop.f32.mrb[0].mxu0
  %3321 = vmatprep.mubr.f32.mxu0 0.0
  %3322 = vmatmul.mubr.f32.gmra.mrb[0].mxu0 %v3000
  %v3323 = vpop.f32.mrb[0].mxu0
  %v3324 = vadd.f32 0.0, %v3323
  %v3325 = vpop.f32.mrb[0].mxu0
  %3326 = vmatprep.mubr.f32.mxu0 0.0
  %3327 = vmatmul.mubr.f32.gmra.mrb[0].mxu0 %v3003
  %v3328 = vpop.f32.mrb[0].mxu0
  %v3329 = vadd.f32 0.0, %v3328
  %v3330 = vpop.f32.mrb[0].mxu0
  %3331 = vmatprep.mubr.f32.mxu0 0.0
  %3332 = vmatmul.mubr.f32.gmra.mrb[0].mxu0 %v3006
  %v3333 = vpop.f32.mrb[0].mxu0
  %v3334 = vadd.f32 0.0, %v3333
  %v3335 = vpop.f32.mrb[0].mxu0
  %3336 = vmatprep.mubr.f32.mxu0 0.0
  %3337 = vmatmul.mubr.f32.gmra.mrb[0].mxu0 %v3009
  %v3338 = vpop.f32.mrb[0].mxu0
  %v3339 = vadd.f32 0.0, %v3338
  %v3340 = vpop.f32.mrb[0].mxu0
  %3341 = vmatprep.mubr.f32.mxu0 0.0
  %3342 = vmatmul.mubr.f32.gmra.mrb[0].mxu0 %v3012
  %v3343 = vpop.f32.mrb[0].mxu0
  %v3344 = vadd.f32 0.0, %v3343
  %v3345 = vpop.f32.mrb[0].mxu0
  %3346 = vmatprep.mubr.f32.mxu0 0.0
  %3347 = vmatmul.mubr.f32.gmra.mrb[0].mxu0 %v3015
  %v3348 = vpop.f32.mrb[0].mxu0
  %v3349 = vadd.f32 0.0, %v3348
  %v3350 = vpop.f32.mrb[0].mxu0
  %3351 = vmatprep.mubr.f32.mxu0 0.0
  %3352 = vmatmul.mubr.f32.gmra.mrb[0].mxu0 %v3018
  %v3353 = vpop.f32.mrb[0].mxu0
  %v3354 = vadd.f32 0.0, %v3353
  %v3355 = vpop.f32.mrb[0].mxu0
  %3356 = vmatprep.mubr.f32.mxu0 0.0
  %3357 = vmatmul.mubr.f32.gmra.mrb[0].mxu0 %v3021
  %v3358 = vpop.f32.mrb[0].mxu0
  %v3359 = vadd.f32 0.0, %v3358
  %v3360 = vpop.f32.mrb[0].mxu0
  %3361 = vmatprep.mubr.f32.mxu0 0.0
  %3362 = vmatmul.mubr.f32.gmra.mrb[0].mxu0 %v3024
  %v3363 = vpop.f32.mrb[0].mxu0
  %v3364 = vadd.f32 0.0, %v3363
  %v3365 = vpop.f32.mrb[0].mxu0
  %3366 = vmatprep.mubr.f32.mxu0 0.0
  %3367 = vmatmul.mubr.f32.gmra.mrb[0].mxu0 %v3027
  %v3368 = vpop.f32.mrb[0].mxu0
  %v3369 = vadd.f32 0.0, %v3368
  %v3370 = vpop.f32.mrb[0].mxu0
  %3371 = vmatprep.mubr.f32.mxu0 0.0
  %3372 = vmatmul.mubr.f32.gmra.mrb[0].mxu0 %v3030
  %v3373 = vpop.f32.mrb[0].mxu0
  %v3374 = vadd.f32 0.0, %v3373
  %v3375 = vpop.f32.mrb[0].mxu0
  %3376 = vmatprep.mubr.f32.mxu0 0.0
  %3377 = vmatmul.mubr.f32.gmra.mrb[0].mxu0 %v3033
  %v3378 = vpop.f32.mrb[0].mxu0
  %v3379 = vadd.f32 0.0, %v3378
  %v3380 = vpop.f32.mrb[0].mxu0
  %3381 = vmatprep.mubr.f32.mxu0 0.0
  %3382 = vmatmul.mubr.f32.gmra.mrb[0].mxu0 %v3036
  %v3383 = vpop.f32.mrb[0].mxu0
  %v3384 = vadd.f32 0.0, %v3383
  %v3385 = vpop.f32.mrb[0].mxu0
  %3386 = vmatprep.mubr.f32.mxu0 0.0
  %3387 = vmatmul.mubr.f32.gmra.mrb[0].mxu0 %v3039
  %v3388 = vpop.f32.mrb[0].mxu0
  %v3389 = vadd.f32 0.0, %v3388
  %v3390 = vpop.f32.mrb[0].mxu0
  %3391 = vmatprep.mubr.f32.mxu0 0.0
  %3392 = vmatmul.mubr.f32.gmra.mrb[0].mxu0 %v3042
  %v3393 = vpop.f32.mrb[0].mxu0
  %v3394 = vadd.f32 0.0, %v3393
  %v3395 = vpop.f32.mrb[0].mxu0
  %3396 = vmatprep.mubr.f32.mxu0 0.0
  %3397 = vmatmul.mubr.f32.gmra.mrb[0].mxu0 %v3045
  %v3398 = vpop.f32.mrb[0].mxu0
  %v3399 = vadd.f32 0.0, %v3398
  %v3400 = vpop.f32.mrb[0].mxu0
  %3401 = vmatprep.mubr.f32.mxu0 0.0
  %3402 = vmatmul.mubr.f32.gmra.mrb[0].mxu0 %v3048
  %v3403 = vpop.f32.mrb[0].mxu0
  %v3404 = vadd.f32 0.0, %v3403
  %v3405 = vpop.f32.mrb[0].mxu0
  %3406 = vmatprep.mubr.f32.mxu0 0.0
  %3407 = vmatmul.mubr.f32.gmra.mrb[0].mxu0 %v3051
  %v3408 = vpop.f32.mrb[0].mxu0
  %v3409 = vadd.f32 0.0, %v3408
  %v3410 = vpop.f32.mrb[0].mxu0
  %3411 = vmatprep.mubr.f32.mxu0 0.0
  %3412 = vmatmul.mubr.f32.gmra.mrb[0].mxu0 %v3054
  %v3413 = vpop.f32.mrb[0].mxu0
  %v3414 = vadd.f32 0.0, %v3413
  %v3415 = vpop.f32.mrb[0].mxu0
  %3416 = vmatprep.mubr.f32.mxu0 0.0
  %3417 = vmatmul.mubr.f32.gmra.mrb[0].mxu0 %v3057
  %v3418 = vpop.f32.mrb[0].mxu0
  %v3419 = vadd.f32 0.0, %v3418
  %v3420 = vpop.f32.mrb[0].mxu0
  %3421 = vmatprep.mubr.f32.mxu0 0.0
  %3422 = vmatmul.mubr.f32.gmra.mrb[0].mxu0 %v3060
  %v3423 = vpop.f32.mrb[0].mxu0
  %v3424 = vadd.f32 0.0, %v3423
  %v3425 = vpop.f32.mrb[0].mxu0
  %3426 = vmatprep.mubr.f32.mxu0 0.0
  %3427 = vmatmul.mubr.f32.gmra.mrb[0].mxu0 %v3063
  %v3428 = vpop.f32.mrb[0].mxu0
  %v3429 = vadd.f32 0.0, %v3428
  %v3430 = vpop.f32.mrb[0].mxu0
  %3431 = vmatprep.mubr.f32.mxu0 0.0
  %3432 = vmatmul.mubr.f32.gmra.mrb[0].mxu0 %v3066
  %v3433 = vpop.f32.mrb[0].mxu0
  %v3434 = vadd.f32 0.0, %v3433
  %v3435 = vpop.f32.mrb[0].mxu0
  %3436 = vmatprep.mubr.f32.mxu0 0.0
  %3437 = vmatmul.mubr.f32.gmra.mrb[0].mxu0 %v3069
  %v3438 = vpop.f32.mrb[0].mxu0
  %v3439 = vadd.f32 0.0, %v3438
  %v3440 = vpop.f32.mrb[0].mxu0
  %3441 = vmatprep.mubr.f32.mxu0 0.0
  %3442 = vmatmul.mubr.f32.gmra.mrb[0].mxu0 %v3072
  %v3443 = vpop.f32.mrb[0].mxu0
  %v3444 = vadd.f32 0.0, %v3443
  %v3445 = vpop.f32.mrb[0].mxu0
  %3446 = vmatprep.mubr.f32.mxu0 0.0
  %3447 = vmatmul.mubr.f32.gmra.mrb[0].mxu0 %v3075
  %v3448 = vpop.f32.mrb[0].mxu0
  %v3449 = vadd.f32 0.0, %v3448
  %v3450 = vpop.f32.mrb[0].mxu0
  %3451 = vmatprep.mubr.f32.mxu0 0.0
  %3452 = vmatmul.mubr.f32.gmra.mrb[0].mxu0 %v3078
  %v3453 = vpop.f32.mrb[0].mxu0
  %v3454 = vadd.f32 0.0, %v3453
  %v3455 = vpop.f32.mrb[0].mxu0
  %3456 = vmatprep.mubr.f32.mxu0 0.0
  %3457 = vmatmul.mubr.f32.gmra.mrb[0].mxu0 %v3081
  %v3458 = vpop.f32.mrb[0].mxu0
  %v3459 = vadd.f32 0.0, %v3458
  %v3460 = vpop.f32.mrb[0].mxu0
  %3461 = vmatprep.mubr.f32.mxu0 0.0
  %3462 = vmatmul.mubr.f32.gmra.mrb[0].mxu0 %v3084
  %v3463 = vpop.f32.mrb[0].mxu0
  %v3464 = vadd.f32 0.0, %v3463
  %v3465 = vpop.f32.mrb[0].mxu0
  %3466 = vmatprep.mubr.f32.mxu0 0.0
  %3467 = vmatmul.mubr.f32.gmra.mrb[0].mxu0 %v3087
  %v3468 = vpop.f32.mrb[0].mxu0
  %v3469 = vadd.f32 0.0, %v3468
  %v3470 = vpop.f32.mrb[0].mxu0
  %3471 = vmatprep.mubr.f32.mxu0 0.0
  %3472 = vmatmul.mubr.f32.gmra.mrb[0].mxu0 %v3090
  %v3473 = vpop.f32.mrb[0].mxu0
  %v3474 = vadd.f32 0.0, %v3473
  %v3475 = vpop.f32.mrb[0].mxu0
  %3476 = vmatprep.mubr.f32.mxu0 0.0
  %3477 = vmatmul.mubr.f32.gmra.mrb[0].mxu0 %v3093
  %v3478 = vpop.f32.mrb[0].mxu0
  %v3479 = vadd.f32 0.0, %v3478
  %v3480 = vpop.f32.mrb[0].mxu0
  %3481 = vmatprep.mubr.f32.mxu0 0.0
  %3482 = vmatmul.mubr.f32.gmra.mrb[0].mxu0 %v3096
  %v3483 = vpop.f32.mrb[0].mxu0
  %v3484 = vadd.f32 0.0, %v3483
  %v3485 = vpop.f32.mrb[0].mxu0
  %3486 = vdwg.mxu0
  %v3487 = vsel %vm26, %v3169, 0.0
  %v3488 = vsel %vm26, %v3174, 0.0
  %v3489 = vadd.f32 %v3487, %v3488
  %v3490 = vsel %vm26, %v3179, 0.0
  %v3491 = vadd.f32 %v3489, %v3490
  %v3492 = vsel %vm26, %v3184, 0.0
  %v3493 = vadd.f32 %v3491, %v3492
  %v3494 = vsel %vm26, %v3189, 0.0
  %v3495 = vadd.f32 %v3493, %v3494
  %v3496 = vsel %vm26, %v3194, 0.0
  %v3497 = vadd.f32 %v3495, %v3496
  %v3498 = vsel %vm26, %v3199, 0.0
  %v3499 = vadd.f32 %v3497, %v3498
  %v3500 = vsel %vm26, %v3204, 0.0
  %v3501 = vadd.f32 %v3499, %v3500
  %v3502 = vsel %vm26, %v3209, 0.0
  %v3503 = vadd.f32 %v3501, %v3502
  %v3504 = vsel %vm26, %v3214, 0.0
  %v3505 = vadd.f32 %v3503, %v3504
  %v3506 = vsel %vm26, %v3219, 0.0
  %v3507 = vadd.f32 %v3505, %v3506
  %v3508 = vsel %vm26, %v3224, 0.0
  %v3509 = vadd.f32 %v3507, %v3508
  %v3510 = vsel %vm26, %v3229, 0.0
  %v3511 = vadd.f32 %v3509, %v3510
  %v3512 = vsel %vm26, %v3234, 0.0
  %v3513 = vadd.f32 %v3511, %v3512
  %v3514 = vsel %vm26, %v3239, 0.0
  %v3515 = vadd.f32 %v3513, %v3514
  %v3516 = vsel %vm26, %v3244, 0.0
  %v3517 = vadd.f32 %v3515, %v3516
  %v3518 = vsel %vm26, %v3249, 0.0
  %v3519 = vadd.f32 %v3517, %v3518
  %v3520 = vsel %vm26, %v3254, 0.0
  %v3521 = vadd.f32 %v3519, %v3520
  %v3522 = vsel %vm26, %v3259, 0.0
  %v3523 = vadd.f32 %v3521, %v3522
  %v3524 = vsel %vm26, %v3264, 0.0
  %v3525 = vadd.f32 %v3523, %v3524
  %v3526 = vsel %vm26, %v3269, 0.0
  %v3527 = vadd.f32 %v3525, %v3526
  %v3528 = vsel %vm26, %v3274, 0.0
  %v3529 = vadd.f32 %v3527, %v3528
  %v3530 = vsel %vm26, %v3279, 0.0
  %v3531 = vadd.f32 %v3529, %v3530
  %v3532 = vsel %vm26, %v3284, 0.0
  %v3533 = vadd.f32 %v3531, %v3532
  %v3534 = vsel %vm26, %v3289, 0.0
  %v3535 = vadd.f32 %v3533, %v3534
  %v3536 = vsel %vm26, %v3294, 0.0
  %v3537 = vadd.f32 %v3535, %v3536
  %v3538 = vsel %vm26, %v3299, 0.0
  %v3539 = vadd.f32 %v3537, %v3538
  %v3540 = vsel %vm26, %v3304, 0.0
  %v3541 = vadd.f32 %v3539, %v3540
  %v3542 = vsel %vm26, %v3309, 0.0
  %v3543 = vadd.f32 %v3541, %v3542
  %v3544 = vsel %vm26, %v3314, 0.0
  %v3545 = vadd.f32 %v3543, %v3544
  %v3546 = vsel %vm26, %v3319, 0.0
  %v3547 = vadd.f32 %v3545, %v3546
  %v3548 = vsel %vm26, %v3324, 0.0
  %v3549 = vadd.f32 %v3547, %v3548
  %v3550 = vsel %vm26, %v3329, 0.0
  %v3551 = vadd.f32 %v3549, %v3550
  %v3552 = vsel %vm26, %v3334, 0.0
  %v3553 = vadd.f32 %v3551, %v3552
  %v3554 = vsel %vm26, %v3339, 0.0
  %v3555 = vadd.f32 %v3553, %v3554
  %v3556 = vsel %vm26, %v3344, 0.0
  %v3557 = vadd.f32 %v3555, %v3556
  %v3558 = vsel %vm26, %v3349, 0.0
  %v3559 = vadd.f32 %v3557, %v3558
  %v3560 = vsel %vm26, %v3354, 0.0
  %v3561 = vadd.f32 %v3559, %v3560
  %v3562 = vsel %vm26, %v3359, 0.0
  %v3563 = vadd.f32 %v3561, %v3562
  %v3564 = vsel %vm26, %v3364, 0.0
  %v3565 = vadd.f32 %v3563, %v3564
  %v3566 = vsel %vm26, %v3369, 0.0
  %v3567 = vadd.f32 %v3565, %v3566
  %v3568 = vsel %vm26, %v3374, 0.0
  %v3569 = vadd.f32 %v3567, %v3568
  %v3570 = vsel %vm26, %v3379, 0.0
  %v3571 = vadd.f32 %v3569, %v3570
  %v3572 = vsel %vm26, %v3384, 0.0
  %v3573 = vadd.f32 %v3571, %v3572
  %v3574 = vsel %vm26, %v3389, 0.0
  %v3575 = vadd.f32 %v3573, %v3574
  %v3576 = vsel %vm26, %v3394, 0.0
  %v3577 = vadd.f32 %v3575, %v3576
  %v3578 = vsel %vm26, %v3399, 0.0
  %v3579 = vadd.f32 %v3577, %v3578
  %v3580 = vsel %vm26, %v3404, 0.0
  %v3581 = vadd.f32 %v3579, %v3580
  %v3582 = vsel %vm26, %v3409, 0.0
  %v3583 = vadd.f32 %v3581, %v3582
  %v3584 = vsel %vm26, %v3414, 0.0
  %v3585 = vadd.f32 %v3583, %v3584
  %v3586 = vsel %vm26, %v3419, 0.0
  %v3587 = vadd.f32 %v3585, %v3586
  %v3588 = vsel %vm26, %v3424, 0.0
  %v3589 = vadd.f32 %v3587, %v3588
  %v3590 = vsel %vm26, %v3429, 0.0
  %v3591 = vadd.f32 %v3589, %v3590
  %v3592 = vsel %vm26, %v3434, 0.0
  %v3593 = vadd.f32 %v3591, %v3592
  %v3594 = vsel %vm26, %v3439, 0.0
  %v3595 = vadd.f32 %v3593, %v3594
  %v3596 = vsel %vm26, %v3444, 0.0
  %v3597 = vadd.f32 %v3595, %v3596
  %v3598 = vsel %vm26, %v3449, 0.0
  %v3599 = vadd.f32 %v3597, %v3598
  %v3600 = vsel %vm26, %v3454, 0.0
  %v3601 = vadd.f32 %v3599, %v3600
  %v3602 = vsel %vm26, %v3459, 0.0
  %v3603 = vadd.f32 %v3601, %v3602
  %v3604 = vsel %vm26, %v3464, 0.0
  %v3605 = vadd.f32 %v3603, %v3604
  %v3606 = vsel %vm26, %v3469, 0.0
  %v3607 = vadd.f32 %v3605, %v3606
  %v3608 = vsel %vm26, %v3474, 0.0
  %v3609 = vadd.f32 %v3607, %v3608
  %v3610 = vsel %vm26, %v3479, 0.0
  %v3611 = vadd.f32 %v3609, %v3610
  %v3612 = vsel %vm26, %v3484, 0.0
  %v3613 = vadd.f32 %v3611, %v3612
  %v3614 = vrot.slane %v3613, 4
  %v3615 = vadd.f32 %v3613, %v3614
  %v3616 = vrot.slane %v3615, 2
  %v3617 = vadd.f32 %v3615, %v3616
  %v3618 = vrot.slane %v3617, 1
  %v3619 = vadd.f32 %v3617, %v3618
  %v3620 = vmul.f32 %v3619, 0.001953125
  %v3621 = vmul.f32 %v3169, %v3169
  %v3622 = vmul.f32 %v3174, %v3174
  %v3623 = vmul.f32 %v3179, %v3179
  %v3624 = vmul.f32 %v3184, %v3184
  %v3625 = vmul.f32 %v3189, %v3189
  %v3626 = vmul.f32 %v3194, %v3194
  %v3627 = vmul.f32 %v3199, %v3199
  %v3628 = vmul.f32 %v3204, %v3204
  %v3629 = vmul.f32 %v3209, %v3209
  %v3630 = vmul.f32 %v3214, %v3214
  %v3631 = vmul.f32 %v3219, %v3219
  %v3632 = vmul.f32 %v3224, %v3224
  %v3633 = vmul.f32 %v3229, %v3229
  %v3634 = vmul.f32 %v3234, %v3234
  %v3635 = vmul.f32 %v3239, %v3239
  %v3636 = vmul.f32 %v3244, %v3244
  %v3637 = vmul.f32 %v3249, %v3249
  %v3638 = vmul.f32 %v3254, %v3254
  %v3639 = vmul.f32 %v3259, %v3259
  %v3640 = vmul.f32 %v3264, %v3264
  %v3641 = vmul.f32 %v3269, %v3269
  %v3642 = vmul.f32 %v3274, %v3274
  %v3643 = vmul.f32 %v3279, %v3279
  %v3644 = vmul.f32 %v3284, %v3284
  %v3645 = vmul.f32 %v3289, %v3289
  %v3646 = vmul.f32 %v3294, %v3294
  %v3647 = vmul.f32 %v3299, %v3299
  %v3648 = vmul.f32 %v3304, %v3304
  %v3649 = vmul.f32 %v3309, %v3309
  %v3650 = vmul.f32 %v3314, %v3314
  %v3651 = vmul.f32 %v3319, %v3319
  %v3652 = vmul.f32 %v3324, %v3324
  %v3653 = vmul.f32 %v3329, %v3329
  %v3654 = vmul.f32 %v3334, %v3334
  %v3655 = vmul.f32 %v3339, %v3339
  %v3656 = vmul.f32 %v3344, %v3344
  %v3657 = vmul.f32 %v3349, %v3349
  %v3658 = vmul.f32 %v3354, %v3354
  %v3659 = vmul.f32 %v3359, %v3359
  %v3660 = vmul.f32 %v3364, %v3364
  %v3661 = vmul.f32 %v3369, %v3369
  %v3662 = vmul.f32 %v3374, %v3374
  %v3663 = vmul.f32 %v3379, %v3379
  %v3664 = vmul.f32 %v3384, %v3384
  %v3665 = vmul.f32 %v3389, %v3389
  %v3666 = vmul.f32 %v3394, %v3394
  %v3667 = vmul.f32 %v3399, %v3399
  %v3668 = vmul.f32 %v3404, %v3404
  %v3669 = vmul.f32 %v3409, %v3409
  %v3670 = vmul.f32 %v3414, %v3414
  %v3671 = vmul.f32 %v3419, %v3419
  %v3672 = vmul.f32 %v3424, %v3424
  %v3673 = vmul.f32 %v3429, %v3429
  %v3674 = vmul.f32 %v3434, %v3434
  %v3675 = vmul.f32 %v3439, %v3439
  %v3676 = vmul.f32 %v3444, %v3444
  %v3677 = vmul.f32 %v3449, %v3449
  %v3678 = vmul.f32 %v3454, %v3454
  %v3679 = vmul.f32 %v3459, %v3459
  %v3680 = vmul.f32 %v3464, %v3464
  %v3681 = vmul.f32 %v3469, %v3469
  %v3682 = vmul.f32 %v3474, %v3474
  %v3683 = vmul.f32 %v3479, %v3479
  %v3684 = vmul.f32 %v3484, %v3484
  %v3685 = vsel %vm26, %v3621, 0.0
  %v3686 = vsel %vm26, %v3622, 0.0
  %v3687 = vadd.f32 %v3685, %v3686
  %v3688 = vsel %vm26, %v3623, 0.0
  %v3689 = vadd.f32 %v3687, %v3688
  %v3690 = vsel %vm26, %v3624, 0.0
  %v3691 = vadd.f32 %v3689, %v3690
  %v3692 = vsel %vm26, %v3625, 0.0
  %v3693 = vadd.f32 %v3691, %v3692
  %v3694 = vsel %vm26, %v3626, 0.0
  %v3695 = vadd.f32 %v3693, %v3694
  %v3696 = vsel %vm26, %v3627, 0.0
  %v3697 = vadd.f32 %v3695, %v3696
  %v3698 = vsel %vm26, %v3628, 0.0
  %v3699 = vadd.f32 %v3697, %v3698
  %v3700 = vsel %vm26, %v3629, 0.0
  %v3701 = vadd.f32 %v3699, %v3700
  %v3702 = vsel %vm26, %v3630, 0.0
  %v3703 = vadd.f32 %v3701, %v3702
  %v3704 = vsel %vm26, %v3631, 0.0
  %v3705 = vadd.f32 %v3703, %v3704
  %v3706 = vsel %vm26, %v3632, 0.0
  %v3707 = vadd.f32 %v3705, %v3706
  %v3708 = vsel %vm26, %v3633, 0.0
  %v3709 = vadd.f32 %v3707, %v3708
  %v3710 = vsel %vm26, %v3634, 0.0
  %v3711 = vadd.f32 %v3709, %v3710
  %v3712 = vsel %vm26, %v3635, 0.0
  %v3713 = vadd.f32 %v3711, %v3712
  %v3714 = vsel %vm26, %v3636, 0.0
  %v3715 = vadd.f32 %v3713, %v3714
  %v3716 = vsel %vm26, %v3637, 0.0
  %v3717 = vadd.f32 %v3715, %v3716
  %v3718 = vsel %vm26, %v3638, 0.0
  %v3719 = vadd.f32 %v3717, %v3718
  %v3720 = vsel %vm26, %v3639, 0.0
  %v3721 = vadd.f32 %v3719, %v3720
  %v3722 = vsel %vm26, %v3640, 0.0
  %v3723 = vadd.f32 %v3721, %v3722
  %v3724 = vsel %vm26, %v3641, 0.0
  %v3725 = vadd.f32 %v3723, %v3724
  %v3726 = vsel %vm26, %v3642, 0.0
  %v3727 = vadd.f32 %v3725, %v3726
  %v3728 = vsel %vm26, %v3643, 0.0
  %v3729 = vadd.f32 %v3727, %v3728
  %v3730 = vsel %vm26, %v3644, 0.0
  %v3731 = vadd.f32 %v3729, %v3730
  %v3732 = vsel %vm26, %v3645, 0.0
  %v3733 = vadd.f32 %v3731, %v3732
  %v3734 = vsel %vm26, %v3646, 0.0
  %v3735 = vadd.f32 %v3733, %v3734
  %v3736 = vsel %vm26, %v3647, 0.0
  %v3737 = vadd.f32 %v3735, %v3736
  %v3738 = vsel %vm26, %v3648, 0.0
  %v3739 = vadd.f32 %v3737, %v3738
  %v3740 = vsel %vm26, %v3649, 0.0
  %v3741 = vadd.f32 %v3739, %v3740
  %v3742 = vsel %vm26, %v3650, 0.0
  %v3743 = vadd.f32 %v3741, %v3742
  %v3744 = vsel %vm26, %v3651, 0.0
  %v3745 = vadd.f32 %v3743, %v3744
  %v3746 = vsel %vm26, %v3652, 0.0
  %v3747 = vadd.f32 %v3745, %v3746
  %v3748 = vsel %vm26, %v3653, 0.0
  %v3749 = vadd.f32 %v3747, %v3748
  %v3750 = vsel %vm26, %v3654, 0.0
  %v3751 = vadd.f32 %v3749, %v3750
  %v3752 = vsel %vm26, %v3655, 0.0
  %v3753 = vadd.f32 %v3751, %v3752
  %v3754 = vsel %vm26, %v3656, 0.0
  %v3755 = vadd.f32 %v3753, %v3754
  %v3756 = vsel %vm26, %v3657, 0.0
  %v3757 = vadd.f32 %v3755, %v3756
  %v3758 = vsel %vm26, %v3658, 0.0
  %v3759 = vadd.f32 %v3757, %v3758
  %v3760 = vsel %vm26, %v3659, 0.0
  %v3761 = vadd.f32 %v3759, %v3760
  %v3762 = vsel %vm26, %v3660, 0.0
  %v3763 = vadd.f32 %v3761, %v3762
  %v3764 = vsel %vm26, %v3661, 0.0
  %v3765 = vadd.f32 %v3763, %v3764
  %v3766 = vsel %vm26, %v3662, 0.0
  %v3767 = vadd.f32 %v3765, %v3766
  %v3768 = vsel %vm26, %v3663, 0.0
  %v3769 = vadd.f32 %v3767, %v3768
  %v3770 = vsel %vm26, %v3664, 0.0
  %v3771 = vadd.f32 %v3769, %v3770
  %v3772 = vsel %vm26, %v3665, 0.0
  %v3773 = vadd.f32 %v3771, %v3772
  %v3774 = vsel %vm26, %v3666, 0.0
  %v3775 = vadd.f32 %v3773, %v3774
  %v3776 = vsel %vm26, %v3667, 0.0
  %v3777 = vadd.f32 %v3775, %v3776
  %v3778 = vsel %vm26, %v3668, 0.0
  %v3779 = vadd.f32 %v3777, %v3778
  %v3780 = vsel %vm26, %v3669, 0.0
  %v3781 = vadd.f32 %v3779, %v3780
  %v3782 = vsel %vm26, %v3670, 0.0
  %v3783 = vadd.f32 %v3781, %v3782
  %v3784 = vsel %vm26, %v3671, 0.0
  %v3785 = vadd.f32 %v3783, %v3784
  %v3786 = vsel %vm26, %v3672, 0.0
  %v3787 = vadd.f32 %v3785, %v3786
  %v3788 = vsel %vm26, %v3673, 0.0
  %v3789 = vadd.f32 %v3787, %v3788
  %v3790 = vsel %vm26, %v3674, 0.0
  %v3791 = vadd.f32 %v3789, %v3790
  %v3792 = vsel %vm26, %v3675, 0.0
  %v3793 = vadd.f32 %v3791, %v3792
  %v3794 = vsel %vm26, %v3676, 0.0
  %v3795 = vadd.f32 %v3793, %v3794
  %v3796 = vsel %vm26, %v3677, 0.0
  %v3797 = vadd.f32 %v3795, %v3796
  %v3798 = vsel %vm26, %v3678, 0.0
  %v3799 = vadd.f32 %v3797, %v3798
  %v3800 = vsel %vm26, %v3679, 0.0
  %v3801 = vadd.f32 %v3799, %v3800
  %v3802 = vsel %vm26, %v3680, 0.0
  %v3803 = vadd.f32 %v3801, %v3802
  %v3804 = vsel %vm26, %v3681, 0.0
  %v3805 = vadd.f32 %v3803, %v3804
  %v3806 = vsel %vm26, %v3682, 0.0
  %v3807 = vadd.f32 %v3805, %v3806
  %v3808 = vsel %vm26, %v3683, 0.0
  %v3809 = vadd.f32 %v3807, %v3808
  %v3810 = vsel %vm26, %v3684, 0.0
  %v3811 = vadd.f32 %v3809, %v3810
  %v3812 = vrot.slane %v3811, 4
  %v3813 = vadd.f32 %v3811, %v3812
  %v3814 = vrot.slane %v3813, 2
  %v3815 = vadd.f32 %v3813, %v3814
  %v3816 = vrot.slane %v3815, 1
  %v3817 = vadd.f32 %v3815, %v3816
  %v3818 = vmul.f32 %v3817, 0.001953125
  %v3819 = vmul.f32 %v3620, %v3620
  %v3820 = vsub.f32 %v3818, %v3819
  %v3821 = vmax.f32 %v3820, 0.0
  %v3822 = vadd.f32 %v3821, 1e-05
  %v3823 = vrsqrt.pop %v3822
  %v3824 = vmul.f32 %v270, %v3823
  %v3825 = vmul.f32 %v3620, %v3824
  %v3826 = vsub.f32 %v271, %v3825
  %v3828 = vlaneseq
  %v3829 = vshrl.u32 %v3828, 7
  %v3830 = vsub.s32 0, %v3829
  %v3831 = vrot.slane %v3824, %v3830
  %v3833 = vmul.f32 %v3169, %v3831
  %v3834 = vmul.f32 %v3174, %v3831
  %v3835 = vmul.f32 %v3179, %v3831
  %v3836 = vmul.f32 %v3184, %v3831
  %v3837 = vmul.f32 %v3189, %v3831
  %v3838 = vmul.f32 %v3194, %v3831
  %v3839 = vmul.f32 %v3199, %v3831
  %v3840 = vmul.f32 %v3204, %v3831
  %v3841 = vmul.f32 %v3209, %v3831
  %v3842 = vmul.f32 %v3214, %v3831
  %v3843 = vmul.f32 %v3219, %v3831
  %v3844 = vmul.f32 %v3224, %v3831
  %v3845 = vmul.f32 %v3229, %v3831
  %v3846 = vmul.f32 %v3234, %v3831
  %v3847 = vmul.f32 %v3239, %v3831
  %v3848 = vmul.f32 %v3244, %v3831
  %v3849 = vmul.f32 %v3249, %v3831
  %v3850 = vmul.f32 %v3254, %v3831
  %v3851 = vmul.f32 %v3259, %v3831
  %v3852 = vmul.f32 %v3264, %v3831
  %v3853 = vmul.f32 %v3269, %v3831
  %v3854 = vmul.f32 %v3274, %v3831
  %v3855 = vmul.f32 %v3279, %v3831
  %v3856 = vmul.f32 %v3284, %v3831
  %v3857 = vmul.f32 %v3289, %v3831
  %v3858 = vmul.f32 %v3294, %v3831
  %v3859 = vmul.f32 %v3299, %v3831
  %v3860 = vmul.f32 %v3304, %v3831
  %v3861 = vmul.f32 %v3309, %v3831
  %v3862 = vmul.f32 %v3314, %v3831
  %v3863 = vmul.f32 %v3319, %v3831
  %v3864 = vmul.f32 %v3324, %v3831
  %v3865 = vmul.f32 %v3329, %v3831
  %v3866 = vmul.f32 %v3334, %v3831
  %v3867 = vmul.f32 %v3339, %v3831
  %v3868 = vmul.f32 %v3344, %v3831
  %v3869 = vmul.f32 %v3349, %v3831
  %v3870 = vmul.f32 %v3354, %v3831
  %v3871 = vmul.f32 %v3359, %v3831
  %v3872 = vmul.f32 %v3364, %v3831
  %v3873 = vmul.f32 %v3369, %v3831
  %v3874 = vmul.f32 %v3374, %v3831
  %v3875 = vmul.f32 %v3379, %v3831
  %v3876 = vmul.f32 %v3384, %v3831
  %v3877 = vmul.f32 %v3389, %v3831
  %v3878 = vmul.f32 %v3394, %v3831
  %v3879 = vmul.f32 %v3399, %v3831
  %v3880 = vmul.f32 %v3404, %v3831
  %v3881 = vmul.f32 %v3409, %v3831
  %v3882 = vmul.f32 %v3414, %v3831
  %v3883 = vmul.f32 %v3419, %v3831
  %v3884 = vmul.f32 %v3424, %v3831
  %v3885 = vmul.f32 %v3429, %v3831
  %v3886 = vmul.f32 %v3434, %v3831
  %v3887 = vmul.f32 %v3439, %v3831
  %v3888 = vmul.f32 %v3444, %v3831
  %v3889 = vmul.f32 %v3449, %v3831
  %v3890 = vmul.f32 %v3454, %v3831
  %v3891 = vmul.f32 %v3459, %v3831
  %v3892 = vmul.f32 %v3464, %v3831
  %v3893 = vmul.f32 %v3469, %v3831
  %v3894 = vmul.f32 %v3474, %v3831
  %v3895 = vmul.f32 %v3479, %v3831
  %v3896 = vmul.f32 %v3484, %v3831
  %v3898 = vlaneseq
  %v3899 = vshrl.u32 %v3898, 7
  %v3900 = vsub.s32 0, %v3899
  %v3901 = vrot.slane %v3826, %v3900
  %v3903 = vadd.f32 %v3833, %v3901
  %v3904 = vadd.f32 %v3834, %v3901
  %v3905 = vadd.f32 %v3835, %v3901
  %v3906 = vadd.f32 %v3836, %v3901
  %v3907 = vadd.f32 %v3837, %v3901
  %v3908 = vadd.f32 %v3838, %v3901
  %v3909 = vadd.f32 %v3839, %v3901
  %v3910 = vadd.f32 %v3840, %v3901
  %v3911 = vadd.f32 %v3841, %v3901
  %v3912 = vadd.f32 %v3842, %v3901
  %v3913 = vadd.f32 %v3843, %v3901
  %v3914 = vadd.f32 %v3844, %v3901
  %v3915 = vadd.f32 %v3845, %v3901
  %v3916 = vadd.f32 %v3846, %v3901
  %v3917 = vadd.f32 %v3847, %v3901
  %v3918 = vadd.f32 %v3848, %v3901
  %v3919 = vadd.f32 %v3849, %v3901
  %v3920 = vadd.f32 %v3850, %v3901
  %v3921 = vadd.f32 %v3851, %v3901
  %v3922 = vadd.f32 %v3852, %v3901
  %v3923 = vadd.f32 %v3853, %v3901
  %v3924 = vadd.f32 %v3854, %v3901
  %v3925 = vadd.f32 %v3855, %v3901
  %v3926 = vadd.f32 %v3856, %v3901
  %v3927 = vadd.f32 %v3857, %v3901
  %v3928 = vadd.f32 %v3858, %v3901
  %v3929 = vadd.f32 %v3859, %v3901
  %v3930 = vadd.f32 %v3860, %v3901
  %v3931 = vadd.f32 %v3861, %v3901
  %v3932 = vadd.f32 %v3862, %v3901
  %v3933 = vadd.f32 %v3863, %v3901
  %v3934 = vadd.f32 %v3864, %v3901
  %v3935 = vadd.f32 %v3865, %v3901
  %v3936 = vadd.f32 %v3866, %v3901
  %v3937 = vadd.f32 %v3867, %v3901
  %v3938 = vadd.f32 %v3868, %v3901
  %v3939 = vadd.f32 %v3869, %v3901
  %v3940 = vadd.f32 %v3870, %v3901
  %v3941 = vadd.f32 %v3871, %v3901
  %v3942 = vadd.f32 %v3872, %v3901
  %v3943 = vadd.f32 %v3873, %v3901
  %v3944 = vadd.f32 %v3874, %v3901
  %v3945 = vadd.f32 %v3875, %v3901
  %v3946 = vadd.f32 %v3876, %v3901
  %v3947 = vadd.f32 %v3877, %v3901
  %v3948 = vadd.f32 %v3878, %v3901
  %v3949 = vadd.f32 %v3879, %v3901
  %v3950 = vadd.f32 %v3880, %v3901
  %v3951 = vadd.f32 %v3881, %v3901
  %v3952 = vadd.f32 %v3882, %v3901
  %v3953 = vadd.f32 %v3883, %v3901
  %v3954 = vadd.f32 %v3884, %v3901
  %v3955 = vadd.f32 %v3885, %v3901
  %v3956 = vadd.f32 %v3886, %v3901
  %v3957 = vadd.f32 %v3887, %v3901
  %v3958 = vadd.f32 %v3888, %v3901
  %v3959 = vadd.f32 %v3889, %v3901
  %v3960 = vadd.f32 %v3890, %v3901
  %v3961 = vadd.f32 %v3891, %v3901
  %v3962 = vadd.f32 %v3892, %v3901
  %v3963 = vadd.f32 %v3893, %v3901
  %v3964 = vadd.f32 %v3894, %v3901
  %v3965 = vadd.f32 %v3895, %v3901
  %v3966 = vadd.f32 %v3896, %v3901
  %v3967 = vmul.f32 %v3903, 0.01
  %v3968 = vmul.f32 %v3904, 0.01
  %v3969 = vmul.f32 %v3905, 0.01
  %v3970 = vmul.f32 %v3906, 0.01
  %v3971 = vmul.f32 %v3907, 0.01
  %v3972 = vmul.f32 %v3908, 0.01
  %v3973 = vmul.f32 %v3909, 0.01
  %v3974 = vmul.f32 %v3910, 0.01
  %v3975 = vmul.f32 %v3911, 0.01
  %v3976 = vmul.f32 %v3912, 0.01
  %v3977 = vmul.f32 %v3913, 0.01
  %v3978 = vmul.f32 %v3914, 0.01
  %v3979 = vmul.f32 %v3915, 0.01
  %v3980 = vmul.f32 %v3916, 0.01
  %v3981 = vmul.f32 %v3917, 0.01
  %v3982 = vmul.f32 %v3918, 0.01
  %v3983 = vmul.f32 %v3919, 0.01
  %v3984 = vmul.f32 %v3920, 0.01
  %v3985 = vmul.f32 %v3921, 0.01
  %v3986 = vmul.f32 %v3922, 0.01
  %v3987 = vmul.f32 %v3923, 0.01
  %v3988 = vmul.f32 %v3924, 0.01
  %v3989 = vmul.f32 %v3925, 0.01
  %v3990 = vmul.f32 %v3926, 0.01
  %v3991 = vmul.f32 %v3927, 0.01
  %v3992 = vmul.f32 %v3928, 0.01
  %v3993 = vmul.f32 %v3929, 0.01
  %v3994 = vmul.f32 %v3930, 0.01
  %v3995 = vmul.f32 %v3931, 0.01
  %v3996 = vmul.f32 %v3932, 0.01
  %v3997 = vmul.f32 %v3933, 0.01
  %v3998 = vmul.f32 %v3934, 0.01
  %v3999 = vmul.f32 %v3935, 0.01
  %v4000 = vmul.f32 %v3936, 0.01
  %v4001 = vmul.f32 %v3937, 0.01
  %v4002 = vmul.f32 %v3938, 0.01
  %v4003 = vmul.f32 %v3939, 0.01
  %v4004 = vmul.f32 %v3940, 0.01
  %v4005 = vmul.f32 %v3941, 0.01
  %v4006 = vmul.f32 %v3942, 0.01
  %v4007 = vmul.f32 %v3943, 0.01
  %v4008 = vmul.f32 %v3944, 0.01
  %v4009 = vmul.f32 %v3945, 0.01
  %v4010 = vmul.f32 %v3946, 0.01
  %v4011 = vmul.f32 %v3947, 0.01
  %v4012 = vmul.f32 %v3948, 0.01
  %v4013 = vmul.f32 %v3949, 0.01
  %v4014 = vmul.f32 %v3950, 0.01
  %v4015 = vmul.f32 %v3951, 0.01
  %v4016 = vmul.f32 %v3952, 0.01
  %v4017 = vmul.f32 %v3953, 0.01
  %v4018 = vmul.f32 %v3954, 0.01
  %v4019 = vmul.f32 %v3955, 0.01
  %v4020 = vmul.f32 %v3956, 0.01
  %v4021 = vmul.f32 %v3957, 0.01
  %v4022 = vmul.f32 %v3958, 0.01
  %v4023 = vmul.f32 %v3959, 0.01
  %v4024 = vmul.f32 %v3960, 0.01
  %v4025 = vmul.f32 %v3961, 0.01
  %v4026 = vmul.f32 %v3962, 0.01
  %v4027 = vmul.f32 %v3963, 0.01
  %v4028 = vmul.f32 %v3964, 0.01
  %v4029 = vmul.f32 %v3965, 0.01
  %v4030 = vmul.f32 %v3966, 0.01
  %v4031 = vmax.f32 %v3903, %v3967
  %v4032 = vmax.f32 %v3904, %v3968
  %v4033 = vmax.f32 %v3905, %v3969
  %v4034 = vmax.f32 %v3906, %v3970
  %v4035 = vmax.f32 %v3907, %v3971
  %v4036 = vmax.f32 %v3908, %v3972
  %v4037 = vmax.f32 %v3909, %v3973
  %v4038 = vmax.f32 %v3910, %v3974
  %v4039 = vmax.f32 %v3911, %v3975
  %v4040 = vmax.f32 %v3912, %v3976
  %v4041 = vmax.f32 %v3913, %v3977
  %v4042 = vmax.f32 %v3914, %v3978
  %v4043 = vmax.f32 %v3915, %v3979
  %v4044 = vmax.f32 %v3916, %v3980
  %v4045 = vmax.f32 %v3917, %v3981
  %v4046 = vmax.f32 %v3918, %v3982
  %v4047 = vmax.f32 %v3919, %v3983
  %v4048 = vmax.f32 %v3920, %v3984
  %v4049 = vmax.f32 %v3921, %v3985
  %v4050 = vmax.f32 %v3922, %v3986
  %v4051 = vmax.f32 %v3923, %v3987
  %v4052 = vmax.f32 %v3924, %v3988
  %v4053 = vmax.f32 %v3925, %v3989
  %v4054 = vmax.f32 %v3926, %v3990
  %v4055 = vmax.f32 %v3927, %v3991
  %v4056 = vmax.f32 %v3928, %v3992
  %v4057 = vmax.f32 %v3929, %v3993
  %v4058 = vmax.f32 %v3930, %v3994
  %v4059 = vmax.f32 %v3931, %v3995
  %v4060 = vmax.f32 %v3932, %v3996
  %v4061 = vmax.f32 %v3933, %v3997
  %v4062 = vmax.f32 %v3934, %v3998
  %v4063 = vmax.f32 %v3935, %v3999
  %v4064 = vmax.f32 %v3936, %v4000
  %v4065 = vmax.f32 %v3937, %v4001
  %v4066 = vmax.f32 %v3938, %v4002
  %v4067 = vmax.f32 %v3939, %v4003
  %v4068 = vmax.f32 %v3940, %v4004
  %v4069 = vmax.f32 %v3941, %v4005
  %v4070 = vmax.f32 %v3942, %v4006
  %v4071 = vmax.f32 %v3943, %v4007
  %v4072 = vmax.f32 %v3944, %v4008
  %v4073 = vmax.f32 %v3945, %v4009
  %v4074 = vmax.f32 %v3946, %v4010
  %v4075 = vmax.f32 %v3947, %v4011
  %v4076 = vmax.f32 %v3948, %v4012
  %v4077 = vmax.f32 %v3949, %v4013
  %v4078 = vmax.f32 %v3950, %v4014
  %v4079 = vmax.f32 %v3951, %v4015
  %v4080 = vmax.f32 %v3952, %v4016
  %v4081 = vmax.f32 %v3953, %v4017
  %v4082 = vmax.f32 %v3954, %v4018
  %v4083 = vmax.f32 %v3955, %v4019
  %v4084 = vmax.f32 %v3956, %v4020
  %v4085 = vmax.f32 %v3957, %v4021
  %v4086 = vmax.f32 %v3958, %v4022
  %v4087 = vmax.f32 %v3959, %v4023
  %v4088 = vmax.f32 %v3960, %v4024
  %v4089 = vmax.f32 %v3961, %v4025
  %v4090 = vmax.f32 %v3962, %v4026
  %v4091 = vmax.f32 %v3963, %v4027
  %v4092 = vmax.f32 %v3964, %v4028
  %v4093 = vmax.f32 %v3965, %v4029
  %v4094 = vmax.f32 %v3966, %v4030
  %4095 = vst.msk [vmem:[%s200 + $0x1] sm:$0xff] %vm26, %v4031
  %4096 = vst.msk [vmem:[%s200 + $0x9] sm:$0xff] %vm26, %v4032
  %4097 = vst.msk [vmem:[%s200 + $0x19] sm:$0xff] %vm26, %v4033
  %4098 = vst.msk [vmem:[%s200 + $0x21] sm:$0xff] %vm26, %v4034
  %4099 = vst.msk [vmem:[%s200 + $0x31] sm:$0xff] %vm26, %v4035
  %4100 = vst.msk [vmem:[%s200 + $0x39] sm:$0xff] %vm26, %v4036
  %4101 = vst.msk [vmem:[%s200 + $0x49] sm:$0xff] %vm26, %v4037
  %4102 = vst.msk [vmem:[%s200 + $0x51] sm:$0xff] %vm26, %v4038
  %4103 = vst.msk [vmem:[%s200 + $0x61] sm:$0xff] %vm26, %v4039
  %4104 = vst.msk [vmem:[%s200 + $0x69] sm:$0xff] %vm26, %v4040
  %4105 = vst.msk [vmem:[%s200 + $0x79] sm:$0xff] %vm26, %v4041
  %4106 = vst.msk [vmem:[%s200 + $0x81] sm:$0xff] %vm26, %v4042
  %4107 = vst.msk [vmem:[%s200 + $0x91] sm:$0xff] %vm26, %v4043
  %4108 = vst.msk [vmem:[%s200 + $0x99] sm:$0xff] %vm26, %v4044
  %4109 = vst.msk [vmem:[%s200 + $0xa9] sm:$0xff] %vm26, %v4045
  %4110 = vst.msk [vmem:[%s200 + $0xb1] sm:$0xff] %vm26, %v4046
  %4111 = vst.msk [vmem:[%s200 + $0xc1] sm:$0xff] %vm26, %v4047
  %4112 = vst.msk [vmem:[%s200 + $0xc9] sm:$0xff] %vm26, %v4048
  %4113 = vst.msk [vmem:[%s200 + $0xd9] sm:$0xff] %vm26, %v4049
  %4114 = vst.msk [vmem:[%s200 + $0xe1] sm:$0xff] %vm26, %v4050
  %4115 = vst.msk [vmem:[%s200 + $0xf1] sm:$0xff] %vm26, %v4051
  %4116 = vst.msk [vmem:[%s200 + $0xf9] sm:$0xff] %vm26, %v4052
  %4117 = vst.msk [vmem:[%s200 + $0x109] sm:$0xff] %vm26, %v4053
  %4118 = vst.msk [vmem:[%s200 + $0x111] sm:$0xff] %vm26, %v4054
  %4119 = vst.msk [vmem:[%s200 + $0x121] sm:$0xff] %vm26, %v4055
  %4120 = vst.msk [vmem:[%s200 + $0x129] sm:$0xff] %vm26, %v4056
  %4121 = vst.msk [vmem:[%s200 + $0x139] sm:$0xff] %vm26, %v4057
  %4122 = vst.msk [vmem:[%s200 + $0x141] sm:$0xff] %vm26, %v4058
  %4123 = vst.msk [vmem:[%s200 + $0x151] sm:$0xff] %vm26, %v4059
  %4124 = vst.msk [vmem:[%s200 + $0x159] sm:$0xff] %vm26, %v4060
  %4125 = vst.msk [vmem:[%s200 + $0x169] sm:$0xff] %vm26, %v4061
  %4126 = vst.msk [vmem:[%s200 + $0x171] sm:$0xff] %vm26, %v4062
  %4127 = vst.msk [vmem:[%s200 + $0x1b1] sm:$0xff] %vm26, %v4063
  %4128 = vst.msk [vmem:[%s200 + $0x1b9] sm:$0xff] %vm26, %v4064
  %4129 = vst.msk [vmem:[%s200 + $0x1c9] sm:$0xff] %vm26, %v4065
  %4130 = vst.msk [vmem:[%s200 + $0x1d1] sm:$0xff] %vm26, %v4066
  %4131 = vst.msk [vmem:[%s200 + $0x1e1] sm:$0xff] %vm26, %v4067
  %4132 = vst.msk [vmem:[%s200 + $0x1e9] sm:$0xff] %vm26, %v4068
  %4133 = vst.msk [vmem:[%s200 + $0x1f9] sm:$0xff] %vm26, %v4069
  %4134 = vst.msk [vmem:[%s200 + $0x201] sm:$0xff] %vm26, %v4070
  %4135 = vst.msk [vmem:[%s200 + $0x211] sm:$0xff] %vm26, %v4071
  %4136 = vst.msk [vmem:[%s200 + $0x219] sm:$0xff] %vm26, %v4072
  %4137 = vst.msk [vmem:[%s200 + $0x229] sm:$0xff] %vm26, %v4073
  %4138 = vst.msk [vmem:[%s200 + $0x231] sm:$0xff] %vm26, %v4074
  %4139 = vst.msk [vmem:[%s200 + $0x241] sm:$0xff] %vm26, %v4075
  %4140 = vst.msk [vmem:[%s200 + $0x249] sm:$0xff] %vm26, %v4076
  %4141 = vst.msk [vmem:[%s200 + $0x259] sm:$0xff] %vm26, %v4077
  %4142 = vst.msk [vmem:[%s200 + $0x261] sm:$0xff] %vm26, %v4078
  %4143 = vst.msk [vmem:[%s200 + $0x271] sm:$0xff] %vm26, %v4079
  %4144 = vst.msk [vmem:[%s200 + $0x279] sm:$0xff] %vm26, %v4080
  %4145 = vst.msk [vmem:[%s200 + $0x289] sm:$0xff] %vm26, %v4081
  %4146 = vst.msk [vmem:[%s200 + $0x291] sm:$0xff] %vm26, %v4082
  %4147 = vst.msk [vmem:[%s200 + $0x2a1] sm:$0xff] %vm26, %v4083
  %4148 = vst.msk [vmem:[%s200 + $0x2a9] sm:$0xff] %vm26, %v4084
  %4149 = vst.msk [vmem:[%s200 + $0x2b9] sm:$0xff] %vm26, %v4085
  %4150 = vst.msk [vmem:[%s200 + $0x2c1] sm:$0xff] %vm26, %v4086
  %4151 = vst.msk [vmem:[%s200 + $0x2d1] sm:$0xff] %vm26, %v4087
  %4152 = vst.msk [vmem:[%s200 + $0x2d9] sm:$0xff] %vm26, %v4088
  %4153 = vst.msk [vmem:[%s200 + $0x2e9] sm:$0xff] %vm26, %v4089
  %4154 = vst.msk [vmem:[%s200 + $0x2f1] sm:$0xff] %vm26, %v4090
  %4155 = vst.msk [vmem:[%s200 + $0x301] sm:$0xff] %vm26, %v4091
  %4156 = vst.msk [vmem:[%s200 + $0x309] sm:$0xff] %vm26, %v4092
  %4157 = vst.msk [vmem:[%s200 + $0x319] sm:$0xff] %vm26, %v4093
  %4158 = vst.msk [vmem:[%s200 + $0x321] sm:$0xff] %vm26, %v4094
  %v4159 = vld [vmem:[%s4] sm:$0xff]
  %v4160 = vld [vmem:[%s4 + $0x8] sm:$0xff]
  %v4161 = vld [vmem:[%s4 + $0x10] sm:$0xff]
  %v4162 = vld [vmem:[%s4 + $0x18] sm:$0xff]
  %v4163 = vld [vmem:[%s4 + $0x20] sm:$0xf]
  %v4164 = vld [vmem:[%s5] sm:$0x1]
  %v4165 = vld [vmem:[%s6] sm:$0x1]
  %v4166 = vld [vmem:[#allocation2] sm:$0xff]
  %v4167 = vld [vmem:[#allocation2 + $0x8] sm:$0xff]
  %v4168 = vld [vmem:[#allocation2 + $0x10] sm:$0x3]
  %v4169 = vld [vmem:[#allocation2 + $0x18] sm:$0xff]
  %v4170 = vld [vmem:[#allocation2 + $0x20] sm:$0xff]
  %v4171 = vld [vmem:[#allocation2 + $0x28] sm:$0x3]
  %v4172 = vld [vmem:[#allocation2 + $0x30] sm:$0xff]
  %v4173 = vld [vmem:[#allocation2 + $0x38] sm:$0xff]
  %v4174 = vld [vmem:[#allocation2 + $0x40] sm:$0x3]
  %v4175 = vld [vmem:[#allocation2 + $0x48] sm:$0xff]
  %v4176 = vld [vmem:[#allocation2 + $0x50] sm:$0xff]
  %v4177 = vld [vmem:[#allocation2 + $0x58] sm:$0x3]
  %v4178 = vld [vmem:[#allocation2 + $0x60] sm:$0xff]
  %v4179 = vld [vmem:[#allocation2 + $0x68] sm:$0xff]
  %v4180 = vld [vmem:[#allocation2 + $0x70] sm:$0x3]
  %v4181 = vld [vmem:[#allocation2 + $0x78] sm:$0xff]
  %v4182 = vld [vmem:[#allocation2 + $0x80] sm:$0xff]
  %v4183 = vld [vmem:[#allocation2 + $0x88] sm:$0x3]
  %v4184 = vld [vmem:[#allocation2 + $0x90] sm:$0xff]
  %v4185 = vld [vmem:[#allocation2 + $0x98] sm:$0xff]
  %v4186 = vld [vmem:[#allocation2 + $0xa0] sm:$0x3]
  %v4187 = vld [vmem:[#allocation2 + $0xa8] sm:$0xff]
  %v4188 = vld [vmem:[#allocation2 + $0xb0] sm:$0xff]
  %v4189 = vld [vmem:[#allocation2 + $0xb8] sm:$0x3]
  %v4190 = vld [vmem:[#allocation2 + $0xc0] sm:$0xff]
  %v4191 = vld [vmem:[#allocation2 + $0xc8] sm:$0xff]
  %v4192 = vld [vmem:[#allocation2 + $0xd0] sm:$0x3]
  %v4193 = vld [vmem:[#allocation2 + $0xd8] sm:$0xff]
  %v4194 = vld [vmem:[#allocation2 + $0xe0] sm:$0xff]
  %v4195 = vld [vmem:[#allocation2 + $0xe8] sm:$0x3]
  %v4196 = vld [vmem:[#allocation2 + $0xf0] sm:$0xff]
  %v4197 = vld [vmem:[#allocation2 + $0xf8] sm:$0xff]
  %v4198 = vld [vmem:[#allocation2 + $0x100] sm:$0x3]
  %v4199 = vld [vmem:[#allocation2 + $0x108] sm:$0xff]
  %v4200 = vld [vmem:[#allocation2 + $0x110] sm:$0xff]
  %v4201 = vld [vmem:[#allocation2 + $0x118] sm:$0x3]
  %v4202 = vld [vmem:[#allocation2 + $0x120] sm:$0xff]
  %v4203 = vld [vmem:[#allocation2 + $0x128] sm:$0xff]
  %v4204 = vld [vmem:[#allocation2 + $0x130] sm:$0x3]
  %v4205 = vld [vmem:[#allocation2 + $0x138] sm:$0xff]
  %v4206 = vld [vmem:[#allocation2 + $0x140] sm:$0xff]
  %v4207 = vld [vmem:[#allocation2 + $0x148] sm:$0x3]
  %v4208 = vld [vmem:[#allocation2 + $0x150] sm:$0xff]
  %v4209 = vld [vmem:[#allocation2 + $0x158] sm:$0xff]
  %v4210 = vld [vmem:[#allocation2 + $0x160] sm:$0x3]
  %v4211 = vld [vmem:[#allocation2 + $0x168] sm:$0xff]
  %v4212 = vld [vmem:[#allocation2 + $0x170] sm:$0xff]
  %v4213 = vld [vmem:[#allocation2 + $0x178] sm:$0x3]
  %v4214 = vld [vmem:[#allocation2 + $0x180] sm:$0xff]
  %v4215 = vld [vmem:[#allocation2 + $0x188] sm:$0xff]
  %v4216 = vld [vmem:[#allocation2 + $0x190] sm:$0x3]
  %v4217 = vld [vmem:[#allocation2 + $0x198] sm:$0xff]
  %v4218 = vld [vmem:[#allocation2 + $0x1a0] sm:$0xff]
  %v4219 = vld [vmem:[#allocation2 + $0x1a8] sm:$0x3]
  %v4220 = vld [vmem:[#allocation2 + $0x1b0] sm:$0xff]
  %v4221 = vld [vmem:[#allocation2 + $0x1b8] sm:$0xff]
  %v4222 = vld [vmem:[#allocation2 + $0x1c0] sm:$0x3]
  %v4223 = vld [vmem:[#allocation2 + $0x1c8] sm:$0xff]
  %v4224 = vld [vmem:[#allocation2 + $0x1d0] sm:$0xff]
  %v4225 = vld [vmem:[#allocation2 + $0x1d8] sm:$0x3]
  %v4226 = vld [vmem:[#allocation2 + $0x1e0] sm:$0xff]
  %v4227 = vld [vmem:[#allocation2 + $0x1e8] sm:$0xff]
  %v4228 = vld [vmem:[#allocation2 + $0x1f0] sm:$0x3]
  %v4229 = vld [vmem:[#allocation2 + $0x1f8] sm:$0xff]
  %v4230 = vld [vmem:[#allocation2 + $0x200] sm:$0xff]
  %v4231 = vld [vmem:[#allocation2 + $0x208] sm:$0x3]
  %v4232 = vld [vmem:[#allocation2 + $0x210] sm:$0xff]
  %v4233 = vld [vmem:[#allocation2 + $0x218] sm:$0xff]
  %v4234 = vld [vmem:[#allocation2 + $0x220] sm:$0x3]
  %v4235 = vld [vmem:[#allocation2 + $0x228] sm:$0xff]
  %v4236 = vld [vmem:[#allocation2 + $0x230] sm:$0xff]
  %v4237 = vld [vmem:[#allocation2 + $0x238] sm:$0x3]
  %v4238 = vld [vmem:[#allocation2 + $0x240] sm:$0xff]
  %v4239 = vld [vmem:[#allocation2 + $0x248] sm:$0xff]
  %v4240 = vld [vmem:[#allocation2 + $0x250] sm:$0x3]
  %v4241 = vld [vmem:[#allocation2 + $0x258] sm:$0xff]
  %v4242 = vld [vmem:[#allocation2 + $0x260] sm:$0xff]
  %v4243 = vld [vmem:[#allocation2 + $0x268] sm:$0x3]
  %v4244 = vld [vmem:[#allocation2 + $0x270] sm:$0xff]
  %v4245 = vld [vmem:[#allocation2 + $0x278] sm:$0xff]
  %v4246 = vld [vmem:[#allocation2 + $0x280] sm:$0x3]
  %v4247 = vld [vmem:[#allocation2 + $0x288] sm:$0xff]
  %v4248 = vld [vmem:[#allocation2 + $0x290] sm:$0xff]
  %v4249 = vld [vmem:[#allocation2 + $0x298] sm:$0x3]
  %v4250 = vld [vmem:[#allocation2 + $0x2a0] sm:$0xff]
  %v4251 = vld [vmem:[#allocation2 + $0x2a8] sm:$0xff]
  %v4252 = vld [vmem:[#allocation2 + $0x2b0] sm:$0x3]
  %v4253 = vld [vmem:[#allocation2 + $0x2b8] sm:$0xff]
  %v4254 = vld [vmem:[#allocation2 + $0x2c0] sm:$0xff]
  %v4255 = vld [vmem:[#allocation2 + $0x2c8] sm:$0x3]
  %v4256 = vld [vmem:[#allocation2 + $0x2d0] sm:$0xff]
  %v4257 = vld [vmem:[#allocation2 + $0x2d8] sm:$0xff]
  %v4258 = vld [vmem:[#allocation2 + $0x2e0] sm:$0x3]
  %v4259 = vld [vmem:[#allocation2 + $0x2e8] sm:$0xff]
  %v4260 = vld [vmem:[#allocation2 + $0x2f0] sm:$0xff]
  %v4261 = vld [vmem:[#allocation2 + $0x2f8] sm:$0x3]
  %v4262 = vld [vmem:[#allocation2 + $0x300] sm:$0xff]
  %v4263 = vld [vmem:[#allocation2 + $0x308] sm:$0xff]
  %v4264 = vld [vmem:[#allocation2 + $0x310] sm:$0x3]
  %v4265 = vld [vmem:[#allocation2 + $0x318] sm:$0xff]
  %v4266 = vld [vmem:[#allocation2 + $0x320] sm:$0xff]
  %v4267 = vld [vmem:[#allocation2 + $0x328] sm:$0x3]
  %v4268 = vld [vmem:[#allocation2 + $0x330] sm:$0xff]
  %v4269 = vld [vmem:[#allocation2 + $0x338] sm:$0xff]
  %v4270 = vld [vmem:[#allocation2 + $0x340] sm:$0x3]
  %v4271 = vld [vmem:[#allocation2 + $0x348] sm:$0xff]
  %v4272 = vld [vmem:[#allocation2 + $0x350] sm:$0xff]
  %v4273 = vld [vmem:[#allocation2 + $0x358] sm:$0x3]
  %v4370 = vrot.slane %v4166, 1
  %v4371 = vrot.slane %v4167, 1
  %v4372 = vsel %vm476, %v4370, %v4371
  %v4373 = vrot.slane %v4168, 1
  %v4374 = vsel %vm476, %v4371, %v4373
  %v4375 = vrot.slane %v4169, 1
  %v4376 = vrot.slane %v4170, 1
  %v4377 = vsel %vm476, %v4375, %v4376
  %v4378 = vrot.slane %v4171, 1
  %v4379 = vsel %vm476, %v4376, %v4378
  %v4380 = vrot.slane %v4172, 1
  %v4381 = vrot.slane %v4173, 1
  %v4382 = vsel %vm476, %v4380, %v4381
  %v4383 = vrot.slane %v4174, 1
  %v4384 = vsel %vm476, %v4381, %v4383
  %v4385 = vrot.slane %v4175, 1
  %v4386 = vrot.slane %v4176, 1
  %v4387 = vsel %vm476, %v4385, %v4386
  %v4388 = vrot.slane %v4177, 1
  %v4389 = vsel %vm476, %v4386, %v4388
  %v4390 = vrot.slane %v4178, 1
  %v4391 = vrot.slane %v4179, 1
  %v4392 = vsel %vm476, %v4390, %v4391
  %v4393 = vrot.slane %v4180, 1
  %v4394 = vsel %vm476, %v4391, %v4393
  %v4395 = vrot.slane %v4181, 1
  %v4396 = vrot.slane %v4182, 1
  %v4397 = vsel %vm476, %v4395, %v4396
  %v4398 = vrot.slane %v4183, 1
  %v4399 = vsel %vm476, %v4396, %v4398
  %v4400 = vrot.slane %v4184, 1
  %v4401 = vrot.slane %v4185, 1
  %v4402 = vsel %vm476, %v4400, %v4401
  %v4403 = vrot.slane %v4186, 1
  %v4404 = vsel %vm476, %v4401, %v4403
  %v4405 = vrot.slane %v4187, 1
  %v4406 = vrot.slane %v4188, 1
  %v4407 = vsel %vm476, %v4405, %v4406
  %v4408 = vrot.slane %v4189, 1
  %v4409 = vsel %vm476, %v4406, %v4408
  %v4410 = vrot.slane %v4190, 1
  %v4411 = vrot.slane %v4191, 1
  %v4412 = vsel %vm476, %v4410, %v4411
  %v4413 = vrot.slane %v4192, 1
  %v4414 = vsel %vm476, %v4411, %v4413
  %v4415 = vrot.slane %v4193, 1
  %v4416 = vrot.slane %v4194, 1
  %v4417 = vsel %vm476, %v4415, %v4416
  %v4418 = vrot.slane %v4195, 1
  %v4419 = vsel %vm476, %v4416, %v4418
  %v4420 = vrot.slane %v4196, 1
  %v4421 = vrot.slane %v4197, 1
  %v4422 = vsel %vm476, %v4420, %v4421
  %v4423 = vrot.slane %v4198, 1
  %v4424 = vsel %vm476, %v4421, %v4423
  %v4425 = vrot.slane %v4199, 1
  %v4426 = vrot.slane %v4200, 1
  %v4427 = vsel %vm476, %v4425, %v4426
  %v4428 = vrot.slane %v4201, 1
  %v4429 = vsel %vm476, %v4426, %v4428
  %v4430 = vrot.slane %v4202, 1
  %v4431 = vrot.slane %v4203, 1
  %v4432 = vsel %vm476, %v4430, %v4431
  %v4433 = vrot.slane %v4204, 1
  %v4434 = vsel %vm476, %v4431, %v4433
  %v4435 = vrot.slane %v4205, 1
  %v4436 = vrot.slane %v4206, 1
  %v4437 = vsel %vm476, %v4435, %v4436
  %v4438 = vrot.slane %v4207, 1
  %v4439 = vsel %vm476, %v4436, %v4438
  %v4440 = vrot.slane %v4208, 1
  %v4441 = vrot.slane %v4209, 1
  %v4442 = vsel %vm476, %v4440, %v4441
  %v4443 = vrot.slane %v4210, 1
  %v4444 = vsel %vm476, %v4441, %v4443
  %v4445 = vrot.slane %v4211, 1
  %v4446 = vrot.slane %v4212, 1
  %v4447 = vsel %vm476, %v4445, %v4446
  %v4448 = vrot.slane %v4213, 1
  %v4449 = vsel %vm476, %v4446, %v4448
  %v4450 = vrot.slane %v4220, 1
  %v4451 = vrot.slane %v4221, 1
  %v4452 = vsel %vm476, %v4450, %v4451
  %v4453 = vrot.slane %v4222, 1
  %v4454 = vsel %vm476, %v4451, %v4453
  %v4455 = vrot.slane %v4223, 1
  %v4456 = vrot.slane %v4224, 1
  %v4457 = vsel %vm476, %v4455, %v4456
  %v4458 = vrot.slane %v4225, 1
  %v4459 = vsel %vm476, %v4456, %v4458
  %v4460 = vrot.slane %v4226, 1
  %v4461 = vrot.slane %v4227, 1
  %v4462 = vsel %vm476, %v4460, %v4461
  %v4463 = vrot.slane %v4228, 1
  %v4464 = vsel %vm476, %v4461, %v4463
  %v4465 = vrot.slane %v4229, 1
  %v4466 = vrot.slane %v4230, 1
  %v4467 = vsel %vm476, %v4465, %v4466
  %v4468 = vrot.slane %v4231, 1
  %v4469 = vsel %vm476, %v4466, %v4468
  %v4470 = vrot.slane %v4232, 1
  %v4471 = vrot.slane %v4233, 1
  %v4472 = vsel %vm476, %v4470, %v4471
  %v4473 = vrot.slane %v4234, 1
  %v4474 = vsel %vm476, %v4471, %v4473
  %v4475 = vrot.slane %v4235, 1
  %v4476 = vrot.slane %v4236, 1
  %v4477 = vsel %vm476, %v4475, %v4476
  %v4478 = vrot.slane %v4237, 1
  %v4479 = vsel %vm476, %v4476, %v4478
  %v4480 = vrot.slane %v4238, 1
  %v4481 = vrot.slane %v4239, 1
  %v4482 = vsel %vm476, %v4480, %v4481
  %v4483 = vrot.slane %v4240, 1
  %v4484 = vsel %vm476, %v4481, %v4483
  %v4485 = vrot.slane %v4241, 1
  %v4486 = vrot.slane %v4242, 1
  %v4487 = vsel %vm476, %v4485, %v4486
  %v4488 = vrot.slane %v4243, 1
  %v4489 = vsel %vm476, %v4486, %v4488
  %v4490 = vrot.slane %v4244, 1
  %v4491 = vrot.slane %v4245, 1
  %v4492 = vsel %vm476, %v4490, %v4491
  %v4493 = vrot.slane %v4246, 1
  %v4494 = vsel %vm476, %v4491, %v4493
  %v4495 = vrot.slane %v4247, 1
  %v4496 = vrot.slane %v4248, 1
  %v4497 = vsel %vm476, %v4495, %v4496
  %v4498 = vrot.slane %v4249, 1
  %v4499 = vsel %vm476, %v4496, %v4498
  %v4500 = vrot.slane %v4250, 1
  %v4501 = vrot.slane %v4251, 1
  %v4502 = vsel %vm476, %v4500, %v4501
  %v4503 = vrot.slane %v4252, 1
  %v4504 = vsel %vm476, %v4501, %v4503
  %v4505 = vrot.slane %v4253, 1
  %v4506 = vrot.slane %v4254, 1
  %v4507 = vsel %vm476, %v4505, %v4506
  %v4508 = vrot.slane %v4255, 1
  %v4509 = vsel %vm476, %v4506, %v4508
  %v4510 = vrot.slane %v4256, 1
  %v4511 = vrot.slane %v4257, 1
  %v4512 = vsel %vm476, %v4510, %v4511
  %v4513 = vrot.slane %v4258, 1
  %v4514 = vsel %vm476, %v4511, %v4513
  %v4515 = vrot.slane %v4259, 1
  %v4516 = vrot.slane %v4260, 1
  %v4517 = vsel %vm476, %v4515, %v4516
  %v4518 = vrot.slane %v4261, 1
  %v4519 = vsel %vm476, %v4516, %v4518
  %v4520 = vrot.slane %v4262, 1
  %v4521 = vrot.slane %v4263, 1
  %v4522 = vsel %vm476, %v4520, %v4521
  %v4523 = vrot.slane %v4264, 1
  %v4524 = vsel %vm476, %v4521, %v4523
  %v4525 = vrot.slane %v4265, 1
  %v4526 = vrot.slane %v4266, 1
  %v4527 = vsel %vm476, %v4525, %v4526
  %v4528 = vrot.slane %v4267, 1
  %v4529 = vsel %vm476, %v4526, %v4528
  %v4530 = vrot.slane %v4166, 2
  %v4531 = vrot.slane %v4167, 2
  %v4532 = vsel %vm637, %v4530, %v4531
  %v4533 = vrot.slane %v4168, 2
  %v4534 = vsel %vm637, %v4531, %v4533
  %v4535 = vrot.slane %v4169, 2
  %v4536 = vrot.slane %v4170, 2
  %v4537 = vsel %vm637, %v4535, %v4536
  %v4538 = vrot.slane %v4171, 2
  %v4539 = vsel %vm637, %v4536, %v4538
  %v4540 = vrot.slane %v4172, 2
  %v4541 = vrot.slane %v4173, 2
  %v4542 = vsel %vm637, %v4540, %v4541
  %v4543 = vrot.slane %v4174, 2
  %v4544 = vsel %vm637, %v4541, %v4543
  %v4545 = vrot.slane %v4175, 2
  %v4546 = vrot.slane %v4176, 2
  %v4547 = vsel %vm637, %v4545, %v4546
  %v4548 = vrot.slane %v4177, 2
  %v4549 = vsel %vm637, %v4546, %v4548
  %v4550 = vrot.slane %v4178, 2
  %v4551 = vrot.slane %v4179, 2
  %v4552 = vsel %vm637, %v4550, %v4551
  %v4553 = vrot.slane %v4180, 2
  %v4554 = vsel %vm637, %v4551, %v4553
  %v4555 = vrot.slane %v4181, 2
  %v4556 = vrot.slane %v4182, 2
  %v4557 = vsel %vm637, %v4555, %v4556
  %v4558 = vrot.slane %v4183, 2
  %v4559 = vsel %vm637, %v4556, %v4558
  %v4560 = vrot.slane %v4184, 2
  %v4561 = vrot.slane %v4185, 2
  %v4562 = vsel %vm637, %v4560, %v4561
  %v4563 = vrot.slane %v4186, 2
  %v4564 = vsel %vm637, %v4561, %v4563
  %v4565 = vrot.slane %v4187, 2
  %v4566 = vrot.slane %v4188, 2
  %v4567 = vsel %vm637, %v4565, %v4566
  %v4568 = vrot.slane %v4189, 2
  %v4569 = vsel %vm637, %v4566, %v4568
  %v4570 = vrot.slane %v4190, 2
  %v4571 = vrot.slane %v4191, 2
  %v4572 = vsel %vm637, %v4570, %v4571
  %v4573 = vrot.slane %v4192, 2
  %v4574 = vsel %vm637, %v4571, %v4573
  %v4575 = vrot.slane %v4193, 2
  %v4576 = vrot.slane %v4194, 2
  %v4577 = vsel %vm637, %v4575, %v4576
  %v4578 = vrot.slane %v4195, 2
  %v4579 = vsel %vm637, %v4576, %v4578
  %v4580 = vrot.slane %v4196, 2
  %v4581 = vrot.slane %v4197, 2
  %v4582 = vsel %vm637, %v4580, %v4581
  %v4583 = vrot.slane %v4198, 2
  %v4584 = vsel %vm637, %v4581, %v4583
  %v4585 = vrot.slane %v4199, 2
  %v4586 = vrot.slane %v4200, 2
  %v4587 = vsel %vm637, %v4585, %v4586
  %v4588 = vrot.slane %v4201, 2
  %v4589 = vsel %vm637, %v4586, %v4588
  %v4590 = vrot.slane %v4202, 2
  %v4591 = vrot.slane %v4203, 2
  %v4592 = vsel %vm637, %v4590, %v4591
  %v4593 = vrot.slane %v4204, 2
  %v4594 = vsel %vm637, %v4591, %v4593
  %v4595 = vrot.slane %v4205, 2
  %v4596 = vrot.slane %v4206, 2
  %v4597 = vsel %vm637, %v4595, %v4596
  %v4598 = vrot.slane %v4207, 2
  %v4599 = vsel %vm637, %v4596, %v4598
  %v4600 = vrot.slane %v4208, 2
  %v4601 = vrot.slane %v4209, 2
  %v4602 = vsel %vm637, %v4600, %v4601
  %v4603 = vrot.slane %v4210, 2
  %v4604 = vsel %vm637, %v4601, %v4603
  %v4605 = vrot.slane %v4211, 2
  %v4606 = vrot.slane %v4212, 2
  %v4607 = vsel %vm637, %v4605, %v4606
  %v4608 = vrot.slane %v4213, 2
  %v4609 = vsel %vm637, %v4606, %v4608
  %v4610 = vrot.slane %v4220, 2
  %v4611 = vrot.slane %v4221, 2
  %v4612 = vsel %vm637, %v4610, %v4611
  %v4613 = vrot.slane %v4222, 2
  %v4614 = vsel %vm637, %v4611, %v4613
  %v4615 = vrot.slane %v4223, 2
  %v4616 = vrot.slane %v4224, 2
  %v4617 = vsel %vm637, %v4615, %v4616
  %v4618 = vrot.slane %v4225, 2
  %v4619 = vsel %vm637, %v4616, %v4618
  %v4620 = vrot.slane %v4226, 2
  %v4621 = vrot.slane %v4227, 2
  %v4622 = vsel %vm637, %v4620, %v4621
  %v4623 = vrot.slane %v4228, 2
  %v4624 = vsel %vm637, %v4621, %v4623
  %v4625 = vrot.slane %v4229, 2
  %v4626 = vrot.slane %v4230, 2
  %v4627 = vsel %vm637, %v4625, %v4626
  %v4628 = vrot.slane %v4231, 2
  %v4629 = vsel %vm637, %v4626, %v4628
  %v4630 = vrot.slane %v4232, 2
  %v4631 = vrot.slane %v4233, 2
  %v4632 = vsel %vm637, %v4630, %v4631
  %v4633 = vrot.slane %v4234, 2
  %v4634 = vsel %vm637, %v4631, %v4633
  %v4635 = vrot.slane %v4235, 2
  %v4636 = vrot.slane %v4236, 2
  %v4637 = vsel %vm637, %v4635, %v4636
  %v4638 = vrot.slane %v4237, 2
  %v4639 = vsel %vm637, %v4636, %v4638
  %v4640 = vrot.slane %v4238, 2
  %v4641 = vrot.slane %v4239, 2
  %v4642 = vsel %vm637, %v4640, %v4641
  %v4643 = vrot.slane %v4240, 2
  %v4644 = vsel %vm637, %v4641, %v4643
  %v4645 = vrot.slane %v4241, 2
  %v4646 = vrot.slane %v4242, 2
  %v4647 = vsel %vm637, %v4645, %v4646
  %v4648 = vrot.slane %v4243, 2
  %v4649 = vsel %vm637, %v4646, %v4648
  %v4650 = vrot.slane %v4244, 2
  %v4651 = vrot.slane %v4245, 2
  %v4652 = vsel %vm637, %v4650, %v4651
  %v4653 = vrot.slane %v4246, 2
  %v4654 = vsel %vm637, %v4651, %v4653
  %v4655 = vrot.slane %v4247, 2
  %v4656 = vrot.slane %v4248, 2
  %v4657 = vsel %vm637, %v4655, %v4656
  %v4658 = vrot.slane %v4249, 2
  %v4659 = vsel %vm637, %v4656, %v4658
  %v4660 = vrot.slane %v4250, 2
  %v4661 = vrot.slane %v4251, 2
  %v4662 = vsel %vm637, %v4660, %v4661
  %v4663 = vrot.slane %v4252, 2
  %v4664 = vsel %vm637, %v4661, %v4663
  %v4665 = vrot.slane %v4253, 2
  %v4666 = vrot.slane %v4254, 2
  %v4667 = vsel %vm637, %v4665, %v4666
  %v4668 = vrot.slane %v4255, 2
  %v4669 = vsel %vm637, %v4666, %v4668
  %v4670 = vrot.slane %v4256, 2
  %v4671 = vrot.slane %v4257, 2
  %v4672 = vsel %vm637, %v4670, %v4671
  %v4673 = vrot.slane %v4258, 2
  %v4674 = vsel %vm637, %v4671, %v4673
  %v4675 = vrot.slane %v4259, 2
  %v4676 = vrot.slane %v4260, 2
  %v4677 = vsel %vm637, %v4675, %v4676
  %v4678 = vrot.slane %v4261, 2
  %v4679 = vsel %vm637, %v4676, %v4678
  %v4680 = vrot.slane %v4262, 2
  %v4681 = vrot.slane %v4263, 2
  %v4682 = vsel %vm637, %v4680, %v4681
  %v4683 = vrot.slane %v4264, 2
  %v4684 = vsel %vm637, %v4681, %v4683
  %v4685 = vrot.slane %v4265, 2
  %v4686 = vrot.slane %v4266, 2
  %v4687 = vsel %vm637, %v4685, %v4686
  %v4688 = vrot.slane %v4267, 2
  %v4689 = vsel %vm637, %v4686, %v4688
  %v4696 = vrot.slane %v4214, 1
  %v4697 = vrot.slane %v4215, 1
  %v4698 = vsel %vm476, %v4696, %v4697
  %v4699 = vrot.slane %v4216, 1
  %v4700 = vsel %vm476, %v4697, %v4699
  %v4701 = vrot.slane %v4268, 1
  %v4702 = vrot.slane %v4269, 1
  %v4703 = vsel %vm476, %v4701, %v4702
  %v4704 = vrot.slane %v4270, 1
  %v4705 = vsel %vm476, %v4702, %v4704
  %v4706 = vrot.slane %v4214, 2
  %v4707 = vrot.slane %v4215, 2
  %v4708 = vsel %vm637, %v4706, %v4707
  %v4709 = vrot.slane %v4216, 2
  %v4710 = vsel %vm637, %v4707, %v4709
  %v4711 = vrot.slane %v4268, 2
  %v4712 = vrot.slane %v4269, 2
  %v4713 = vsel %vm637, %v4711, %v4712
  %v4714 = vrot.slane %v4270, 2
  %v4715 = vsel %vm637, %v4712, %v4714
  %v4722 = vrot.slane %v4217, 1
  %v4723 = vrot.slane %v4218, 1
  %v4724 = vsel %vm476, %v4722, %v4723
  %v4725 = vrot.slane %v4219, 1
  %v4726 = vsel %vm476, %v4723, %v4725
  %v4727 = vrot.slane %v4271, 1
  %v4728 = vrot.slane %v4272, 1
  %v4729 = vsel %vm476, %v4727, %v4728
  %v4730 = vrot.slane %v4273, 1
  %v4731 = vsel %vm476, %v4728, %v4730
  %v4732 = vrot.slane %v4217, 2
  %v4733 = vrot.slane %v4218, 2
  %v4734 = vsel %vm637, %v4732, %v4733
  %v4735 = vrot.slane %v4219, 2
  %v4736 = vsel %vm637, %v4733, %v4735
  %v4737 = vrot.slane %v4271, 2
  %v4738 = vrot.slane %v4272, 2
  %v4739 = vsel %vm637, %v4737, %v4738
  %v4740 = vrot.slane %v4273, 2
  %v4741 = vsel %vm637, %v4738, %v4740
  %4742 = vrot.lane.b32.xlu0 %v4372, 4
  %v4743 = vpop.permute.xlu0 %4742
  %4744 = vrot.lane.b32.xlu0 %v4374, 4
  %v4745 = vpop.permute.xlu0 %4744
  %4746 = vrot.lane.b32.xlu0 %v4377, 4
  %v4747 = vpop.permute.xlu0 %4746
  %4748 = vrot.lane.b32.xlu0 %v4379, 4
  %v4749 = vpop.permute.xlu0 %4748
  %4750 = vrot.lane.b32.xlu0 %v4382, 4
  %v4751 = vpop.permute.xlu0 %4750
  %4752 = vrot.lane.b32.xlu0 %v4384, 4
  %v4753 = vpop.permute.xlu0 %4752
  %4754 = vrot.lane.b32.xlu0 %v4387, 4
  %v4755 = vpop.permute.xlu0 %4754
  %4756 = vrot.lane.b32.xlu0 %v4389, 4
  %v4757 = vpop.permute.xlu0 %4756
  %4758 = vrot.lane.b32.xlu0 %v4392, 4
  %v4759 = vpop.permute.xlu0 %4758
  %4760 = vrot.lane.b32.xlu0 %v4394, 4
  %v4761 = vpop.permute.xlu0 %4760
  %4762 = vrot.lane.b32.xlu0 %v4397, 4
  %v4763 = vpop.permute.xlu0 %4762
  %4764 = vrot.lane.b32.xlu0 %v4399, 4
  %v4765 = vpop.permute.xlu0 %4764
  %4766 = vrot.lane.b32.xlu0 %v4402, 4
  %v4767 = vpop.permute.xlu0 %4766
  %4768 = vrot.lane.b32.xlu0 %v4404, 4
  %v4769 = vpop.permute.xlu0 %4768
  %4770 = vrot.lane.b32.xlu0 %v4407, 4
  %v4771 = vpop.permute.xlu0 %4770
  %4772 = vrot.lane.b32.xlu0 %v4409, 4
  %v4773 = vpop.permute.xlu0 %4772
  %4774 = vrot.lane.b32.xlu0 %v4412, 4
  %v4775 = vpop.permute.xlu0 %4774
  %4776 = vrot.lane.b32.xlu0 %v4414, 4
  %v4777 = vpop.permute.xlu0 %4776
  %4778 = vrot.lane.b32.xlu0 %v4417, 4
  %v4779 = vpop.permute.xlu0 %4778
  %4780 = vrot.lane.b32.xlu0 %v4419, 4
  %v4781 = vpop.permute.xlu0 %4780
  %4782 = vrot.lane.b32.xlu0 %v4422, 4
  %v4783 = vpop.permute.xlu0 %4782
  %4784 = vrot.lane.b32.xlu0 %v4424, 4
  %v4785 = vpop.permute.xlu0 %4784
  %4786 = vrot.lane.b32.xlu0 %v4427, 4
  %v4787 = vpop.permute.xlu0 %4786
  %4788 = vrot.lane.b32.xlu0 %v4429, 4
  %v4789 = vpop.permute.xlu0 %4788
  %4790 = vrot.lane.b32.xlu0 %v4432, 4
  %v4791 = vpop.permute.xlu0 %4790
  %4792 = vrot.lane.b32.xlu0 %v4434, 4
  %v4793 = vpop.permute.xlu0 %4792
  %4794 = vrot.lane.b32.xlu0 %v4437, 4
  %v4795 = vpop.permute.xlu0 %4794
  %4796 = vrot.lane.b32.xlu0 %v4439, 4
  %v4797 = vpop.permute.xlu0 %4796
  %4798 = vrot.lane.b32.xlu0 %v4442, 4
  %v4799 = vpop.permute.xlu0 %4798
  %4800 = vrot.lane.b32.xlu0 %v4444, 4
  %v4801 = vpop.permute.xlu0 %4800
  %4802 = vrot.lane.b32.xlu0 %v4447, 4
  %v4803 = vpop.permute.xlu0 %4802
  %4804 = vrot.lane.b32.xlu0 %v4449, 4
  %v4805 = vpop.permute.xlu0 %4804
  %4806 = vrot.lane.b32.xlu0 %v4452, 4
  %v4807 = vpop.permute.xlu0 %4806
  %4808 = vrot.lane.b32.xlu0 %v4454, 4
  %v4809 = vpop.permute.xlu0 %4808
  %4810 = vrot.lane.b32.xlu0 %v4457, 4
  %v4811 = vpop.permute.xlu0 %4810
  %4812 = vrot.lane.b32.xlu0 %v4459, 4
  %v4813 = vpop.permute.xlu0 %4812
  %4814 = vrot.lane.b32.xlu0 %v4462, 4
  %v4815 = vpop.permute.xlu0 %4814
  %4816 = vrot.lane.b32.xlu0 %v4464, 4
  %v4817 = vpop.permute.xlu0 %4816
  %4818 = vrot.lane.b32.xlu0 %v4467, 4
  %v4819 = vpop.permute.xlu0 %4818
  %4820 = vrot.lane.b32.xlu0 %v4469, 4
  %v4821 = vpop.permute.xlu0 %4820
  %4822 = vrot.lane.b32.xlu0 %v4472, 4
  %v4823 = vpop.permute.xlu0 %4822
  %4824 = vrot.lane.b32.xlu0 %v4474, 4
  %v4825 = vpop.permute.xlu0 %4824
  %4826 = vrot.lane.b32.xlu0 %v4477, 4
  %v4827 = vpop.permute.xlu0 %4826
  %4828 = vrot.lane.b32.xlu0 %v4479, 4
  %v4829 = vpop.permute.xlu0 %4828
  %4830 = vrot.lane.b32.xlu0 %v4482, 4
  %v4831 = vpop.permute.xlu0 %4830
  %4832 = vrot.lane.b32.xlu0 %v4484, 4
  %v4833 = vpop.permute.xlu0 %4832
  %4834 = vrot.lane.b32.xlu0 %v4487, 4
  %v4835 = vpop.permute.xlu0 %4834
  %4836 = vrot.lane.b32.xlu0 %v4489, 4
  %v4837 = vpop.permute.xlu0 %4836
  %4838 = vrot.lane.b32.xlu0 %v4492, 4
  %v4839 = vpop.permute.xlu0 %4838
  %4840 = vrot.lane.b32.xlu0 %v4494, 4
  %v4841 = vpop.permute.xlu0 %4840
  %4842 = vrot.lane.b32.xlu0 %v4497, 4
  %v4843 = vpop.permute.xlu0 %4842
  %4844 = vrot.lane.b32.xlu0 %v4499, 4
  %v4845 = vpop.permute.xlu0 %4844
  %4846 = vrot.lane.b32.xlu0 %v4502, 4
  %v4847 = vpop.permute.xlu0 %4846
  %4848 = vrot.lane.b32.xlu0 %v4504, 4
  %v4849 = vpop.permute.xlu0 %4848
  %4850 = vrot.lane.b32.xlu0 %v4507, 4
  %v4851 = vpop.permute.xlu0 %4850
  %4852 = vrot.lane.b32.xlu0 %v4509, 4
  %v4853 = vpop.permute.xlu0 %4852
  %4854 = vrot.lane.b32.xlu0 %v4512, 4
  %v4855 = vpop.permute.xlu0 %4854
  %4856 = vrot.lane.b32.xlu0 %v4514, 4
  %v4857 = vpop.permute.xlu0 %4856
  %4858 = vrot.lane.b32.xlu0 %v4517, 4
  %v4859 = vpop.permute.xlu0 %4858
  %4860 = vrot.lane.b32.xlu0 %v4519, 4
  %v4861 = vpop.permute.xlu0 %4860
  %4862 = vrot.lane.b32.xlu0 %v4522, 4
  %v4863 = vpop.permute.xlu0 %4862
  %4864 = vrot.lane.b32.xlu0 %v4524, 4
  %v4865 = vpop.permute.xlu0 %4864
  %4866 = vrot.lane.b32.xlu0 %v4527, 4
  %v4867 = vpop.permute.xlu0 %4866
  %4868 = vrot.lane.b32.xlu0 %v4529, 4
  %v4869 = vpop.permute.xlu0 %4868
  %4934 = vrot.lane.b32.xlu0 %v4532, 8
  %v4935 = vpop.permute.xlu0 %4934
  %4936 = vrot.lane.b32.xlu0 %v4534, 8
  %v4937 = vpop.permute.xlu0 %4936
  %4938 = vrot.lane.b32.xlu0 %v4537, 8
  %v4939 = vpop.permute.xlu0 %4938
  %4940 = vrot.lane.b32.xlu0 %v4539, 8
  %v4941 = vpop.permute.xlu0 %4940
  %4942 = vrot.lane.b32.xlu0 %v4542, 8
  %v4943 = vpop.permute.xlu0 %4942
  %4944 = vrot.lane.b32.xlu0 %v4544, 8
  %v4945 = vpop.permute.xlu0 %4944
  %4946 = vrot.lane.b32.xlu0 %v4547, 8
  %v4947 = vpop.permute.xlu0 %4946
  %4948 = vrot.lane.b32.xlu0 %v4549, 8
  %v4949 = vpop.permute.xlu0 %4948
  %4950 = vrot.lane.b32.xlu0 %v4552, 8
  %v4951 = vpop.permute.xlu0 %4950
  %4952 = vrot.lane.b32.xlu0 %v4554, 8
  %v4953 = vpop.permute.xlu0 %4952
  %4954 = vrot.lane.b32.xlu0 %v4557, 8
  %v4955 = vpop.permute.xlu0 %4954
  %4956 = vrot.lane.b32.xlu0 %v4559, 8
  %v4957 = vpop.permute.xlu0 %4956
  %4958 = vrot.lane.b32.xlu0 %v4562, 8
  %v4959 = vpop.permute.xlu0 %4958
  %4960 = vrot.lane.b32.xlu0 %v4564, 8
  %v4961 = vpop.permute.xlu0 %4960
  %4962 = vrot.lane.b32.xlu0 %v4567, 8
  %v4963 = vpop.permute.xlu0 %4962
  %4964 = vrot.lane.b32.xlu0 %v4569, 8
  %v4965 = vpop.permute.xlu0 %4964
  %4966 = vrot.lane.b32.xlu0 %v4572, 8
  %v4967 = vpop.permute.xlu0 %4966
  %4968 = vrot.lane.b32.xlu0 %v4574, 8
  %v4969 = vpop.permute.xlu0 %4968
  %4970 = vrot.lane.b32.xlu0 %v4577, 8
  %v4971 = vpop.permute.xlu0 %4970
  %4972 = vrot.lane.b32.xlu0 %v4579, 8
  %v4973 = vpop.permute.xlu0 %4972
  %4974 = vrot.lane.b32.xlu0 %v4582, 8
  %v4975 = vpop.permute.xlu0 %4974
  %4976 = vrot.lane.b32.xlu0 %v4584, 8
  %v4977 = vpop.permute.xlu0 %4976
  %4978 = vrot.lane.b32.xlu0 %v4587, 8
  %v4979 = vpop.permute.xlu0 %4978
  %4980 = vrot.lane.b32.xlu0 %v4589, 8
  %v4981 = vpop.permute.xlu0 %4980
  %4982 = vrot.lane.b32.xlu0 %v4592, 8
  %v4983 = vpop.permute.xlu0 %4982
  %4984 = vrot.lane.b32.xlu0 %v4594, 8
  %v4985 = vpop.permute.xlu0 %4984
  %4986 = vrot.lane.b32.xlu0 %v4597, 8
  %v4987 = vpop.permute.xlu0 %4986
  %4988 = vrot.lane.b32.xlu0 %v4599, 8
  %v4989 = vpop.permute.xlu0 %4988
  %4990 = vrot.lane.b32.xlu0 %v4602, 8
  %v4991 = vpop.permute.xlu0 %4990
  %4992 = vrot.lane.b32.xlu0 %v4604, 8
  %v4993 = vpop.permute.xlu0 %4992
  %4994 = vrot.lane.b32.xlu0 %v4607, 8
  %v4995 = vpop.permute.xlu0 %4994
  %4996 = vrot.lane.b32.xlu0 %v4609, 8
  %v4997 = vpop.permute.xlu0 %4996
  %4998 = vrot.lane.b32.xlu0 %v4612, 8
  %v4999 = vpop.permute.xlu0 %4998
  %5000 = vrot.lane.b32.xlu0 %v4614, 8
  %v5001 = vpop.permute.xlu0 %5000
  %5002 = vrot.lane.b32.xlu0 %v4617, 8
  %v5003 = vpop.permute.xlu0 %5002
  %5004 = vrot.lane.b32.xlu0 %v4619, 8
  %v5005 = vpop.permute.xlu0 %5004
  %5006 = vrot.lane.b32.xlu0 %v4622, 8
  %v5007 = vpop.permute.xlu0 %5006
  %5008 = vrot.lane.b32.xlu0 %v4624, 8
  %v5009 = vpop.permute.xlu0 %5008
  %5010 = vrot.lane.b32.xlu0 %v4627, 8
  %v5011 = vpop.permute.xlu0 %5010
  %5012 = vrot.lane.b32.xlu0 %v4629, 8
  %v5013 = vpop.permute.xlu0 %5012
  %5014 = vrot.lane.b32.xlu0 %v4632, 8
  %v5015 = vpop.permute.xlu0 %5014
  %5016 = vrot.lane.b32.xlu0 %v4634, 8
  %v5017 = vpop.permute.xlu0 %5016
  %5018 = vrot.lane.b32.xlu0 %v4637, 8
  %v5019 = vpop.permute.xlu0 %5018
  %5020 = vrot.lane.b32.xlu0 %v4639, 8
  %v5021 = vpop.permute.xlu0 %5020
  %5022 = vrot.lane.b32.xlu0 %v4642, 8
  %v5023 = vpop.permute.xlu0 %5022
  %5024 = vrot.lane.b32.xlu0 %v4644, 8
  %v5025 = vpop.permute.xlu0 %5024
  %5026 = vrot.lane.b32.xlu0 %v4647, 8
  %v5027 = vpop.permute.xlu0 %5026
  %5028 = vrot.lane.b32.xlu0 %v4649, 8
  %v5029 = vpop.permute.xlu0 %5028
  %5030 = vrot.lane.b32.xlu0 %v4652, 8
  %v5031 = vpop.permute.xlu0 %5030
  %5032 = vrot.lane.b32.xlu0 %v4654, 8
  %v5033 = vpop.permute.xlu0 %5032
  %5034 = vrot.lane.b32.xlu0 %v4657, 8
  %v5035 = vpop.permute.xlu0 %5034
  %5036 = vrot.lane.b32.xlu0 %v4659, 8
  %v5037 = vpop.permute.xlu0 %5036
  %5038 = vrot.lane.b32.xlu0 %v4662, 8
  %v5039 = vpop.permute.xlu0 %5038
  %5040 = vrot.lane.b32.xlu0 %v4664, 8
  %v5041 = vpop.permute.xlu0 %5040
  %5042 = vrot.lane.b32.xlu0 %v4667, 8
  %v5043 = vpop.permute.xlu0 %5042
  %5044 = vrot.lane.b32.xlu0 %v4669, 8
  %v5045 = vpop.permute.xlu0 %5044
  %5046 = vrot.lane.b32.xlu0 %v4672, 8
  %v5047 = vpop.permute.xlu0 %5046
  %5048 = vrot.lane.b32.xlu0 %v4674, 8
  %v5049 = vpop.permute.xlu0 %5048
  %5050 = vrot.lane.b32.xlu0 %v4677, 8
  %v5051 = vpop.permute.xlu0 %5050
  %5052 = vrot.lane.b32.xlu0 %v4679, 8
  %v5053 = vpop.permute.xlu0 %5052
  %5054 = vrot.lane.b32.xlu0 %v4682, 8
  %v5055 = vpop.permute.xlu0 %5054
  %5056 = vrot.lane.b32.xlu0 %v4684, 8
  %v5057 = vpop.permute.xlu0 %5056
  %5058 = vrot.lane.b32.xlu0 %v4687, 8
  %v5059 = vpop.permute.xlu0 %5058
  %5060 = vrot.lane.b32.xlu0 %v4689, 8
  %v5061 = vpop.permute.xlu0 %5060
  %5126 = vrot.lane.b32.xlu0 %v4169, 12
  %v5127 = vpop.permute.xlu0 %5126
  %5128 = vrot.lane.b32.xlu0 %v4170, 12
  %v5129 = vpop.permute.xlu0 %5128
  %5130 = vrot.lane.b32.xlu0 %v4172, 12
  %v5131 = vpop.permute.xlu0 %5130
  %5132 = vrot.lane.b32.xlu0 %v4173, 12
  %v5133 = vpop.permute.xlu0 %5132
  %5134 = vrot.lane.b32.xlu0 %v4175, 12
  %v5135 = vpop.permute.xlu0 %5134
  %5136 = vrot.lane.b32.xlu0 %v4176, 12
  %v5137 = vpop.permute.xlu0 %5136
  %5138 = vrot.lane.b32.xlu0 %v4178, 12
  %v5139 = vpop.permute.xlu0 %5138
  %5140 = vrot.lane.b32.xlu0 %v4179, 12
  %v5141 = vpop.permute.xlu0 %5140
  %5142 = vrot.lane.b32.xlu0 %v4181, 12
  %v5143 = vpop.permute.xlu0 %5142
  %5144 = vrot.lane.b32.xlu0 %v4182, 12
  %v5145 = vpop.permute.xlu0 %5144
  %5146 = vrot.lane.b32.xlu0 %v4184, 12
  %v5147 = vpop.permute.xlu0 %5146
  %5148 = vrot.lane.b32.xlu0 %v4185, 12
  %v5149 = vpop.permute.xlu0 %5148
  %5150 = vrot.lane.b32.xlu0 %v4187, 12
  %v5151 = vpop.permute.xlu0 %5150
  %5152 = vrot.lane.b32.xlu0 %v4188, 12
  %v5153 = vpop.permute.xlu0 %5152
  %5154 = vrot.lane.b32.xlu0 %v4190, 12
  %v5155 = vpop.permute.xlu0 %5154
  %5156 = vrot.lane.b32.xlu0 %v4191, 12
  %v5157 = vpop.permute.xlu0 %5156
  %5158 = vrot.lane.b32.xlu0 %v4193, 12
  %v5159 = vpop.permute.xlu0 %5158
  %5160 = vrot.lane.b32.xlu0 %v4194, 12
  %v5161 = vpop.permute.xlu0 %5160
  %5162 = vrot.lane.b32.xlu0 %v4196, 12
  %v5163 = vpop.permute.xlu0 %5162
  %5164 = vrot.lane.b32.xlu0 %v4197, 12
  %v5165 = vpop.permute.xlu0 %5164
  %5166 = vrot.lane.b32.xlu0 %v4199, 12
  %v5167 = vpop.permute.xlu0 %5166
  %5168 = vrot.lane.b32.xlu0 %v4200, 12
  %v5169 = vpop.permute.xlu0 %5168
  %5170 = vrot.lane.b32.xlu0 %v4202, 12
  %v5171 = vpop.permute.xlu0 %5170
  %5172 = vrot.lane.b32.xlu0 %v4203, 12
  %v5173 = vpop.permute.xlu0 %5172
  %5174 = vrot.lane.b32.xlu0 %v4205, 12
  %v5175 = vpop.permute.xlu0 %5174
  %5176 = vrot.lane.b32.xlu0 %v4206, 12
  %v5177 = vpop.permute.xlu0 %5176
  %5178 = vrot.lane.b32.xlu0 %v4208, 12
  %v5179 = vpop.permute.xlu0 %5178
  %5180 = vrot.lane.b32.xlu0 %v4209, 12
  %v5181 = vpop.permute.xlu0 %5180
  %5182 = vrot.lane.b32.xlu0 %v4211, 12
  %v5183 = vpop.permute.xlu0 %5182
  %5184 = vrot.lane.b32.xlu0 %v4212, 12
  %v5185 = vpop.permute.xlu0 %5184
  %5186 = vrot.lane.b32.xlu0 %v4214, 12
  %v5187 = vpop.permute.xlu0 %5186
  %5188 = vrot.lane.b32.xlu0 %v4215, 12
  %v5189 = vpop.permute.xlu0 %5188
  %5190 = vrot.lane.b32.xlu0 %v4223, 12
  %v5191 = vpop.permute.xlu0 %5190
  %5192 = vrot.lane.b32.xlu0 %v4224, 12
  %v5193 = vpop.permute.xlu0 %5192
  %5194 = vrot.lane.b32.xlu0 %v4226, 12
  %v5195 = vpop.permute.xlu0 %5194
  %5196 = vrot.lane.b32.xlu0 %v4227, 12
  %v5197 = vpop.permute.xlu0 %5196
  %5198 = vrot.lane.b32.xlu0 %v4229, 12
  %v5199 = vpop.permute.xlu0 %5198
  %5200 = vrot.lane.b32.xlu0 %v4230, 12
  %v5201 = vpop.permute.xlu0 %5200
  %5202 = vrot.lane.b32.xlu0 %v4232, 12
  %v5203 = vpop.permute.xlu0 %5202
  %5204 = vrot.lane.b32.xlu0 %v4233, 12
  %v5205 = vpop.permute.xlu0 %5204
  %5206 = vrot.lane.b32.xlu0 %v4235, 12
  %v5207 = vpop.permute.xlu0 %5206
  %5208 = vrot.lane.b32.xlu0 %v4236, 12
  %v5209 = vpop.permute.xlu0 %5208
  %5210 = vrot.lane.b32.xlu0 %v4238, 12
  %v5211 = vpop.permute.xlu0 %5210
  %5212 = vrot.lane.b32.xlu0 %v4239, 12
  %v5213 = vpop.permute.xlu0 %5212
  %5214 = vrot.lane.b32.xlu0 %v4241, 12
  %v5215 = vpop.permute.xlu0 %5214
  %5216 = vrot.lane.b32.xlu0 %v4242, 12
  %v5217 = vpop.permute.xlu0 %5216
  %5218 = vrot.lane.b32.xlu0 %v4244, 12
  %v5219 = vpop.permute.xlu0 %5218
  %5220 = vrot.lane.b32.xlu0 %v4245, 12
  %v5221 = vpop.permute.xlu0 %5220
  %5222 = vrot.lane.b32.xlu0 %v4247, 12
  %v5223 = vpop.permute.xlu0 %5222
  %5224 = vrot.lane.b32.xlu0 %v4248, 12
  %v5225 = vpop.permute.xlu0 %5224
  %5226 = vrot.lane.b32.xlu0 %v4250, 12
  %v5227 = vpop.permute.xlu0 %5226
  %5228 = vrot.lane.b32.xlu0 %v4251, 12
  %v5229 = vpop.permute.xlu0 %5228
  %5230 = vrot.lane.b32.xlu0 %v4253, 12
  %v5231 = vpop.permute.xlu0 %5230
  %5232 = vrot.lane.b32.xlu0 %v4254, 12
  %v5233 = vpop.permute.xlu0 %5232
  %5234 = vrot.lane.b32.xlu0 %v4256, 12
  %v5235 = vpop.permute.xlu0 %5234
  %5236 = vrot.lane.b32.xlu0 %v4257, 12
  %v5237 = vpop.permute.xlu0 %5236
  %5238 = vrot.lane.b32.xlu0 %v4259, 12
  %v5239 = vpop.permute.xlu0 %5238
  %5240 = vrot.lane.b32.xlu0 %v4260, 12
  %v5241 = vpop.permute.xlu0 %5240
  %5242 = vrot.lane.b32.xlu0 %v4262, 12
  %v5243 = vpop.permute.xlu0 %5242
  %5244 = vrot.lane.b32.xlu0 %v4263, 12
  %v5245 = vpop.permute.xlu0 %5244
  %5246 = vrot.lane.b32.xlu0 %v4265, 12
  %v5247 = vpop.permute.xlu0 %5246
  %5248 = vrot.lane.b32.xlu0 %v4266, 12
  %v5249 = vpop.permute.xlu0 %5248
  %5250 = vrot.lane.b32.xlu0 %v4268, 12
  %v5251 = vpop.permute.xlu0 %5250
  %5252 = vrot.lane.b32.xlu0 %v4269, 12
  %v5253 = vpop.permute.xlu0 %5252
  %5318 = vrot.lane.b32.xlu0 %v4377, 16
  %v5319 = vpop.permute.xlu0 %5318
  %5320 = vrot.lane.b32.xlu0 %v4379, 16
  %v5321 = vpop.permute.xlu0 %5320
  %5322 = vrot.lane.b32.xlu0 %v4382, 16
  %v5323 = vpop.permute.xlu0 %5322
  %5324 = vrot.lane.b32.xlu0 %v4384, 16
  %v5325 = vpop.permute.xlu0 %5324
  %5326 = vrot.lane.b32.xlu0 %v4387, 16
  %v5327 = vpop.permute.xlu0 %5326
  %5328 = vrot.lane.b32.xlu0 %v4389, 16
  %v5329 = vpop.permute.xlu0 %5328
  %5330 = vrot.lane.b32.xlu0 %v4392, 16
  %v5331 = vpop.permute.xlu0 %5330
  %5332 = vrot.lane.b32.xlu0 %v4394, 16
  %v5333 = vpop.permute.xlu0 %5332
  %5334 = vrot.lane.b32.xlu0 %v4397, 16
  %v5335 = vpop.permute.xlu0 %5334
  %5336 = vrot.lane.b32.xlu0 %v4399, 16
  %v5337 = vpop.permute.xlu0 %5336
  %5338 = vrot.lane.b32.xlu0 %v4402, 16
  %v5339 = vpop.permute.xlu0 %5338
  %5340 = vrot.lane.b32.xlu0 %v4404, 16
  %v5341 = vpop.permute.xlu0 %5340
  %5342 = vrot.lane.b32.xlu0 %v4407, 16
  %v5343 = vpop.permute.xlu0 %5342
  %5344 = vrot.lane.b32.xlu0 %v4409, 16
  %v5345 = vpop.permute.xlu0 %5344
  %5346 = vrot.lane.b32.xlu0 %v4412, 16
  %v5347 = vpop.permute.xlu0 %5346
  %5348 = vrot.lane.b32.xlu0 %v4414, 16
  %v5349 = vpop.permute.xlu0 %5348
  %5350 = vrot.lane.b32.xlu0 %v4417, 16
  %v5351 = vpop.permute.xlu0 %5350
  %5352 = vrot.lane.b32.xlu0 %v4419, 16
  %v5353 = vpop.permute.xlu0 %5352
  %5354 = vrot.lane.b32.xlu0 %v4422, 16
  %v5355 = vpop.permute.xlu0 %5354
  %5356 = vrot.lane.b32.xlu0 %v4424, 16
  %v5357 = vpop.permute.xlu0 %5356
  %5358 = vrot.lane.b32.xlu0 %v4427, 16
  %v5359 = vpop.permute.xlu0 %5358
  %5360 = vrot.lane.b32.xlu0 %v4429, 16
  %v5361 = vpop.permute.xlu0 %5360
  %5362 = vrot.lane.b32.xlu0 %v4432, 16
  %v5363 = vpop.permute.xlu0 %5362
  %5364 = vrot.lane.b32.xlu0 %v4434, 16
  %v5365 = vpop.permute.xlu0 %5364
  %5366 = vrot.lane.b32.xlu0 %v4437, 16
  %v5367 = vpop.permute.xlu0 %5366
  %5368 = vrot.lane.b32.xlu0 %v4439, 16
  %v5369 = vpop.permute.xlu0 %5368
  %5370 = vrot.lane.b32.xlu0 %v4442, 16
  %v5371 = vpop.permute.xlu0 %5370
  %5372 = vrot.lane.b32.xlu0 %v4444, 16
  %v5373 = vpop.permute.xlu0 %5372
  %5374 = vrot.lane.b32.xlu0 %v4447, 16
  %v5375 = vpop.permute.xlu0 %5374
  %5376 = vrot.lane.b32.xlu0 %v4449, 16
  %v5377 = vpop.permute.xlu0 %5376
  %5378 = vrot.lane.b32.xlu0 %v4698, 16
  %v5379 = vpop.permute.xlu0 %5378
  %5380 = vrot.lane.b32.xlu0 %v4700, 16
  %v5381 = vpop.permute.xlu0 %5380
  %5382 = vrot.lane.b32.xlu0 %v4457, 16
  %v5383 = vpop.permute.xlu0 %5382
  %5384 = vrot.lane.b32.xlu0 %v4459, 16
  %v5385 = vpop.permute.xlu0 %5384
  %5386 = vrot.lane.b32.xlu0 %v4462, 16
  %v5387 = vpop.permute.xlu0 %5386
  %5388 = vrot.lane.b32.xlu0 %v4464, 16
  %v5389 = vpop.permute.xlu0 %5388
  %5390 = vrot.lane.b32.xlu0 %v4467, 16
  %v5391 = vpop.permute.xlu0 %5390
  %5392 = vrot.lane.b32.xlu0 %v4469, 16
  %v5393 = vpop.permute.xlu0 %5392
  %5394 = vrot.lane.b32.xlu0 %v4472, 16
  %v5395 = vpop.permute.xlu0 %5394
  %5396 = vrot.lane.b32.xlu0 %v4474, 16
  %v5397 = vpop.permute.xlu0 %5396
  %5398 = vrot.lane.b32.xlu0 %v4477, 16
  %v5399 = vpop.permute.xlu0 %5398
  %5400 = vrot.lane.b32.xlu0 %v4479, 16
  %v5401 = vpop.permute.xlu0 %5400
  %5402 = vrot.lane.b32.xlu0 %v4482, 16
  %v5403 = vpop.permute.xlu0 %5402
  %5404 = vrot.lane.b32.xlu0 %v4484, 16
  %v5405 = vpop.permute.xlu0 %5404
  %5406 = vrot.lane.b32.xlu0 %v4487, 16
  %v5407 = vpop.permute.xlu0 %5406
  %5408 = vrot.lane.b32.xlu0 %v4489, 16
  %v5409 = vpop.permute.xlu0 %5408
  %5410 = vrot.lane.b32.xlu0 %v4492, 16
  %v5411 = vpop.permute.xlu0 %5410
  %5412 = vrot.lane.b32.xlu0 %v4494, 16
  %v5413 = vpop.permute.xlu0 %5412
  %5414 = vrot.lane.b32.xlu0 %v4497, 16
  %v5415 = vpop.permute.xlu0 %5414
  %5416 = vrot.lane.b32.xlu0 %v4499, 16
  %v5417 = vpop.permute.xlu0 %5416
  %5418 = vrot.lane.b32.xlu0 %v4502, 16
  %v5419 = vpop.permute.xlu0 %5418
  %5420 = vrot.lane.b32.xlu0 %v4504, 16
  %v5421 = vpop.permute.xlu0 %5420
  %5422 = vrot.lane.b32.xlu0 %v4507, 16
  %v5423 = vpop.permute.xlu0 %5422
  %5424 = vrot.lane.b32.xlu0 %v4509, 16
  %v5425 = vpop.permute.xlu0 %5424
  %5426 = vrot.lane.b32.xlu0 %v4512, 16
  %v5427 = vpop.permute.xlu0 %5426
  %5428 = vrot.lane.b32.xlu0 %v4514, 16
  %v5429 = vpop.permute.xlu0 %5428
  %5430 = vrot.lane.b32.xlu0 %v4517, 16
  %v5431 = vpop.permute.xlu0 %5430
  %5432 = vrot.lane.b32.xlu0 %v4519, 16
  %v5433 = vpop.permute.xlu0 %5432
  %5434 = vrot.lane.b32.xlu0 %v4522, 16
  %v5435 = vpop.permute.xlu0 %5434
  %5436 = vrot.lane.b32.xlu0 %v4524, 16
  %v5437 = vpop.permute.xlu0 %5436
  %5438 = vrot.lane.b32.xlu0 %v4527, 16
  %v5439 = vpop.permute.xlu0 %5438
  %5440 = vrot.lane.b32.xlu0 %v4529, 16
  %v5441 = vpop.permute.xlu0 %5440
  %5442 = vrot.lane.b32.xlu0 %v4703, 16
  %v5443 = vpop.permute.xlu0 %5442
  %5444 = vrot.lane.b32.xlu0 %v4705, 16
  %v5445 = vpop.permute.xlu0 %5444
  %5510 = vrot.lane.b32.xlu0 %v4537, 20
  %v5511 = vpop.permute.xlu0 %5510
  %5512 = vrot.lane.b32.xlu0 %v4539, 20
  %v5513 = vpop.permute.xlu0 %5512
  %5514 = vrot.lane.b32.xlu0 %v4542, 20
  %v5515 = vpop.permute.xlu0 %5514
  %5516 = vrot.lane.b32.xlu0 %v4544, 20
  %v5517 = vpop.permute.xlu0 %5516
  %5518 = vrot.lane.b32.xlu0 %v4547, 20
  %v5519 = vpop.permute.xlu0 %5518
  %5520 = vrot.lane.b32.xlu0 %v4549, 20
  %v5521 = vpop.permute.xlu0 %5520
  %5522 = vrot.lane.b32.xlu0 %v4552, 20
  %v5523 = vpop.permute.xlu0 %5522
  %5524 = vrot.lane.b32.xlu0 %v4554, 20
  %v5525 = vpop.permute.xlu0 %5524
  %5526 = vrot.lane.b32.xlu0 %v4557, 20
  %v5527 = vpop.permute.xlu0 %5526
  %5528 = vrot.lane.b32.xlu0 %v4559, 20
  %v5529 = vpop.permute.xlu0 %5528
  %5530 = vrot.lane.b32.xlu0 %v4562, 20
  %v5531 = vpop.permute.xlu0 %5530
  %5532 = vrot.lane.b32.xlu0 %v4564, 20
  %v5533 = vpop.permute.xlu0 %5532
  %5534 = vrot.lane.b32.xlu0 %v4567, 20
  %v5535 = vpop.permute.xlu0 %5534
  %5536 = vrot.lane.b32.xlu0 %v4569, 20
  %v5537 = vpop.permute.xlu0 %5536
  %5538 = vrot.lane.b32.xlu0 %v4572, 20
  %v5539 = vpop.permute.xlu0 %5538
  %5540 = vrot.lane.b32.xlu0 %v4574, 20
  %v5541 = vpop.permute.xlu0 %5540
  %5542 = vrot.lane.b32.xlu0 %v4577, 20
  %v5543 = vpop.permute.xlu0 %5542
  %5544 = vrot.lane.b32.xlu0 %v4579, 20
  %v5545 = vpop.permute.xlu0 %5544
  %5546 = vrot.lane.b32.xlu0 %v4582, 20
  %v5547 = vpop.permute.xlu0 %5546
  %5548 = vrot.lane.b32.xlu0 %v4584, 20
  %v5549 = vpop.permute.xlu0 %5548
  %5550 = vrot.lane.b32.xlu0 %v4587, 20
  %v5551 = vpop.permute.xlu0 %5550
  %5552 = vrot.lane.b32.xlu0 %v4589, 20
  %v5553 = vpop.permute.xlu0 %5552
  %5554 = vrot.lane.b32.xlu0 %v4592, 20
  %v5555 = vpop.permute.xlu0 %5554
  %5556 = vrot.lane.b32.xlu0 %v4594, 20
  %v5557 = vpop.permute.xlu0 %5556
  %5558 = vrot.lane.b32.xlu0 %v4597, 20
  %v5559 = vpop.permute.xlu0 %5558
  %5560 = vrot.lane.b32.xlu0 %v4599, 20
  %v5561 = vpop.permute.xlu0 %5560
  %5562 = vrot.lane.b32.xlu0 %v4602, 20
  %v5563 = vpop.permute.xlu0 %5562
  %5564 = vrot.lane.b32.xlu0 %v4604, 20
  %v5565 = vpop.permute.xlu0 %5564
  %5566 = vrot.lane.b32.xlu0 %v4607, 20
  %v5567 = vpop.permute.xlu0 %5566
  %5568 = vrot.lane.b32.xlu0 %v4609, 20
  %v5569 = vpop.permute.xlu0 %5568
  %5570 = vrot.lane.b32.xlu0 %v4708, 20
  %v5571 = vpop.permute.xlu0 %5570
  %5572 = vrot.lane.b32.xlu0 %v4710, 20
  %v5573 = vpop.permute.xlu0 %5572
  %5574 = vrot.lane.b32.xlu0 %v4617, 20
  %v5575 = vpop.permute.xlu0 %5574
  %5576 = vrot.lane.b32.xlu0 %v4619, 20
  %v5577 = vpop.permute.xlu0 %5576
  %5578 = vrot.lane.b32.xlu0 %v4622, 20
  %v5579 = vpop.permute.xlu0 %5578
  %5580 = vrot.lane.b32.xlu0 %v4624, 20
  %v5581 = vpop.permute.xlu0 %5580
  %5582 = vrot.lane.b32.xlu0 %v4627, 20
  %v5583 = vpop.permute.xlu0 %5582
  %5584 = vrot.lane.b32.xlu0 %v4629, 20
  %v5585 = vpop.permute.xlu0 %5584
  %5586 = vrot.lane.b32.xlu0 %v4632, 20
  %v5587 = vpop.permute.xlu0 %5586
  %5588 = vrot.lane.b32.xlu0 %v4634, 20
  %v5589 = vpop.permute.xlu0 %5588
  %5590 = vrot.lane.b32.xlu0 %v4637, 20
  %v5591 = vpop.permute.xlu0 %5590
  %5592 = vrot.lane.b32.xlu0 %v4639, 20
  %v5593 = vpop.permute.xlu0 %5592
  %5594 = vrot.lane.b32.xlu0 %v4642, 20
  %v5595 = vpop.permute.xlu0 %5594
  %5596 = vrot.lane.b32.xlu0 %v4644, 20
  %v5597 = vpop.permute.xlu0 %5596
  %5598 = vrot.lane.b32.xlu0 %v4647, 20
  %v5599 = vpop.permute.xlu0 %5598
  %5600 = vrot.lane.b32.xlu0 %v4649, 20
  %v5601 = vpop.permute.xlu0 %5600
  %5602 = vrot.lane.b32.xlu0 %v4652, 20
  %v5603 = vpop.permute.xlu0 %5602
  %5604 = vrot.lane.b32.xlu0 %v4654, 20
  %v5605 = vpop.permute.xlu0 %5604
  %5606 = vrot.lane.b32.xlu0 %v4657, 20
  %v5607 = vpop.permute.xlu0 %5606
  %5608 = vrot.lane.b32.xlu0 %v4659, 20
  %v5609 = vpop.permute.xlu0 %5608
  %5610 = vrot.lane.b32.xlu0 %v4662, 20
  %v5611 = vpop.permute.xlu0 %5610
  %5612 = vrot.lane.b32.xlu0 %v4664, 20
  %v5613 = vpop.permute.xlu0 %5612
  %5614 = vrot.lane.b32.xlu0 %v4667, 20
  %v5615 = vpop.permute.xlu0 %5614
  %5616 = vrot.lane.b32.xlu0 %v4669, 20
  %v5617 = vpop.permute.xlu0 %5616
  %5618 = vrot.lane.b32.xlu0 %v4672, 20
  %v5619 = vpop.permute.xlu0 %5618
  %5620 = vrot.lane.b32.xlu0 %v4674, 20
  %v5621 = vpop.permute.xlu0 %5620
  %5622 = vrot.lane.b32.xlu0 %v4677, 20
  %v5623 = vpop.permute.xlu0 %5622
  %5624 = vrot.lane.b32.xlu0 %v4679, 20
  %v5625 = vpop.permute.xlu0 %5624
  %5626 = vrot.lane.b32.xlu0 %v4682, 20
  %v5627 = vpop.permute.xlu0 %5626
  %5628 = vrot.lane.b32.xlu0 %v4684, 20
  %v5629 = vpop.permute.xlu0 %5628
  %5630 = vrot.lane.b32.xlu0 %v4687, 20
  %v5631 = vpop.permute.xlu0 %5630
  %5632 = vrot.lane.b32.xlu0 %v4689, 20
  %v5633 = vpop.permute.xlu0 %5632
  %5634 = vrot.lane.b32.xlu0 %v4713, 20
  %v5635 = vpop.permute.xlu0 %5634
  %5636 = vrot.lane.b32.xlu0 %v4715, 20
  %v5637 = vpop.permute.xlu0 %5636
  %5702 = vrot.lane.b32.xlu0 %v4172, 24
  %v5703 = vpop.permute.xlu0 %5702
  %5704 = vrot.lane.b32.xlu0 %v4173, 24
  %v5705 = vpop.permute.xlu0 %5704
  %5706 = vrot.lane.b32.xlu0 %v4175, 24
  %v5707 = vpop.permute.xlu0 %5706
  %5708 = vrot.lane.b32.xlu0 %v4176, 24
  %v5709 = vpop.permute.xlu0 %5708
  %5710 = vrot.lane.b32.xlu0 %v4178, 24
  %v5711 = vpop.permute.xlu0 %5710
  %5712 = vrot.lane.b32.xlu0 %v4179, 24
  %v5713 = vpop.permute.xlu0 %5712
  %5714 = vrot.lane.b32.xlu0 %v4181, 24
  %v5715 = vpop.permute.xlu0 %5714
  %5716 = vrot.lane.b32.xlu0 %v4182, 24
  %v5717 = vpop.permute.xlu0 %5716
  %5718 = vrot.lane.b32.xlu0 %v4184, 24
  %v5719 = vpop.permute.xlu0 %5718
  %5720 = vrot.lane.b32.xlu0 %v4185, 24
  %v5721 = vpop.permute.xlu0 %5720
  %5722 = vrot.lane.b32.xlu0 %v4187, 24
  %v5723 = vpop.permute.xlu0 %5722
  %5724 = vrot.lane.b32.xlu0 %v4188, 24
  %v5725 = vpop.permute.xlu0 %5724
  %5726 = vrot.lane.b32.xlu0 %v4190, 24
  %v5727 = vpop.permute.xlu0 %5726
  %5728 = vrot.lane.b32.xlu0 %v4191, 24
  %v5729 = vpop.permute.xlu0 %5728
  %5730 = vrot.lane.b32.xlu0 %v4193, 24
  %v5731 = vpop.permute.xlu0 %5730
  %5732 = vrot.lane.b32.xlu0 %v4194, 24
  %v5733 = vpop.permute.xlu0 %5732
  %5734 = vrot.lane.b32.xlu0 %v4196, 24
  %v5735 = vpop.permute.xlu0 %5734
  %5736 = vrot.lane.b32.xlu0 %v4197, 24
  %v5737 = vpop.permute.xlu0 %5736
  %5738 = vrot.lane.b32.xlu0 %v4199, 24
  %v5739 = vpop.permute.xlu0 %5738
  %5740 = vrot.lane.b32.xlu0 %v4200, 24
  %v5741 = vpop.permute.xlu0 %5740
  %5742 = vrot.lane.b32.xlu0 %v4202, 24
  %v5743 = vpop.permute.xlu0 %5742
  %5744 = vrot.lane.b32.xlu0 %v4203, 24
  %v5745 = vpop.permute.xlu0 %5744
  %5746 = vrot.lane.b32.xlu0 %v4205, 24
  %v5747 = vpop.permute.xlu0 %5746
  %5748 = vrot.lane.b32.xlu0 %v4206, 24
  %v5749 = vpop.permute.xlu0 %5748
  %5750 = vrot.lane.b32.xlu0 %v4208, 24
  %v5751 = vpop.permute.xlu0 %5750
  %5752 = vrot.lane.b32.xlu0 %v4209, 24
  %v5753 = vpop.permute.xlu0 %5752
  %5754 = vrot.lane.b32.xlu0 %v4211, 24
  %v5755 = vpop.permute.xlu0 %5754
  %5756 = vrot.lane.b32.xlu0 %v4212, 24
  %v5757 = vpop.permute.xlu0 %5756
  %5758 = vrot.lane.b32.xlu0 %v4214, 24
  %v5759 = vpop.permute.xlu0 %5758
  %5760 = vrot.lane.b32.xlu0 %v4215, 24
  %v5761 = vpop.permute.xlu0 %5760
  %5762 = vrot.lane.b32.xlu0 %v4217, 24
  %v5763 = vpop.permute.xlu0 %5762
  %5764 = vrot.lane.b32.xlu0 %v4218, 24
  %v5765 = vpop.permute.xlu0 %5764
  %5766 = vrot.lane.b32.xlu0 %v4226, 24
  %v5767 = vpop.permute.xlu0 %5766
  %5768 = vrot.lane.b32.xlu0 %v4227, 24
  %v5769 = vpop.permute.xlu0 %5768
  %5770 = vrot.lane.b32.xlu0 %v4229, 24
  %v5771 = vpop.permute.xlu0 %5770
  %5772 = vrot.lane.b32.xlu0 %v4230, 24
  %v5773 = vpop.permute.xlu0 %5772
  %5774 = vrot.lane.b32.xlu0 %v4232, 24
  %v5775 = vpop.permute.xlu0 %5774
  %5776 = vrot.lane.b32.xlu0 %v4233, 24
  %v5777 = vpop.permute.xlu0 %5776
  %5778 = vrot.lane.b32.xlu0 %v4235, 24
  %v5779 = vpop.permute.xlu0 %5778
  %5780 = vrot.lane.b32.xlu0 %v4236, 24
  %v5781 = vpop.permute.xlu0 %5780
  %5782 = vrot.lane.b32.xlu0 %v4238, 24
  %v5783 = vpop.permute.xlu0 %5782
  %5784 = vrot.lane.b32.xlu0 %v4239, 24
  %v5785 = vpop.permute.xlu0 %5784
  %5786 = vrot.lane.b32.xlu0 %v4241, 24
  %v5787 = vpop.permute.xlu0 %5786
  %5788 = vrot.lane.b32.xlu0 %v4242, 24
  %v5789 = vpop.permute.xlu0 %5788
  %5790 = vrot.lane.b32.xlu0 %v4244, 24
  %v5791 = vpop.permute.xlu0 %5790
  %5792 = vrot.lane.b32.xlu0 %v4245, 24
  %v5793 = vpop.permute.xlu0 %5792
  %5794 = vrot.lane.b32.xlu0 %v4247, 24
  %v5795 = vpop.permute.xlu0 %5794
  %5796 = vrot.lane.b32.xlu0 %v4248, 24
  %v5797 = vpop.permute.xlu0 %5796
  %5798 = vrot.lane.b32.xlu0 %v4250, 24
  %v5799 = vpop.permute.xlu0 %5798
  %5800 = vrot.lane.b32.xlu0 %v4251, 24
  %v5801 = vpop.permute.xlu0 %5800
  %5802 = vrot.lane.b32.xlu0 %v4253, 24
  %v5803 = vpop.permute.xlu0 %5802
  %5804 = vrot.lane.b32.xlu0 %v4254, 24
  %v5805 = vpop.permute.xlu0 %5804
  %5806 = vrot.lane.b32.xlu0 %v4256, 24
  %v5807 = vpop.permute.xlu0 %5806
  %5808 = vrot.lane.b32.xlu0 %v4257, 24
  %v5809 = vpop.permute.xlu0 %5808
  %5810 = vrot.lane.b32.xlu0 %v4259, 24
  %v5811 = vpop.permute.xlu0 %5810
  %5812 = vrot.lane.b32.xlu0 %v4260, 24
  %v5813 = vpop.permute.xlu0 %5812
  %5814 = vrot.lane.b32.xlu0 %v4262, 24
  %v5815 = vpop.permute.xlu0 %5814
  %5816 = vrot.lane.b32.xlu0 %v4263, 24
  %v5817 = vpop.permute.xlu0 %5816
  %5818 = vrot.lane.b32.xlu0 %v4265, 24
  %v5819 = vpop.permute.xlu0 %5818
  %5820 = vrot.lane.b32.xlu0 %v4266, 24
  %v5821 = vpop.permute.xlu0 %5820
  %5822 = vrot.lane.b32.xlu0 %v4268, 24
  %v5823 = vpop.permute.xlu0 %5822
  %5824 = vrot.lane.b32.xlu0 %v4269, 24
  %v5825 = vpop.permute.xlu0 %5824
  %5826 = vrot.lane.b32.xlu0 %v4271, 24
  %v5827 = vpop.permute.xlu0 %5826
  %5828 = vrot.lane.b32.xlu0 %v4272, 24
  %v5829 = vpop.permute.xlu0 %5828
  %5894 = vrot.lane.b32.xlu0 %v4382, 28
  %v5895 = vpop.permute.xlu0 %5894
  %5896 = vrot.lane.b32.xlu0 %v4384, 28
  %v5897 = vpop.permute.xlu0 %5896
  %5898 = vrot.lane.b32.xlu0 %v4387, 28
  %v5899 = vpop.permute.xlu0 %5898
  %5900 = vrot.lane.b32.xlu0 %v4389, 28
  %v5901 = vpop.permute.xlu0 %5900
  %5902 = vrot.lane.b32.xlu0 %v4392, 28
  %v5903 = vpop.permute.xlu0 %5902
  %5904 = vrot.lane.b32.xlu0 %v4394, 28
  %v5905 = vpop.permute.xlu0 %5904
  %5906 = vrot.lane.b32.xlu0 %v4397, 28
  %v5907 = vpop.permute.xlu0 %5906
  %5908 = vrot.lane.b32.xlu0 %v4399, 28
  %v5909 = vpop.permute.xlu0 %5908
  %5910 = vrot.lane.b32.xlu0 %v4402, 28
  %v5911 = vpop.permute.xlu0 %5910
  %5912 = vrot.lane.b32.xlu0 %v4404, 28
  %v5913 = vpop.permute.xlu0 %5912
  %5914 = vrot.lane.b32.xlu0 %v4407, 28
  %v5915 = vpop.permute.xlu0 %5914
  %5916 = vrot.lane.b32.xlu0 %v4409, 28
  %v5917 = vpop.permute.xlu0 %5916
  %5918 = vrot.lane.b32.xlu0 %v4412, 28
  %v5919 = vpop.permute.xlu0 %5918
  %5920 = vrot.lane.b32.xlu0 %v4414, 28
  %v5921 = vpop.permute.xlu0 %5920
  %5922 = vrot.lane.b32.xlu0 %v4417, 28
  %v5923 = vpop.permute.xlu0 %5922
  %5924 = vrot.lane.b32.xlu0 %v4419, 28
  %v5925 = vpop.permute.xlu0 %5924
  %5926 = vrot.lane.b32.xlu0 %v4422, 28
  %v5927 = vpop.permute.xlu0 %5926
  %5928 = vrot.lane.b32.xlu0 %v4424, 28
  %v5929 = vpop.permute.xlu0 %5928
  %5930 = vrot.lane.b32.xlu0 %v4427, 28
  %v5931 = vpop.permute.xlu0 %5930
  %5932 = vrot.lane.b32.xlu0 %v4429, 28
  %v5933 = vpop.permute.xlu0 %5932
  %5934 = vrot.lane.b32.xlu0 %v4432, 28
  %v5935 = vpop.permute.xlu0 %5934
  %5936 = vrot.lane.b32.xlu0 %v4434, 28
  %v5937 = vpop.permute.xlu0 %5936
  %5938 = vrot.lane.b32.xlu0 %v4437, 28
  %v5939 = vpop.permute.xlu0 %5938
  %5940 = vrot.lane.b32.xlu0 %v4439, 28
  %v5941 = vpop.permute.xlu0 %5940
  %5942 = vrot.lane.b32.xlu0 %v4442, 28
  %v5943 = vpop.permute.xlu0 %5942
  %5944 = vrot.lane.b32.xlu0 %v4444, 28
  %v5945 = vpop.permute.xlu0 %5944
  %5946 = vrot.lane.b32.xlu0 %v4447, 28
  %v5947 = vpop.permute.xlu0 %5946
  %5948 = vrot.lane.b32.xlu0 %v4449, 28
  %v5949 = vpop.permute.xlu0 %5948
  %5950 = vrot.lane.b32.xlu0 %v4698, 28
  %v5951 = vpop.permute.xlu0 %5950
  %5952 = vrot.lane.b32.xlu0 %v4700, 28
  %v5953 = vpop.permute.xlu0 %5952
  %5954 = vrot.lane.b32.xlu0 %v4724, 28
  %v5955 = vpop.permute.xlu0 %5954
  %5956 = vrot.lane.b32.xlu0 %v4726, 28
  %v5957 = vpop.permute.xlu0 %5956
  %5958 = vrot.lane.b32.xlu0 %v4462, 28
  %v5959 = vpop.permute.xlu0 %5958
  %5960 = vrot.lane.b32.xlu0 %v4464, 28
  %v5961 = vpop.permute.xlu0 %5960
  %5962 = vrot.lane.b32.xlu0 %v4467, 28
  %v5963 = vpop.permute.xlu0 %5962
  %5964 = vrot.lane.b32.xlu0 %v4469, 28
  %v5965 = vpop.permute.xlu0 %5964
  %5966 = vrot.lane.b32.xlu0 %v4472, 28
  %v5967 = vpop.permute.xlu0 %5966
  %5968 = vrot.lane.b32.xlu0 %v4474, 28
  %v5969 = vpop.permute.xlu0 %5968
  %5970 = vrot.lane.b32.xlu0 %v4477, 28
  %v5971 = vpop.permute.xlu0 %5970
  %5972 = vrot.lane.b32.xlu0 %v4479, 28
  %v5973 = vpop.permute.xlu0 %5972
  %5974 = vrot.lane.b32.xlu0 %v4482, 28
  %v5975 = vpop.permute.xlu0 %5974
  %5976 = vrot.lane.b32.xlu0 %v4484, 28
  %v5977 = vpop.permute.xlu0 %5976
  %5978 = vrot.lane.b32.xlu0 %v4487, 28
  %v5979 = vpop.permute.xlu0 %5978
  %5980 = vrot.lane.b32.xlu0 %v4489, 28
  %v5981 = vpop.permute.xlu0 %5980
  %5982 = vrot.lane.b32.xlu0 %v4492, 28
  %v5983 = vpop.permute.xlu0 %5982
  %5984 = vrot.lane.b32.xlu0 %v4494, 28
  %v5985 = vpop.permute.xlu0 %5984
  %5986 = vrot.lane.b32.xlu0 %v4497, 28
  %v5987 = vpop.permute.xlu0 %5986
  %5988 = vrot.lane.b32.xlu0 %v4499, 28
  %v5989 = vpop.permute.xlu0 %5988
  %5990 = vrot.lane.b32.xlu0 %v4502, 28
  %v5991 = vpop.permute.xlu0 %5990
  %5992 = vrot.lane.b32.xlu0 %v4504, 28
  %v5993 = vpop.permute.xlu0 %5992
  %5994 = vrot.lane.b32.xlu0 %v4507, 28
  %v5995 = vpop.permute.xlu0 %5994
  %5996 = vrot.lane.b32.xlu0 %v4509, 28
  %v5997 = vpop.permute.xlu0 %5996
  %5998 = vrot.lane.b32.xlu0 %v4512, 28
  %v5999 = vpop.permute.xlu0 %5998
  %6000 = vrot.lane.b32.xlu0 %v4514, 28
  %v6001 = vpop.permute.xlu0 %6000
  %6002 = vrot.lane.b32.xlu0 %v4517, 28
  %v6003 = vpop.permute.xlu0 %6002
  %6004 = vrot.lane.b32.xlu0 %v4519, 28
  %v6005 = vpop.permute.xlu0 %6004
  %6006 = vrot.lane.b32.xlu0 %v4522, 28
  %v6007 = vpop.permute.xlu0 %6006
  %6008 = vrot.lane.b32.xlu0 %v4524, 28
  %v6009 = vpop.permute.xlu0 %6008
  %6010 = vrot.lane.b32.xlu0 %v4527, 28
  %v6011 = vpop.permute.xlu0 %6010
  %6012 = vrot.lane.b32.xlu0 %v4529, 28
  %v6013 = vpop.permute.xlu0 %6012
  %6014 = vrot.lane.b32.xlu0 %v4703, 28
  %v6015 = vpop.permute.xlu0 %6014
  %6016 = vrot.lane.b32.xlu0 %v4705, 28
  %v6017 = vpop.permute.xlu0 %6016
  %6018 = vrot.lane.b32.xlu0 %v4729, 28
  %v6019 = vpop.permute.xlu0 %6018
  %6020 = vrot.lane.b32.xlu0 %v4731, 28
  %v6021 = vpop.permute.xlu0 %6020
  %6086 = vrot.lane.b32.xlu0 %v4542, 32
  %v6087 = vpop.permute.xlu0 %6086
  %6088 = vrot.lane.b32.xlu0 %v4544, 32
  %v6089 = vpop.permute.xlu0 %6088
  %6090 = vrot.lane.b32.xlu0 %v4547, 32
  %v6091 = vpop.permute.xlu0 %6090
  %6092 = vrot.lane.b32.xlu0 %v4549, 32
  %v6093 = vpop.permute.xlu0 %6092
  %6094 = vrot.lane.b32.xlu0 %v4552, 32
  %v6095 = vpop.permute.xlu0 %6094
  %6096 = vrot.lane.b32.xlu0 %v4554, 32
  %v6097 = vpop.permute.xlu0 %6096
  %6098 = vrot.lane.b32.xlu0 %v4557, 32
  %v6099 = vpop.permute.xlu0 %6098
  %6100 = vrot.lane.b32.xlu0 %v4559, 32
  %v6101 = vpop.permute.xlu0 %6100
  %6102 = vrot.lane.b32.xlu0 %v4562, 32
  %v6103 = vpop.permute.xlu0 %6102
  %6104 = vrot.lane.b32.xlu0 %v4564, 32
  %v6105 = vpop.permute.xlu0 %6104
  %6106 = vrot.lane.b32.xlu0 %v4567, 32
  %v6107 = vpop.permute.xlu0 %6106
  %6108 = vrot.lane.b32.xlu0 %v4569, 32
  %v6109 = vpop.permute.xlu0 %6108
  %6110 = vrot.lane.b32.xlu0 %v4572, 32
  %v6111 = vpop.permute.xlu0 %6110
  %6112 = vrot.lane.b32.xlu0 %v4574, 32
  %v6113 = vpop.permute.xlu0 %6112
  %6114 = vrot.lane.b32.xlu0 %v4577, 32
  %v6115 = vpop.permute.xlu0 %6114
  %6116 = vrot.lane.b32.xlu0 %v4579, 32
  %v6117 = vpop.permute.xlu0 %6116
  %6118 = vrot.lane.b32.xlu0 %v4582, 32
  %v6119 = vpop.permute.xlu0 %6118
  %6120 = vrot.lane.b32.xlu0 %v4584, 32
  %v6121 = vpop.permute.xlu0 %6120
  %6122 = vrot.lane.b32.xlu0 %v4587, 32
  %v6123 = vpop.permute.xlu0 %6122
  %6124 = vrot.lane.b32.xlu0 %v4589, 32
  %v6125 = vpop.permute.xlu0 %6124
  %6126 = vrot.lane.b32.xlu0 %v4592, 32
  %v6127 = vpop.permute.xlu0 %6126
  %6128 = vrot.lane.b32.xlu0 %v4594, 32
  %v6129 = vpop.permute.xlu0 %6128
  %6130 = vrot.lane.b32.xlu0 %v4597, 32
  %v6131 = vpop.permute.xlu0 %6130
  %6132 = vrot.lane.b32.xlu0 %v4599, 32
  %v6133 = vpop.permute.xlu0 %6132
  %6134 = vrot.lane.b32.xlu0 %v4602, 32
  %v6135 = vpop.permute.xlu0 %6134
  %6136 = vrot.lane.b32.xlu0 %v4604, 32
  %v6137 = vpop.permute.xlu0 %6136
  %6138 = vrot.lane.b32.xlu0 %v4607, 32
  %v6139 = vpop.permute.xlu0 %6138
  %6140 = vrot.lane.b32.xlu0 %v4609, 32
  %v6141 = vpop.permute.xlu0 %6140
  %6142 = vrot.lane.b32.xlu0 %v4708, 32
  %v6143 = vpop.permute.xlu0 %6142
  %6144 = vrot.lane.b32.xlu0 %v4710, 32
  %v6145 = vpop.permute.xlu0 %6144
  %6146 = vrot.lane.b32.xlu0 %v4734, 32
  %v6147 = vpop.permute.xlu0 %6146
  %6148 = vrot.lane.b32.xlu0 %v4736, 32
  %v6149 = vpop.permute.xlu0 %6148
  %6150 = vrot.lane.b32.xlu0 %v4622, 32
  %v6151 = vpop.permute.xlu0 %6150
  %6152 = vrot.lane.b32.xlu0 %v4624, 32
  %v6153 = vpop.permute.xlu0 %6152
  %6154 = vrot.lane.b32.xlu0 %v4627, 32
  %v6155 = vpop.permute.xlu0 %6154
  %6156 = vrot.lane.b32.xlu0 %v4629, 32
  %v6157 = vpop.permute.xlu0 %6156
  %6158 = vrot.lane.b32.xlu0 %v4632, 32
  %v6159 = vpop.permute.xlu0 %6158
  %6160 = vrot.lane.b32.xlu0 %v4634, 32
  %v6161 = vpop.permute.xlu0 %6160
  %6162 = vrot.lane.b32.xlu0 %v4637, 32
  %v6163 = vpop.permute.xlu0 %6162
  %6164 = vrot.lane.b32.xlu0 %v4639, 32
  %v6165 = vpop.permute.xlu0 %6164
  %6166 = vrot.lane.b32.xlu0 %v4642, 32
  %v6167 = vpop.permute.xlu0 %6166
  %6168 = vrot.lane.b32.xlu0 %v4644, 32
  %v6169 = vpop.permute.xlu0 %6168
  %6170 = vrot.lane.b32.xlu0 %v4647, 32
  %v6171 = vpop.permute.xlu0 %6170
  %6172 = vrot.lane.b32.xlu0 %v4649, 32
  %v6173 = vpop.permute.xlu0 %6172
  %6174 = vrot.lane.b32.xlu0 %v4652, 32
  %v6175 = vpop.permute.xlu0 %6174
  %6176 = vrot.lane.b32.xlu0 %v4654, 32
  %v6177 = vpop.permute.xlu0 %6176
  %6178 = vrot.lane.b32.xlu0 %v4657, 32
  %v6179 = vpop.permute.xlu0 %6178
  %6180 = vrot.lane.b32.xlu0 %v4659, 32
  %v6181 = vpop.permute.xlu0 %6180
  %6182 = vrot.lane.b32.xlu0 %v4662, 32
  %v6183 = vpop.permute.xlu0 %6182
  %6184 = vrot.lane.b32.xlu0 %v4664, 32
  %v6185 = vpop.permute.xlu0 %6184
  %6186 = vrot.lane.b32.xlu0 %v4667, 32
  %v6187 = vpop.permute.xlu0 %6186
  %6188 = vrot.lane.b32.xlu0 %v4669, 32
  %v6189 = vpop.permute.xlu0 %6188
  %6190 = vrot.lane.b32.xlu0 %v4672, 32
  %v6191 = vpop.permute.xlu0 %6190
  %6192 = vrot.lane.b32.xlu0 %v4674, 32
  %v6193 = vpop.permute.xlu0 %6192
  %6194 = vrot.lane.b32.xlu0 %v4677, 32
  %v6195 = vpop.permute.xlu0 %6194
  %6196 = vrot.lane.b32.xlu0 %v4679, 32
  %v6197 = vpop.permute.xlu0 %6196
  %6198 = vrot.lane.b32.xlu0 %v4682, 32
  %v6199 = vpop.permute.xlu0 %6198
  %6200 = vrot.lane.b32.xlu0 %v4684, 32
  %v6201 = vpop.permute.xlu0 %6200
  %6202 = vrot.lane.b32.xlu0 %v4687, 32
  %v6203 = vpop.permute.xlu0 %6202
  %6204 = vrot.lane.b32.xlu0 %v4689, 32
  %v6205 = vpop.permute.xlu0 %6204
  %6206 = vrot.lane.b32.xlu0 %v4713, 32
  %v6207 = vpop.permute.xlu0 %6206
  %6208 = vrot.lane.b32.xlu0 %v4715, 32
  %v6209 = vpop.permute.xlu0 %6208
  %6210 = vrot.lane.b32.xlu0 %v4739, 32
  %v6211 = vpop.permute.xlu0 %6210
  %6212 = vrot.lane.b32.xlu0 %v4741, 32
  %v6213 = vpop.permute.xlu0 %6212
  %v6278 = vsel %vm26, %v4166, %v4743
  %v6279 = vsel %vm26, %v4167, %v4745
  %v6280 = vsel %vm26, %v4169, %v4747
  %v6281 = vsel %vm26, %v4170, %v4749
  %v6282 = vsel %vm26, %v4172, %v4751
  %v6283 = vsel %vm26, %v4173, %v4753
  %v6284 = vsel %vm26, %v4175, %v4755
  %v6285 = vsel %vm26, %v4176, %v4757
  %v6286 = vsel %vm26, %v4178, %v4759
  %v6287 = vsel %vm26, %v4179, %v4761
  %v6288 = vsel %vm26, %v4181, %v4763
  %v6289 = vsel %vm26, %v4182, %v4765
  %v6290 = vsel %vm26, %v4184, %v4767
  %v6291 = vsel %vm26, %v4185, %v4769
  %v6292 = vsel %vm26, %v4187, %v4771
  %v6293 = vsel %vm26, %v4188, %v4773
  %v6294 = vsel %vm26, %v4190, %v4775
  %v6295 = vsel %vm26, %v4191, %v4777
  %v6296 = vsel %vm26, %v4193, %v4779
  %v6297 = vsel %vm26, %v4194, %v4781
  %v6298 = vsel %vm26, %v4196, %v4783
  %v6299 = vsel %vm26, %v4197, %v4785
  %v6300 = vsel %vm26, %v4199, %v4787
  %v6301 = vsel %vm26, %v4200, %v4789
  %v6302 = vsel %vm26, %v4202, %v4791
  %v6303 = vsel %vm26, %v4203, %v4793
  %v6304 = vsel %vm26, %v4205, %v4795
  %v6305 = vsel %vm26, %v4206, %v4797
  %v6306 = vsel %vm26, %v4208, %v4799
  %v6307 = vsel %vm26, %v4209, %v4801
  %v6308 = vsel %vm26, %v4211, %v4803
  %v6309 = vsel %vm26, %v4212, %v4805
  %v6310 = vsel %vm26, %v4220, %v4807
  %v6311 = vsel %vm26, %v4221, %v4809
  %v6312 = vsel %vm26, %v4223, %v4811
  %v6313 = vsel %vm26, %v4224, %v4813
  %v6314 = vsel %vm26, %v4226, %v4815
  %v6315 = vsel %vm26, %v4227, %v4817
  %v6316 = vsel %vm26, %v4229, %v4819
  %v6317 = vsel %vm26, %v4230, %v4821
  %v6318 = vsel %vm26, %v4232, %v4823
  %v6319 = vsel %vm26, %v4233, %v4825
  %v6320 = vsel %vm26, %v4235, %v4827
  %v6321 = vsel %vm26, %v4236, %v4829
  %v6322 = vsel %vm26, %v4238, %v4831
  %v6323 = vsel %vm26, %v4239, %v4833
  %v6324 = vsel %vm26, %v4241, %v4835
  %v6325 = vsel %vm26, %v4242, %v4837
  %v6326 = vsel %vm26, %v4244, %v4839
  %v6327 = vsel %vm26, %v4245, %v4841
  %v6328 = vsel %vm26, %v4247, %v4843
  %v6329 = vsel %vm26, %v4248, %v4845
  %v6330 = vsel %vm26, %v4250, %v4847
  %v6331 = vsel %vm26, %v4251, %v4849
  %v6332 = vsel %vm26, %v4253, %v4851
  %v6333 = vsel %vm26, %v4254, %v4853
  %v6334 = vsel %vm26, %v4256, %v4855
  %v6335 = vsel %vm26, %v4257, %v4857
  %v6336 = vsel %vm26, %v4259, %v4859
  %v6337 = vsel %vm26, %v4260, %v4861
  %v6338 = vsel %vm26, %v4262, %v4863
  %v6339 = vsel %vm26, %v4263, %v4865
  %v6340 = vsel %vm26, %v4265, %v4867
  %v6341 = vsel %vm26, %v4266, %v4869
  %v6342 = vsel %vm2450, %v6278, %v4935
  %v6343 = vsel %vm2450, %v6279, %v4937
  %v6344 = vsel %vm2450, %v6280, %v4939
  %v6345 = vsel %vm2450, %v6281, %v4941
  %v6346 = vsel %vm2450, %v6282, %v4943
  %v6347 = vsel %vm2450, %v6283, %v4945
  %v6348 = vsel %vm2450, %v6284, %v4947
  %v6349 = vsel %vm2450, %v6285, %v4949
  %v6350 = vsel %vm2450, %v6286, %v4951
  %v6351 = vsel %vm2450, %v6287, %v4953
  %v6352 = vsel %vm2450, %v6288, %v4955
  %v6353 = vsel %vm2450, %v6289, %v4957
  %v6354 = vsel %vm2450, %v6290, %v4959
  %v6355 = vsel %vm2450, %v6291, %v4961
  %v6356 = vsel %vm2450, %v6292, %v4963
  %v6357 = vsel %vm2450, %v6293, %v4965
  %v6358 = vsel %vm2450, %v6294, %v4967
  %v6359 = vsel %vm2450, %v6295, %v4969
  %v6360 = vsel %vm2450, %v6296, %v4971
  %v6361 = vsel %vm2450, %v6297, %v4973
  %v6362 = vsel %vm2450, %v6298, %v4975
  %v6363 = vsel %vm2450, %v6299, %v4977
  %v6364 = vsel %vm2450, %v6300, %v4979
  %v6365 = vsel %vm2450, %v6301, %v4981
  %v6366 = vsel %vm2450, %v6302, %v4983
  %v6367 = vsel %vm2450, %v6303, %v4985
  %v6368 = vsel %vm2450, %v6304, %v4987
  %v6369 = vsel %vm2450, %v6305, %v4989
  %v6370 = vsel %vm2450, %v6306, %v4991
  %v6371 = vsel %vm2450, %v6307, %v4993
  %v6372 = vsel %vm2450, %v6308, %v4995
  %v6373 = vsel %vm2450, %v6309, %v4997
  %v6374 = vsel %vm2450, %v6310, %v4999
  %v6375 = vsel %vm2450, %v6311, %v5001
  %v6376 = vsel %vm2450, %v6312, %v5003
  %v6377 = vsel %vm2450, %v6313, %v5005
  %v6378 = vsel %vm2450, %v6314, %v5007
  %v6379 = vsel %vm2450, %v6315, %v5009
  %v6380 = vsel %vm2450, %v6316, %v5011
  %v6381 = vsel %vm2450, %v6317, %v5013
  %v6382 = vsel %vm2450, %v6318, %v5015
  %v6383 = vsel %vm2450, %v6319, %v5017
  %v6384 = vsel %vm2450, %v6320, %v5019
  %v6385 = vsel %vm2450, %v6321, %v5021
  %v6386 = vsel %vm2450, %v6322, %v5023
  %v6387 = vsel %vm2450, %v6323, %v5025
  %v6388 = vsel %vm2450, %v6324, %v5027
  %v6389 = vsel %vm2450, %v6325, %v5029
  %v6390 = vsel %vm2450, %v6326, %v5031
  %v6391 = vsel %vm2450, %v6327, %v5033
  %v6392 = vsel %vm2450, %v6328, %v5035
  %v6393 = vsel %vm2450, %v6329, %v5037
  %v6394 = vsel %vm2450, %v6330, %v5039
  %v6395 = vsel %vm2450, %v6331, %v5041
  %v6396 = vsel %vm2450, %v6332, %v5043
  %v6397 = vsel %vm2450, %v6333, %v5045
  %v6398 = vsel %vm2450, %v6334, %v5047
  %v6399 = vsel %vm2450, %v6335, %v5049
  %v6400 = vsel %vm2450, %v6336, %v5051
  %v6401 = vsel %vm2450, %v6337, %v5053
  %v6402 = vsel %vm2450, %v6338, %v5055
  %v6403 = vsel %vm2450, %v6339, %v5057
  %v6404 = vsel %vm2450, %v6340, %v5059
  %v6405 = vsel %vm2450, %v6341, %v5061
  %v6406 = vsel %vm2515, %v6342, %v5127
  %v6407 = vsel %vm2515, %v6343, %v5129
  %v6408 = vsel %vm2515, %v6344, %v5131
  %v6409 = vsel %vm2515, %v6345, %v5133
  %v6410 = vsel %vm2515, %v6346, %v5135
  %v6411 = vsel %vm2515, %v6347, %v5137
  %v6412 = vsel %vm2515, %v6348, %v5139
  %v6413 = vsel %vm2515, %v6349, %v5141
  %v6414 = vsel %vm2515, %v6350, %v5143
  %v6415 = vsel %vm2515, %v6351, %v5145
  %v6416 = vsel %vm2515, %v6352, %v5147
  %v6417 = vsel %vm2515, %v6353, %v5149
  %v6418 = vsel %vm2515, %v6354, %v5151
  %v6419 = vsel %vm2515, %v6355, %v5153
  %v6420 = vsel %vm2515, %v6356, %v5155
  %v6421 = vsel %vm2515, %v6357, %v5157
  %v6422 = vsel %vm2515, %v6358, %v5159
  %v6423 = vsel %vm2515, %v6359, %v5161
  %v6424 = vsel %vm2515, %v6360, %v5163
  %v6425 = vsel %vm2515, %v6361, %v5165
  %v6426 = vsel %vm2515, %v6362, %v5167
  %v6427 = vsel %vm2515, %v6363, %v5169
  %v6428 = vsel %vm2515, %v6364, %v5171
  %v6429 = vsel %vm2515, %v6365, %v5173
  %v6430 = vsel %vm2515, %v6366, %v5175
  %v6431 = vsel %vm2515, %v6367, %v5177
  %v6432 = vsel %vm2515, %v6368, %v5179
  %v6433 = vsel %vm2515, %v6369, %v5181
  %v6434 = vsel %vm2515, %v6370, %v5183
  %v6435 = vsel %vm2515, %v6371, %v5185
  %v6436 = vsel %vm2515, %v6372, %v5187
  %v6437 = vsel %vm2515, %v6373, %v5189
  %v6438 = vsel %vm2515, %v6374, %v5191
  %v6439 = vsel %vm2515, %v6375, %v5193
  %v6440 = vsel %vm2515, %v6376, %v5195
  %v6441 = vsel %vm2515, %v6377, %v5197
  %v6442 = vsel %vm2515, %v6378, %v5199
  %v6443 = vsel %vm2515, %v6379, %v5201
  %v6444 = vsel %vm2515, %v6380, %v5203
  %v6445 = vsel %vm2515, %v6381, %v5205
  %v6446 = vsel %vm2515, %v6382, %v5207
  %v6447 = vsel %vm2515, %v6383, %v5209
  %v6448 = vsel %vm2515, %v6384, %v5211
  %v6449 = vsel %vm2515, %v6385, %v5213
  %v6450 = vsel %vm2515, %v6386, %v5215
  %v6451 = vsel %vm2515, %v6387, %v5217
  %v6452 = vsel %vm2515, %v6388, %v5219
  %v6453 = vsel %vm2515, %v6389, %v5221
  %v6454 = vsel %vm2515, %v6390, %v5223
  %v6455 = vsel %vm2515, %v6391, %v5225
  %v6456 = vsel %vm2515, %v6392, %v5227
  %v6457 = vsel %vm2515, %v6393, %v5229
  %v6458 = vsel %vm2515, %v6394, %v5231
  %v6459 = vsel %vm2515, %v6395, %v5233
  %v6460 = vsel %vm2515, %v6396, %v5235
  %v6461 = vsel %vm2515, %v6397, %v5237
  %v6462 = vsel %vm2515, %v6398, %v5239
  %v6463 = vsel %vm2515, %v6399, %v5241
  %v6464 = vsel %vm2515, %v6400, %v5243
  %v6465 = vsel %vm2515, %v6401, %v5245
  %v6466 = vsel %vm2515, %v6402, %v5247
  %v6467 = vsel %vm2515, %v6403, %v5249
  %v6468 = vsel %vm2515, %v6404, %v5251
  %v6469 = vsel %vm2515, %v6405, %v5253
  %v6470 = vsel %vm2580, %v6406, %v5319
  %v6471 = vsel %vm2580, %v6407, %v5321
  %v6472 = vsel %vm2580, %v6408, %v5323
  %v6473 = vsel %vm2580, %v6409, %v5325
  %v6474 = vsel %vm2580, %v6410, %v5327
  %v6475 = vsel %vm2580, %v6411, %v5329
  %v6476 = vsel %vm2580, %v6412, %v5331
  %v6477 = vsel %vm2580, %v6413, %v5333
  %v6478 = vsel %vm2580, %v6414, %v5335
  %v6479 = vsel %vm2580, %v6415, %v5337
  %v6480 = vsel %vm2580, %v6416, %v5339
  %v6481 = vsel %vm2580, %v6417, %v5341
  %v6482 = vsel %vm2580, %v6418, %v5343
  %v6483 = vsel %vm2580, %v6419, %v5345
  %v6484 = vsel %vm2580, %v6420, %v5347
  %v6485 = vsel %vm2580, %v6421, %v5349
  %v6486 = vsel %vm2580, %v6422, %v5351
  %v6487 = vsel %vm2580, %v6423, %v5353
  %v6488 = vsel %vm2580, %v6424, %v5355
  %v6489 = vsel %vm2580, %v6425, %v5357
  %v6490 = vsel %vm2580, %v6426, %v5359
  %v6491 = vsel %vm2580, %v6427, %v5361
  %v6492 = vsel %vm2580, %v6428, %v5363
  %v6493 = vsel %vm2580, %v6429, %v5365
  %v6494 = vsel %vm2580, %v6430, %v5367
  %v6495 = vsel %vm2580, %v6431, %v5369
  %v6496 = vsel %vm2580, %v6432, %v5371
  %v6497 = vsel %vm2580, %v6433, %v5373
  %v6498 = vsel %vm2580, %v6434, %v5375
  %v6499 = vsel %vm2580, %v6435, %v5377
  %v6500 = vsel %vm2580, %v6436, %v5379
  %v6501 = vsel %vm2580, %v6437, %v5381
  %v6502 = vsel %vm2580, %v6438, %v5383
  %v6503 = vsel %vm2580, %v6439, %v5385
  %v6504 = vsel %vm2580, %v6440, %v5387
  %v6505 = vsel %vm2580, %v6441, %v5389
  %v6506 = vsel %vm2580, %v6442, %v5391
  %v6507 = vsel %vm2580, %v6443, %v5393
  %v6508 = vsel %vm2580, %v6444, %v5395
  %v6509 = vsel %vm2580, %v6445, %v5397
  %v6510 = vsel %vm2580, %v6446, %v5399
  %v6511 = vsel %vm2580, %v6447, %v5401
  %v6512 = vsel %vm2580, %v6448, %v5403
  %v6513 = vsel %vm2580, %v6449, %v5405
  %v6514 = vsel %vm2580, %v6450, %v5407
  %v6515 = vsel %vm2580, %v6451, %v5409
  %v6516 = vsel %vm2580, %v6452, %v5411
  %v6517 = vsel %vm2580, %v6453, %v5413
  %v6518 = vsel %vm2580, %v6454, %v5415
  %v6519 = vsel %vm2580, %v6455, %v5417
  %v6520 = vsel %vm2580, %v6456, %v5419
  %v6521 = vsel %vm2580, %v6457, %v5421
  %v6522 = vsel %vm2580, %v6458, %v5423
  %v6523 = vsel %vm2580, %v6459, %v5425
  %v6524 = vsel %vm2580, %v6460, %v5427
  %v6525 = vsel %vm2580, %v6461, %v5429
  %v6526 = vsel %vm2580, %v6462, %v5431
  %v6527 = vsel %vm2580, %v6463, %v5433
  %v6528 = vsel %vm2580, %v6464, %v5435
  %v6529 = vsel %vm2580, %v6465, %v5437
  %v6530 = vsel %vm2580, %v6466, %v5439
  %v6531 = vsel %vm2580, %v6467, %v5441
  %v6532 = vsel %vm2580, %v6468, %v5443
  %v6533 = vsel %vm2580, %v6469, %v5445
  %v6534 = vsel %vm2645, %v6470, %v5511
  %v6535 = vsel %vm2645, %v6471, %v5513
  %v6536 = vsel %vm2645, %v6472, %v5515
  %v6537 = vsel %vm2645, %v6473, %v5517
  %v6538 = vsel %vm2645, %v6474, %v5519
  %v6539 = vsel %vm2645, %v6475, %v5521
  %v6540 = vsel %vm2645, %v6476, %v5523
  %v6541 = vsel %vm2645, %v6477, %v5525
  %v6542 = vsel %vm2645, %v6478, %v5527
  %v6543 = vsel %vm2645, %v6479, %v5529
  %v6544 = vsel %vm2645, %v6480, %v5531
  %v6545 = vsel %vm2645, %v6481, %v5533
  %v6546 = vsel %vm2645, %v6482, %v5535
  %v6547 = vsel %vm2645, %v6483, %v5537
  %v6548 = vsel %vm2645, %v6484, %v5539
  %v6549 = vsel %vm2645, %v6485, %v5541
  %v6550 = vsel %vm2645, %v6486, %v5543
  %v6551 = vsel %vm2645, %v6487, %v5545
  %v6552 = vsel %vm2645, %v6488, %v5547
  %v6553 = vsel %vm2645, %v6489, %v5549
  %v6554 = vsel %vm2645, %v6490, %v5551
  %v6555 = vsel %vm2645, %v6491, %v5553
  %v6556 = vsel %vm2645, %v6492, %v5555
  %v6557 = vsel %vm2645, %v6493, %v5557
  %v6558 = vsel %vm2645, %v6494, %v5559
  %v6559 = vsel %vm2645, %v6495, %v5561
  %v6560 = vsel %vm2645, %v6496, %v5563
  %v6561 = vsel %vm2645, %v6497, %v5565
  %v6562 = vsel %vm2645, %v6498, %v5567
  %v6563 = vsel %vm2645, %v6499, %v5569
  %v6564 = vsel %vm2645, %v6500, %v5571
  %v6565 = vsel %vm2645, %v6501, %v5573
  %v6566 = vsel %vm2645, %v6502, %v5575
  %v6567 = vsel %vm2645, %v6503, %v5577
  %v6568 = vsel %vm2645, %v6504, %v5579
  %v6569 = vsel %vm2645, %v6505, %v5581
  %v6570 = vsel %vm2645, %v6506, %v5583
  %v6571 = vsel %vm2645, %v6507, %v5585
  %v6572 = vsel %vm2645, %v6508, %v5587
  %v6573 = vsel %vm2645, %v6509, %v5589
  %v6574 = vsel %vm2645, %v6510, %v5591
  %v6575 = vsel %vm2645, %v6511, %v5593
  %v6576 = vsel %vm2645, %v6512, %v5595
  %v6577 = vsel %vm2645, %v6513, %v5597
  %v6578 = vsel %vm2645, %v6514, %v5599
  %v6579 = vsel %vm2645, %v6515, %v5601
  %v6580 = vsel %vm2645, %v6516, %v5603
  %v6581 = vsel %vm2645, %v6517, %v5605
  %v6582 = vsel %vm2645, %v6518, %v5607
  %v6583 = vsel %vm2645, %v6519, %v5609
  %v6584 = vsel %vm2645, %v6520, %v5611
  %v6585 = vsel %vm2645, %v6521, %v5613
  %v6586 = vsel %vm2645, %v6522, %v5615
  %v6587 = vsel %vm2645, %v6523, %v5617
  %v6588 = vsel %vm2645, %v6524, %v5619
  %v6589 = vsel %vm2645, %v6525, %v5621
  %v6590 = vsel %vm2645, %v6526, %v5623
  %v6591 = vsel %vm2645, %v6527, %v5625
  %v6592 = vsel %vm2645, %v6528, %v5627
  %v6593 = vsel %vm2645, %v6529, %v5629
  %v6594 = vsel %vm2645, %v6530, %v5631
  %v6595 = vsel %vm2645, %v6531, %v5633
  %v6596 = vsel %vm2645, %v6532, %v5635
  %v6597 = vsel %vm2645, %v6533, %v5637
  %v6598 = vsel %vm2710, %v6534, %v5703
  %v6599 = vsel %vm2710, %v6535, %v5705
  %v6600 = vsel %vm2710, %v6536, %v5707
  %v6601 = vsel %vm2710, %v6537, %v5709
  %v6602 = vsel %vm2710, %v6538, %v5711
  %v6603 = vsel %vm2710, %v6539, %v5713
  %v6604 = vsel %vm2710, %v6540, %v5715
  %v6605 = vsel %vm2710, %v6541, %v5717
  %v6606 = vsel %vm2710, %v6542, %v5719
  %v6607 = vsel %vm2710, %v6543, %v5721
  %v6608 = vsel %vm2710, %v6544, %v5723
  %v6609 = vsel %vm2710, %v6545, %v5725
  %v6610 = vsel %vm2710, %v6546, %v5727
  %v6611 = vsel %vm2710, %v6547, %v5729
  %v6612 = vsel %vm2710, %v6548, %v5731
  %v6613 = vsel %vm2710, %v6549, %v5733
  %v6614 = vsel %vm2710, %v6550, %v5735
  %v6615 = vsel %vm2710, %v6551, %v5737
  %v6616 = vsel %vm2710, %v6552, %v5739
  %v6617 = vsel %vm2710, %v6553, %v5741
  %v6618 = vsel %vm2710, %v6554, %v5743
  %v6619 = vsel %vm2710, %v6555, %v5745
  %v6620 = vsel %vm2710, %v6556, %v5747
  %v6621 = vsel %vm2710, %v6557, %v5749
  %v6622 = vsel %vm2710, %v6558, %v5751
  %v6623 = vsel %vm2710, %v6559, %v5753
  %v6624 = vsel %vm2710, %v6560, %v5755
  %v6625 = vsel %vm2710, %v6561, %v5757
  %v6626 = vsel %vm2710, %v6562, %v5759
  %v6627 = vsel %vm2710, %v6563, %v5761
  %v6628 = vsel %vm2710, %v6564, %v5763
  %v6629 = vsel %vm2710, %v6565, %v5765
  %v6630 = vsel %vm2710, %v6566, %v5767
  %v6631 = vsel %vm2710, %v6567, %v5769
  %v6632 = vsel %vm2710, %v6568, %v5771
  %v6633 = vsel %vm2710, %v6569, %v5773
  %v6634 = vsel %vm2710, %v6570, %v5775
  %v6635 = vsel %vm2710, %v6571, %v5777
  %v6636 = vsel %vm2710, %v6572, %v5779
  %v6637 = vsel %vm2710, %v6573, %v5781
  %v6638 = vsel %vm2710, %v6574, %v5783
  %v6639 = vsel %vm2710, %v6575, %v5785
  %v6640 = vsel %vm2710, %v6576, %v5787
  %v6641 = vsel %vm2710, %v6577, %v5789
  %v6642 = vsel %vm2710, %v6578, %v5791
  %v6643 = vsel %vm2710, %v6579, %v5793
  %v6644 = vsel %vm2710, %v6580, %v5795
  %v6645 = vsel %vm2710, %v6581, %v5797
  %v6646 = vsel %vm2710, %v6582, %v5799
  %v6647 = vsel %vm2710, %v6583, %v5801
  %v6648 = vsel %vm2710, %v6584, %v5803
  %v6649 = vsel %vm2710, %v6585, %v5805
  %v6650 = vsel %vm2710, %v6586, %v5807
  %v6651 = vsel %vm2710, %v6587, %v5809
  %v6652 = vsel %vm2710, %v6588, %v5811
  %v6653 = vsel %vm2710, %v6589, %v5813
  %v6654 = vsel %vm2710, %v6590, %v5815
  %v6655 = vsel %vm2710, %v6591, %v5817
  %v6656 = vsel %vm2710, %v6592, %v5819
  %v6657 = vsel %vm2710, %v6593, %v5821
  %v6658 = vsel %vm2710, %v6594, %v5823
  %v6659 = vsel %vm2710, %v6595, %v5825
  %v6660 = vsel %vm2710, %v6596, %v5827
  %v6661 = vsel %vm2710, %v6597, %v5829
  %v6662 = vsel %vm2775, %v6598, %v5895
  %v6663 = vsel %vm2775, %v6599, %v5897
  %v6664 = vsel %vm2775, %v6600, %v5899
  %v6665 = vsel %vm2775, %v6601, %v5901
  %v6666 = vsel %vm2775, %v6602, %v5903
  %v6667 = vsel %vm2775, %v6603, %v5905
  %v6668 = vsel %vm2775, %v6604, %v5907
  %v6669 = vsel %vm2775, %v6605, %v5909
  %v6670 = vsel %vm2775, %v6606, %v5911
  %v6671 = vsel %vm2775, %v6607, %v5913
  %v6672 = vsel %vm2775, %v6608, %v5915
  %v6673 = vsel %vm2775, %v6609, %v5917
  %v6674 = vsel %vm2775, %v6610, %v5919
  %v6675 = vsel %vm2775, %v6611, %v5921
  %v6676 = vsel %vm2775, %v6612, %v5923
  %v6677 = vsel %vm2775, %v6613, %v5925
  %v6678 = vsel %vm2775, %v6614, %v5927
  %v6679 = vsel %vm2775, %v6615, %v5929
  %v6680 = vsel %vm2775, %v6616, %v5931
  %v6681 = vsel %vm2775, %v6617, %v5933
  %v6682 = vsel %vm2775, %v6618, %v5935
  %v6683 = vsel %vm2775, %v6619, %v5937
  %v6684 = vsel %vm2775, %v6620, %v5939
  %v6685 = vsel %vm2775, %v6621, %v5941
  %v6686 = vsel %vm2775, %v6622, %v5943
  %v6687 = vsel %vm2775, %v6623, %v5945
  %v6688 = vsel %vm2775, %v6624, %v5947
  %v6689 = vsel %vm2775, %v6625, %v5949
  %v6690 = vsel %vm2775, %v6626, %v5951
  %v6691 = vsel %vm2775, %v6627, %v5953
  %v6692 = vsel %vm2775, %v6628, %v5955
  %v6693 = vsel %vm2775, %v6629, %v5957
  %v6694 = vsel %vm2775, %v6630, %v5959
  %v6695 = vsel %vm2775, %v6631, %v5961
  %v6696 = vsel %vm2775, %v6632, %v5963
  %v6697 = vsel %vm2775, %v6633, %v5965
  %v6698 = vsel %vm2775, %v6634, %v5967
  %v6699 = vsel %vm2775, %v6635, %v5969
  %v6700 = vsel %vm2775, %v6636, %v5971
  %v6701 = vsel %vm2775, %v6637, %v5973
  %v6702 = vsel %vm2775, %v6638, %v5975
  %v6703 = vsel %vm2775, %v6639, %v5977
  %v6704 = vsel %vm2775, %v6640, %v5979
  %v6705 = vsel %vm2775, %v6641, %v5981
  %v6706 = vsel %vm2775, %v6642, %v5983
  %v6707 = vsel %vm2775, %v6643, %v5985
  %v6708 = vsel %vm2775, %v6644, %v5987
  %v6709 = vsel %vm2775, %v6645, %v5989
  %v6710 = vsel %vm2775, %v6646, %v5991
  %v6711 = vsel %vm2775, %v6647, %v5993
  %v6712 = vsel %vm2775, %v6648, %v5995
  %v6713 = vsel %vm2775, %v6649, %v5997
  %v6714 = vsel %vm2775, %v6650, %v5999
  %v6715 = vsel %vm2775, %v6651, %v6001
  %v6716 = vsel %vm2775, %v6652, %v6003
  %v6717 = vsel %vm2775, %v6653, %v6005
  %v6718 = vsel %vm2775, %v6654, %v6007
  %v6719 = vsel %vm2775, %v6655, %v6009
  %v6720 = vsel %vm2775, %v6656, %v6011
  %v6721 = vsel %vm2775, %v6657, %v6013
  %v6722 = vsel %vm2775, %v6658, %v6015
  %v6723 = vsel %vm2775, %v6659, %v6017
  %v6724 = vsel %vm2775, %v6660, %v6019
  %v6725 = vsel %vm2775, %v6661, %v6021
  %v6726 = vsel %vm2840, %v6662, %v6087
  %v6727 = vsel %vm2840, %v6663, %v6089
  %v6728 = vsel %vm2840, %v6664, %v6091
  %v6729 = vsel %vm2840, %v6665, %v6093
  %v6730 = vsel %vm2840, %v6666, %v6095
  %v6731 = vsel %vm2840, %v6667, %v6097
  %v6732 = vsel %vm2840, %v6668, %v6099
  %v6733 = vsel %vm2840, %v6669, %v6101
  %v6734 = vsel %vm2840, %v6670, %v6103
  %v6735 = vsel %vm2840, %v6671, %v6105
  %v6736 = vsel %vm2840, %v6672, %v6107
  %v6737 = vsel %vm2840, %v6673, %v6109
  %v6738 = vsel %vm2840, %v6674, %v6111
  %v6739 = vsel %vm2840, %v6675, %v6113
  %v6740 = vsel %vm2840, %v6676, %v6115
  %v6741 = vsel %vm2840, %v6677, %v6117
  %v6742 = vsel %vm2840, %v6678, %v6119
  %v6743 = vsel %vm2840, %v6679, %v6121
  %v6744 = vsel %vm2840, %v6680, %v6123
  %v6745 = vsel %vm2840, %v6681, %v6125
  %v6746 = vsel %vm2840, %v6682, %v6127
  %v6747 = vsel %vm2840, %v6683, %v6129
  %v6748 = vsel %vm2840, %v6684, %v6131
  %v6749 = vsel %vm2840, %v6685, %v6133
  %v6750 = vsel %vm2840, %v6686, %v6135
  %v6751 = vsel %vm2840, %v6687, %v6137
  %v6752 = vsel %vm2840, %v6688, %v6139
  %v6753 = vsel %vm2840, %v6689, %v6141
  %v6754 = vsel %vm2840, %v6690, %v6143
  %v6755 = vsel %vm2840, %v6691, %v6145
  %v6756 = vsel %vm2840, %v6692, %v6147
  %v6757 = vsel %vm2840, %v6693, %v6149
  %v6758 = vsel %vm2840, %v6694, %v6151
  %v6759 = vsel %vm2840, %v6695, %v6153
  %v6760 = vsel %vm2840, %v6696, %v6155
  %v6761 = vsel %vm2840, %v6697, %v6157
  %v6762 = vsel %vm2840, %v6698, %v6159
  %v6763 = vsel %vm2840, %v6699, %v6161
  %v6764 = vsel %vm2840, %v6700, %v6163
  %v6765 = vsel %vm2840, %v6701, %v6165
  %v6766 = vsel %vm2840, %v6702, %v6167
  %v6767 = vsel %vm2840, %v6703, %v6169
  %v6768 = vsel %vm2840, %v6704, %v6171
  %v6769 = vsel %vm2840, %v6705, %v6173
  %v6770 = vsel %vm2840, %v6706, %v6175
  %v6771 = vsel %vm2840, %v6707, %v6177
  %v6772 = vsel %vm2840, %v6708, %v6179
  %v6773 = vsel %vm2840, %v6709, %v6181
  %v6774 = vsel %vm2840, %v6710, %v6183
  %v6775 = vsel %vm2840, %v6711, %v6185
  %v6776 = vsel %vm2840, %v6712, %v6187
  %v6777 = vsel %vm2840, %v6713, %v6189
  %v6778 = vsel %vm2840, %v6714, %v6191
  %v6779 = vsel %vm2840, %v6715, %v6193
  %v6780 = vsel %vm2840, %v6716, %v6195
  %v6781 = vsel %vm2840, %v6717, %v6197
  %v6782 = vsel %vm2840, %v6718, %v6199
  %v6783 = vsel %vm2840, %v6719, %v6201
  %v6784 = vsel %vm2840, %v6720, %v6203
  %v6785 = vsel %vm2840, %v6721, %v6205
  %v6786 = vsel %vm2840, %v6722, %v6207
  %v6787 = vsel %vm2840, %v6723, %v6209
  %v6788 = vsel %vm2840, %v6724, %v6211
  %v6789 = vsel %vm2840, %v6725, %v6213
  %v6791 = vsel %vm2905, %v6726, 0
  %v6794 = vsel %vm2905, %v6727, 0
  %v6797 = vsel %vm2905, %v6728, 0
  %v6800 = vsel %vm2905, %v6729, 0
  %v6803 = vsel %vm2905, %v6730, 0
  %v6806 = vsel %vm2905, %v6731, 0
  %v6809 = vsel %vm2905, %v6732, 0
  %v6812 = vsel %vm2905, %v6733, 0
  %v6815 = vsel %vm2905, %v6734, 0
  %v6818 = vsel %vm2905, %v6735, 0
  %v6821 = vsel %vm2905, %v6736, 0
  %v6824 = vsel %vm2905, %v6737, 0
  %v6827 = vsel %vm2905, %v6738, 0
  %v6830 = vsel %vm2905, %v6739, 0
  %v6833 = vsel %vm2905, %v6740, 0
  %v6836 = vsel %vm2905, %v6741, 0
  %v6839 = vsel %vm2905, %v6742, 0
  %v6842 = vsel %vm2905, %v6743, 0
  %v6845 = vsel %vm2905, %v6744, 0
  %v6848 = vsel %vm2905, %v6745, 0
  %v6851 = vsel %vm2905, %v6746, 0
  %v6854 = vsel %vm2905, %v6747, 0
  %v6857 = vsel %vm2905, %v6748, 0
  %v6860 = vsel %vm2905, %v6749, 0
  %v6863 = vsel %vm2905, %v6750, 0
  %v6866 = vsel %vm2905, %v6751, 0
  %v6869 = vsel %vm2905, %v6752, 0
  %v6872 = vsel %vm2905, %v6753, 0
  %v6875 = vsel %vm2905, %v6754, 0
  %v6878 = vsel %vm2905, %v6755, 0
  %v6881 = vsel %vm2905, %v6756, 0
  %v6884 = vsel %vm2905, %v6757, 0
  %v6887 = vsel %vm2905, %v6758, 0
  %v6890 = vsel %vm2905, %v6759, 0
  %v6893 = vsel %vm2905, %v6760, 0
  %v6896 = vsel %vm2905, %v6761, 0
  %v6899 = vsel %vm2905, %v6762, 0
  %v6902 = vsel %vm2905, %v6763, 0
  %v6905 = vsel %vm2905, %v6764, 0
  %v6908 = vsel %vm2905, %v6765, 0
  %v6911 = vsel %vm2905, %v6766, 0
  %v6914 = vsel %vm2905, %v6767, 0
  %v6917 = vsel %vm2905, %v6768, 0
  %v6920 = vsel %vm2905, %v6769, 0
  %v6923 = vsel %vm2905, %v6770, 0
  %v6926 = vsel %vm2905, %v6771, 0
  %v6929 = vsel %vm2905, %v6772, 0
  %v6932 = vsel %vm2905, %v6773, 0
  %v6935 = vsel %vm2905, %v6774, 0
  %v6938 = vsel %vm2905, %v6775, 0
  %v6941 = vsel %vm2905, %v6776, 0
  %v6944 = vsel %vm2905, %v6777, 0
  %v6947 = vsel %vm2905, %v6778, 0
  %v6950 = vsel %vm2905, %v6779, 0
  %v6953 = vsel %vm2905, %v6780, 0
  %v6956 = vsel %vm2905, %v6781, 0
  %v6959 = vsel %vm2905, %v6782, 0
  %v6962 = vsel %vm2905, %v6783, 0
  %v6965 = vsel %vm2905, %v6784, 0
  %v6968 = vsel %vm2905, %v6785, 0
  %v6971 = vsel %vm2905, %v6786, 0
  %v6974 = vsel %vm2905, %v6787, 0
  %v6977 = vsel %vm2905, %v6788, 0
  %v6980 = vsel %vm2905, %v6789, 0
  %v6983 = vsel %vm3098, %v4163, 0
  %6985 = vmatprep.subr.mxu0 0.0
  %6986 = vmatpush1.msra.mxu0 %v4159
  %6987 = vmatprep.subr.mxu0 0.0
  %6988 = vmatpush1.msra.mxu0 %v4160
  %6989 = vmatprep.subr.mxu0 0.0
  %6990 = vmatpush1.msra.mxu0 %v4161
  %6991 = vmatprep.subr.mxu0 0.0
  %6992 = vmatpush1.msra.mxu0 %v4162
  %6993 = vmatprep.subr.mxu0 0.0
  %6994 = vmatpush1.msra.mxu0 %v6983
  %6995 = vmatprep.subr.mxu0 0.0
  %6996 = vmatpush1.msra.mxu0 0.0
  %6997 = vmatprep.subr.mxu0 0.0
  %6998 = vmatpush1.msra.mxu0 0.0
  %6999 = vmatprep.subr.mxu0 0.0
  %7000 = vmatpush1.msra.mxu0 0.0
  %7001 = vmatprep.subr.mxu0 0.0
  %7002 = vmatpush1.msra.mxu0 0.0
  %7003 = vmatprep.subr.mxu0 0.0
  %7004 = vmatpush1.msra.mxu0 0.0
  %7005 = vmatprep.subr.mxu0 0.0
  %7006 = vmatpush1.msra.mxu0 0.0
  %7007 = vmatprep.subr.mxu0 0.0
  %7008 = vmatpush1.msra.mxu0 0.0
  %7009 = vmatprep.subr.mxu0 0.0
  %7010 = vmatpush1.msra.mxu0 0.0
  %7011 = vmatprep.subr.mxu0 0.0
  %7012 = vmatpush1.msra.mxu0 0.0
  %7013 = vmatprep.subr.mxu0 0.0
  %7014 = vmatpush1.msra.mxu0 0.0
  %7015 = vmatprep.subr.mxu0 0.0
  %7016 = vmatpush1.msra.mxu0 0.0
  %7017 = vmatprep.subr.mxu0 0.0
  %7018 = vmatpush1.msra.mxu0 0.0
  %7019 = vmatprep.subr.mxu0 0.0
  %7020 = vmatpush1.msra.mxu0 0.0
  %7021 = vmatprep.subr.mxu0 0.0
  %7022 = vmatpush1.msra.mxu0 0.0
  %7023 = vmatprep.subr.mxu0 0.0
  %7024 = vmatpush1.msra.mxu0 0.0
  %7025 = vmatprep.subr.mxu0 0.0
  %7026 = vmatpush1.msra.mxu0 0.0
  %7027 = vmatprep.subr.mxu0 0.0
  %7028 = vmatpush1.msra.mxu0 0.0
  %7029 = vmatprep.subr.mxu0 0.0
  %7030 = vmatpush1.msra.mxu0 0.0
  %7031 = vmatprep.subr.mxu0 0.0
  %7032 = vmatpush1.msra.mxu0 0.0
  %7033 = vmatprep.subr.mxu0 0.0
  %7034 = vmatpush1.msra.mxu0 0.0
  %7035 = vmatprep.subr.mxu0 0.0
  %7036 = vmatpush1.msra.mxu0 0.0
  %7037 = vmatprep.subr.mxu0 0.0
  %7038 = vmatpush1.msra.mxu0 0.0
  %7039 = vmatprep.subr.mxu0 0.0
  %7040 = vmatpush1.msra.mxu0 0.0
  %7041 = vmatprep.subr.mxu0 0.0
  %7042 = vmatpush1.msra.mxu0 0.0
  %7043 = vmatprep.subr.mxu0 0.0
  %7044 = vmatpush1.msra.mxu0 0.0
  %7045 = vmatprep.subr.mxu0 0.0
  %7046 = vmatpush1.msra.mxu0 0.0
  %7047 = vmatprep.subr.mxu0 0.0
  %7048 = vmatpush1.msra.mxu0 0.0
  %7049 = vmatprep.mubr.f32.mxu0 0.0
  %7050 = vmatmul.mubr.f32.gmra.mrb[0].mxu0 %v6791
  %v7051 = vpop.f32.mrb[0].mxu0
  %v7052 = vadd.f32 0.0, %v7051
  %v7053 = vpop.f32.mrb[0].mxu0
  %7054 = vmatprep.mubr.f32.mxu0 0.0
  %7055 = vmatmul.mubr.f32.gmra.mrb[0].mxu0 %v6794
  %v7056 = vpop.f32.mrb[0].mxu0
  %v7057 = vadd.f32 0.0, %v7056
  %v7058 = vpop.f32.mrb[0].mxu0
  %7059 = vmatprep.mubr.f32.mxu0 0.0
  %7060 = vmatmul.mubr.f32.gmra.mrb[0].mxu0 %v6797
  %v7061 = vpop.f32.mrb[0].mxu0
  %v7062 = vadd.f32 0.0, %v7061
  %v7063 = vpop.f32.mrb[0].mxu0
  %7064 = vmatprep.mubr.f32.mxu0 0.0
  %7065 = vmatmul.mubr.f32.gmra.mrb[0].mxu0 %v6800
  %v7066 = vpop.f32.mrb[0].mxu0
  %v7067 = vadd.f32 0.0, %v7066
  %v7068 = vpop.f32.mrb[0].mxu0
  %7069 = vmatprep.mubr.f32.mxu0 0.0
  %7070 = vmatmul.mubr.f32.gmra.mrb[0].mxu0 %v6803
  %v7071 = vpop.f32.mrb[0].mxu0
  %v7072 = vadd.f32 0.0, %v7071
  %v7073 = vpop.f32.mrb[0].mxu0
  %7074 = vmatprep.mubr.f32.mxu0 0.0
  %7075 = vmatmul.mubr.f32.gmra.mrb[0].mxu0 %v6806
  %v7076 = vpop.f32.mrb[0].mxu0
  %v7077 = vadd.f32 0.0, %v7076
  %v7078 = vpop.f32.mrb[0].mxu0
  %7079 = vmatprep.mubr.f32.mxu0 0.0
  %7080 = vmatmul.mubr.f32.gmra.mrb[0].mxu0 %v6809
  %v7081 = vpop.f32.mrb[0].mxu0
  %v7082 = vadd.f32 0.0, %v7081
  %v7083 = vpop.f32.mrb[0].mxu0
  %7084 = vmatprep.mubr.f32.mxu0 0.0
  %7085 = vmatmul.mubr.f32.gmra.mrb[0].mxu0 %v6812
  %v7086 = vpop.f32.mrb[0].mxu0
  %v7087 = vadd.f32 0.0, %v7086
  %v7088 = vpop.f32.mrb[0].mxu0
  %7089 = vmatprep.mubr.f32.mxu0 0.0
  %7090 = vmatmul.mubr.f32.gmra.mrb[0].mxu0 %v6815
  %v7091 = vpop.f32.mrb[0].mxu0
  %v7092 = vadd.f32 0.0, %v7091
  %v7093 = vpop.f32.mrb[0].mxu0
  %7094 = vmatprep.mubr.f32.mxu0 0.0
  %7095 = vmatmul.mubr.f32.gmra.mrb[0].mxu0 %v6818
  %v7096 = vpop.f32.mrb[0].mxu0
  %v7097 = vadd.f32 0.0, %v7096
  %v7098 = vpop.f32.mrb[0].mxu0
  %7099 = vmatprep.mubr.f32.mxu0 0.0
  %7100 = vmatmul.mubr.f32.gmra.mrb[0].mxu0 %v6821
  %v7101 = vpop.f32.mrb[0].mxu0
  %v7102 = vadd.f32 0.0, %v7101
  %v7103 = vpop.f32.mrb[0].mxu0
  %7104 = vmatprep.mubr.f32.mxu0 0.0
  %7105 = vmatmul.mubr.f32.gmra.mrb[0].mxu0 %v6824
  %v7106 = vpop.f32.mrb[0].mxu0
  %v7107 = vadd.f32 0.0, %v7106
  %v7108 = vpop.f32.mrb[0].mxu0
  %7109 = vmatprep.mubr.f32.mxu0 0.0
  %7110 = vmatmul.mubr.f32.gmra.mrb[0].mxu0 %v6827
  %v7111 = vpop.f32.mrb[0].mxu0
  %v7112 = vadd.f32 0.0, %v7111
  %v7113 = vpop.f32.mrb[0].mxu0
  %7114 = vmatprep.mubr.f32.mxu0 0.0
  %7115 = vmatmul.mubr.f32.gmra.mrb[0].mxu0 %v6830
  %v7116 = vpop.f32.mrb[0].mxu0
  %v7117 = vadd.f32 0.0, %v7116
  %v7118 = vpop.f32.mrb[0].mxu0
  %7119 = vmatprep.mubr.f32.mxu0 0.0
  %7120 = vmatmul.mubr.f32.gmra.mrb[0].mxu0 %v6833
  %v7121 = vpop.f32.mrb[0].mxu0
  %v7122 = vadd.f32 0.0, %v7121
  %v7123 = vpop.f32.mrb[0].mxu0
  %7124 = vmatprep.mubr.f32.mxu0 0.0
  %7125 = vmatmul.mubr.f32.gmra.mrb[0].mxu0 %v6836
  %v7126 = vpop.f32.mrb[0].mxu0
  %v7127 = vadd.f32 0.0, %v7126
  %v7128 = vpop.f32.mrb[0].mxu0
  %7129 = vmatprep.mubr.f32.mxu0 0.0
  %7130 = vmatmul.mubr.f32.gmra.mrb[0].mxu0 %v6839
  %v7131 = vpop.f32.mrb[0].mxu0
  %v7132 = vadd.f32 0.0, %v7131
  %v7133 = vpop.f32.mrb[0].mxu0
  %7134 = vmatprep.mubr.f32.mxu0 0.0
  %7135 = vmatmul.mubr.f32.gmra.mrb[0].mxu0 %v6842
  %v7136 = vpop.f32.mrb[0].mxu0
  %v7137 = vadd.f32 0.0, %v7136
  %v7138 = vpop.f32.mrb[0].mxu0
  %7139 = vmatprep.mubr.f32.mxu0 0.0
  %7140 = vmatmul.mubr.f32.gmra.mrb[0].mxu0 %v6845
  %v7141 = vpop.f32.mrb[0].mxu0
  %v7142 = vadd.f32 0.0, %v7141
  %v7143 = vpop.f32.mrb[0].mxu0
  %7144 = vmatprep.mubr.f32.mxu0 0.0
  %7145 = vmatmul.mubr.f32.gmra.mrb[0].mxu0 %v6848
  %v7146 = vpop.f32.mrb[0].mxu0
  %v7147 = vadd.f32 0.0, %v7146
  %v7148 = vpop.f32.mrb[0].mxu0
  %7149 = vmatprep.mubr.f32.mxu0 0.0
  %7150 = vmatmul.mubr.f32.gmra.mrb[0].mxu0 %v6851
  %v7151 = vpop.f32.mrb[0].mxu0
  %v7152 = vadd.f32 0.0, %v7151
  %v7153 = vpop.f32.mrb[0].mxu0
  %7154 = vmatprep.mubr.f32.mxu0 0.0
  %7155 = vmatmul.mubr.f32.gmra.mrb[0].mxu0 %v6854
  %v7156 = vpop.f32.mrb[0].mxu0
  %v7157 = vadd.f32 0.0, %v7156
  %v7158 = vpop.f32.mrb[0].mxu0
  %7159 = vmatprep.mubr.f32.mxu0 0.0
  %7160 = vmatmul.mubr.f32.gmra.mrb[0].mxu0 %v6857
  %v7161 = vpop.f32.mrb[0].mxu0
  %v7162 = vadd.f32 0.0, %v7161
  %v7163 = vpop.f32.mrb[0].mxu0
  %7164 = vmatprep.mubr.f32.mxu0 0.0
  %7165 = vmatmul.mubr.f32.gmra.mrb[0].mxu0 %v6860
  %v7166 = vpop.f32.mrb[0].mxu0
  %v7167 = vadd.f32 0.0, %v7166
  %v7168 = vpop.f32.mrb[0].mxu0
  %7169 = vmatprep.mubr.f32.mxu0 0.0
  %7170 = vmatmul.mubr.f32.gmra.mrb[0].mxu0 %v6863
  %v7171 = vpop.f32.mrb[0].mxu0
  %v7172 = vadd.f32 0.0, %v7171
  %v7173 = vpop.f32.mrb[0].mxu0
  %7174 = vmatprep.mubr.f32.mxu0 0.0
  %7175 = vmatmul.mubr.f32.gmra.mrb[0].mxu0 %v6866
  %v7176 = vpop.f32.mrb[0].mxu0
  %v7177 = vadd.f32 0.0, %v7176
  %v7178 = vpop.f32.mrb[0].mxu0
  %7179 = vmatprep.mubr.f32.mxu0 0.0
  %7180 = vmatmul.mubr.f32.gmra.mrb[0].mxu0 %v6869
  %v7181 = vpop.f32.mrb[0].mxu0
  %v7182 = vadd.f32 0.0, %v7181
  %v7183 = vpop.f32.mrb[0].mxu0
  %7184 = vmatprep.mubr.f32.mxu0 0.0
  %7185 = vmatmul.mubr.f32.gmra.mrb[0].mxu0 %v6872
  %v7186 = vpop.f32.mrb[0].mxu0
  %v7187 = vadd.f32 0.0, %v7186
  %v7188 = vpop.f32.mrb[0].mxu0
  %7189 = vmatprep.mubr.f32.mxu0 0.0
  %7190 = vmatmul.mubr.f32.gmra.mrb[0].mxu0 %v6875
  %v7191 = vpop.f32.mrb[0].mxu0
  %v7192 = vadd.f32 0.0, %v7191
  %v7193 = vpop.f32.mrb[0].mxu0
  %7194 = vmatprep.mubr.f32.mxu0 0.0
  %7195 = vmatmul.mubr.f32.gmra.mrb[0].mxu0 %v6878
  %v7196 = vpop.f32.mrb[0].mxu0
  %v7197 = vadd.f32 0.0, %v7196
  %v7198 = vpop.f32.mrb[0].mxu0
  %7199 = vmatprep.mubr.f32.mxu0 0.0
  %7200 = vmatmul.mubr.f32.gmra.mrb[0].mxu0 %v6881
  %v7201 = vpop.f32.mrb[0].mxu0
  %v7202 = vadd.f32 0.0, %v7201
  %v7203 = vpop.f32.mrb[0].mxu0
  %7204 = vmatprep.mubr.f32.mxu0 0.0
  %7205 = vmatmul.mubr.f32.gmra.mrb[0].mxu0 %v6884
  %v7206 = vpop.f32.mrb[0].mxu0
  %v7207 = vadd.f32 0.0, %v7206
  %v7208 = vpop.f32.mrb[0].mxu0
  %7209 = vmatprep.mubr.f32.mxu0 0.0
  %7210 = vmatmul.mubr.f32.gmra.mrb[0].mxu0 %v6887
  %v7211 = vpop.f32.mrb[0].mxu0
  %v7212 = vadd.f32 0.0, %v7211
  %v7213 = vpop.f32.mrb[0].mxu0
  %7214 = vmatprep.mubr.f32.mxu0 0.0
  %7215 = vmatmul.mubr.f32.gmra.mrb[0].mxu0 %v6890
  %v7216 = vpop.f32.mrb[0].mxu0
  %v7217 = vadd.f32 0.0, %v7216
  %v7218 = vpop.f32.mrb[0].mxu0
  %7219 = vmatprep.mubr.f32.mxu0 0.0
  %7220 = vmatmul.mubr.f32.gmra.mrb[0].mxu0 %v6893
  %v7221 = vpop.f32.mrb[0].mxu0
  %v7222 = vadd.f32 0.0, %v7221
  %v7223 = vpop.f32.mrb[0].mxu0
  %7224 = vmatprep.mubr.f32.mxu0 0.0
  %7225 = vmatmul.mubr.f32.gmra.mrb[0].mxu0 %v6896
  %v7226 = vpop.f32.mrb[0].mxu0
  %v7227 = vadd.f32 0.0, %v7226
  %v7228 = vpop.f32.mrb[0].mxu0
  %7229 = vmatprep.mubr.f32.mxu0 0.0
  %7230 = vmatmul.mubr.f32.gmra.mrb[0].mxu0 %v6899
  %v7231 = vpop.f32.mrb[0].mxu0
  %v7232 = vadd.f32 0.0, %v7231
  %v7233 = vpop.f32.mrb[0].mxu0
  %7234 = vmatprep.mubr.f32.mxu0 0.0
  %7235 = vmatmul.mubr.f32.gmra.mrb[0].mxu0 %v6902
  %v7236 = vpop.f32.mrb[0].mxu0
  %v7237 = vadd.f32 0.0, %v7236
  %v7238 = vpop.f32.mrb[0].mxu0
  %7239 = vmatprep.mubr.f32.mxu0 0.0
  %7240 = vmatmul.mubr.f32.gmra.mrb[0].mxu0 %v6905
  %v7241 = vpop.f32.mrb[0].mxu0
  %v7242 = vadd.f32 0.0, %v7241
  %v7243 = vpop.f32.mrb[0].mxu0
  %7244 = vmatprep.mubr.f32.mxu0 0.0
  %7245 = vmatmul.mubr.f32.gmra.mrb[0].mxu0 %v6908
  %v7246 = vpop.f32.mrb[0].mxu0
  %v7247 = vadd.f32 0.0, %v7246
  %v7248 = vpop.f32.mrb[0].mxu0
  %7249 = vmatprep.mubr.f32.mxu0 0.0
  %7250 = vmatmul.mubr.f32.gmra.mrb[0].mxu0 %v6911
  %v7251 = vpop.f32.mrb[0].mxu0
  %v7252 = vadd.f32 0.0, %v7251
  %v7253 = vpop.f32.mrb[0].mxu0
  %7254 = vmatprep.mubr.f32.mxu0 0.0
  %7255 = vmatmul.mubr.f32.gmra.mrb[0].mxu0 %v6914
  %v7256 = vpop.f32.mrb[0].mxu0
  %v7257 = vadd.f32 0.0, %v7256
  %v7258 = vpop.f32.mrb[0].mxu0
  %7259 = vmatprep.mubr.f32.mxu0 0.0
  %7260 = vmatmul.mubr.f32.gmra.mrb[0].mxu0 %v6917
  %v7261 = vpop.f32.mrb[0].mxu0
  %v7262 = vadd.f32 0.0, %v7261
  %v7263 = vpop.f32.mrb[0].mxu0
  %7264 = vmatprep.mubr.f32.mxu0 0.0
  %7265 = vmatmul.mubr.f32.gmra.mrb[0].mxu0 %v6920
  %v7266 = vpop.f32.mrb[0].mxu0
  %v7267 = vadd.f32 0.0, %v7266
  %v7268 = vpop.f32.mrb[0].mxu0
  %7269 = vmatprep.mubr.f32.mxu0 0.0
  %7270 = vmatmul.mubr.f32.gmra.mrb[0].mxu0 %v6923
  %v7271 = vpop.f32.mrb[0].mxu0
  %v7272 = vadd.f32 0.0, %v7271
  %v7273 = vpop.f32.mrb[0].mxu0
  %7274 = vmatprep.mubr.f32.mxu0 0.0
  %7275 = vmatmul.mubr.f32.gmra.mrb[0].mxu0 %v6926
  %v7276 = vpop.f32.mrb[0].mxu0
  %v7277 = vadd.f32 0.0, %v7276
  %v7278 = vpop.f32.mrb[0].mxu0
  %7279 = vmatprep.mubr.f32.mxu0 0.0
  %7280 = vmatmul.mubr.f32.gmra.mrb[0].mxu0 %v6929
  %v7281 = vpop.f32.mrb[0].mxu0
  %v7282 = vadd.f32 0.0, %v7281
  %v7283 = vpop.f32.mrb[0].mxu0
  %7284 = vmatprep.mubr.f32.mxu0 0.0
  %7285 = vmatmul.mubr.f32.gmra.mrb[0].mxu0 %v6932
  %v7286 = vpop.f32.mrb[0].mxu0
  %v7287 = vadd.f32 0.0, %v7286
  %v7288 = vpop.f32.mrb[0].mxu0
  %7289 = vmatprep.mubr.f32.mxu0 0.0
  %7290 = vmatmul.mubr.f32.gmra.mrb[0].mxu0 %v6935
  %v7291 = vpop.f32.mrb[0].mxu0
  %v7292 = vadd.f32 0.0, %v7291
  %v7293 = vpop.f32.mrb[0].mxu0
  %7294 = vmatprep.mubr.f32.mxu0 0.0
  %7295 = vmatmul.mubr.f32.gmra.mrb[0].mxu0 %v6938
  %v7296 = vpop.f32.mrb[0].mxu0
  %v7297 = vadd.f32 0.0, %v7296
  %v7298 = vpop.f32.mrb[0].mxu0
  %7299 = vmatprep.mubr.f32.mxu0 0.0
  %7300 = vmatmul.mubr.f32.gmra.mrb[0].mxu0 %v6941
  %v7301 = vpop.f32.mrb[0].mxu0
  %v7302 = vadd.f32 0.0, %v7301
  %v7303 = vpop.f32.mrb[0].mxu0
  %7304 = vmatprep.mubr.f32.mxu0 0.0
  %7305 = vmatmul.mubr.f32.gmra.mrb[0].mxu0 %v6944
  %v7306 = vpop.f32.mrb[0].mxu0
  %v7307 = vadd.f32 0.0, %v7306
  %v7308 = vpop.f32.mrb[0].mxu0
  %7309 = vmatprep.mubr.f32.mxu0 0.0
  %7310 = vmatmul.mubr.f32.gmra.mrb[0].mxu0 %v6947
  %v7311 = vpop.f32.mrb[0].mxu0
  %v7312 = vadd.f32 0.0, %v7311
  %v7313 = vpop.f32.mrb[0].mxu0
  %7314 = vmatprep.mubr.f32.mxu0 0.0
  %7315 = vmatmul.mubr.f32.gmra.mrb[0].mxu0 %v6950
  %v7316 = vpop.f32.mrb[0].mxu0
  %v7317 = vadd.f32 0.0, %v7316
  %v7318 = vpop.f32.mrb[0].mxu0
  %7319 = vmatprep.mubr.f32.mxu0 0.0
  %7320 = vmatmul.mubr.f32.gmra.mrb[0].mxu0 %v6953
  %v7321 = vpop.f32.mrb[0].mxu0
  %v7322 = vadd.f32 0.0, %v7321
  %v7323 = vpop.f32.mrb[0].mxu0
  %7324 = vmatprep.mubr.f32.mxu0 0.0
  %7325 = vmatmul.mubr.f32.gmra.mrb[0].mxu0 %v6956
  %v7326 = vpop.f32.mrb[0].mxu0
  %v7327 = vadd.f32 0.0, %v7326
  %v7328 = vpop.f32.mrb[0].mxu0
  %7329 = vmatprep.mubr.f32.mxu0 0.0
  %7330 = vmatmul.mubr.f32.gmra.mrb[0].mxu0 %v6959
  %v7331 = vpop.f32.mrb[0].mxu0
  %v7332 = vadd.f32 0.0, %v7331
  %v7333 = vpop.f32.mrb[0].mxu0
  %7334 = vmatprep.mubr.f32.mxu0 0.0
  %7335 = vmatmul.mubr.f32.gmra.mrb[0].mxu0 %v6962
  %v7336 = vpop.f32.mrb[0].mxu0
  %v7337 = vadd.f32 0.0, %v7336
  %v7338 = vpop.f32.mrb[0].mxu0
  %7339 = vmatprep.mubr.f32.mxu0 0.0
  %7340 = vmatmul.mubr.f32.gmra.mrb[0].mxu0 %v6965
  %v7341 = vpop.f32.mrb[0].mxu0
  %v7342 = vadd.f32 0.0, %v7341
  %v7343 = vpop.f32.mrb[0].mxu0
  %7344 = vmatprep.mubr.f32.mxu0 0.0
  %7345 = vmatmul.mubr.f32.gmra.mrb[0].mxu0 %v6968
  %v7346 = vpop.f32.mrb[0].mxu0
  %v7347 = vadd.f32 0.0, %v7346
  %v7348 = vpop.f32.mrb[0].mxu0
  %7349 = vmatprep.mubr.f32.mxu0 0.0
  %7350 = vmatmul.mubr.f32.gmra.mrb[0].mxu0 %v6971
  %v7351 = vpop.f32.mrb[0].mxu0
  %v7352 = vadd.f32 0.0, %v7351
  %v7353 = vpop.f32.mrb[0].mxu0
  %7354 = vmatprep.mubr.f32.mxu0 0.0
  %7355 = vmatmul.mubr.f32.gmra.mrb[0].mxu0 %v6974
  %v7356 = vpop.f32.mrb[0].mxu0
  %v7357 = vadd.f32 0.0, %v7356
  %v7358 = vpop.f32.mrb[0].mxu0
  %7359 = vmatprep.mubr.f32.mxu0 0.0
  %7360 = vmatmul.mubr.f32.gmra.mrb[0].mxu0 %v6977
  %v7361 = vpop.f32.mrb[0].mxu0
  %v7362 = vadd.f32 0.0, %v7361
  %v7363 = vpop.f32.mrb[0].mxu0
  %7364 = vmatprep.mubr.f32.mxu0 0.0
  %7365 = vmatmul.mubr.f32.gmra.mrb[0].mxu0 %v6980
  %v7366 = vpop.f32.mrb[0].mxu0
  %v7367 = vadd.f32 0.0, %v7366
  %v7368 = vpop.f32.mrb[0].mxu0
  %7369 = vdwg.mxu0
  %v7370 = vsel %vm26, %v7052, 0.0
  %v7371 = vsel %vm26, %v7057, 0.0
  %v7372 = vadd.f32 %v7370, %v7371
  %v7373 = vsel %vm26, %v7062, 0.0
  %v7374 = vadd.f32 %v7372, %v7373
  %v7375 = vsel %vm26, %v7067, 0.0
  %v7376 = vadd.f32 %v7374, %v7375
  %v7377 = vsel %vm26, %v7072, 0.0
  %v7378 = vadd.f32 %v7376, %v7377
  %v7379 = vsel %vm26, %v7077, 0.0
  %v7380 = vadd.f32 %v7378, %v7379
  %v7381 = vsel %vm26, %v7082, 0.0
  %v7382 = vadd.f32 %v7380, %v7381
  %v7383 = vsel %vm26, %v7087, 0.0
  %v7384 = vadd.f32 %v7382, %v7383
  %v7385 = vsel %vm26, %v7092, 0.0
  %v7386 = vadd.f32 %v7384, %v7385
  %v7387 = vsel %vm26, %v7097, 0.0
  %v7388 = vadd.f32 %v7386, %v7387
  %v7389 = vsel %vm26, %v7102, 0.0
  %v7390 = vadd.f32 %v7388, %v7389
  %v7391 = vsel %vm26, %v7107, 0.0
  %v7392 = vadd.f32 %v7390, %v7391
  %v7393 = vsel %vm26, %v7112, 0.0
  %v7394 = vadd.f32 %v7392, %v7393
  %v7395 = vsel %vm26, %v7117, 0.0
  %v7396 = vadd.f32 %v7394, %v7395
  %v7397 = vsel %vm26, %v7122, 0.0
  %v7398 = vadd.f32 %v7396, %v7397
  %v7399 = vsel %vm26, %v7127, 0.0
  %v7400 = vadd.f32 %v7398, %v7399
  %v7401 = vsel %vm26, %v7132, 0.0
  %v7402 = vadd.f32 %v7400, %v7401
  %v7403 = vsel %vm26, %v7137, 0.0
  %v7404 = vadd.f32 %v7402, %v7403
  %v7405 = vsel %vm26, %v7142, 0.0
  %v7406 = vadd.f32 %v7404, %v7405
  %v7407 = vsel %vm26, %v7147, 0.0
  %v7408 = vadd.f32 %v7406, %v7407
  %v7409 = vsel %vm26, %v7152, 0.0
  %v7410 = vadd.f32 %v7408, %v7409
  %v7411 = vsel %vm26, %v7157, 0.0
  %v7412 = vadd.f32 %v7410, %v7411
  %v7413 = vsel %vm26, %v7162, 0.0
  %v7414 = vadd.f32 %v7412, %v7413
  %v7415 = vsel %vm26, %v7167, 0.0
  %v7416 = vadd.f32 %v7414, %v7415
  %v7417 = vsel %vm26, %v7172, 0.0
  %v7418 = vadd.f32 %v7416, %v7417
  %v7419 = vsel %vm26, %v7177, 0.0
  %v7420 = vadd.f32 %v7418, %v7419
  %v7421 = vsel %vm26, %v7182, 0.0
  %v7422 = vadd.f32 %v7420, %v7421
  %v7423 = vsel %vm26, %v7187, 0.0
  %v7424 = vadd.f32 %v7422, %v7423
  %v7425 = vsel %vm26, %v7192, 0.0
  %v7426 = vadd.f32 %v7424, %v7425
  %v7427 = vsel %vm26, %v7197, 0.0
  %v7428 = vadd.f32 %v7426, %v7427
  %v7429 = vsel %vm26, %v7202, 0.0
  %v7430 = vadd.f32 %v7428, %v7429
  %v7431 = vsel %vm26, %v7207, 0.0
  %v7432 = vadd.f32 %v7430, %v7431
  %v7433 = vsel %vm26, %v7212, 0.0
  %v7434 = vadd.f32 %v7432, %v7433
  %v7435 = vsel %vm26, %v7217, 0.0
  %v7436 = vadd.f32 %v7434, %v7435
  %v7437 = vsel %vm26, %v7222, 0.0
  %v7438 = vadd.f32 %v7436, %v7437
  %v7439 = vsel %vm26, %v7227, 0.0
  %v7440 = vadd.f32 %v7438, %v7439
  %v7441 = vsel %vm26, %v7232, 0.0
  %v7442 = vadd.f32 %v7440, %v7441
  %v7443 = vsel %vm26, %v7237, 0.0
  %v7444 = vadd.f32 %v7442, %v7443
  %v7445 = vsel %vm26, %v7242, 0.0
  %v7446 = vadd.f32 %v7444, %v7445
  %v7447 = vsel %vm26, %v7247, 0.0
  %v7448 = vadd.f32 %v7446, %v7447
  %v7449 = vsel %vm26, %v7252, 0.0
  %v7450 = vadd.f32 %v7448, %v7449
  %v7451 = vsel %vm26, %v7257, 0.0
  %v7452 = vadd.f32 %v7450, %v7451
  %v7453 = vsel %vm26, %v7262, 0.0
  %v7454 = vadd.f32 %v7452, %v7453
  %v7455 = vsel %vm26, %v7267, 0.0
  %v7456 = vadd.f32 %v7454, %v7455
  %v7457 = vsel %vm26, %v7272, 0.0
  %v7458 = vadd.f32 %v7456, %v7457
  %v7459 = vsel %vm26, %v7277, 0.0
  %v7460 = vadd.f32 %v7458, %v7459
  %v7461 = vsel %vm26, %v7282, 0.0
  %v7462 = vadd.f32 %v7460, %v7461
  %v7463 = vsel %vm26, %v7287, 0.0
  %v7464 = vadd.f32 %v7462, %v7463
  %v7465 = vsel %vm26, %v7292, 0.0
  %v7466 = vadd.f32 %v7464, %v7465
  %v7467 = vsel %vm26, %v7297, 0.0
  %v7468 = vadd.f32 %v7466, %v7467
  %v7469 = vsel %vm26, %v7302, 0.0
  %v7470 = vadd.f32 %v7468, %v7469
  %v7471 = vsel %vm26, %v7307, 0.0
  %v7472 = vadd.f32 %v7470, %v7471
  %v7473 = vsel %vm26, %v7312, 0.0
  %v7474 = vadd.f32 %v7472, %v7473
  %v7475 = vsel %vm26, %v7317, 0.0
  %v7476 = vadd.f32 %v7474, %v7475
  %v7477 = vsel %vm26, %v7322, 0.0
  %v7478 = vadd.f32 %v7476, %v7477
  %v7479 = vsel %vm26, %v7327, 0.0
  %v7480 = vadd.f32 %v7478, %v7479
  %v7481 = vsel %vm26, %v7332, 0.0
  %v7482 = vadd.f32 %v7480, %v7481
  %v7483 = vsel %vm26, %v7337, 0.0
  %v7484 = vadd.f32 %v7482, %v7483
  %v7485 = vsel %vm26, %v7342, 0.0
  %v7486 = vadd.f32 %v7484, %v7485
  %v7487 = vsel %vm26, %v7347, 0.0
  %v7488 = vadd.f32 %v7486, %v7487
  %v7489 = vsel %vm26, %v7352, 0.0
  %v7490 = vadd.f32 %v7488, %v7489
  %v7491 = vsel %vm26, %v7357, 0.0
  %v7492 = vadd.f32 %v7490, %v7491
  %v7493 = vsel %vm26, %v7362, 0.0
  %v7494 = vadd.f32 %v7492, %v7493
  %v7495 = vsel %vm26, %v7367, 0.0
  %v7496 = vadd.f32 %v7494, %v7495
  %v7497 = vrot.slane %v7496, 4
  %v7498 = vadd.f32 %v7496, %v7497
  %v7499 = vrot.slane %v7498, 2
  %v7500 = vadd.f32 %v7498, %v7499
  %v7501 = vrot.slane %v7500, 1
  %v7502 = vadd.f32 %v7500, %v7501
  %v7503 = vmul.f32 %v7502, 0.001953125
  %v7504 = vmul.f32 %v7052, %v7052
  %v7505 = vmul.f32 %v7057, %v7057
  %v7506 = vmul.f32 %v7062, %v7062
  %v7507 = vmul.f32 %v7067, %v7067
  %v7508 = vmul.f32 %v7072, %v7072
  %v7509 = vmul.f32 %v7077, %v7077
  %v7510 = vmul.f32 %v7082, %v7082
  %v7511 = vmul.f32 %v7087, %v7087
  %v7512 = vmul.f32 %v7092, %v7092
  %v7513 = vmul.f32 %v7097, %v7097
  %v7514 = vmul.f32 %v7102, %v7102
  %v7515 = vmul.f32 %v7107, %v7107
  %v7516 = vmul.f32 %v7112, %v7112
  %v7517 = vmul.f32 %v7117, %v7117
  %v7518 = vmul.f32 %v7122, %v7122
  %v7519 = vmul.f32 %v7127, %v7127
  %v7520 = vmul.f32 %v7132, %v7132
  %v7521 = vmul.f32 %v7137, %v7137
  %v7522 = vmul.f32 %v7142, %v7142
  %v7523 = vmul.f32 %v7147, %v7147
  %v7524 = vmul.f32 %v7152, %v7152
  %v7525 = vmul.f32 %v7157, %v7157
  %v7526 = vmul.f32 %v7162, %v7162
  %v7527 = vmul.f32 %v7167, %v7167
  %v7528 = vmul.f32 %v7172, %v7172
  %v7529 = vmul.f32 %v7177, %v7177
  %v7530 = vmul.f32 %v7182, %v7182
  %v7531 = vmul.f32 %v7187, %v7187
  %v7532 = vmul.f32 %v7192, %v7192
  %v7533 = vmul.f32 %v7197, %v7197
  %v7534 = vmul.f32 %v7202, %v7202
  %v7535 = vmul.f32 %v7207, %v7207
  %v7536 = vmul.f32 %v7212, %v7212
  %v7537 = vmul.f32 %v7217, %v7217
  %v7538 = vmul.f32 %v7222, %v7222
  %v7539 = vmul.f32 %v7227, %v7227
  %v7540 = vmul.f32 %v7232, %v7232
  %v7541 = vmul.f32 %v7237, %v7237
  %v7542 = vmul.f32 %v7242, %v7242
  %v7543 = vmul.f32 %v7247, %v7247
  %v7544 = vmul.f32 %v7252, %v7252
  %v7545 = vmul.f32 %v7257, %v7257
  %v7546 = vmul.f32 %v7262, %v7262
  %v7547 = vmul.f32 %v7267, %v7267
  %v7548 = vmul.f32 %v7272, %v7272
  %v7549 = vmul.f32 %v7277, %v7277
  %v7550 = vmul.f32 %v7282, %v7282
  %v7551 = vmul.f32 %v7287, %v7287
  %v7552 = vmul.f32 %v7292, %v7292
  %v7553 = vmul.f32 %v7297, %v7297
  %v7554 = vmul.f32 %v7302, %v7302
  %v7555 = vmul.f32 %v7307, %v7307
  %v7556 = vmul.f32 %v7312, %v7312
  %v7557 = vmul.f32 %v7317, %v7317
  %v7558 = vmul.f32 %v7322, %v7322
  %v7559 = vmul.f32 %v7327, %v7327
  %v7560 = vmul.f32 %v7332, %v7332
  %v7561 = vmul.f32 %v7337, %v7337
  %v7562 = vmul.f32 %v7342, %v7342
  %v7563 = vmul.f32 %v7347, %v7347
  %v7564 = vmul.f32 %v7352, %v7352
  %v7565 = vmul.f32 %v7357, %v7357
  %v7566 = vmul.f32 %v7362, %v7362
  %v7567 = vmul.f32 %v7367, %v7367
  %v7568 = vsel %vm26, %v7504, 0.0
  %v7569 = vsel %vm26, %v7505, 0.0
  %v7570 = vadd.f32 %v7568, %v7569
  %v7571 = vsel %vm26, %v7506, 0.0
  %v7572 = vadd.f32 %v7570, %v7571
  %v7573 = vsel %vm26, %v7507, 0.0
  %v7574 = vadd.f32 %v7572, %v7573
  %v7575 = vsel %vm26, %v7508, 0.0
  %v7576 = vadd.f32 %v7574, %v7575
  %v7577 = vsel %vm26, %v7509, 0.0
  %v7578 = vadd.f32 %v7576, %v7577
  %v7579 = vsel %vm26, %v7510, 0.0
  %v7580 = vadd.f32 %v7578, %v7579
  %v7581 = vsel %vm26, %v7511, 0.0
  %v7582 = vadd.f32 %v7580, %v7581
  %v7583 = vsel %vm26, %v7512, 0.0
  %v7584 = vadd.f32 %v7582, %v7583
  %v7585 = vsel %vm26, %v7513, 0.0
  %v7586 = vadd.f32 %v7584, %v7585
  %v7587 = vsel %vm26, %v7514, 0.0
  %v7588 = vadd.f32 %v7586, %v7587
  %v7589 = vsel %vm26, %v7515, 0.0
  %v7590 = vadd.f32 %v7588, %v7589
  %v7591 = vsel %vm26, %v7516, 0.0
  %v7592 = vadd.f32 %v7590, %v7591
  %v7593 = vsel %vm26, %v7517, 0.0
  %v7594 = vadd.f32 %v7592, %v7593
  %v7595 = vsel %vm26, %v7518, 0.0
  %v7596 = vadd.f32 %v7594, %v7595
  %v7597 = vsel %vm26, %v7519, 0.0
  %v7598 = vadd.f32 %v7596, %v7597
  %v7599 = vsel %vm26, %v7520, 0.0
  %v7600 = vadd.f32 %v7598, %v7599
  %v7601 = vsel %vm26, %v7521, 0.0
  %v7602 = vadd.f32 %v7600, %v7601
  %v7603 = vsel %vm26, %v7522, 0.0
  %v7604 = vadd.f32 %v7602, %v7603
  %v7605 = vsel %vm26, %v7523, 0.0
  %v7606 = vadd.f32 %v7604, %v7605
  %v7607 = vsel %vm26, %v7524, 0.0
  %v7608 = vadd.f32 %v7606, %v7607
  %v7609 = vsel %vm26, %v7525, 0.0
  %v7610 = vadd.f32 %v7608, %v7609
  %v7611 = vsel %vm26, %v7526, 0.0
  %v7612 = vadd.f32 %v7610, %v7611
  %v7613 = vsel %vm26, %v7527, 0.0
  %v7614 = vadd.f32 %v7612, %v7613
  %v7615 = vsel %vm26, %v7528, 0.0
  %v7616 = vadd.f32 %v7614, %v7615
  %v7617 = vsel %vm26, %v7529, 0.0
  %v7618 = vadd.f32 %v7616, %v7617
  %v7619 = vsel %vm26, %v7530, 0.0
  %v7620 = vadd.f32 %v7618, %v7619
  %v7621 = vsel %vm26, %v7531, 0.0
  %v7622 = vadd.f32 %v7620, %v7621
  %v7623 = vsel %vm26, %v7532, 0.0
  %v7624 = vadd.f32 %v7622, %v7623
  %v7625 = vsel %vm26, %v7533, 0.0
  %v7626 = vadd.f32 %v7624, %v7625
  %v7627 = vsel %vm26, %v7534, 0.0
  %v7628 = vadd.f32 %v7626, %v7627
  %v7629 = vsel %vm26, %v7535, 0.0
  %v7630 = vadd.f32 %v7628, %v7629
  %v7631 = vsel %vm26, %v7536, 0.0
  %v7632 = vadd.f32 %v7630, %v7631
  %v7633 = vsel %vm26, %v7537, 0.0
  %v7634 = vadd.f32 %v7632, %v7633
  %v7635 = vsel %vm26, %v7538, 0.0
  %v7636 = vadd.f32 %v7634, %v7635
  %v7637 = vsel %vm26, %v7539, 0.0
  %v7638 = vadd.f32 %v7636, %v7637
  %v7639 = vsel %vm26, %v7540, 0.0
  %v7640 = vadd.f32 %v7638, %v7639
  %v7641 = vsel %vm26, %v7541, 0.0
  %v7642 = vadd.f32 %v7640, %v7641
  %v7643 = vsel %vm26, %v7542, 0.0
  %v7644 = vadd.f32 %v7642, %v7643
  %v7645 = vsel %vm26, %v7543, 0.0
  %v7646 = vadd.f32 %v7644, %v7645
  %v7647 = vsel %vm26, %v7544, 0.0
  %v7648 = vadd.f32 %v7646, %v7647
  %v7649 = vsel %vm26, %v7545, 0.0
  %v7650 = vadd.f32 %v7648, %v7649
  %v7651 = vsel %vm26, %v7546, 0.0
  %v7652 = vadd.f32 %v7650, %v7651
  %v7653 = vsel %vm26, %v7547, 0.0
  %v7654 = vadd.f32 %v7652, %v7653
  %v7655 = vsel %vm26, %v7548, 0.0
  %v7656 = vadd.f32 %v7654, %v7655
  %v7657 = vsel %vm26, %v7549, 0.0
  %v7658 = vadd.f32 %v7656, %v7657
  %v7659 = vsel %vm26, %v7550, 0.0
  %v7660 = vadd.f32 %v7658, %v7659
  %v7661 = vsel %vm26, %v7551, 0.0
  %v7662 = vadd.f32 %v7660, %v7661
  %v7663 = vsel %vm26, %v7552, 0.0
  %v7664 = vadd.f32 %v7662, %v7663
  %v7665 = vsel %vm26, %v7553, 0.0
  %v7666 = vadd.f32 %v7664, %v7665
  %v7667 = vsel %vm26, %v7554, 0.0
  %v7668 = vadd.f32 %v7666, %v7667
  %v7669 = vsel %vm26, %v7555, 0.0
  %v7670 = vadd.f32 %v7668, %v7669
  %v7671 = vsel %vm26, %v7556, 0.0
  %v7672 = vadd.f32 %v7670, %v7671
  %v7673 = vsel %vm26, %v7557, 0.0
  %v7674 = vadd.f32 %v7672, %v7673
  %v7675 = vsel %vm26, %v7558, 0.0
  %v7676 = vadd.f32 %v7674, %v7675
  %v7677 = vsel %vm26, %v7559, 0.0
  %v7678 = vadd.f32 %v7676, %v7677
  %v7679 = vsel %vm26, %v7560, 0.0
  %v7680 = vadd.f32 %v7678, %v7679
  %v7681 = vsel %vm26, %v7561, 0.0
  %v7682 = vadd.f32 %v7680, %v7681
  %v7683 = vsel %vm26, %v7562, 0.0
  %v7684 = vadd.f32 %v7682, %v7683
  %v7685 = vsel %vm26, %v7563, 0.0
  %v7686 = vadd.f32 %v7684, %v7685
  %v7687 = vsel %vm26, %v7564, 0.0
  %v7688 = vadd.f32 %v7686, %v7687
  %v7689 = vsel %vm26, %v7565, 0.0
  %v7690 = vadd.f32 %v7688, %v7689
  %v7691 = vsel %vm26, %v7566, 0.0
  %v7692 = vadd.f32 %v7690, %v7691
  %v7693 = vsel %vm26, %v7567, 0.0
  %v7694 = vadd.f32 %v7692, %v7693
  %v7695 = vrot.slane %v7694, 4
  %v7696 = vadd.f32 %v7694, %v7695
  %v7697 = vrot.slane %v7696, 2
  %v7698 = vadd.f32 %v7696, %v7697
  %v7699 = vrot.slane %v7698, 1
  %v7700 = vadd.f32 %v7698, %v7699
  %v7701 = vmul.f32 %v7700, 0.001953125
  %v7702 = vmul.f32 %v7503, %v7503
  %v7703 = vsub.f32 %v7701, %v7702
  %v7704 = vmax.f32 %v7703, 0.0
  %v7705 = vadd.f32 %v7704, 1e-05
  %v7706 = vrsqrt.pop %v7705
  %v7707 = vmul.f32 %v4164, %v7706
  %v7708 = vmul.f32 %v7503, %v7707
  %v7709 = vsub.f32 %v4165, %v7708
  %v7711 = vlaneseq
  %v7712 = vshrl.u32 %v7711, 7
  %v7713 = vsub.s32 0, %v7712
  %v7714 = vrot.slane %v7707, %v7713
  %v7716 = vmul.f32 %v7052, %v7714
  %v7717 = vmul.f32 %v7057, %v7714
  %v7718 = vmul.f32 %v7062, %v7714
  %v7719 = vmul.f32 %v7067, %v7714
  %v7720 = vmul.f32 %v7072, %v7714
  %v7721 = vmul.f32 %v7077, %v7714
  %v7722 = vmul.f32 %v7082, %v7714
  %v7723 = vmul.f32 %v7087, %v7714
  %v7724 = vmul.f32 %v7092, %v7714
  %v7725 = vmul.f32 %v7097, %v7714
  %v7726 = vmul.f32 %v7102, %v7714
  %v7727 = vmul.f32 %v7107, %v7714
  %v7728 = vmul.f32 %v7112, %v7714
  %v7729 = vmul.f32 %v7117, %v7714
  %v7730 = vmul.f32 %v7122, %v7714
  %v7731 = vmul.f32 %v7127, %v7714
  %v7732 = vmul.f32 %v7132, %v7714
  %v7733 = vmul.f32 %v7137, %v7714
  %v7734 = vmul.f32 %v7142, %v7714
  %v7735 = vmul.f32 %v7147, %v7714
  %v7736 = vmul.f32 %v7152, %v7714
  %v7737 = vmul.f32 %v7157, %v7714
  %v7738 = vmul.f32 %v7162, %v7714
  %v7739 = vmul.f32 %v7167, %v7714
  %v7740 = vmul.f32 %v7172, %v7714
  %v7741 = vmul.f32 %v7177, %v7714
  %v7742 = vmul.f32 %v7182, %v7714
  %v7743 = vmul.f32 %v7187, %v7714
  %v7744 = vmul.f32 %v7192, %v7714
  %v7745 = vmul.f32 %v7197, %v7714
  %v7746 = vmul.f32 %v7202, %v7714
  %v7747 = vmul.f32 %v7207, %v7714
  %v7748 = vmul.f32 %v7212, %v7714
  %v7749 = vmul.f32 %v7217, %v7714
  %v7750 = vmul.f32 %v7222, %v7714
  %v7751 = vmul.f32 %v7227, %v7714
  %v7752 = vmul.f32 %v7232, %v7714
  %v7753 = vmul.f32 %v7237, %v7714
  %v7754 = vmul.f32 %v7242, %v7714
  %v7755 = vmul.f32 %v7247, %v7714
  %v7756 = vmul.f32 %v7252, %v7714
  %v7757 = vmul.f32 %v7257, %v7714
  %v7758 = vmul.f32 %v7262, %v7714
  %v7759 = vmul.f32 %v7267, %v7714
  %v7760 = vmul.f32 %v7272, %v7714
  %v7761 = vmul.f32 %v7277, %v7714
  %v7762 = vmul.f32 %v7282, %v7714
  %v7763 = vmul.f32 %v7287, %v7714
  %v7764 = vmul.f32 %v7292, %v7714
  %v7765 = vmul.f32 %v7297, %v7714
  %v7766 = vmul.f32 %v7302, %v7714
  %v7767 = vmul.f32 %v7307, %v7714
  %v7768 = vmul.f32 %v7312, %v7714
  %v7769 = vmul.f32 %v7317, %v7714
  %v7770 = vmul.f32 %v7322, %v7714
  %v7771 = vmul.f32 %v7327, %v7714
  %v7772 = vmul.f32 %v7332, %v7714
  %v7773 = vmul.f32 %v7337, %v7714
  %v7774 = vmul.f32 %v7342, %v7714
  %v7775 = vmul.f32 %v7347, %v7714
  %v7776 = vmul.f32 %v7352, %v7714
  %v7777 = vmul.f32 %v7357, %v7714
  %v7778 = vmul.f32 %v7362, %v7714
  %v7779 = vmul.f32 %v7367, %v7714
  %v7781 = vlaneseq
  %v7782 = vshrl.u32 %v7781, 7
  %v7783 = vsub.s32 0, %v7782
  %v7784 = vrot.slane %v7709, %v7783
  %v7786 = vadd.f32 %v7716, %v7784
  %v7787 = vadd.f32 %v7717, %v7784
  %v7788 = vadd.f32 %v7718, %v7784
  %v7789 = vadd.f32 %v7719, %v7784
  %v7790 = vadd.f32 %v7720, %v7784
  %v7791 = vadd.f32 %v7721, %v7784
  %v7792 = vadd.f32 %v7722, %v7784
  %v7793 = vadd.f32 %v7723, %v7784
  %v7794 = vadd.f32 %v7724, %v7784
  %v7795 = vadd.f32 %v7725, %v7784
  %v7796 = vadd.f32 %v7726, %v7784
  %v7797 = vadd.f32 %v7727, %v7784
  %v7798 = vadd.f32 %v7728, %v7784
  %v7799 = vadd.f32 %v7729, %v7784
  %v7800 = vadd.f32 %v7730, %v7784
  %v7801 = vadd.f32 %v7731, %v7784
  %v7802 = vadd.f32 %v7732, %v7784
  %v7803 = vadd.f32 %v7733, %v7784
  %v7804 = vadd.f32 %v7734, %v7784
  %v7805 = vadd.f32 %v7735, %v7784
  %v7806 = vadd.f32 %v7736, %v7784
  %v7807 = vadd.f32 %v7737, %v7784
  %v7808 = vadd.f32 %v7738, %v7784
  %v7809 = vadd.f32 %v7739, %v7784
  %v7810 = vadd.f32 %v7740, %v7784
  %v7811 = vadd.f32 %v7741, %v7784
  %v7812 = vadd.f32 %v7742, %v7784
  %v7813 = vadd.f32 %v7743, %v7784
  %v7814 = vadd.f32 %v7744, %v7784
  %v7815 = vadd.f32 %v7745, %v7784
  %v7816 = vadd.f32 %v7746, %v7784
  %v7817 = vadd.f32 %v7747, %v7784
  %v7818 = vadd.f32 %v7748, %v7784
  %v7819 = vadd.f32 %v7749, %v7784
  %v7820 = vadd.f32 %v7750, %v7784
  %v7821 = vadd.f32 %v7751, %v7784
  %v7822 = vadd.f32 %v7752, %v7784
  %v7823 = vadd.f32 %v7753, %v7784
  %v7824 = vadd.f32 %v7754, %v7784
  %v7825 = vadd.f32 %v7755, %v7784
  %v7826 = vadd.f32 %v7756, %v7784
  %v7827 = vadd.f32 %v7757, %v7784
  %v7828 = vadd.f32 %v7758, %v7784
  %v7829 = vadd.f32 %v7759, %v7784
  %v7830 = vadd.f32 %v7760, %v7784
  %v7831 = vadd.f32 %v7761, %v7784
  %v7832 = vadd.f32 %v7762, %v7784
  %v7833 = vadd.f32 %v7763, %v7784
  %v7834 = vadd.f32 %v7764, %v7784
  %v7835 = vadd.f32 %v7765, %v7784
  %v7836 = vadd.f32 %v7766, %v7784
  %v7837 = vadd.f32 %v7767, %v7784
  %v7838 = vadd.f32 %v7768, %v7784
  %v7839 = vadd.f32 %v7769, %v7784
  %v7840 = vadd.f32 %v7770, %v7784
  %v7841 = vadd.f32 %v7771, %v7784
  %v7842 = vadd.f32 %v7772, %v7784
  %v7843 = vadd.f32 %v7773, %v7784
  %v7844 = vadd.f32 %v7774, %v7784
  %v7845 = vadd.f32 %v7775, %v7784
  %v7846 = vadd.f32 %v7776, %v7784
  %v7847 = vadd.f32 %v7777, %v7784
  %v7848 = vadd.f32 %v7778, %v7784
  %v7849 = vadd.f32 %v7779, %v7784
  %v7850 = vmul.f32 %v7786, 0.01
  %v7851 = vmul.f32 %v7787, 0.01
  %v7852 = vmul.f32 %v7788, 0.01
  %v7853 = vmul.f32 %v7789, 0.01
  %v7854 = vmul.f32 %v7790, 0.01
  %v7855 = vmul.f32 %v7791, 0.01
  %v7856 = vmul.f32 %v7792, 0.01
  %v7857 = vmul.f32 %v7793, 0.01
  %v7858 = vmul.f32 %v7794, 0.01
  %v7859 = vmul.f32 %v7795, 0.01
  %v7860 = vmul.f32 %v7796, 0.01
  %v7861 = vmul.f32 %v7797, 0.01
  %v7862 = vmul.f32 %v7798, 0.01
  %v7863 = vmul.f32 %v7799, 0.01
  %v7864 = vmul.f32 %v7800, 0.01
  %v7865 = vmul.f32 %v7801, 0.01
  %v7866 = vmul.f32 %v7802, 0.01
  %v7867 = vmul.f32 %v7803, 0.01
  %v7868 = vmul.f32 %v7804, 0.01
  %v7869 = vmul.f32 %v7805, 0.01
  %v7870 = vmul.f32 %v7806, 0.01
  %v7871 = vmul.f32 %v7807, 0.01
  %v7872 = vmul.f32 %v7808, 0.01
  %v7873 = vmul.f32 %v7809, 0.01
  %v7874 = vmul.f32 %v7810, 0.01
  %v7875 = vmul.f32 %v7811, 0.01
  %v7876 = vmul.f32 %v7812, 0.01
  %v7877 = vmul.f32 %v7813, 0.01
  %v7878 = vmul.f32 %v7814, 0.01
  %v7879 = vmul.f32 %v7815, 0.01
  %v7880 = vmul.f32 %v7816, 0.01
  %v7881 = vmul.f32 %v7817, 0.01
  %v7882 = vmul.f32 %v7818, 0.01
  %v7883 = vmul.f32 %v7819, 0.01
  %v7884 = vmul.f32 %v7820, 0.01
  %v7885 = vmul.f32 %v7821, 0.01
  %v7886 = vmul.f32 %v7822, 0.01
  %v7887 = vmul.f32 %v7823, 0.01
  %v7888 = vmul.f32 %v7824, 0.01
  %v7889 = vmul.f32 %v7825, 0.01
  %v7890 = vmul.f32 %v7826, 0.01
  %v7891 = vmul.f32 %v7827, 0.01
  %v7892 = vmul.f32 %v7828, 0.01
  %v7893 = vmul.f32 %v7829, 0.01
  %v7894 = vmul.f32 %v7830, 0.01
  %v7895 = vmul.f32 %v7831, 0.01
  %v7896 = vmul.f32 %v7832, 0.01
  %v7897 = vmul.f32 %v7833, 0.01
  %v7898 = vmul.f32 %v7834, 0.01
  %v7899 = vmul.f32 %v7835, 0.01
  %v7900 = vmul.f32 %v7836, 0.01
  %v7901 = vmul.f32 %v7837, 0.01
  %v7902 = vmul.f32 %v7838, 0.01
  %v7903 = vmul.f32 %v7839, 0.01
  %v7904 = vmul.f32 %v7840, 0.01
  %v7905 = vmul.f32 %v7841, 0.01
  %v7906 = vmul.f32 %v7842, 0.01
  %v7907 = vmul.f32 %v7843, 0.01
  %v7908 = vmul.f32 %v7844, 0.01
  %v7909 = vmul.f32 %v7845, 0.01
  %v7910 = vmul.f32 %v7846, 0.01
  %v7911 = vmul.f32 %v7847, 0.01
  %v7912 = vmul.f32 %v7848, 0.01
  %v7913 = vmul.f32 %v7849, 0.01
  %v7914 = vmax.f32 %v7786, %v7850
  %v7915 = vmax.f32 %v7787, %v7851
  %v7916 = vmax.f32 %v7788, %v7852
  %v7917 = vmax.f32 %v7789, %v7853
  %v7918 = vmax.f32 %v7790, %v7854
  %v7919 = vmax.f32 %v7791, %v7855
  %v7920 = vmax.f32 %v7792, %v7856
  %v7921 = vmax.f32 %v7793, %v7857
  %v7922 = vmax.f32 %v7794, %v7858
  %v7923 = vmax.f32 %v7795, %v7859
  %v7924 = vmax.f32 %v7796, %v7860
  %v7925 = vmax.f32 %v7797, %v7861
  %v7926 = vmax.f32 %v7798, %v7862
  %v7927 = vmax.f32 %v7799, %v7863
  %v7928 = vmax.f32 %v7800, %v7864
  %v7929 = vmax.f32 %v7801, %v7865
  %v7930 = vmax.f32 %v7802, %v7866
  %v7931 = vmax.f32 %v7803, %v7867
  %v7932 = vmax.f32 %v7804, %v7868
  %v7933 = vmax.f32 %v7805, %v7869
  %v7934 = vmax.f32 %v7806, %v7870
  %v7935 = vmax.f32 %v7807, %v7871
  %v7936 = vmax.f32 %v7808, %v7872
  %v7937 = vmax.f32 %v7809, %v7873
  %v7938 = vmax.f32 %v7810, %v7874
  %v7939 = vmax.f32 %v7811, %v7875
  %v7940 = vmax.f32 %v7812, %v7876
  %v7941 = vmax.f32 %v7813, %v7877
  %v7942 = vmax.f32 %v7814, %v7878
  %v7943 = vmax.f32 %v7815, %v7879
  %v7944 = vmax.f32 %v7816, %v7880
  %v7945 = vmax.f32 %v7817, %v7881
  %v7946 = vmax.f32 %v7818, %v7882
  %v7947 = vmax.f32 %v7819, %v7883
  %v7948 = vmax.f32 %v7820, %v7884
  %v7949 = vmax.f32 %v7821, %v7885
  %v7950 = vmax.f32 %v7822, %v7886
  %v7951 = vmax.f32 %v7823, %v7887
  %v7952 = vmax.f32 %v7824, %v7888
  %v7953 = vmax.f32 %v7825, %v7889
  %v7954 = vmax.f32 %v7826, %v7890
  %v7955 = vmax.f32 %v7827, %v7891
  %v7956 = vmax.f32 %v7828, %v7892
  %v7957 = vmax.f32 %v7829, %v7893
  %v7958 = vmax.f32 %v7830, %v7894
  %v7959 = vmax.f32 %v7831, %v7895
  %v7960 = vmax.f32 %v7832, %v7896
  %v7961 = vmax.f32 %v7833, %v7897
  %v7962 = vmax.f32 %v7834, %v7898
  %v7963 = vmax.f32 %v7835, %v7899
  %v7964 = vmax.f32 %v7836, %v7900
  %v7965 = vmax.f32 %v7837, %v7901
  %v7966 = vmax.f32 %v7838, %v7902
  %v7967 = vmax.f32 %v7839, %v7903
  %v7968 = vmax.f32 %v7840, %v7904
  %v7969 = vmax.f32 %v7841, %v7905
  %v7970 = vmax.f32 %v7842, %v7906
  %v7971 = vmax.f32 %v7843, %v7907
  %v7972 = vmax.f32 %v7844, %v7908
  %v7973 = vmax.f32 %v7845, %v7909
  %v7974 = vmax.f32 %v7846, %v7910
  %v7975 = vmax.f32 %v7847, %v7911
  %v7976 = vmax.f32 %v7848, %v7912
  %v7977 = vmax.f32 %v7849, %v7913
  %v7978 = vadd.f32 %v7914, %v136
  %v7979 = vadd.f32 %v7915, %v137
  %v7980 = vadd.f32 %v7916, %v138
  %v7981 = vadd.f32 %v7917, %v139
  %v7982 = vadd.f32 %v7918, %v140
  %v7983 = vadd.f32 %v7919, %v141
  %v7984 = vadd.f32 %v7920, %v142
  %v7985 = vadd.f32 %v7921, %v143
  %v7986 = vadd.f32 %v7922, %v144
  %v7987 = vadd.f32 %v7923, %v145
  %v7988 = vadd.f32 %v7924, %v146
  %v7989 = vadd.f32 %v7925, %v147
  %v7990 = vadd.f32 %v7926, %v148
  %v7991 = vadd.f32 %v7927, %v149
  %v7992 = vadd.f32 %v7928, %v150
  %v7993 = vadd.f32 %v7929, %v151
  %v7994 = vadd.f32 %v7930, %v152
  %v7995 = vadd.f32 %v7931, %v153
  %v7996 = vadd.f32 %v7932, %v154
  %v7997 = vadd.f32 %v7933, %v155
  %v7998 = vadd.f32 %v7934, %v156
  %v7999 = vadd.f32 %v7935, %v157
  %v8000 = vadd.f32 %v7936, %v158
  %v8001 = vadd.f32 %v7937, %v159
  %v8002 = vadd.f32 %v7938, %v160
  %v8003 = vadd.f32 %v7939, %v161
  %v8004 = vadd.f32 %v7940, %v162
  %v8005 = vadd.f32 %v7941, %v163
  %v8006 = vadd.f32 %v7942, %v164
  %v8007 = vadd.f32 %v7943, %v165
  %v8008 = vadd.f32 %v7944, %v166
  %v8009 = vadd.f32 %v7945, %v167
  %v8010 = vadd.f32 %v7946, %v168
  %v8011 = vadd.f32 %v7947, %v169
  %v8012 = vadd.f32 %v7948, %v170
  %v8013 = vadd.f32 %v7949, %v171
  %v8014 = vadd.f32 %v7950, %v172
  %v8015 = vadd.f32 %v7951, %v173
  %v8016 = vadd.f32 %v7952, %v174
  %v8017 = vadd.f32 %v7953, %v175
  %v8018 = vadd.f32 %v7954, %v176
  %v8019 = vadd.f32 %v7955, %v177
  %v8020 = vadd.f32 %v7956, %v178
  %v8021 = vadd.f32 %v7957, %v179
  %v8022 = vadd.f32 %v7958, %v180
  %v8023 = vadd.f32 %v7959, %v181
  %v8024 = vadd.f32 %v7960, %v182
  %v8025 = vadd.f32 %v7961, %v183
  %v8026 = vadd.f32 %v7962, %v184
  %v8027 = vadd.f32 %v7963, %v185
  %v8028 = vadd.f32 %v7964, %v186
  %v8029 = vadd.f32 %v7965, %v187
  %v8030 = vadd.f32 %v7966, %v188
  %v8031 = vadd.f32 %v7967, %v189
  %v8032 = vadd.f32 %v7968, %v190
  %v8033 = vadd.f32 %v7969, %v191
  %v8034 = vadd.f32 %v7970, %v192
  %v8035 = vadd.f32 %v7971, %v193
  %v8036 = vadd.f32 %v7972, %v194
  %v8037 = vadd.f32 %v7973, %v195
  %v8038 = vadd.f32 %v7974, %v196
  %v8039 = vadd.f32 %v7975, %v197
  %v8040 = vadd.f32 %v7976, %v198
  %v8041 = vadd.f32 %v7977, %v199
  %8042 = vst.msk [vmem:[%s7] sm:$0xff] %vm26, %v7978
  %8043 = vst.msk [vmem:[%s7 + $0x8] sm:$0xff] %vm26, %v7979
  %8044 = vst.msk [vmem:[%s7 + $0x10] sm:$0xff] %vm26, %v7980
  %8045 = vst.msk [vmem:[%s7 + $0x18] sm:$0xff] %vm26, %v7981
  %8046 = vst.msk [vmem:[%s7 + $0x20] sm:$0xff] %vm26, %v7982
  %8047 = vst.msk [vmem:[%s7 + $0x28] sm:$0xff] %vm26, %v7983
  %8048 = vst.msk [vmem:[%s7 + $0x30] sm:$0xff] %vm26, %v7984
  %8049 = vst.msk [vmem:[%s7 + $0x38] sm:$0xff] %vm26, %v7985
  %8050 = vst.msk [vmem:[%s7 + $0x40] sm:$0xff] %vm26, %v7986
  %8051 = vst.msk [vmem:[%s7 + $0x48] sm:$0xff] %vm26, %v7987
  %8052 = vst.msk [vmem:[%s7 + $0x50] sm:$0xff] %vm26, %v7988
  %8053 = vst.msk [vmem:[%s7 + $0x58] sm:$0xff] %vm26, %v7989
  %8054 = vst.msk [vmem:[%s7 + $0x60] sm:$0xff] %vm26, %v7990
  %8055 = vst.msk [vmem:[%s7 + $0x68] sm:$0xff] %vm26, %v7991
  %8056 = vst.msk [vmem:[%s7 + $0x70] sm:$0xff] %vm26, %v7992
  %8057 = vst.msk [vmem:[%s7 + $0x78] sm:$0xff] %vm26, %v7993
  %8058 = vst.msk [vmem:[%s7 + $0x80] sm:$0xff] %vm26, %v7994
  %8059 = vst.msk [vmem:[%s7 + $0x88] sm:$0xff] %vm26, %v7995
  %8060 = vst.msk [vmem:[%s7 + $0x90] sm:$0xff] %vm26, %v7996
  %8061 = vst.msk [vmem:[%s7 + $0x98] sm:$0xff] %vm26, %v7997
  %8062 = vst.msk [vmem:[%s7 + $0xa0] sm:$0xff] %vm26, %v7998
  %8063 = vst.msk [vmem:[%s7 + $0xa8] sm:$0xff] %vm26, %v7999
  %8064 = vst.msk [vmem:[%s7 + $0xb0] sm:$0xff] %vm26, %v8000
  %8065 = vst.msk [vmem:[%s7 + $0xb8] sm:$0xff] %vm26, %v8001
  %8066 = vst.msk [vmem:[%s7 + $0xc0] sm:$0xff] %vm26, %v8002
  %8067 = vst.msk [vmem:[%s7 + $0xc8] sm:$0xff] %vm26, %v8003
  %8068 = vst.msk [vmem:[%s7 + $0xd0] sm:$0xff] %vm26, %v8004
  %8069 = vst.msk [vmem:[%s7 + $0xd8] sm:$0xff] %vm26, %v8005
  %8070 = vst.msk [vmem:[%s7 + $0xe0] sm:$0xff] %vm26, %v8006
  %8071 = vst.msk [vmem:[%s7 + $0xe8] sm:$0xff] %vm26, %v8007
  %8072 = vst.msk [vmem:[%s7 + $0xf0] sm:$0xff] %vm26, %v8008
  %8073 = vst.msk [vmem:[%s7 + $0xf8] sm:$0xff] %vm26, %v8009
  %8074 = vst.msk [vmem:[%s7 + $0x100] sm:$0xff] %vm26, %v8010
  %8075 = vst.msk [vmem:[%s7 + $0x108] sm:$0xff] %vm26, %v8011
  %8076 = vst.msk [vmem:[%s7 + $0x110] sm:$0xff] %vm26, %v8012
  %8077 = vst.msk [vmem:[%s7 + $0x118] sm:$0xff] %vm26, %v8013
  %8078 = vst.msk [vmem:[%s7 + $0x120] sm:$0xff] %vm26, %v8014
  %8079 = vst.msk [vmem:[%s7 + $0x128] sm:$0xff] %vm26, %v8015
  %8080 = vst.msk [vmem:[%s7 + $0x130] sm:$0xff] %vm26, %v8016
  %8081 = vst.msk [vmem:[%s7 + $0x138] sm:$0xff] %vm26, %v8017
  %8082 = vst.msk [vmem:[%s7 + $0x140] sm:$0xff] %vm26, %v8018
  %8083 = vst.msk [vmem:[%s7 + $0x148] sm:$0xff] %vm26, %v8019
  %8084 = vst.msk [vmem:[%s7 + $0x150] sm:$0xff] %vm26, %v8020
  %8085 = vst.msk [vmem:[%s7 + $0x158] sm:$0xff] %vm26, %v8021
  %8086 = vst.msk [vmem:[%s7 + $0x160] sm:$0xff] %vm26, %v8022
  %8087 = vst.msk [vmem:[%s7 + $0x168] sm:$0xff] %vm26, %v8023
  %8088 = vst.msk [vmem:[%s7 + $0x170] sm:$0xff] %vm26, %v8024
  %8089 = vst.msk [vmem:[%s7 + $0x178] sm:$0xff] %vm26, %v8025
  %8090 = vst.msk [vmem:[%s7 + $0x180] sm:$0xff] %vm26, %v8026
  %8091 = vst.msk [vmem:[%s7 + $0x188] sm:$0xff] %vm26, %v8027
  %8092 = vst.msk [vmem:[%s7 + $0x190] sm:$0xff] %vm26, %v8028
  %8093 = vst.msk [vmem:[%s7 + $0x198] sm:$0xff] %vm26, %v8029
  %8094 = vst.msk [vmem:[%s7 + $0x1a0] sm:$0xff] %vm26, %v8030
  %8095 = vst.msk [vmem:[%s7 + $0x1a8] sm:$0xff] %vm26, %v8031
  %8096 = vst.msk [vmem:[%s7 + $0x1b0] sm:$0xff] %vm26, %v8032
  %8097 = vst.msk [vmem:[%s7 + $0x1b8] sm:$0xff] %vm26, %v8033
  %8098 = vst.msk [vmem:[%s7 + $0x1c0] sm:$0xff] %vm26, %v8034
  %8099 = vst.msk [vmem:[%s7 + $0x1c8] sm:$0xff] %vm26, %v8035
  %8100 = vst.msk [vmem:[%s7 + $0x1d0] sm:$0xff] %vm26, %v8036
  %8101 = vst.msk [vmem:[%s7 + $0x1d8] sm:$0xff] %vm26, %v8037
  %8102 = vst.msk [vmem:[%s7 + $0x1e0] sm:$0xff] %vm26, %v8038
  %8103 = vst.msk [vmem:[%s7 + $0x1e8] sm:$0xff] %vm26, %v8039
  %8104 = vst.msk [vmem:[%s7 + $0x1f0] sm:$0xff] %vm26, %v8040
  %8105 = vst.msk [vmem:[%s7 + $0x1f8] sm:$0xff] %vm26, %v8041
  // Predicated region
  $region30: #{dconv2_forward.1} parent=0 // pred_check
    _
  $region31: #{dconv2_forward.1} parent=0 // pred_check_branch
    %8107 = sbr.rel (0) target = $region33
  $region32: #{dconv2_forward.1} parent=0 // pred_region
    _
  $region33: #{dconv2_forward.1} parent=0 // pred_fallthru
    _
  // Predicated region
  $region34: #{dconv2_forward.1} parent=0 // pred_check
    _
  $region35: #{dconv2_forward.1} parent=0 // pred_check_branch
    %8109 = sbr.rel (0) target = $region37
  $region36: #{dconv2_forward.1} parent=0 // pred_region
    _
  $region37: #{dconv2_forward.1} parent=0 // pred_fallthru
    _

</llo_original>
